<compile_context>
chip_gen: v5e
topology: v5e:2x2
jax: 0.10.0
libtpu: 0.0.40
codegen_flags: <defaults>
</compile_context>

<pallas_src>
import functools

import jax
import jax.numpy as jnp
from jax import lax
from jax.experimental import pallas as pl
from jax.experimental.pallas import tpu as pltpu

PATCH_SIZES = (3, 5, 7)   # MultiSEAM default patch_size list
# TODO(synk): depth is fixed at the module default (depth=1); deeper stacks would repeat
#             the residual/pointwise block inside the branch kernel.


def _silu(v):
    return v * (1.0 / (1.0 + jnp.exp(-v)))


# ---------------------------------------------------------------------------
# Kernel 1: one fused DCovN branch + global average pool (one image per program)
# ---------------------------------------------------------------------------
def _dcovn_branch_kernel(xp_ref, wpatch_ref, wdw_ref, wpw_ref, cp_ref, o_ref, pad_ref):
    # xp_ref : (1, Hp, Wp, p*p*C)  im2col'ed patches (stride == kernel patch embed)
    # wpatch : (p*p*C, C)          patch-embed weight, matmul layout
    # wdw    : (9, C)              depthwise 3x3 taps (row-major)
    # wpw    : (C, C)              1x1 conv weight (in, out)
    # cp     : (9, C)              [b_patch, s_bn1, b_bn1, b_dw, s_bn2, b_bn2, b_pw, s_bn3, b_bn3]
    # o_ref  : (1, 1, C)           pooled branch output
    # pad_ref: (Hp+2, Wp+2, C)     VMEM scratch holding the zero-padded BN1 output
    Hp, Wp = xp_ref.shape[1], xp_ref.shape[2]
    C = o_ref.shape[-1]

    # Stage 1: patch embed -> +bias -> SiLU -> BN1, written into the padded scratch so
    # the 3x3 halo needs no wrapper-side pad and no extra HBM traffic.
    pad_ref[...] = jnp.zeros_like(pad_ref)
    for i in range(Hp):
        h = jnp.dot(xp_ref[0, i, :, :], wpatch_ref[...],
                    preferred_element_type=jnp.float32)              # (Wp, C)
        h = _silu(h + cp_ref[0, :])
        h = h * cp_ref[1, :] + cp_ref[2, :]
        pad_ref[1 + i, 1:Wp + 1, :] = h

    # Stage 2: depthwise 3x3 (+bias, SiLU, BN2) + residual, then 1x1 conv (+bias, SiLU,
    # BN3), accumulated straight into the global average pool.
    total = jnp.zeros((1, C), jnp.float32)
    for i in range(Hp):
        acc = jnp.zeros((Wp, C), jnp.float32)
        for di in range(3):
            for dj in range(3):
                acc = acc + pad_ref[i + di, dj:dj + Wp, :] * wdw_ref[di * 3 + dj, :]
        d = _silu(acc + cp_ref[3, :])
        d = d * cp_ref[4, :] + cp_ref[5, :]
        r = d + pad_ref[1 + i, 1:Wp + 1, :]                           # Residual add
        z = jnp.dot(r, wpw_ref[...], preferred_element_type=jnp.float32)
        z = _silu(z + cp_ref[6, :])
        z = z * cp_ref[7, :] + cp_ref[8, :]
        total = total + jnp.sum(z, axis=0, keepdims=True)
    o_ref[0] = total * (1.0 / (Hp * Wp))


def _dcovn_branch(xp, w_patch, w_dw, w_pw, cp):
    N, Hp, Wp, K = xp.shape
    C = w_patch.shape[-1]
    return pl.pallas_call(
        _dcovn_branch_kernel,
        out_shape=jax.ShapeDtypeStruct((N, 1, C), jnp.float32),
        grid=(N,),
        in_specs=[
            pl.BlockSpec((1, Hp, Wp, K), lambda n: (n, 0, 0, 0)),
            pl.BlockSpec((K, C), lambda n: (0, 0)),
            pl.BlockSpec((9, C), lambda n: (0, 0)),
            pl.BlockSpec((C, C), lambda n: (0, 0)),
            pl.BlockSpec((9, C), lambda n: (0, 0)),
        ],
        out_specs=pl.BlockSpec((1, 1, C), lambda n: (n, 0, 0)),
        scratch_shapes=[pltpu.VMEM((Hp + 2, Wp + 2, C), jnp.float32)],
        compiler_params=pltpu.CompilerParams(dimension_semantics=("parallel",)),
    )(xp, w_patch, w_dw, w_pw, cp)


# ---------------------------------------------------------------------------
# Kernel 2: fused SEAM head (avg-pool(x), combine, FC, sigmoid, exp, re-weight x)
# ---------------------------------------------------------------------------
def _seam_head_kernel(x_ref, y0_ref, y1_ref, y2_ref, w1_ref, w2_ref, o_ref):
    x = x_ref[0]                                                      # (H*W, C)
    C = x.shape[-1]
    hidden = w1_ref.shape[0]
    y4 = jnp.mean(x, axis=0, keepdims=True)                           # avg_pool(x)
    y = (y0_ref[0] + y1_ref[0] + y2_ref[0] + y4) * 0.25               # (1, C)
    z = jnp.zeros((1, C), jnp.float32)
    for j in range(hidden):                                           # tiny SE FC, unrolled
        hj = jnp.maximum(jnp.sum(y * w1_ref[j, :]), 0.0)              # ReLU(<y, W1[j,:]>)
        z = z + hj * w2_ref[j, :]
    scale = jnp.exp(1.0 / (1.0 + jnp.exp(-z)))                        # exp(sigmoid(.))
    o_ref[0] = x * scale


def _seam_head(xf, y0, y1, y2, w_fc1, w_fc2):
    N, HW, C = xf.shape
    Ch = w_fc1.shape[0]
    return pl.pallas_call(
        _seam_head_kernel,
        out_shape=jax.ShapeDtypeStruct((N, HW, C), jnp.float32),
        grid=(N,),
        in_specs=[
            pl.BlockSpec((1, HW, C), lambda n: (n, 0, 0)),
            pl.BlockSpec((1, 1, C), lambda n: (n, 0, 0)),
            pl.BlockSpec((1, 1, C), lambda n: (n, 0, 0)),
            pl.BlockSpec((1, 1, C), lambda n: (n, 0, 0)),
            pl.BlockSpec((Ch, C), lambda n: (0, 0)),
            pl.BlockSpec((Ch, C), lambda n: (0, 0)),
        ],
        out_specs=pl.BlockSpec((1, HW, C), lambda n: (n, 0, 0)),
        compiler_params=pltpu.CompilerParams(dimension_semantics=("parallel",)),
    )(xf, y0, y1, y2, w_fc1, w_fc2)


# ---------------------------------------------------------------------------
# Wrapper-side plumbing (pure layout / constant folding, negligible HBM traffic)
# ---------------------------------------------------------------------------
def fold_bn(gamma, beta, mean, var, eps=1e-5):
    scale = gamma / jnp.sqrt(var + eps)
    bias = beta - mean * scale
    return scale.astype(jnp.float32), bias.astype(jnp.float32)


def _im2col(x_nhwc, p):
    # Non-overlapping patches (stride == kernel): pure permutation, same byte count as x.
    N, H, W, C = x_nhwc.shape
    Hp, Wp = H // p, W // p
    xc = x_nhwc[:, :Hp * p, :Wp * p, :]
    xc = xc.reshape(N, Hp, p, Wp, p, C)
    xc = jnp.transpose(xc, (0, 1, 3, 2, 4, 5))
    return xc.reshape(N, Hp, Wp, p * p * C)


def _prep_branch(br, p, C):
    w_patch = br["w_patch"].reshape(p * p * C, C)          # (di,dj,cin) flattened x cout
    w_dw = br["w_dw"].reshape(9, C)
    s1, b1 = fold_bn(*br["bn1"])
    s2, b2 = fold_bn(*br["bn2"])
    s3, b3 = fold_bn(*br["bn3"])
    cp = jnp.stack([br["b_patch"], s1, b1, br["b_dw"], s2, b2, br["b_pw"], s3, b3], axis=0)
    return w_patch, w_dw, br["w_pw"], cp


def multi_seam_forward(x_nchw, params):
    """MultiSEAM forward. Input/output NCHW (PyTorch convention)."""
    N, C, H, W = x_nchw.shape
    x = jnp.transpose(x_nchw, (0, 2, 3, 1))                 # NCHW -> NHWC (lane = channel)
    pooled = []
    for p, br in zip(PATCH_SIZES, params["branches"]):
        xp = _im2col(x, p)
        w_patch, w_dw, w_pw, cp = _prep_branch(br, p, C)
        pooled.append(_dcovn_branch(xp, w_patch, w_dw, w_pw, cp))      # (N, 1, C)
    out = _seam_head(x.reshape(N, H * W, C), pooled[0], pooled[1], pooled[2],
                     params["w_fc1"], params["w_fc2"])
    return jnp.transpose(out.reshape(N, H, W, C), (0, 3, 1, 2))        # NHWC -> NCHW


# ---------------------------------------------------------------------------
# Pure-JAX reference (lax.conv, HIGHEST precision) for correctness checking
# ---------------------------------------------------------------------------
def reference_forward(x_nchw, params):
    N, C, H, W = x_nchw.shape
    hi = jax.lax.Precision.HIGHEST

    def affine(v, s, b):
        return v * s.reshape(1, -1, 1, 1) + b.reshape(1, -1, 1, 1)

    pooled = []
    for p, br in zip(PATCH_SIZES, params["branches"]):
        s1, b1 = fold_bn(*br["bn1"])
        s2, b2 = fold_bn(*br["bn2"])
        s3, b3 = fold_bn(*br["bn3"])
        w_patch_oihw = jnp.transpose(br["w_patch"], (3, 2, 0, 1))             # (C,C,p,p)
        y = lax.conv_general_dilated(x_nchw, w_patch_oihw, (p, p), "VALID",
                                     dimension_numbers=("NCHW", "OIHW", "NCHW"),
                                     precision=hi)
        y = affine(_silu(y + br["b_patch"].reshape(1, -1, 1, 1)), s1, b1)
        w_dw_oihw = jnp.transpose(br["w_dw"], (2, 0, 1))[:, None, :, :]       # (C,1,3,3)
        d = lax.conv_general_dilated(y, w_dw_oihw, (1, 1), [(1, 1), (1, 1)],
                                     dimension_numbers=("NCHW", "OIHW", "NCHW"),
                                     feature_group_count=C, precision=hi)
        d = affine(_silu(d + br["b_dw"].reshape(1, -1, 1, 1)), s2, b2)
        r = d + y                                                             # Residual
        w_pw_oihw = jnp.transpose(br["w_pw"], (1, 0))[:, :, None, None]       # (C,C,1,1)
        z = lax.conv_general_dilated(r, w_pw_oihw, (1, 1), "VALID",
                                     dimension_numbers=("NCHW", "OIHW", "NCHW"),
                                     precision=hi)
        z = affine(_silu(z + br["b_pw"].reshape(1, -1, 1, 1)), s3, b3)
        pooled.append(jnp.mean(z, axis=(2, 3)))
    y4 = jnp.mean(x_nchw, axis=(2, 3))
    y = (pooled[0] + pooled[1] + pooled[2] + y4) * 0.25
    h = jnp.maximum(jnp.dot(y, params["w_fc1"].T, precision=hi), 0.0)
    zz = 1.0 / (1.0 + jnp.exp(-jnp.dot(h, params["w_fc2"], precision=hi)))
    return x_nchw * jnp.exp(zz)[:, :, None, None]


# ---------------------------------------------------------------------------
def make_bn(key, c):
    k1, k2, k3, k4 = jax.random.split(key, 4)
    gamma = 1.0 + 0.1 * jax.random.normal(k1, (c,), jnp.float32)
    beta = 0.1 * jax.random.normal(k2, (c,), jnp.float32)
    mean = 0.05 * jax.random.normal(k3, (c,), jnp.float32)
    var = 0.5 + jnp.abs(jax.random.normal(k4, (c,), jnp.float32))
    return gamma, beta, mean, var


if __name__ == "__main__":
    key = jax.random.PRNGKey(0)
    # c1 must be >= reduction (=16) so the SE bottleneck Linear is valid, hence C=32.
    N, C, H, W = 2, 32, 16, 16
    REDUCTION = 16
    CH = max(C // REDUCTION, 1)

    kit = iter(jax.random.split(key, 40))

    def rnd(shape, scale):
        return scale * jax.random.normal(next(kit), shape, jnp.float32)

    x = jax.random.normal(next(kit), (N, C, H, W), jnp.float32)

    branches = []
    for p in PATCH_SIZES:
        branches.append({
            "w_patch": rnd((p, p, C, C), 0.05),   # (di, dj, cin, cout)
            "b_patch": rnd((C,), 0.1),
            "w_dw": rnd((3, 3, C), 0.2),          # depthwise taps
            "b_dw": rnd((C,), 0.1),
            "w_pw": rnd((C, C), 0.15),            # (cin, cout)
            "b_pw": rnd((C,), 0.1),
            "bn1": make_bn(next(kit), C),
            "bn2": make_bn(next(kit), C),
            "bn3": make_bn(next(kit), C),
        })
    params = {
        "branches": branches,
        "w_fc1": rnd((CH, C), 0.3),               # Linear(C, C//r, bias=False) weight (out,in)
        "w_fc2": rnd((CH, C), 0.3),               # Linear(C//r, C, bias=False) weight^T (in,out)
    }

    out = jax.block_until_ready(jax.jit(multi_seam_forward)(x, params))
    ref = jax.block_until_ready(jax.jit(reference_forward)(x, params))

    assert out.shape == (N, C, H, W), out.shape
    max_err = float(jnp.max(jnp.abs(out - ref)))
    assert jnp.allclose(out, ref, atol=1e-3, rtol=1e-3), max_err
    print("KERNEL_OK")
</pallas_src>

<mosaic_0001>
module attributes {stable_mosaic.version = 11 : i64} {
  func.func @_dcovn_branch_kernel(%arg0: i32, %arg1: memref<1x5x5x288xf32, #tpu.memory_space<vmem>>, %arg2: memref<288x32xf32, #tpu.memory_space<vmem>>, %arg3: memref<9x32xf32, #tpu.memory_space<vmem>>, %arg4: memref<32x32xf32, #tpu.memory_space<vmem>>, %arg5: memref<9x32xf32, #tpu.memory_space<vmem>>, %arg6: memref<1x1x32xf32, #tpu.memory_space<vmem>>, %arg7: memref<7x7x32xf32, #tpu.memory_space<vmem>>) attributes {dimension_semantics = [#tpu.dimension_semantics<parallel>], iteration_bounds = array<i64: 2>, scalar_prefetch = 0 : i64, scratch_operands = 1 : i64, tpu.core_type = #tpu.core_type<tc>, window_params = [{transform_indices = @transform_0, window_bounds = array<i64: 1, 5, 5, 288>}, {pipeline_mode = #tpu.pipeline_mode<synchronous>, transform_indices = @transform_1, window_bounds = array<i64: 288, 32>}, {pipeline_mode = #tpu.pipeline_mode<synchronous>, transform_indices = @transform_2, window_bounds = array<i64: 9, 32>}, {pipeline_mode = #tpu.pipeline_mode<synchronous>, transform_indices = @transform_3, window_bounds = array<i64: 32, 32>}, {pipeline_mode = #tpu.pipeline_mode<synchronous>, transform_indices = @transform_4, window_bounds = array<i64: 9, 32>}, {transform_indices = @transform_5, window_bounds = array<i64: 1, 1, 32>}]} {
    %cst = arith.constant 0.000000e+00 : f32
    %0 = vector.broadcast %cst : f32 to vector<7x7x32xf32>
    %c0 = arith.constant 0 : index
    %c0_0 = arith.constant 0 : index
    %c0_1 = arith.constant 0 : index
    %1 = vector.load %arg7[%c0, %c0_0, %c0_1] : memref<7x7x32xf32, #tpu.memory_space<vmem>>, vector<7x7x32xf32>
    tpu.vector_store %arg7[%c0, %c0_0, %c0_1], %0 {strides = array<i32>} : memref<7x7x32xf32, #tpu.memory_space<vmem>>, vector<7x7x32xf32>,
    %c0_2 = arith.constant 0 : index
    %c0_3 = arith.constant 0 : index
    %c0_4 = arith.constant 0 : index
    %c0_5 = arith.constant 0 : index
    %2 = vector.load %arg1[%c0_2, %c0_3, %c0_4, %c0_5] : memref<1x5x5x288xf32, #tpu.memory_space<vmem>>, vector<1x1x5x288xf32>
    %3 = vector.shape_cast %2 : vector<1x1x5x288xf32> to vector<5x288xf32>
    %c0_6 = arith.constant 0 : index
    %c0_7 = arith.constant 0 : index
    %4 = vector.load %arg2[%c0_6, %c0_7] : memref<288x32xf32, #tpu.memory_space<vmem>>, vector<288x32xf32>
    %cst_8 = arith.constant dense<0.000000e+00> : vector<5x32xf32>
    %5 = tpu.matmul %3, %4, %cst_8 {dimension_numbers = #tpu.dot_dimension_numbers<[1], [0], [0], [1], [0, 0, 1, 1], [], []>} : vector<5x288xf32>, vector<288x32xf32>, vector<5x32xf32> -> vector<5x32xf32>
    %c0_9 = arith.constant 0 : index
    %c0_10 = arith.constant 0 : index
    %6 = vector.load %arg5[%c0_9, %c0_10] : memref<9x32xf32, #tpu.memory_space<vmem>>, vector<1x32xf32>
    %7 = vector.shape_cast %6 : vector<1x32xf32> to vector<32xf32>
    %8 = vector.shape_cast %7 : vector<32xf32> to vector<1x32xf32>
    %9 = vector.broadcast %8 : vector<1x32xf32> to vector<5x32xf32>
    %10 = arith.addf %5, %9 : vector<5x32xf32>
    %cst_11 = arith.constant 0.000000e+00 : f32
    %11 = vector.broadcast %cst_11 : f32 to vector<5x32xf32>
    %12 = arith.subf %11, %10 : vector<5x32xf32>
    %13 = math.exp %12 : vector<5x32xf32>
    %cst_12 = arith.constant 1.000000e+00 : f32
    %14 = vector.broadcast %cst_12 : f32 to vector<5x32xf32>
    %15 = arith.addf %14, %13 : vector<5x32xf32>
    %cst_13 = arith.constant 1.000000e+00 : f32
    %16 = vector.broadcast %cst_13 : f32 to vector<5x32xf32>
    %17 = arith.divf %16, %15 : vector<5x32xf32>
    %18 = arith.mulf %10, %17 : vector<5x32xf32>
    %c1 = arith.constant 1 : index
    %c0_14 = arith.constant 0 : index
    %19 = vector.load %arg5[%c1, %c0_14] : memref<9x32xf32, #tpu.memory_space<vmem>>, vector<1x32xf32>
    %20 = vector.shape_cast %19 : vector<1x32xf32> to vector<32xf32>
    %21 = vector.shape_cast %20 : vector<32xf32> to vector<1x32xf32>
    %22 = vector.broadcast %21 : vector<1x32xf32> to vector<5x32xf32>
    %23 = arith.mulf %18, %22 : vector<5x32xf32>
    %c2 = arith.constant 2 : index
    %c0_15 = arith.constant 0 : index
    %24 = vector.load %arg5[%c2, %c0_15] : memref<9x32xf32, #tpu.memory_space<vmem>>, vector<1x32xf32>
    %25 = vector.shape_cast %24 : vector<1x32xf32> to vector<32xf32>
    %26 = vector.shape_cast %25 : vector<32xf32> to vector<1x32xf32>
    %27 = vector.broadcast %26 : vector<1x32xf32> to vector<5x32xf32>
    %28 = arith.addf %23, %27 : vector<5x32xf32>
    %c1_16 = arith.constant 1 : index
    %c1_17 = arith.constant 1 : index
    %c0_18 = arith.constant 0 : index
    %29 = vector.load %arg7[%c1_16, %c1_17, %c0_18] : memref<7x7x32xf32, #tpu.memory_space<vmem>>, vector<1x5x32xf32>
    %30 = vector.shape_cast %29 : vector<1x5x32xf32> to vector<5x32xf32>
    %31 = vector.shape_cast %28 : vector<5x32xf32> to vector<1x5x32xf32>
    tpu.vector_store %arg7[%c1_16, %c1_17, %c0_18], %31 {strides = array<i32>} : memref<7x7x32xf32, #tpu.memory_space<vmem>>, vector<1x5x32xf32>,
    %c0_19 = arith.constant 0 : index
    %c1_20 = arith.constant 1 : index
    %c0_21 = arith.constant 0 : index
    %c0_22 = arith.constant 0 : index
    %32 = vector.load %arg1[%c0_19, %c1_20, %c0_21, %c0_22] : memref<1x5x5x288xf32, #tpu.memory_space<vmem>>, vector<1x1x5x288xf32>
    %33 = vector.shape_cast %32 : vector<1x1x5x288xf32> to vector<5x288xf32>
    %c0_23 = arith.constant 0 : index
    %c0_24 = arith.constant 0 : index
    %34 = vector.load %arg2[%c0_23, %c0_24] : memref<288x32xf32, #tpu.memory_space<vmem>>, vector<288x32xf32>
    %cst_25 = arith.constant dense<0.000000e+00> : vector<5x32xf32>
    %35 = tpu.matmul %33, %34, %cst_25 {dimension_numbers = #tpu.dot_dimension_numbers<[1], [0], [0], [1], [0, 0, 1, 1], [], []>} : vector<5x288xf32>, vector<288x32xf32>, vector<5x32xf32> -> vector<5x32xf32>
    %c0_26 = arith.constant 0 : index
    %c0_27 = arith.constant 0 : index
    %36 = vector.load %arg5[%c0_26, %c0_27] : memref<9x32xf32, #tpu.memory_space<vmem>>, vector<1x32xf32>
    %37 = vector.shape_cast %36 : vector<1x32xf32> to vector<32xf32>
    %38 = vector.shape_cast %37 : vector<32xf32> to vector<1x32xf32>
    %39 = vector.broadcast %38 : vector<1x32xf32> to vector<5x32xf32>
    %40 = arith.addf %35, %39 : vector<5x32xf32>
    %cst_28 = arith.constant 0.000000e+00 : f32
    %41 = vector.broadcast %cst_28 : f32 to vector<5x32xf32>
    %42 = arith.subf %41, %40 : vector<5x32xf32>
    %43 = math.exp %42 : vector<5x32xf32>
    %cst_29 = arith.constant 1.000000e+00 : f32
    %44 = vector.broadcast %cst_29 : f32 to vector<5x32xf32>
    %45 = arith.addf %44, %43 : vector<5x32xf32>
    %cst_30 = arith.constant 1.000000e+00 : f32
    %46 = vector.broadcast %cst_30 : f32 to vector<5x32xf32>
    %47 = arith.divf %46, %45 : vector<5x32xf32>
    %48 = arith.mulf %40, %47 : vector<5x32xf32>
    %c1_31 = arith.constant 1 : index
    %c0_32 = arith.constant 0 : index
    %49 = vector.load %arg5[%c1_31, %c0_32] : memref<9x32xf32, #tpu.memory_space<vmem>>, vector<1x32xf32>
    %50 = vector.shape_cast %49 : vector<1x32xf32> to vector<32xf32>
    %51 = vector.shape_cast %50 : vector<32xf32> to vector<1x32xf32>
    %52 = vector.broadcast %51 : vector<1x32xf32> to vector<5x32xf32>
    %53 = arith.mulf %48, %52 : vector<5x32xf32>
    %c2_33 = arith.constant 2 : index
    %c0_34 = arith.constant 0 : index
    %54 = vector.load %arg5[%c2_33, %c0_34] : memref<9x32xf32, #tpu.memory_space<vmem>>, vector<1x32xf32>
    %55 = vector.shape_cast %54 : vector<1x32xf32> to vector<32xf32>
    %56 = vector.shape_cast %55 : vector<32xf32> to vector<1x32xf32>
    %57 = vector.broadcast %56 : vector<1x32xf32> to vector<5x32xf32>
    %58 = arith.addf %53, %57 : vector<5x32xf32>
    %c2_35 = arith.constant 2 : index
    %c1_36 = arith.constant 1 : index
    %c0_37 = arith.constant 0 : index
    %59 = vector.load %arg7[%c2_35, %c1_36, %c0_37] : memref<7x7x32xf32, #tpu.memory_space<vmem>>, vector<1x5x32xf32>
    %60 = vector.shape_cast %59 : vector<1x5x32xf32> to vector<5x32xf32>
    %61 = vector.shape_cast %58 : vector<5x32xf32> to vector<1x5x32xf32>
    tpu.vector_store %arg7[%c2_35, %c1_36, %c0_37], %61 {strides = array<i32>} : memref<7x7x32xf32, #tpu.memory_space<vmem>>, vector<1x5x32xf32>,
    %c0_38 = arith.constant 0 : index
    %c2_39 = arith.constant 2 : index
    %c0_40 = arith.constant 0 : index
    %c0_41 = arith.constant 0 : index
    %62 = vector.load %arg1[%c0_38, %c2_39, %c0_40, %c0_41] : memref<1x5x5x288xf32, #tpu.memory_space<vmem>>, vector<1x1x5x288xf32>
    %63 = vector.shape_cast %62 : vector<1x1x5x288xf32> to vector<5x288xf32>
    %c0_42 = arith.constant 0 : index
    %c0_43 = arith.constant 0 : index
    %64 = vector.load %arg2[%c0_42, %c0_43] : memref<288x32xf32, #tpu.memory_space<vmem>>, vector<288x32xf32>
    %cst_44 = arith.constant dense<0.000000e+00> : vector<5x32xf32>
    %65 = tpu.matmul %63, %64, %cst_44 {dimension_numbers = #tpu.dot_dimension_numbers<[1], [0], [0], [1], [0, 0, 1, 1], [], []>} : vector<5x288xf32>, vector<288x32xf32>, vector<5x32xf32> -> vector<5x32xf32>
    %c0_45 = arith.constant 0 : index
    %c0_46 = arith.constant 0 : index
    %66 = vector.load %arg5[%c0_45, %c0_46] : memref<9x32xf32, #tpu.memory_space<vmem>>, vector<1x32xf32>
    %67 = vector.shape_cast %66 : vector<1x32xf32> to vector<32xf32>
    %68 = vector.shape_cast %67 : vector<32xf32> to vector<1x32xf32>
    %69 = vector.broadcast %68 : vector<1x32xf32> to vector<5x32xf32>
    %70 = arith.addf %65, %69 : vector<5x32xf32>
    %cst_47 = arith.constant 0.000000e+00 : f32
    %71 = vector.broadcast %cst_47 : f32 to vector<5x32xf32>
    %72 = arith.subf %71, %70 : vector<5x32xf32>
    %73 = math.exp %72 : vector<5x32xf32>
    %cst_48 = arith.constant 1.000000e+00 : f32
    %74 = vector.broadcast %cst_48 : f32 to vector<5x32xf32>
    %75 = arith.addf %74, %73 : vector<5x32xf32>
    %cst_49 = arith.constant 1.000000e+00 : f32
    %76 = vector.broadcast %cst_49 : f32 to vector<5x32xf32>
    %77 = arith.divf %76, %75 : vector<5x32xf32>
    %78 = arith.mulf %70, %77 : vector<5x32xf32>
    %c1_50 = arith.constant 1 : index
    %c0_51 = arith.constant 0 : index
    %79 = vector.load %arg5[%c1_50, %c0_51] : memref<9x32xf32, #tpu.memory_space<vmem>>, vector<1x32xf32>
    %80 = vector.shape_cast %79 : vector<1x32xf32> to vector<32xf32>
    %81 = vector.shape_cast %80 : vector<32xf32> to vector<1x32xf32>
    %82 = vector.broadcast %81 : vector<1x32xf32> to vector<5x32xf32>
    %83 = arith.mulf %78, %82 : vector<5x32xf32>
    %c2_52 = arith.constant 2 : index
    %c0_53 = arith.constant 0 : index
    %84 = vector.load %arg5[%c2_52, %c0_53] : memref<9x32xf32, #tpu.memory_space<vmem>>, vector<1x32xf32>
    %85 = vector.shape_cast %84 : vector<1x32xf32> to vector<32xf32>
    %86 = vector.shape_cast %85 : vector<32xf32> to vector<1x32xf32>
    %87 = vector.broadcast %86 : vector<1x32xf32> to vector<5x32xf32>
    %88 = arith.addf %83, %87 : vector<5x32xf32>
    %c3 = arith.constant 3 : index
    %c1_54 = arith.constant 1 : index
    %c0_55 = arith.constant 0 : index
    %89 = vector.load %arg7[%c3, %c1_54, %c0_55] : memref<7x7x32xf32, #tpu.memory_space<vmem>>, vector<1x5x32xf32>
    %90 = vector.shape_cast %89 : vector<1x5x32xf32> to vector<5x32xf32>
    %91 = vector.shape_cast %88 : vector<5x32xf32> to vector<1x5x32xf32>
    tpu.vector_store %arg7[%c3, %c1_54, %c0_55], %91 {strides = array<i32>} : memref<7x7x32xf32, #tpu.memory_space<vmem>>, vector<1x5x32xf32>,
    %c0_56 = arith.constant 0 : index
    %c3_57 = arith.constant 3 : index
    %c0_58 = arith.constant 0 : index
    %c0_59 = arith.constant 0 : index
    %92 = vector.load %arg1[%c0_56, %c3_57, %c0_58, %c0_59] : memref<1x5x5x288xf32, #tpu.memory_space<vmem>>, vector<1x1x5x288xf32>
    %93 = vector.shape_cast %92 : vector<1x1x5x288xf32> to vector<5x288xf32>
    %c0_60 = arith.constant 0 : index
    %c0_61 = arith.constant 0 : index
    %94 = vector.load %arg2[%c0_60, %c0_61] : memref<288x32xf32, #tpu.memory_space<vmem>>, vector<288x32xf32>
    %cst_62 = arith.constant dense<0.000000e+00> : vector<5x32xf32>
    %95 = tpu.matmul %93, %94, %cst_62 {dimension_numbers = #tpu.dot_dimension_numbers<[1], [0], [0], [1], [0, 0, 1, 1], [], []>} : vector<5x288xf32>, vector<288x32xf32>, vector<5x32xf32> -> vector<5x32xf32>
    %c0_63 = arith.constant 0 : index
    %c0_64 = arith.constant 0 : index
    %96 = vector.load %arg5[%c0_63, %c0_64] : memref<9x32xf32, #tpu.memory_space<vmem>>, vector<1x32xf32>
    %97 = vector.shape_cast %96 : vector<1x32xf32> to vector<32xf32>
    %98 = vector.shape_cast %97 : vector<32xf32> to vector<1x32xf32>
    %99 = vector.broadcast %98 : vector<1x32xf32> to vector<5x32xf32>
    %100 = arith.addf %95, %99 : vector<5x32xf32>
    %cst_65 = arith.constant 0.000000e+00 : f32
    %101 = vector.broadcast %cst_65 : f32 to vector<5x32xf32>
    %102 = arith.subf %101, %100 : vector<5x32xf32>
    %103 = math.exp %102 : vector<5x32xf32>
    %cst_66 = arith.constant 1.000000e+00 : f32
    %104 = vector.broadcast %cst_66 : f32 to vector<5x32xf32>
    %105 = arith.addf %104, %103 : vector<5x32xf32>
    %cst_67 = arith.constant 1.000000e+00 : f32
    %106 = vector.broadcast %cst_67 : f32 to vector<5x32xf32>
    %107 = arith.divf %106, %105 : vector<5x32xf32>
    %108 = arith.mulf %100, %107 : vector<5x32xf32>
    %c1_68 = arith.constant 1 : index
    %c0_69 = arith.constant 0 : index
    %109 = vector.load %arg5[%c1_68, %c0_69] : memref<9x32xf32, #tpu.memory_space<vmem>>, vector<1x32xf32>
    %110 = vector.shape_cast %109 : vector<1x32xf32> to vector<32xf32>
    %111 = vector.shape_cast %110 : vector<32xf32> to vector<1x32xf32>
    %112 = vector.broadcast %111 : vector<1x32xf32> to vector<5x32xf32>
    %113 = arith.mulf %108, %112 : vector<5x32xf32>
    %c2_70 = arith.constant 2 : index
    %c0_71 = arith.constant 0 : index
    %114 = vector.load %arg5[%c2_70, %c0_71] : memref<9x32xf32, #tpu.memory_space<vmem>>, vector<1x32xf32>
    %115 = vector.shape_cast %114 : vector<1x32xf32> to vector<32xf32>
    %116 = vector.shape_cast %115 : vector<32xf32> to vector<1x32xf32>
    %117 = vector.broadcast %116 : vector<1x32xf32> to vector<5x32xf32>
    %118 = arith.addf %113, %117 : vector<5x32xf32>
    %c4 = arith.constant 4 : index
    %c1_72 = arith.constant 1 : index
    %c0_73 = arith.constant 0 : index
    %119 = vector.load %arg7[%c4, %c1_72, %c0_73] : memref<7x7x32xf32, #tpu.memory_space<vmem>>, vector<1x5x32xf32>
    %120 = vector.shape_cast %119 : vector<1x5x32xf32> to vector<5x32xf32>
    %121 = vector.shape_cast %118 : vector<5x32xf32> to vector<1x5x32xf32>
    tpu.vector_store %arg7[%c4, %c1_72, %c0_73], %121 {strides = array<i32>} : memref<7x7x32xf32, #tpu.memory_space<vmem>>, vector<1x5x32xf32>,
    %c0_74 = arith.constant 0 : index
    %c4_75 = arith.constant 4 : index
    %c0_76 = arith.constant 0 : index
    %c0_77 = arith.constant 0 : index
    %122 = vector.load %arg1[%c0_74, %c4_75, %c0_76, %c0_77] : memref<1x5x5x288xf32, #tpu.memory_space<vmem>>, vector<1x1x5x288xf32>
    %123 = vector.shape_cast %122 : vector<1x1x5x288xf32> to vector<5x288xf32>
    %c0_78 = arith.constant 0 : index
    %c0_79 = arith.constant 0 : index
    %124 = vector.load %arg2[%c0_78, %c0_79] : memref<288x32xf32, #tpu.memory_space<vmem>>, vector<288x32xf32>
    %cst_80 = arith.constant dense<0.000000e+00> : vector<5x32xf32>
    %125 = tpu.matmul %123, %124, %cst_80 {dimension_numbers = #tpu.dot_dimension_numbers<[1], [0], [0], [1], [0, 0, 1, 1], [], []>} : vector<5x288xf32>, vector<288x32xf32>, vector<5x32xf32> -> vector<5x32xf32>
    %c0_81 = arith.constant 0 : index
    %c0_82 = arith.constant 0 : index
    %126 = vector.load %arg5[%c0_81, %c0_82] : memref<9x32xf32, #tpu.memory_space<vmem>>, vector<1x32xf32>
    %127 = vector.shape_cast %126 : vector<1x32xf32> to vector<32xf32>
    %128 = vector.shape_cast %127 : vector<32xf32> to vector<1x32xf32>
    %129 = vector.broadcast %128 : vector<1x32xf32> to vector<5x32xf32>
    %130 = arith.addf %125, %129 : vector<5x32xf32>
    %cst_83 = arith.constant 0.000000e+00 : f32
    %131 = vector.broadcast %cst_83 : f32 to vector<5x32xf32>
    %132 = arith.subf %131, %130 : vector<5x32xf32>
    %133 = math.exp %132 : vector<5x32xf32>
    %cst_84 = arith.constant 1.000000e+00 : f32
    %134 = vector.broadcast %cst_84 : f32 to vector<5x32xf32>
    %135 = arith.addf %134, %133 : vector<5x32xf32>
    %cst_85 = arith.constant 1.000000e+00 : f32
    %136 = vector.broadcast %cst_85 : f32 to vector<5x32xf32>
    %137 = arith.divf %136, %135 : vector<5x32xf32>
    %138 = arith.mulf %130, %137 : vector<5x32xf32>
    %c1_86 = arith.constant 1 : index
    %c0_87 = arith.constant 0 : index
    %139 = vector.load %arg5[%c1_86, %c0_87] : memref<9x32xf32, #tpu.memory_space<vmem>>, vector<1x32xf32>
    %140 = vector.shape_cast %139 : vector<1x32xf32> to vector<32xf32>
    %141 = vector.shape_cast %140 : vector<32xf32> to vector<1x32xf32>
    %142 = vector.broadcast %141 : vector<1x32xf32> to vector<5x32xf32>
    %143 = arith.mulf %138, %142 : vector<5x32xf32>
    %c2_88 = arith.constant 2 : index
    %c0_89 = arith.constant 0 : index
    %144 = vector.load %arg5[%c2_88, %c0_89] : memref<9x32xf32, #tpu.memory_space<vmem>>, vector<1x32xf32>
    %145 = vector.shape_cast %144 : vector<1x32xf32> to vector<32xf32>
    %146 = vector.shape_cast %145 : vector<32xf32> to vector<1x32xf32>
    %147 = vector.broadcast %146 : vector<1x32xf32> to vector<5x32xf32>
    %148 = arith.addf %143, %147 : vector<5x32xf32>
    %c5 = arith.constant 5 : index
    %c1_90 = arith.constant 1 : index
    %c0_91 = arith.constant 0 : index
    %149 = vector.load %arg7[%c5, %c1_90, %c0_91] : memref<7x7x32xf32, #tpu.memory_space<vmem>>, vector<1x5x32xf32>
    %150 = vector.shape_cast %149 : vector<1x5x32xf32> to vector<5x32xf32>
    %151 = vector.shape_cast %148 : vector<5x32xf32> to vector<1x5x32xf32>
    tpu.vector_store %arg7[%c5, %c1_90, %c0_91], %151 {strides = array<i32>} : memref<7x7x32xf32, #tpu.memory_space<vmem>>, vector<1x5x32xf32>,
    %cst_92 = arith.constant 0.000000e+00 : f32
    %152 = vector.broadcast %cst_92 : f32 to vector<1x32xf32>
    %cst_93 = arith.constant 0.000000e+00 : f32
    %153 = vector.broadcast %cst_93 : f32 to vector<5x32xf32>
    %c0_94 = arith.constant 0 : index
    %c0_95 = arith.constant 0 : index
    %c0_96 = arith.constant 0 : index
    %154 = vector.load %arg7[%c0_94, %c0_95, %c0_96] : memref<7x7x32xf32, #tpu.memory_space<vmem>>, vector<1x5x32xf32>
    %155 = vector.shape_cast %154 : vector<1x5x32xf32> to vector<5x32xf32>
    %c0_97 = arith.constant 0 : index
    %c0_98 = arith.constant 0 : index
    %156 = vector.load %arg3[%c0_97, %c0_98] : memref<9x32xf32, #tpu.memory_space<vmem>>, vector<1x32xf32>
    %157 = vector.shape_cast %156 : vector<1x32xf32> to vector<32xf32>
    %158 = vector.shape_cast %157 : vector<32xf32> to vector<1x32xf32>
    %159 = vector.broadcast %158 : vector<1x32xf32> to vector<5x32xf32>
    %160 = arith.mulf %155, %159 : vector<5x32xf32>
    %161 = arith.addf %153, %160 : vector<5x32xf32>
    %c0_99 = arith.constant 0 : index
    %c1_100 = arith.constant 1 : index
    %c0_101 = arith.constant 0 : index
    %162 = vector.load %arg7[%c0_99, %c1_100, %c0_101] : memref<7x7x32xf32, #tpu.memory_space<vmem>>, vector<1x5x32xf32>
    %163 = vector.shape_cast %162 : vector<1x5x32xf32> to vector<5x32xf32>
    %c1_102 = arith.constant 1 : index
    %c0_103 = arith.constant 0 : index
    %164 = vector.load %arg3[%c1_102, %c0_103] : memref<9x32xf32, #tpu.memory_space<vmem>>, vector<1x32xf32>
    %165 = vector.shape_cast %164 : vector<1x32xf32> to vector<32xf32>
    %166 = vector.shape_cast %165 : vector<32xf32> to vector<1x32xf32>
    %167 = vector.broadcast %166 : vector<1x32xf32> to vector<5x32xf32>
    %168 = arith.mulf %163, %167 : vector<5x32xf32>
    %169 = arith.addf %161, %168 : vector<5x32xf32>
    %c0_104 = arith.constant 0 : index
    %c2_105 = arith.constant 2 : index
    %c0_106 = arith.constant 0 : index
    %170 = vector.load %arg7[%c0_104, %c2_105, %c0_106] : memref<7x7x32xf32, #tpu.memory_space<vmem>>, vector<1x5x32xf32>
    %171 = vector.shape_cast %170 : vector<1x5x32xf32> to vector<5x32xf32>
    %c2_107 = arith.constant 2 : index
    %c0_108 = arith.constant 0 : index
    %172 = vector.load %arg3[%c2_107, %c0_108] : memref<9x32xf32, #tpu.memory_space<vmem>>, vector<1x32xf32>
    %173 = vector.shape_cast %172 : vector<1x32xf32> to vector<32xf32>
    %174 = vector.shape_cast %173 : vector<32xf32> to vector<1x32xf32>
    %175 = vector.broadcast %174 : vector<1x32xf32> to vector<5x32xf32>
    %176 = arith.mulf %171, %175 : vector<5x32xf32>
    %177 = arith.addf %169, %176 : vector<5x32xf32>
    %c1_109 = arith.constant 1 : index
    %c0_110 = arith.constant 0 : index
    %c0_111 = arith.constant 0 : index
    %178 = vector.load %arg7[%c1_109, %c0_110, %c0_111] : memref<7x7x32xf32, #tpu.memory_space<vmem>>, vector<1x5x32xf32>
    %179 = vector.shape_cast %178 : vector<1x5x32xf32> to vector<5x32xf32>
    %c3_112 = arith.constant 3 : index
    %c0_113 = arith.constant 0 : index
    %180 = vector.load %arg3[%c3_112, %c0_113] : memref<9x32xf32, #tpu.memory_space<vmem>>, vector<1x32xf32>
    %181 = vector.shape_cast %180 : vector<1x32xf32> to vector<32xf32>
    %182 = vector.shape_cast %181 : vector<32xf32> to vector<1x32xf32>
    %183 = vector.broadcast %182 : vector<1x32xf32> to vector<5x32xf32>
    %184 = arith.mulf %179, %183 : vector<5x32xf32>
    %185 = arith.addf %177, %184 : vector<5x32xf32>
    %c1_114 = arith.constant 1 : index
    %c1_115 = arith.constant 1 : index
    %c0_116 = arith.constant 0 : index
    %186 = vector.load %arg7[%c1_114, %c1_115, %c0_116] : memref<7x7x32xf32, #tpu.memory_space<vmem>>, vector<1x5x32xf32>
    %187 = vector.shape_cast %186 : vector<1x5x32xf32> to vector<5x32xf32>
    %c4_117 = arith.constant 4 : index
    %c0_118 = arith.constant 0 : index
    %188 = vector.load %arg3[%c4_117, %c0_118] : memref<9x32xf32, #tpu.memory_space<vmem>>, vector<1x32xf32>
    %189 = vector.shape_cast %188 : vector<1x32xf32> to vector<32xf32>
    %190 = vector.shape_cast %189 : vector<32xf32> to vector<1x32xf32>
    %191 = vector.broadcast %190 : vector<1x32xf32> to vector<5x32xf32>
    %192 = arith.mulf %187, %191 : vector<5x32xf32>
    %193 = arith.addf %185, %192 : vector<5x32xf32>
    %c1_119 = arith.constant 1 : index
    %c2_120 = arith.constant 2 : index
    %c0_121 = arith.constant 0 : index
    %194 = vector.load %arg7[%c1_119, %c2_120, %c0_121] : memref<7x7x32xf32, #tpu.memory_space<vmem>>, vector<1x5x32xf32>
    %195 = vector.shape_cast %194 : vector<1x5x32xf32> to vector<5x32xf32>
    %c5_122 = arith.constant 5 : index
    %c0_123 = arith.constant 0 : index
    %196 = vector.load %arg3[%c5_122, %c0_123] : memref<9x32xf32, #tpu.memory_space<vmem>>, vector<1x32xf32>
    %197 = vector.shape_cast %196 : vector<1x32xf32> to vector<32xf32>
    %198 = vector.shape_cast %197 : vector<32xf32> to vector<1x32xf32>
    %199 = vector.broadcast %198 : vector<1x32xf32> to vector<5x32xf32>
    %200 = arith.mulf %195, %199 : vector<5x32xf32>
    %201 = arith.addf %193, %200 : vector<5x32xf32>
    %c2_124 = arith.constant 2 : index
    %c0_125 = arith.constant 0 : index
    %c0_126 = arith.constant 0 : index
    %202 = vector.load %arg7[%c2_124, %c0_125, %c0_126] : memref<7x7x32xf32, #tpu.memory_space<vmem>>, vector<1x5x32xf32>
    %203 = vector.shape_cast %202 : vector<1x5x32xf32> to vector<5x32xf32>
    %c6 = arith.constant 6 : index
    %c0_127 = arith.constant 0 : index
    %204 = vector.load %arg3[%c6, %c0_127] : memref<9x32xf32, #tpu.memory_space<vmem>>, vector<1x32xf32>
    %205 = vector.shape_cast %204 : vector<1x32xf32> to vector<32xf32>
    %206 = vector.shape_cast %205 : vector<32xf32> to vector<1x32xf32>
    %207 = vector.broadcast %206 : vector<1x32xf32> to vector<5x32xf32>
    %208 = arith.mulf %203, %207 : vector<5x32xf32>
    %209 = arith.addf %201, %208 : vector<5x32xf32>
    %c2_128 = arith.constant 2 : index
    %c1_129 = arith.constant 1 : index
    %c0_130 = arith.constant 0 : index
    %210 = vector.load %arg7[%c2_128, %c1_129, %c0_130] : memref<7x7x32xf32, #tpu.memory_space<vmem>>, vector<1x5x32xf32>
    %211 = vector.shape_cast %210 : vector<1x5x32xf32> to vector<5x32xf32>
    %c7 = arith.constant 7 : index
    %c0_131 = arith.constant 0 : index
    %212 = vector.load %arg3[%c7, %c0_131] : memref<9x32xf32, #tpu.memory_space<vmem>>, vector<1x32xf32>
    %213 = vector.shape_cast %212 : vector<1x32xf32> to vector<32xf32>
    %214 = vector.shape_cast %213 : vector<32xf32> to vector<1x32xf32>
    %215 = vector.broadcast %214 : vector<1x32xf32> to vector<5x32xf32>
    %216 = arith.mulf %211, %215 : vector<5x32xf32>
    %217 = arith.addf %209, %216 : vector<5x32xf32>
    %c2_132 = arith.constant 2 : index
    %c2_133 = arith.constant 2 : index
    %c0_134 = arith.constant 0 : index
    %218 = vector.load %arg7[%c2_132, %c2_133, %c0_134] : memref<7x7x32xf32, #tpu.memory_space<vmem>>, vector<1x5x32xf32>
    %219 = vector.shape_cast %218 : vector<1x5x32xf32> to vector<5x32xf32>
    %c8 = arith.constant 8 : index
    %c0_135 = arith.constant 0 : index
    %220 = vector.load %arg3[%c8, %c0_135] : memref<9x32xf32, #tpu.memory_space<vmem>>, vector<1x32xf32>
    %221 = vector.shape_cast %220 : vector<1x32xf32> to vector<32xf32>
    %222 = vector.shape_cast %221 : vector<32xf32> to vector<1x32xf32>
    %223 = vector.broadcast %222 : vector<1x32xf32> to vector<5x32xf32>
    %224 = arith.mulf %219, %223 : vector<5x32xf32>
    %225 = arith.addf %217, %224 : vector<5x32xf32>
    %c3_136 = arith.constant 3 : index
    %c0_137 = arith.constant 0 : index
    %226 = vector.load %arg5[%c3_136, %c0_137] : memref<9x32xf32, #tpu.memory_space<vmem>>, vector<1x32xf32>
    %227 = vector.shape_cast %226 : vector<1x32xf32> to vector<32xf32>
    %228 = vector.shape_cast %227 : vector<32xf32> to vector<1x32xf32>
    %229 = vector.broadcast %228 : vector<1x32xf32> to vector<5x32xf32>
    %230 = arith.addf %225, %229 : vector<5x32xf32>
    %cst_138 = arith.constant 0.000000e+00 : f32
    %231 = vector.broadcast %cst_138 : f32 to vector<5x32xf32>
    %232 = arith.subf %231, %230 : vector<5x32xf32>
    %233 = math.exp %232 : vector<5x32xf32>
    %cst_139 = arith.constant 1.000000e+00 : f32
    %234 = vector.broadcast %cst_139 : f32 to vector<5x32xf32>
    %235 = arith.addf %234, %233 : vector<5x32xf32>
    %cst_140 = arith.constant 1.000000e+00 : f32
    %236 = vector.broadcast %cst_140 : f32 to vector<5x32xf32>
    %237 = arith.divf %236, %235 : vector<5x32xf32>
    %238 = arith.mulf %230, %237 : vector<5x32xf32>
    %c4_141 = arith.constant 4 : index
    %c0_142 = arith.constant 0 : index
    %239 = vector.load %arg5[%c4_141, %c0_142] : memref<9x32xf32, #tpu.memory_space<vmem>>, vector<1x32xf32>
    %240 = vector.shape_cast %239 : vector<1x32xf32> to vector<32xf32>
    %241 = vector.shape_cast %240 : vector<32xf32> to vector<1x32xf32>
    %242 = vector.broadcast %241 : vector<1x32xf32> to vector<5x32xf32>
    %243 = arith.mulf %238, %242 : vector<5x32xf32>
    %c5_143 = arith.constant 5 : index
    %c0_144 = arith.constant 0 : index
    %244 = vector.load %arg5[%c5_143, %c0_144] : memref<9x32xf32, #tpu.memory_space<vmem>>, vector<1x32xf32>
    %245 = vector.shape_cast %244 : vector<1x32xf32> to vector<32xf32>
    %246 = vector.shape_cast %245 : vector<32xf32> to vector<1x32xf32>
    %247 = vector.broadcast %246 : vector<1x32xf32> to vector<5x32xf32>
    %248 = arith.addf %243, %247 : vector<5x32xf32>
    %c1_145 = arith.constant 1 : index
    %c1_146 = arith.constant 1 : index
    %c0_147 = arith.constant 0 : index
    %249 = vector.load %arg7[%c1_145, %c1_146, %c0_147] : memref<7x7x32xf32, #tpu.memory_space<vmem>>, vector<1x5x32xf32>
    %250 = vector.shape_cast %249 : vector<1x5x32xf32> to vector<5x32xf32>
    %251 = arith.addf %248, %250 : vector<5x32xf32>
    %c0_148 = arith.constant 0 : index
    %c0_149 = arith.constant 0 : index
    %252 = vector.load %arg4[%c0_148, %c0_149] : memref<32x32xf32, #tpu.memory_space<vmem>>, vector<32x32xf32>
    %cst_150 = arith.constant dense<0.000000e+00> : vector<5x32xf32>
    %253 = tpu.matmul %251, %252, %cst_150 {dimension_numbers = #tpu.dot_dimension_numbers<[1], [0], [0], [1], [0, 0, 1, 1], [], []>} : vector<5x32xf32>, vector<32x32xf32>, vector<5x32xf32> -> vector<5x32xf32>
    %c6_151 = arith.constant 6 : index
    %c0_152 = arith.constant 0 : index
    %254 = vector.load %arg5[%c6_151, %c0_152] : memref<9x32xf32, #tpu.memory_space<vmem>>, vector<1x32xf32>
    %255 = vector.shape_cast %254 : vector<1x32xf32> to vector<32xf32>
    %256 = vector.shape_cast %255 : vector<32xf32> to vector<1x32xf32>
    %257 = vector.broadcast %256 : vector<1x32xf32> to vector<5x32xf32>
    %258 = arith.addf %253, %257 : vector<5x32xf32>
    %cst_153 = arith.constant 0.000000e+00 : f32
    %259 = vector.broadcast %cst_153 : f32 to vector<5x32xf32>
    %260 = arith.subf %259, %258 : vector<5x32xf32>
    %261 = math.exp %260 : vector<5x32xf32>
    %cst_154 = arith.constant 1.000000e+00 : f32
    %262 = vector.broadcast %cst_154 : f32 to vector<5x32xf32>
    %263 = arith.addf %262, %261 : vector<5x32xf32>
    %cst_155 = arith.constant 1.000000e+00 : f32
    %264 = vector.broadcast %cst_155 : f32 to vector<5x32xf32>
    %265 = arith.divf %264, %263 : vector<5x32xf32>
    %266 = arith.mulf %258, %265 : vector<5x32xf32>
    %c7_156 = arith.constant 7 : index
    %c0_157 = arith.constant 0 : index
    %267 = vector.load %arg5[%c7_156, %c0_157] : memref<9x32xf32, #tpu.memory_space<vmem>>, vector<1x32xf32>
    %268 = vector.shape_cast %267 : vector<1x32xf32> to vector<32xf32>
    %269 = vector.shape_cast %268 : vector<32xf32> to vector<1x32xf32>
    %270 = vector.broadcast %269 : vector<1x32xf32> to vector<5x32xf32>
    %271 = arith.mulf %266, %270 : vector<5x32xf32>
    %c8_158 = arith.constant 8 : index
    %c0_159 = arith.constant 0 : index
    %272 = vector.load %arg5[%c8_158, %c0_159] : memref<9x32xf32, #tpu.memory_space<vmem>>, vector<1x32xf32>
    %273 = vector.shape_cast %272 : vector<1x32xf32> to vector<32xf32>
    %274 = vector.shape_cast %273 : vector<32xf32> to vector<1x32xf32>
    %275 = vector.broadcast %274 : vector<1x32xf32> to vector<5x32xf32>
    %276 = arith.addf %271, %275 : vector<5x32xf32>
    %cst_160 = arith.constant dense<0.000000e+00> : vector<32xf32>
    %277 = vector.multi_reduction <add>, %276, %cst_160 [0] : vector<5x32xf32> to vector<32xf32>
    %278 = vector.shape_cast %277 : vector<32xf32> to vector<1x32xf32>
    %279 = arith.addf %152, %278 : vector<1x32xf32>
    %cst_161 = arith.constant 0.000000e+00 : f32
    %280 = vector.broadcast %cst_161 : f32 to vector<5x32xf32>
    %c1_162 = arith.constant 1 : index
    %c0_163 = arith.constant 0 : index
    %c0_164 = arith.constant 0 : index
    %281 = vector.load %arg7[%c1_162, %c0_163, %c0_164] : memref<7x7x32xf32, #tpu.memory_space<vmem>>, vector<1x5x32xf32>
    %282 = vector.shape_cast %281 : vector<1x5x32xf32> to vector<5x32xf32>
    %c0_165 = arith.constant 0 : index
    %c0_166 = arith.constant 0 : index
    %283 = vector.load %arg3[%c0_165, %c0_166] : memref<9x32xf32, #tpu.memory_space<vmem>>, vector<1x32xf32>
    %284 = vector.shape_cast %283 : vector<1x32xf32> to vector<32xf32>
    %285 = vector.shape_cast %284 : vector<32xf32> to vector<1x32xf32>
    %286 = vector.broadcast %285 : vector<1x32xf32> to vector<5x32xf32>
    %287 = arith.mulf %282, %286 : vector<5x32xf32>
    %288 = arith.addf %280, %287 : vector<5x32xf32>
    %c1_167 = arith.constant 1 : index
    %c1_168 = arith.constant 1 : index
    %c0_169 = arith.constant 0 : index
    %289 = vector.load %arg7[%c1_167, %c1_168, %c0_169] : memref<7x7x32xf32, #tpu.memory_space<vmem>>, vector<1x5x32xf32>
    %290 = vector.shape_cast %289 : vector<1x5x32xf32> to vector<5x32xf32>
    %c1_170 = arith.constant 1 : index
    %c0_171 = arith.constant 0 : index
    %291 = vector.load %arg3[%c1_170, %c0_171] : memref<9x32xf32, #tpu.memory_space<vmem>>, vector<1x32xf32>
    %292 = vector.shape_cast %291 : vector<1x32xf32> to vector<32xf32>
    %293 = vector.shape_cast %292 : vector<32xf32> to vector<1x32xf32>
    %294 = vector.broadcast %293 : vector<1x32xf32> to vector<5x32xf32>
    %295 = arith.mulf %290, %294 : vector<5x32xf32>
    %296 = arith.addf %288, %295 : vector<5x32xf32>
    %c1_172 = arith.constant 1 : index
    %c2_173 = arith.constant 2 : index
    %c0_174 = arith.constant 0 : index
    %297 = vector.load %arg7[%c1_172, %c2_173, %c0_174] : memref<7x7x32xf32, #tpu.memory_space<vmem>>, vector<1x5x32xf32>
    %298 = vector.shape_cast %297 : vector<1x5x32xf32> to vector<5x32xf32>
    %c2_175 = arith.constant 2 : index
    %c0_176 = arith.constant 0 : index
    %299 = vector.load %arg3[%c2_175, %c0_176] : memref<9x32xf32, #tpu.memory_space<vmem>>, vector<1x32xf32>
    %300 = vector.shape_cast %299 : vector<1x32xf32> to vector<32xf32>
    %301 = vector.shape_cast %300 : vector<32xf32> to vector<1x32xf32>
    %302 = vector.broadcast %301 : vector<1x32xf32> to vector<5x32xf32>
    %303 = arith.mulf %298, %302 : vector<5x32xf32>
    %304 = arith.addf %296, %303 : vector<5x32xf32>
    %c2_177 = arith.constant 2 : index
    %c0_178 = arith.constant 0 : index
    %c0_179 = arith.constant 0 : index
    %305 = vector.load %arg7[%c2_177, %c0_178, %c0_179] : memref<7x7x32xf32, #tpu.memory_space<vmem>>, vector<1x5x32xf32>
    %306 = vector.shape_cast %305 : vector<1x5x32xf32> to vector<5x32xf32>
    %c3_180 = arith.constant 3 : index
    %c0_181 = arith.constant 0 : index
    %307 = vector.load %arg3[%c3_180, %c0_181] : memref<9x32xf32, #tpu.memory_space<vmem>>, vector<1x32xf32>
    %308 = vector.shape_cast %307 : vector<1x32xf32> to vector<32xf32>
    %309 = vector.shape_cast %308 : vector<32xf32> to vector<1x32xf32>
    %310 = vector.broadcast %309 : vector<1x32xf32> to vector<5x32xf32>
    %311 = arith.mulf %306, %310 : vector<5x32xf32>
    %312 = arith.addf %304, %311 : vector<5x32xf32>
    %c2_182 = arith.constant 2 : index
    %c1_183 = arith.constant 1 : index
    %c0_184 = arith.constant 0 : index
    %313 = vector.load %arg7[%c2_182, %c1_183, %c0_184] : memref<7x7x32xf32, #tpu.memory_space<vmem>>, vector<1x5x32xf32>
    %314 = vector.shape_cast %313 : vector<1x5x32xf32> to vector<5x32xf32>
    %c4_185 = arith.constant 4 : index
    %c0_186 = arith.constant 0 : index
    %315 = vector.load %arg3[%c4_185, %c0_186] : memref<9x32xf32, #tpu.memory_space<vmem>>, vector<1x32xf32>
    %316 = vector.shape_cast %315 : vector<1x32xf32> to vector<32xf32>
    %317 = vector.shape_cast %316 : vector<32xf32> to vector<1x32xf32>
    %318 = vector.broadcast %317 : vector<1x32xf32> to vector<5x32xf32>
    %319 = arith.mulf %314, %318 : vector<5x32xf32>
    %320 = arith.addf %312, %319 : vector<5x32xf32>
    %c2_187 = arith.constant 2 : index
    %c2_188 = arith.constant 2 : index
    %c0_189 = arith.constant 0 : index
    %321 = vector.load %arg7[%c2_187, %c2_188, %c0_189] : memref<7x7x32xf32, #tpu.memory_space<vmem>>, vector<1x5x32xf32>
    %322 = vector.shape_cast %321 : vector<1x5x32xf32> to vector<5x32xf32>
    %c5_190 = arith.constant 5 : index
    %c0_191 = arith.constant 0 : index
    %323 = vector.load %arg3[%c5_190, %c0_191] : memref<9x32xf32, #tpu.memory_space<vmem>>, vector<1x32xf32>
    %324 = vector.shape_cast %323 : vector<1x32xf32> to vector<32xf32>
    %325 = vector.shape_cast %324 : vector<32xf32> to vector<1x32xf32>
    %326 = vector.broadcast %325 : vector<1x32xf32> to vector<5x32xf32>
    %327 = arith.mulf %322, %326 : vector<5x32xf32>
    %328 = arith.addf %320, %327 : vector<5x32xf32>
    %c3_192 = arith.constant 3 : index
    %c0_193 = arith.constant 0 : index
    %c0_194 = arith.constant 0 : index
    %329 = vector.load %arg7[%c3_192, %c0_193, %c0_194] : memref<7x7x32xf32, #tpu.memory_space<vmem>>, vector<1x5x32xf32>
    %330 = vector.shape_cast %329 : vector<1x5x32xf32> to vector<5x32xf32>
    %c6_195 = arith.constant 6 : index
    %c0_196 = arith.constant 0 : index
    %331 = vector.load %arg3[%c6_195, %c0_196] : memref<9x32xf32, #tpu.memory_space<vmem>>, vector<1x32xf32>
    %332 = vector.shape_cast %331 : vector<1x32xf32> to vector<32xf32>
    %333 = vector.shape_cast %332 : vector<32xf32> to vector<1x32xf32>
    %334 = vector.broadcast %333 : vector<1x32xf32> to vector<5x32xf32>
    %335 = arith.mulf %330, %334 : vector<5x32xf32>
    %336 = arith.addf %328, %335 : vector<5x32xf32>
    %c3_197 = arith.constant 3 : index
    %c1_198 = arith.constant 1 : index
    %c0_199 = arith.constant 0 : index
    %337 = vector.load %arg7[%c3_197, %c1_198, %c0_199] : memref<7x7x32xf32, #tpu.memory_space<vmem>>, vector<1x5x32xf32>
    %338 = vector.shape_cast %337 : vector<1x5x32xf32> to vector<5x32xf32>
    %c7_200 = arith.constant 7 : index
    %c0_201 = arith.constant 0 : index
    %339 = vector.load %arg3[%c7_200, %c0_201] : memref<9x32xf32, #tpu.memory_space<vmem>>, vector<1x32xf32>
    %340 = vector.shape_cast %339 : vector<1x32xf32> to vector<32xf32>
    %341 = vector.shape_cast %340 : vector<32xf32> to vector<1x32xf32>
    %342 = vector.broadcast %341 : vector<1x32xf32> to vector<5x32xf32>
    %343 = arith.mulf %338, %342 : vector<5x32xf32>
    %344 = arith.addf %336, %343 : vector<5x32xf32>
    %c3_202 = arith.constant 3 : index
    %c2_203 = arith.constant 2 : index
    %c0_204 = arith.constant 0 : index
    %345 = vector.load %arg7[%c3_202, %c2_203, %c0_204] : memref<7x7x32xf32, #tpu.memory_space<vmem>>, vector<1x5x32xf32>
    %346 = vector.shape_cast %345 : vector<1x5x32xf32> to vector<5x32xf32>
    %c8_205 = arith.constant 8 : index
    %c0_206 = arith.constant 0 : index
    %347 = vector.load %arg3[%c8_205, %c0_206] : memref<9x32xf32, #tpu.memory_space<vmem>>, vector<1x32xf32>
    %348 = vector.shape_cast %347 : vector<1x32xf32> to vector<32xf32>
    %349 = vector.shape_cast %348 : vector<32xf32> to vector<1x32xf32>
    %350 = vector.broadcast %349 : vector<1x32xf32> to vector<5x32xf32>
    %351 = arith.mulf %346, %350 : vector<5x32xf32>
    %352 = arith.addf %344, %351 : vector<5x32xf32>
    %c3_207 = arith.constant 3 : index
    %c0_208 = arith.constant 0 : index
    %353 = vector.load %arg5[%c3_207, %c0_208] : memref<9x32xf32, #tpu.memory_space<vmem>>, vector<1x32xf32>
    %354 = vector.shape_cast %353 : vector<1x32xf32> to vector<32xf32>
    %355 = vector.shape_cast %354 : vector<32xf32> to vector<1x32xf32>
    %356 = vector.broadcast %355 : vector<1x32xf32> to vector<5x32xf32>
    %357 = arith.addf %352, %356 : vector<5x32xf32>
    %cst_209 = arith.constant 0.000000e+00 : f32
    %358 = vector.broadcast %cst_209 : f32 to vector<5x32xf32>
    %359 = arith.subf %358, %357 : vector<5x32xf32>
    %360 = math.exp %359 : vector<5x32xf32>
    %cst_210 = arith.constant 1.000000e+00 : f32
    %361 = vector.broadcast %cst_210 : f32 to vector<5x32xf32>
    %362 = arith.addf %361, %360 : vector<5x32xf32>
    %cst_211 = arith.constant 1.000000e+00 : f32
    %363 = vector.broadcast %cst_211 : f32 to vector<5x32xf32>
    %364 = arith.divf %363, %362 : vector<5x32xf32>
    %365 = arith.mulf %357, %364 : vector<5x32xf32>
    %c4_212 = arith.constant 4 : index
    %c0_213 = arith.constant 0 : index
    %366 = vector.load %arg5[%c4_212, %c0_213] : memref<9x32xf32, #tpu.memory_space<vmem>>, vector<1x32xf32>
    %367 = vector.shape_cast %366 : vector<1x32xf32> to vector<32xf32>
    %368 = vector.shape_cast %367 : vector<32xf32> to vector<1x32xf32>
    %369 = vector.broadcast %368 : vector<1x32xf32> to vector<5x32xf32>
    %370 = arith.mulf %365, %369 : vector<5x32xf32>
    %c5_214 = arith.constant 5 : index
    %c0_215 = arith.constant 0 : index
    %371 = vector.load %arg5[%c5_214, %c0_215] : memref<9x32xf32, #tpu.memory_space<vmem>>, vector<1x32xf32>
    %372 = vector.shape_cast %371 : vector<1x32xf32> to vector<32xf32>
    %373 = vector.shape_cast %372 : vector<32xf32> to vector<1x32xf32>
    %374 = vector.broadcast %373 : vector<1x32xf32> to vector<5x32xf32>
    %375 = arith.addf %370, %374 : vector<5x32xf32>
    %c2_216 = arith.constant 2 : index
    %c1_217 = arith.constant 1 : index
    %c0_218 = arith.constant 0 : index
    %376 = vector.load %arg7[%c2_216, %c1_217, %c0_218] : memref<7x7x32xf32, #tpu.memory_space<vmem>>, vector<1x5x32xf32>
    %377 = vector.shape_cast %376 : vector<1x5x32xf32> to vector<5x32xf32>
    %378 = arith.addf %375, %377 : vector<5x32xf32>
    %c0_219 = arith.constant 0 : index
    %c0_220 = arith.constant 0 : index
    %379 = vector.load %arg4[%c0_219, %c0_220] : memref<32x32xf32, #tpu.memory_space<vmem>>, vector<32x32xf32>
    %cst_221 = arith.constant dense<0.000000e+00> : vector<5x32xf32>
    %380 = tpu.matmul %378, %379, %cst_221 {dimension_numbers = #tpu.dot_dimension_numbers<[1], [0], [0], [1], [0, 0, 1, 1], [], []>} : vector<5x32xf32>, vector<32x32xf32>, vector<5x32xf32> -> vector<5x32xf32>
    %c6_222 = arith.constant 6 : index
    %c0_223 = arith.constant 0 : index
    %381 = vector.load %arg5[%c6_222, %c0_223] : memref<9x32xf32, #tpu.memory_space<vmem>>, vector<1x32xf32>
    %382 = vector.shape_cast %381 : vector<1x32xf32> to vector<32xf32>
    %383 = vector.shape_cast %382 : vector<32xf32> to vector<1x32xf32>
    %384 = vector.broadcast %383 : vector<1x32xf32> to vector<5x32xf32>
    %385 = arith.addf %380, %384 : vector<5x32xf32>
    %cst_224 = arith.constant 0.000000e+00 : f32
    %386 = vector.broadcast %cst_224 : f32 to vector<5x32xf32>
    %387 = arith.subf %386, %385 : vector<5x32xf32>
    %388 = math.exp %387 : vector<5x32xf32>
    %cst_225 = arith.constant 1.000000e+00 : f32
    %389 = vector.broadcast %cst_225 : f32 to vector<5x32xf32>
    %390 = arith.addf %389, %388 : vector<5x32xf32>
    %cst_226 = arith.constant 1.000000e+00 : f32
    %391 = vector.broadcast %cst_226 : f32 to vector<5x32xf32>
    %392 = arith.divf %391, %390 : vector<5x32xf32>
    %393 = arith.mulf %385, %392 : vector<5x32xf32>
    %c7_227 = arith.constant 7 : index
    %c0_228 = arith.constant 0 : index
    %394 = vector.load %arg5[%c7_227, %c0_228] : memref<9x32xf32, #tpu.memory_space<vmem>>, vector<1x32xf32>
    %395 = vector.shape_cast %394 : vector<1x32xf32> to vector<32xf32>
    %396 = vector.shape_cast %395 : vector<32xf32> to vector<1x32xf32>
    %397 = vector.broadcast %396 : vector<1x32xf32> to vector<5x32xf32>
    %398 = arith.mulf %393, %397 : vector<5x32xf32>
    %c8_229 = arith.constant 8 : index
    %c0_230 = arith.constant 0 : index
    %399 = vector.load %arg5[%c8_229, %c0_230] : memref<9x32xf32, #tpu.memory_space<vmem>>, vector<1x32xf32>
    %400 = vector.shape_cast %399 : vector<1x32xf32> to vector<32xf32>
    %401 = vector.shape_cast %400 : vector<32xf32> to vector<1x32xf32>
    %402 = vector.broadcast %401 : vector<1x32xf32> to vector<5x32xf32>
    %403 = arith.addf %398, %402 : vector<5x32xf32>
    %cst_231 = arith.constant dense<0.000000e+00> : vector<32xf32>
    %404 = vector.multi_reduction <add>, %403, %cst_231 [0] : vector<5x32xf32> to vector<32xf32>
    %405 = vector.shape_cast %404 : vector<32xf32> to vector<1x32xf32>
    %406 = arith.addf %279, %405 : vector<1x32xf32>
    %cst_232 = arith.constant 0.000000e+00 : f32
    %407 = vector.broadcast %cst_232 : f32 to vector<5x32xf32>
    %c2_233 = arith.constant 2 : index
    %c0_234 = arith.constant 0 : index
    %c0_235 = arith.constant 0 : index
    %408 = vector.load %arg7[%c2_233, %c0_234, %c0_235] : memref<7x7x32xf32, #tpu.memory_space<vmem>>, vector<1x5x32xf32>
    %409 = vector.shape_cast %408 : vector<1x5x32xf32> to vector<5x32xf32>
    %c0_236 = arith.constant 0 : index
    %c0_237 = arith.constant 0 : index
    %410 = vector.load %arg3[%c0_236, %c0_237] : memref<9x32xf32, #tpu.memory_space<vmem>>, vector<1x32xf32>
    %411 = vector.shape_cast %410 : vector<1x32xf32> to vector<32xf32>
    %412 = vector.shape_cast %411 : vector<32xf32> to vector<1x32xf32>
    %413 = vector.broadcast %412 : vector<1x32xf32> to vector<5x32xf32>
    %414 = arith.mulf %409, %413 : vector<5x32xf32>
    %415 = arith.addf %407, %414 : vector<5x32xf32>
    %c2_238 = arith.constant 2 : index
    %c1_239 = arith.constant 1 : index
    %c0_240 = arith.constant 0 : index
    %416 = vector.load %arg7[%c2_238, %c1_239, %c0_240] : memref<7x7x32xf32, #tpu.memory_space<vmem>>, vector<1x5x32xf32>
    %417 = vector.shape_cast %416 : vector<1x5x32xf32> to vector<5x32xf32>
    %c1_241 = arith.constant 1 : index
    %c0_242 = arith.constant 0 : index
    %418 = vector.load %arg3[%c1_241, %c0_242] : memref<9x32xf32, #tpu.memory_space<vmem>>, vector<1x32xf32>
    %419 = vector.shape_cast %418 : vector<1x32xf32> to vector<32xf32>
    %420 = vector.shape_cast %419 : vector<32xf32> to vector<1x32xf32>
    %421 = vector.broadcast %420 : vector<1x32xf32> to vector<5x32xf32>
    %422 = arith.mulf %417, %421 : vector<5x32xf32>
    %423 = arith.addf %415, %422 : vector<5x32xf32>
    %c2_243 = arith.constant 2 : index
    %c2_244 = arith.constant 2 : index
    %c0_245 = arith.constant 0 : index
    %424 = vector.load %arg7[%c2_243, %c2_244, %c0_245] : memref<7x7x32xf32, #tpu.memory_space<vmem>>, vector<1x5x32xf32>
    %425 = vector.shape_cast %424 : vector<1x5x32xf32> to vector<5x32xf32>
    %c2_246 = arith.constant 2 : index
    %c0_247 = arith.constant 0 : index
    %426 = vector.load %arg3[%c2_246, %c0_247] : memref<9x32xf32, #tpu.memory_space<vmem>>, vector<1x32xf32>
    %427 = vector.shape_cast %426 : vector<1x32xf32> to vector<32xf32>
    %428 = vector.shape_cast %427 : vector<32xf32> to vector<1x32xf32>
    %429 = vector.broadcast %428 : vector<1x32xf32> to vector<5x32xf32>
    %430 = arith.mulf %425, %429 : vector<5x32xf32>
    %431 = arith.addf %423, %430 : vector<5x32xf32>
    %c3_248 = arith.constant 3 : index
    %c0_249 = arith.constant 0 : index
    %c0_250 = arith.constant 0 : index
    %432 = vector.load %arg7[%c3_248, %c0_249, %c0_250] : memref<7x7x32xf32, #tpu.memory_space<vmem>>, vector<1x5x32xf32>
    %433 = vector.shape_cast %432 : vector<1x5x32xf32> to vector<5x32xf32>
    %c3_251 = arith.constant 3 : index
    %c0_252 = arith.constant 0 : index
    %434 = vector.load %arg3[%c3_251, %c0_252] : memref<9x32xf32, #tpu.memory_space<vmem>>, vector<1x32xf32>
    %435 = vector.shape_cast %434 : vector<1x32xf32> to vector<32xf32>
    %436 = vector.shape_cast %435 : vector<32xf32> to vector<1x32xf32>
    %437 = vector.broadcast %436 : vector<1x32xf32> to vector<5x32xf32>
    %438 = arith.mulf %433, %437 : vector<5x32xf32>
    %439 = arith.addf %431, %438 : vector<5x32xf32>
    %c3_253 = arith.constant 3 : index
    %c1_254 = arith.constant 1 : index
    %c0_255 = arith.constant 0 : index
    %440 = vector.load %arg7[%c3_253, %c1_254, %c0_255] : memref<7x7x32xf32, #tpu.memory_space<vmem>>, vector<1x5x32xf32>
    %441 = vector.shape_cast %440 : vector<1x5x32xf32> to vector<5x32xf32>
    %c4_256 = arith.constant 4 : index
    %c0_257 = arith.constant 0 : index
    %442 = vector.load %arg3[%c4_256, %c0_257] : memref<9x32xf32, #tpu.memory_space<vmem>>, vector<1x32xf32>
    %443 = vector.shape_cast %442 : vector<1x32xf32> to vector<32xf32>
    %444 = vector.shape_cast %443 : vector<32xf32> to vector<1x32xf32>
    %445 = vector.broadcast %444 : vector<1x32xf32> to vector<5x32xf32>
    %446 = arith.mulf %441, %445 : vector<5x32xf32>
    %447 = arith.addf %439, %446 : vector<5x32xf32>
    %c3_258 = arith.constant 3 : index
    %c2_259 = arith.constant 2 : index
    %c0_260 = arith.constant 0 : index
    %448 = vector.load %arg7[%c3_258, %c2_259, %c0_260] : memref<7x7x32xf32, #tpu.memory_space<vmem>>, vector<1x5x32xf32>
    %449 = vector.shape_cast %448 : vector<1x5x32xf32> to vector<5x32xf32>
    %c5_261 = arith.constant 5 : index
    %c0_262 = arith.constant 0 : index
    %450 = vector.load %arg3[%c5_261, %c0_262] : memref<9x32xf32, #tpu.memory_space<vmem>>, vector<1x32xf32>
    %451 = vector.shape_cast %450 : vector<1x32xf32> to vector<32xf32>
    %452 = vector.shape_cast %451 : vector<32xf32> to vector<1x32xf32>
    %453 = vector.broadcast %452 : vector<1x32xf32> to vector<5x32xf32>
    %454 = arith.mulf %449, %453 : vector<5x32xf32>
    %455 = arith.addf %447, %454 : vector<5x32xf32>
    %c4_263 = arith.constant 4 : index
    %c0_264 = arith.constant 0 : index
    %c0_265 = arith.constant 0 : index
    %456 = vector.load %arg7[%c4_263, %c0_264, %c0_265] : memref<7x7x32xf32, #tpu.memory_space<vmem>>, vector<1x5x32xf32>
    %457 = vector.shape_cast %456 : vector<1x5x32xf32> to vector<5x32xf32>
    %c6_266 = arith.constant 6 : index
    %c0_267 = arith.constant 0 : index
    %458 = vector.load %arg3[%c6_266, %c0_267] : memref<9x32xf32, #tpu.memory_space<vmem>>, vector<1x32xf32>
    %459 = vector.shape_cast %458 : vector<1x32xf32> to vector<32xf32>
    %460 = vector.shape_cast %459 : vector<32xf32> to vector<1x32xf32>
    %461 = vector.broadcast %460 : vector<1x32xf32> to vector<5x32xf32>
    %462 = arith.mulf %457, %461 : vector<5x32xf32>
    %463 = arith.addf %455, %462 : vector<5x32xf32>
    %c4_268 = arith.constant 4 : index
    %c1_269 = arith.constant 1 : index
    %c0_270 = arith.constant 0 : index
    %464 = vector.load %arg7[%c4_268, %c1_269, %c0_270] : memref<7x7x32xf32, #tpu.memory_space<vmem>>, vector<1x5x32xf32>
    %465 = vector.shape_cast %464 : vector<1x5x32xf32> to vector<5x32xf32>
    %c7_271 = arith.constant 7 : index
    %c0_272 = arith.constant 0 : index
    %466 = vector.load %arg3[%c7_271, %c0_272] : memref<9x32xf32, #tpu.memory_space<vmem>>, vector<1x32xf32>
    %467 = vector.shape_cast %466 : vector<1x32xf32> to vector<32xf32>
    %468 = vector.shape_cast %467 : vector<32xf32> to vector<1x32xf32>
    %469 = vector.broadcast %468 : vector<1x32xf32> to vector<5x32xf32>
    %470 = arith.mulf %465, %469 : vector<5x32xf32>
    %471 = arith.addf %463, %470 : vector<5x32xf32>
    %c4_273 = arith.constant 4 : index
    %c2_274 = arith.constant 2 : index
    %c0_275 = arith.constant 0 : index
    %472 = vector.load %arg7[%c4_273, %c2_274, %c0_275] : memref<7x7x32xf32, #tpu.memory_space<vmem>>, vector<1x5x32xf32>
    %473 = vector.shape_cast %472 : vector<1x5x32xf32> to vector<5x32xf32>
    %c8_276 = arith.constant 8 : index
    %c0_277 = arith.constant 0 : index
    %474 = vector.load %arg3[%c8_276, %c0_277] : memref<9x32xf32, #tpu.memory_space<vmem>>, vector<1x32xf32>
    %475 = vector.shape_cast %474 : vector<1x32xf32> to vector<32xf32>
    %476 = vector.shape_cast %475 : vector<32xf32> to vector<1x32xf32>
    %477 = vector.broadcast %476 : vector<1x32xf32> to vector<5x32xf32>
    %478 = arith.mulf %473, %477 : vector<5x32xf32>
    %479 = arith.addf %471, %478 : vector<5x32xf32>
    %c3_278 = arith.constant 3 : index
    %c0_279 = arith.constant 0 : index
    %480 = vector.load %arg5[%c3_278, %c0_279] : memref<9x32xf32, #tpu.memory_space<vmem>>, vector<1x32xf32>
    %481 = vector.shape_cast %480 : vector<1x32xf32> to vector<32xf32>
    %482 = vector.shape_cast %481 : vector<32xf32> to vector<1x32xf32>
    %483 = vector.broadcast %482 : vector<1x32xf32> to vector<5x32xf32>
    %484 = arith.addf %479, %483 : vector<5x32xf32>
    %cst_280 = arith.constant 0.000000e+00 : f32
    %485 = vector.broadcast %cst_280 : f32 to vector<5x32xf32>
    %486 = arith.subf %485, %484 : vector<5x32xf32>
    %487 = math.exp %486 : vector<5x32xf32>
    %cst_281 = arith.constant 1.000000e+00 : f32
    %488 = vector.broadcast %cst_281 : f32 to vector<5x32xf32>
    %489 = arith.addf %488, %487 : vector<5x32xf32>
    %cst_282 = arith.constant 1.000000e+00 : f32
    %490 = vector.broadcast %cst_282 : f32 to vector<5x32xf32>
    %491 = arith.divf %490, %489 : vector<5x32xf32>
    %492 = arith.mulf %484, %491 : vector<5x32xf32>
    %c4_283 = arith.constant 4 : index
    %c0_284 = arith.constant 0 : index
    %493 = vector.load %arg5[%c4_283, %c0_284] : memref<9x32xf32, #tpu.memory_space<vmem>>, vector<1x32xf32>
    %494 = vector.shape_cast %493 : vector<1x32xf32> to vector<32xf32>
    %495 = vector.shape_cast %494 : vector<32xf32> to vector<1x32xf32>
    %496 = vector.broadcast %495 : vector<1x32xf32> to vector<5x32xf32>
    %497 = arith.mulf %492, %496 : vector<5x32xf32>
    %c5_285 = arith.constant 5 : index
    %c0_286 = arith.constant 0 : index
    %498 = vector.load %arg5[%c5_285, %c0_286] : memref<9x32xf32, #tpu.memory_space<vmem>>, vector<1x32xf32>
    %499 = vector.shape_cast %498 : vector<1x32xf32> to vector<32xf32>
    %500 = vector.shape_cast %499 : vector<32xf32> to vector<1x32xf32>
    %501 = vector.broadcast %500 : vector<1x32xf32> to vector<5x32xf32>
    %502 = arith.addf %497, %501 : vector<5x32xf32>
    %c3_287 = arith.constant 3 : index
    %c1_288 = arith.constant 1 : index
    %c0_289 = arith.constant 0 : index
    %503 = vector.load %arg7[%c3_287, %c1_288, %c0_289] : memref<7x7x32xf32, #tpu.memory_space<vmem>>, vector<1x5x32xf32>
    %504 = vector.shape_cast %503 : vector<1x5x32xf32> to vector<5x32xf32>
    %505 = arith.addf %502, %504 : vector<5x32xf32>
    %c0_290 = arith.constant 0 : index
    %c0_291 = arith.constant 0 : index
    %506 = vector.load %arg4[%c0_290, %c0_291] : memref<32x32xf32, #tpu.memory_space<vmem>>, vector<32x32xf32>
    %cst_292 = arith.constant dense<0.000000e+00> : vector<5x32xf32>
    %507 = tpu.matmul %505, %506, %cst_292 {dimension_numbers = #tpu.dot_dimension_numbers<[1], [0], [0], [1], [0, 0, 1, 1], [], []>} : vector<5x32xf32>, vector<32x32xf32>, vector<5x32xf32> -> vector<5x32xf32>
    %c6_293 = arith.constant 6 : index
    %c0_294 = arith.constant 0 : index
    %508 = vector.load %arg5[%c6_293, %c0_294] : memref<9x32xf32, #tpu.memory_space<vmem>>, vector<1x32xf32>
    %509 = vector.shape_cast %508 : vector<1x32xf32> to vector<32xf32>
    %510 = vector.shape_cast %509 : vector<32xf32> to vector<1x32xf32>
    %511 = vector.broadcast %510 : vector<1x32xf32> to vector<5x32xf32>
    %512 = arith.addf %507, %511 : vector<5x32xf32>
    %cst_295 = arith.constant 0.000000e+00 : f32
    %513 = vector.broadcast %cst_295 : f32 to vector<5x32xf32>
    %514 = arith.subf %513, %512 : vector<5x32xf32>
    %515 = math.exp %514 : vector<5x32xf32>
    %cst_296 = arith.constant 1.000000e+00 : f32
    %516 = vector.broadcast %cst_296 : f32 to vector<5x32xf32>
    %517 = arith.addf %516, %515 : vector<5x32xf32>
    %cst_297 = arith.constant 1.000000e+00 : f32
    %518 = vector.broadcast %cst_297 : f32 to vector<5x32xf32>
    %519 = arith.divf %518, %517 : vector<5x32xf32>
    %520 = arith.mulf %512, %519 : vector<5x32xf32>
    %c7_298 = arith.constant 7 : index
    %c0_299 = arith.constant 0 : index
    %521 = vector.load %arg5[%c7_298, %c0_299] : memref<9x32xf32, #tpu.memory_space<vmem>>, vector<1x32xf32>
    %522 = vector.shape_cast %521 : vector<1x32xf32> to vector<32xf32>
    %523 = vector.shape_cast %522 : vector<32xf32> to vector<1x32xf32>
    %524 = vector.broadcast %523 : vector<1x32xf32> to vector<5x32xf32>
    %525 = arith.mulf %520, %524 : vector<5x32xf32>
    %c8_300 = arith.constant 8 : index
    %c0_301 = arith.constant 0 : index
    %526 = vector.load %arg5[%c8_300, %c0_301] : memref<9x32xf32, #tpu.memory_space<vmem>>, vector<1x32xf32>
    %527 = vector.shape_cast %526 : vector<1x32xf32> to vector<32xf32>
    %528 = vector.shape_cast %527 : vector<32xf32> to vector<1x32xf32>
    %529 = vector.broadcast %528 : vector<1x32xf32> to vector<5x32xf32>
    %530 = arith.addf %525, %529 : vector<5x32xf32>
    %cst_302 = arith.constant dense<0.000000e+00> : vector<32xf32>
    %531 = vector.multi_reduction <add>, %530, %cst_302 [0] : vector<5x32xf32> to vector<32xf32>
    %532 = vector.shape_cast %531 : vector<32xf32> to vector<1x32xf32>
    %533 = arith.addf %406, %532 : vector<1x32xf32>
    %cst_303 = arith.constant 0.000000e+00 : f32
    %534 = vector.broadcast %cst_303 : f32 to vector<5x32xf32>
    %c3_304 = arith.constant 3 : index
    %c0_305 = arith.constant 0 : index
    %c0_306 = arith.constant 0 : index
    %535 = vector.load %arg7[%c3_304, %c0_305, %c0_306] : memref<7x7x32xf32, #tpu.memory_space<vmem>>, vector<1x5x32xf32>
    %536 = vector.shape_cast %535 : vector<1x5x32xf32> to vector<5x32xf32>
    %c0_307 = arith.constant 0 : index
    %c0_308 = arith.constant 0 : index
    %537 = vector.load %arg3[%c0_307, %c0_308] : memref<9x32xf32, #tpu.memory_space<vmem>>, vector<1x32xf32>
    %538 = vector.shape_cast %537 : vector<1x32xf32> to vector<32xf32>
    %539 = vector.shape_cast %538 : vector<32xf32> to vector<1x32xf32>
    %540 = vector.broadcast %539 : vector<1x32xf32> to vector<5x32xf32>
    %541 = arith.mulf %536, %540 : vector<5x32xf32>
    %542 = arith.addf %534, %541 : vector<5x32xf32>
    %c3_309 = arith.constant 3 : index
    %c1_310 = arith.constant 1 : index
    %c0_311 = arith.constant 0 : index
    %543 = vector.load %arg7[%c3_309, %c1_310, %c0_311] : memref<7x7x32xf32, #tpu.memory_space<vmem>>, vector<1x5x32xf32>
    %544 = vector.shape_cast %543 : vector<1x5x32xf32> to vector<5x32xf32>
    %c1_312 = arith.constant 1 : index
    %c0_313 = arith.constant 0 : index
    %545 = vector.load %arg3[%c1_312, %c0_313] : memref<9x32xf32, #tpu.memory_space<vmem>>, vector<1x32xf32>
    %546 = vector.shape_cast %545 : vector<1x32xf32> to vector<32xf32>
    %547 = vector.shape_cast %546 : vector<32xf32> to vector<1x32xf32>
    %548 = vector.broadcast %547 : vector<1x32xf32> to vector<5x32xf32>
    %549 = arith.mulf %544, %548 : vector<5x32xf32>
    %550 = arith.addf %542, %549 : vector<5x32xf32>
    %c3_314 = arith.constant 3 : index
    %c2_315 = arith.constant 2 : index
    %c0_316 = arith.constant 0 : index
    %551 = vector.load %arg7[%c3_314, %c2_315, %c0_316] : memref<7x7x32xf32, #tpu.memory_space<vmem>>, vector<1x5x32xf32>
    %552 = vector.shape_cast %551 : vector<1x5x32xf32> to vector<5x32xf32>
    %c2_317 = arith.constant 2 : index
    %c0_318 = arith.constant 0 : index
    %553 = vector.load %arg3[%c2_317, %c0_318] : memref<9x32xf32, #tpu.memory_space<vmem>>, vector<1x32xf32>
    %554 = vector.shape_cast %553 : vector<1x32xf32> to vector<32xf32>
    %555 = vector.shape_cast %554 : vector<32xf32> to vector<1x32xf32>
    %556 = vector.broadcast %555 : vector<1x32xf32> to vector<5x32xf32>
    %557 = arith.mulf %552, %556 : vector<5x32xf32>
    %558 = arith.addf %550, %557 : vector<5x32xf32>
    %c4_319 = arith.constant 4 : index
    %c0_320 = arith.constant 0 : index
    %c0_321 = arith.constant 0 : index
    %559 = vector.load %arg7[%c4_319, %c0_320, %c0_321] : memref<7x7x32xf32, #tpu.memory_space<vmem>>, vector<1x5x32xf32>
    %560 = vector.shape_cast %559 : vector<1x5x32xf32> to vector<5x32xf32>
    %c3_322 = arith.constant 3 : index
    %c0_323 = arith.constant 0 : index
    %561 = vector.load %arg3[%c3_322, %c0_323] : memref<9x32xf32, #tpu.memory_space<vmem>>, vector<1x32xf32>
    %562 = vector.shape_cast %561 : vector<1x32xf32> to vector<32xf32>
    %563 = vector.shape_cast %562 : vector<32xf32> to vector<1x32xf32>
    %564 = vector.broadcast %563 : vector<1x32xf32> to vector<5x32xf32>
    %565 = arith.mulf %560, %564 : vector<5x32xf32>
    %566 = arith.addf %558, %565 : vector<5x32xf32>
    %c4_324 = arith.constant 4 : index
    %c1_325 = arith.constant 1 : index
    %c0_326 = arith.constant 0 : index
    %567 = vector.load %arg7[%c4_324, %c1_325, %c0_326] : memref<7x7x32xf32, #tpu.memory_space<vmem>>, vector<1x5x32xf32>
    %568 = vector.shape_cast %567 : vector<1x5x32xf32> to vector<5x32xf32>
    %c4_327 = arith.constant 4 : index
    %c0_328 = arith.constant 0 : index
    %569 = vector.load %arg3[%c4_327, %c0_328] : memref<9x32xf32, #tpu.memory_space<vmem>>, vector<1x32xf32>
    %570 = vector.shape_cast %569 : vector<1x32xf32> to vector<32xf32>
    %571 = vector.shape_cast %570 : vector<32xf32> to vector<1x32xf32>
    %572 = vector.broadcast %571 : vector<1x32xf32> to vector<5x32xf32>
    %573 = arith.mulf %568, %572 : vector<5x32xf32>
    %574 = arith.addf %566, %573 : vector<5x32xf32>
    %c4_329 = arith.constant 4 : index
    %c2_330 = arith.constant 2 : index
    %c0_331 = arith.constant 0 : index
    %575 = vector.load %arg7[%c4_329, %c2_330, %c0_331] : memref<7x7x32xf32, #tpu.memory_space<vmem>>, vector<1x5x32xf32>
    %576 = vector.shape_cast %575 : vector<1x5x32xf32> to vector<5x32xf32>
    %c5_332 = arith.constant 5 : index
    %c0_333 = arith.constant 0 : index
    %577 = vector.load %arg3[%c5_332, %c0_333] : memref<9x32xf32, #tpu.memory_space<vmem>>, vector<1x32xf32>
    %578 = vector.shape_cast %577 : vector<1x32xf32> to vector<32xf32>
    %579 = vector.shape_cast %578 : vector<32xf32> to vector<1x32xf32>
    %580 = vector.broadcast %579 : vector<1x32xf32> to vector<5x32xf32>
    %581 = arith.mulf %576, %580 : vector<5x32xf32>
    %582 = arith.addf %574, %581 : vector<5x32xf32>
    %c5_334 = arith.constant 5 : index
    %c0_335 = arith.constant 0 : index
    %c0_336 = arith.constant 0 : index
    %583 = vector.load %arg7[%c5_334, %c0_335, %c0_336] : memref<7x7x32xf32, #tpu.memory_space<vmem>>, vector<1x5x32xf32>
    %584 = vector.shape_cast %583 : vector<1x5x32xf32> to vector<5x32xf32>
    %c6_337 = arith.constant 6 : index
    %c0_338 = arith.constant 0 : index
    %585 = vector.load %arg3[%c6_337, %c0_338] : memref<9x32xf32, #tpu.memory_space<vmem>>, vector<1x32xf32>
    %586 = vector.shape_cast %585 : vector<1x32xf32> to vector<32xf32>
    %587 = vector.shape_cast %586 : vector<32xf32> to vector<1x32xf32>
    %588 = vector.broadcast %587 : vector<1x32xf32> to vector<5x32xf32>
    %589 = arith.mulf %584, %588 : vector<5x32xf32>
    %590 = arith.addf %582, %589 : vector<5x32xf32>
    %c5_339 = arith.constant 5 : index
    %c1_340 = arith.constant 1 : index
    %c0_341 = arith.constant 0 : index
    %591 = vector.load %arg7[%c5_339, %c1_340, %c0_341] : memref<7x7x32xf32, #tpu.memory_space<vmem>>, vector<1x5x32xf32>
    %592 = vector.shape_cast %591 : vector<1x5x32xf32> to vector<5x32xf32>
    %c7_342 = arith.constant 7 : index
    %c0_343 = arith.constant 0 : index
    %593 = vector.load %arg3[%c7_342, %c0_343] : memref<9x32xf32, #tpu.memory_space<vmem>>, vector<1x32xf32>
    %594 = vector.shape_cast %593 : vector<1x32xf32> to vector<32xf32>
    %595 = vector.shape_cast %594 : vector<32xf32> to vector<1x32xf32>
    %596 = vector.broadcast %595 : vector<1x32xf32> to vector<5x32xf32>
    %597 = arith.mulf %592, %596 : vector<5x32xf32>
    %598 = arith.addf %590, %597 : vector<5x32xf32>
    %c5_344 = arith.constant 5 : index
    %c2_345 = arith.constant 2 : index
    %c0_346 = arith.constant 0 : index
    %599 = vector.load %arg7[%c5_344, %c2_345, %c0_346] : memref<7x7x32xf32, #tpu.memory_space<vmem>>, vector<1x5x32xf32>
    %600 = vector.shape_cast %599 : vector<1x5x32xf32> to vector<5x32xf32>
    %c8_347 = arith.constant 8 : index
    %c0_348 = arith.constant 0 : index
    %601 = vector.load %arg3[%c8_347, %c0_348] : memref<9x32xf32, #tpu.memory_space<vmem>>, vector<1x32xf32>
    %602 = vector.shape_cast %601 : vector<1x32xf32> to vector<32xf32>
    %603 = vector.shape_cast %602 : vector<32xf32> to vector<1x32xf32>
    %604 = vector.broadcast %603 : vector<1x32xf32> to vector<5x32xf32>
    %605 = arith.mulf %600, %604 : vector<5x32xf32>
    %606 = arith.addf %598, %605 : vector<5x32xf32>
    %c3_349 = arith.constant 3 : index
    %c0_350 = arith.constant 0 : index
    %607 = vector.load %arg5[%c3_349, %c0_350] : memref<9x32xf32, #tpu.memory_space<vmem>>, vector<1x32xf32>
    %608 = vector.shape_cast %607 : vector<1x32xf32> to vector<32xf32>
    %609 = vector.shape_cast %608 : vector<32xf32> to vector<1x32xf32>
    %610 = vector.broadcast %609 : vector<1x32xf32> to vector<5x32xf32>
    %611 = arith.addf %606, %610 : vector<5x32xf32>
    %cst_351 = arith.constant 0.000000e+00 : f32
    %612 = vector.broadcast %cst_351 : f32 to vector<5x32xf32>
    %613 = arith.subf %612, %611 : vector<5x32xf32>
    %614 = math.exp %613 : vector<5x32xf32>
    %cst_352 = arith.constant 1.000000e+00 : f32
    %615 = vector.broadcast %cst_352 : f32 to vector<5x32xf32>
    %616 = arith.addf %615, %614 : vector<5x32xf32>
    %cst_353 = arith.constant 1.000000e+00 : f32
    %617 = vector.broadcast %cst_353 : f32 to vector<5x32xf32>
    %618 = arith.divf %617, %616 : vector<5x32xf32>
    %619 = arith.mulf %611, %618 : vector<5x32xf32>
    %c4_354 = arith.constant 4 : index
    %c0_355 = arith.constant 0 : index
    %620 = vector.load %arg5[%c4_354, %c0_355] : memref<9x32xf32, #tpu.memory_space<vmem>>, vector<1x32xf32>
    %621 = vector.shape_cast %620 : vector<1x32xf32> to vector<32xf32>
    %622 = vector.shape_cast %621 : vector<32xf32> to vector<1x32xf32>
    %623 = vector.broadcast %622 : vector<1x32xf32> to vector<5x32xf32>
    %624 = arith.mulf %619, %623 : vector<5x32xf32>
    %c5_356 = arith.constant 5 : index
    %c0_357 = arith.constant 0 : index
    %625 = vector.load %arg5[%c5_356, %c0_357] : memref<9x32xf32, #tpu.memory_space<vmem>>, vector<1x32xf32>
    %626 = vector.shape_cast %625 : vector<1x32xf32> to vector<32xf32>
    %627 = vector.shape_cast %626 : vector<32xf32> to vector<1x32xf32>
    %628 = vector.broadcast %627 : vector<1x32xf32> to vector<5x32xf32>
    %629 = arith.addf %624, %628 : vector<5x32xf32>
    %c4_358 = arith.constant 4 : index
    %c1_359 = arith.constant 1 : index
    %c0_360 = arith.constant 0 : index
    %630 = vector.load %arg7[%c4_358, %c1_359, %c0_360] : memref<7x7x32xf32, #tpu.memory_space<vmem>>, vector<1x5x32xf32>
    %631 = vector.shape_cast %630 : vector<1x5x32xf32> to vector<5x32xf32>
    %632 = arith.addf %629, %631 : vector<5x32xf32>
    %c0_361 = arith.constant 0 : index
    %c0_362 = arith.constant 0 : index
    %633 = vector.load %arg4[%c0_361, %c0_362] : memref<32x32xf32, #tpu.memory_space<vmem>>, vector<32x32xf32>
    %cst_363 = arith.constant dense<0.000000e+00> : vector<5x32xf32>
    %634 = tpu.matmul %632, %633, %cst_363 {dimension_numbers = #tpu.dot_dimension_numbers<[1], [0], [0], [1], [0, 0, 1, 1], [], []>} : vector<5x32xf32>, vector<32x32xf32>, vector<5x32xf32> -> vector<5x32xf32>
    %c6_364 = arith.constant 6 : index
    %c0_365 = arith.constant 0 : index
    %635 = vector.load %arg5[%c6_364, %c0_365] : memref<9x32xf32, #tpu.memory_space<vmem>>, vector<1x32xf32>
    %636 = vector.shape_cast %635 : vector<1x32xf32> to vector<32xf32>
    %637 = vector.shape_cast %636 : vector<32xf32> to vector<1x32xf32>
    %638 = vector.broadcast %637 : vector<1x32xf32> to vector<5x32xf32>
    %639 = arith.addf %634, %638 : vector<5x32xf32>
    %cst_366 = arith.constant 0.000000e+00 : f32
    %640 = vector.broadcast %cst_366 : f32 to vector<5x32xf32>
    %641 = arith.subf %640, %639 : vector<5x32xf32>
    %642 = math.exp %641 : vector<5x32xf32>
    %cst_367 = arith.constant 1.000000e+00 : f32
    %643 = vector.broadcast %cst_367 : f32 to vector<5x32xf32>
    %644 = arith.addf %643, %642 : vector<5x32xf32>
    %cst_368 = arith.constant 1.000000e+00 : f32
    %645 = vector.broadcast %cst_368 : f32 to vector<5x32xf32>
    %646 = arith.divf %645, %644 : vector<5x32xf32>
    %647 = arith.mulf %639, %646 : vector<5x32xf32>
    %c7_369 = arith.constant 7 : index
    %c0_370 = arith.constant 0 : index
    %648 = vector.load %arg5[%c7_369, %c0_370] : memref<9x32xf32, #tpu.memory_space<vmem>>, vector<1x32xf32>
    %649 = vector.shape_cast %648 : vector<1x32xf32> to vector<32xf32>
    %650 = vector.shape_cast %649 : vector<32xf32> to vector<1x32xf32>
    %651 = vector.broadcast %650 : vector<1x32xf32> to vector<5x32xf32>
    %652 = arith.mulf %647, %651 : vector<5x32xf32>
    %c8_371 = arith.constant 8 : index
    %c0_372 = arith.constant 0 : index
    %653 = vector.load %arg5[%c8_371, %c0_372] : memref<9x32xf32, #tpu.memory_space<vmem>>, vector<1x32xf32>
    %654 = vector.shape_cast %653 : vector<1x32xf32> to vector<32xf32>
    %655 = vector.shape_cast %654 : vector<32xf32> to vector<1x32xf32>
    %656 = vector.broadcast %655 : vector<1x32xf32> to vector<5x32xf32>
    %657 = arith.addf %652, %656 : vector<5x32xf32>
    %cst_373 = arith.constant dense<0.000000e+00> : vector<32xf32>
    %658 = vector.multi_reduction <add>, %657, %cst_373 [0] : vector<5x32xf32> to vector<32xf32>
    %659 = vector.shape_cast %658 : vector<32xf32> to vector<1x32xf32>
    %660 = arith.addf %533, %659 : vector<1x32xf32>
    %cst_374 = arith.constant 0.000000e+00 : f32
    %661 = vector.broadcast %cst_374 : f32 to vector<5x32xf32>
    %c4_375 = arith.constant 4 : index
    %c0_376 = arith.constant 0 : index
    %c0_377 = arith.constant 0 : index
    %662 = vector.load %arg7[%c4_375, %c0_376, %c0_377] : memref<7x7x32xf32, #tpu.memory_space<vmem>>, vector<1x5x32xf32>
    %663 = vector.shape_cast %662 : vector<1x5x32xf32> to vector<5x32xf32>
    %c0_378 = arith.constant 0 : index
    %c0_379 = arith.constant 0 : index
    %664 = vector.load %arg3[%c0_378, %c0_379] : memref<9x32xf32, #tpu.memory_space<vmem>>, vector<1x32xf32>
    %665 = vector.shape_cast %664 : vector<1x32xf32> to vector<32xf32>
    %666 = vector.shape_cast %665 : vector<32xf32> to vector<1x32xf32>
    %667 = vector.broadcast %666 : vector<1x32xf32> to vector<5x32xf32>
    %668 = arith.mulf %663, %667 : vector<5x32xf32>
    %669 = arith.addf %661, %668 : vector<5x32xf32>
    %c4_380 = arith.constant 4 : index
    %c1_381 = arith.constant 1 : index
    %c0_382 = arith.constant 0 : index
    %670 = vector.load %arg7[%c4_380, %c1_381, %c0_382] : memref<7x7x32xf32, #tpu.memory_space<vmem>>, vector<1x5x32xf32>
    %671 = vector.shape_cast %670 : vector<1x5x32xf32> to vector<5x32xf32>
    %c1_383 = arith.constant 1 : index
    %c0_384 = arith.constant 0 : index
    %672 = vector.load %arg3[%c1_383, %c0_384] : memref<9x32xf32, #tpu.memory_space<vmem>>, vector<1x32xf32>
    %673 = vector.shape_cast %672 : vector<1x32xf32> to vector<32xf32>
    %674 = vector.shape_cast %673 : vector<32xf32> to vector<1x32xf32>
    %675 = vector.broadcast %674 : vector<1x32xf32> to vector<5x32xf32>
    %676 = arith.mulf %671, %675 : vector<5x32xf32>
    %677 = arith.addf %669, %676 : vector<5x32xf32>
    %c4_385 = arith.constant 4 : index
    %c2_386 = arith.constant 2 : index
    %c0_387 = arith.constant 0 : index
    %678 = vector.load %arg7[%c4_385, %c2_386, %c0_387] : memref<7x7x32xf32, #tpu.memory_space<vmem>>, vector<1x5x32xf32>
    %679 = vector.shape_cast %678 : vector<1x5x32xf32> to vector<5x32xf32>
    %c2_388 = arith.constant 2 : index
    %c0_389 = arith.constant 0 : index
    %680 = vector.load %arg3[%c2_388, %c0_389] : memref<9x32xf32, #tpu.memory_space<vmem>>, vector<1x32xf32>
    %681 = vector.shape_cast %680 : vector<1x32xf32> to vector<32xf32>
    %682 = vector.shape_cast %681 : vector<32xf32> to vector<1x32xf32>
    %683 = vector.broadcast %682 : vector<1x32xf32> to vector<5x32xf32>
    %684 = arith.mulf %679, %683 : vector<5x32xf32>
    %685 = arith.addf %677, %684 : vector<5x32xf32>
    %c5_390 = arith.constant 5 : index
    %c0_391 = arith.constant 0 : index
    %c0_392 = arith.constant 0 : index
    %686 = vector.load %arg7[%c5_390, %c0_391, %c0_392] : memref<7x7x32xf32, #tpu.memory_space<vmem>>, vector<1x5x32xf32>
    %687 = vector.shape_cast %686 : vector<1x5x32xf32> to vector<5x32xf32>
    %c3_393 = arith.constant 3 : index
    %c0_394 = arith.constant 0 : index
    %688 = vector.load %arg3[%c3_393, %c0_394] : memref<9x32xf32, #tpu.memory_space<vmem>>, vector<1x32xf32>
    %689 = vector.shape_cast %688 : vector<1x32xf32> to vector<32xf32>
    %690 = vector.shape_cast %689 : vector<32xf32> to vector<1x32xf32>
    %691 = vector.broadcast %690 : vector<1x32xf32> to vector<5x32xf32>
    %692 = arith.mulf %687, %691 : vector<5x32xf32>
    %693 = arith.addf %685, %692 : vector<5x32xf32>
    %c5_395 = arith.constant 5 : index
    %c1_396 = arith.constant 1 : index
    %c0_397 = arith.constant 0 : index
    %694 = vector.load %arg7[%c5_395, %c1_396, %c0_397] : memref<7x7x32xf32, #tpu.memory_space<vmem>>, vector<1x5x32xf32>
    %695 = vector.shape_cast %694 : vector<1x5x32xf32> to vector<5x32xf32>
    %c4_398 = arith.constant 4 : index
    %c0_399 = arith.constant 0 : index
    %696 = vector.load %arg3[%c4_398, %c0_399] : memref<9x32xf32, #tpu.memory_space<vmem>>, vector<1x32xf32>
    %697 = vector.shape_cast %696 : vector<1x32xf32> to vector<32xf32>
    %698 = vector.shape_cast %697 : vector<32xf32> to vector<1x32xf32>
    %699 = vector.broadcast %698 : vector<1x32xf32> to vector<5x32xf32>
    %700 = arith.mulf %695, %699 : vector<5x32xf32>
    %701 = arith.addf %693, %700 : vector<5x32xf32>
    %c5_400 = arith.constant 5 : index
    %c2_401 = arith.constant 2 : index
    %c0_402 = arith.constant 0 : index
    %702 = vector.load %arg7[%c5_400, %c2_401, %c0_402] : memref<7x7x32xf32, #tpu.memory_space<vmem>>, vector<1x5x32xf32>
    %703 = vector.shape_cast %702 : vector<1x5x32xf32> to vector<5x32xf32>
    %c5_403 = arith.constant 5 : index
    %c0_404 = arith.constant 0 : index
    %704 = vector.load %arg3[%c5_403, %c0_404] : memref<9x32xf32, #tpu.memory_space<vmem>>, vector<1x32xf32>
    %705 = vector.shape_cast %704 : vector<1x32xf32> to vector<32xf32>
    %706 = vector.shape_cast %705 : vector<32xf32> to vector<1x32xf32>
    %707 = vector.broadcast %706 : vector<1x32xf32> to vector<5x32xf32>
    %708 = arith.mulf %703, %707 : vector<5x32xf32>
    %709 = arith.addf %701, %708 : vector<5x32xf32>
    %c6_405 = arith.constant 6 : index
    %c0_406 = arith.constant 0 : index
    %c0_407 = arith.constant 0 : index
    %710 = vector.load %arg7[%c6_405, %c0_406, %c0_407] : memref<7x7x32xf32, #tpu.memory_space<vmem>>, vector<1x5x32xf32>
    %711 = vector.shape_cast %710 : vector<1x5x32xf32> to vector<5x32xf32>
    %c6_408 = arith.constant 6 : index
    %c0_409 = arith.constant 0 : index
    %712 = vector.load %arg3[%c6_408, %c0_409] : memref<9x32xf32, #tpu.memory_space<vmem>>, vector<1x32xf32>
    %713 = vector.shape_cast %712 : vector<1x32xf32> to vector<32xf32>
    %714 = vector.shape_cast %713 : vector<32xf32> to vector<1x32xf32>
    %715 = vector.broadcast %714 : vector<1x32xf32> to vector<5x32xf32>
    %716 = arith.mulf %711, %715 : vector<5x32xf32>
    %717 = arith.addf %709, %716 : vector<5x32xf32>
    %c6_410 = arith.constant 6 : index
    %c1_411 = arith.constant 1 : index
    %c0_412 = arith.constant 0 : index
    %718 = vector.load %arg7[%c6_410, %c1_411, %c0_412] : memref<7x7x32xf32, #tpu.memory_space<vmem>>, vector<1x5x32xf32>
    %719 = vector.shape_cast %718 : vector<1x5x32xf32> to vector<5x32xf32>
    %c7_413 = arith.constant 7 : index
    %c0_414 = arith.constant 0 : index
    %720 = vector.load %arg3[%c7_413, %c0_414] : memref<9x32xf32, #tpu.memory_space<vmem>>, vector<1x32xf32>
    %721 = vector.shape_cast %720 : vector<1x32xf32> to vector<32xf32>
    %722 = vector.shape_cast %721 : vector<32xf32> to vector<1x32xf32>
    %723 = vector.broadcast %722 : vector<1x32xf32> to vector<5x32xf32>
    %724 = arith.mulf %719, %723 : vector<5x32xf32>
    %725 = arith.addf %717, %724 : vector<5x32xf32>
    %c6_415 = arith.constant 6 : index
    %c2_416 = arith.constant 2 : index
    %c0_417 = arith.constant 0 : index
    %726 = vector.load %arg7[%c6_415, %c2_416, %c0_417] : memref<7x7x32xf32, #tpu.memory_space<vmem>>, vector<1x5x32xf32>
    %727 = vector.shape_cast %726 : vector<1x5x32xf32> to vector<5x32xf32>
    %c8_418 = arith.constant 8 : index
    %c0_419 = arith.constant 0 : index
    %728 = vector.load %arg3[%c8_418, %c0_419] : memref<9x32xf32, #tpu.memory_space<vmem>>, vector<1x32xf32>
    %729 = vector.shape_cast %728 : vector<1x32xf32> to vector<32xf32>
    %730 = vector.shape_cast %729 : vector<32xf32> to vector<1x32xf32>
    %731 = vector.broadcast %730 : vector<1x32xf32> to vector<5x32xf32>
    %732 = arith.mulf %727, %731 : vector<5x32xf32>
    %733 = arith.addf %725, %732 : vector<5x32xf32>
    %c3_420 = arith.constant 3 : index
    %c0_421 = arith.constant 0 : index
    %734 = vector.load %arg5[%c3_420, %c0_421] : memref<9x32xf32, #tpu.memory_space<vmem>>, vector<1x32xf32>
    %735 = vector.shape_cast %734 : vector<1x32xf32> to vector<32xf32>
    %736 = vector.shape_cast %735 : vector<32xf32> to vector<1x32xf32>
    %737 = vector.broadcast %736 : vector<1x32xf32> to vector<5x32xf32>
    %738 = arith.addf %733, %737 : vector<5x32xf32>
    %cst_422 = arith.constant 0.000000e+00 : f32
    %739 = vector.broadcast %cst_422 : f32 to vector<5x32xf32>
    %740 = arith.subf %739, %738 : vector<5x32xf32>
    %741 = math.exp %740 : vector<5x32xf32>
    %cst_423 = arith.constant 1.000000e+00 : f32
    %742 = vector.broadcast %cst_423 : f32 to vector<5x32xf32>
    %743 = arith.addf %742, %741 : vector<5x32xf32>
    %cst_424 = arith.constant 1.000000e+00 : f32
    %744 = vector.broadcast %cst_424 : f32 to vector<5x32xf32>
    %745 = arith.divf %744, %743 : vector<5x32xf32>
    %746 = arith.mulf %738, %745 : vector<5x32xf32>
    %c4_425 = arith.constant 4 : index
    %c0_426 = arith.constant 0 : index
    %747 = vector.load %arg5[%c4_425, %c0_426] : memref<9x32xf32, #tpu.memory_space<vmem>>, vector<1x32xf32>
    %748 = vector.shape_cast %747 : vector<1x32xf32> to vector<32xf32>
    %749 = vector.shape_cast %748 : vector<32xf32> to vector<1x32xf32>
    %750 = vector.broadcast %749 : vector<1x32xf32> to vector<5x32xf32>
    %751 = arith.mulf %746, %750 : vector<5x32xf32>
    %c5_427 = arith.constant 5 : index
    %c0_428 = arith.constant 0 : index
    %752 = vector.load %arg5[%c5_427, %c0_428] : memref<9x32xf32, #tpu.memory_space<vmem>>, vector<1x32xf32>
    %753 = vector.shape_cast %752 : vector<1x32xf32> to vector<32xf32>
    %754 = vector.shape_cast %753 : vector<32xf32> to vector<1x32xf32>
    %755 = vector.broadcast %754 : vector<1x32xf32> to vector<5x32xf32>
    %756 = arith.addf %751, %755 : vector<5x32xf32>
    %c5_429 = arith.constant 5 : index
    %c1_430 = arith.constant 1 : index
    %c0_431 = arith.constant 0 : index
    %757 = vector.load %arg7[%c5_429, %c1_430, %c0_431] : memref<7x7x32xf32, #tpu.memory_space<vmem>>, vector<1x5x32xf32>
    %758 = vector.shape_cast %757 : vector<1x5x32xf32> to vector<5x32xf32>
    %759 = arith.addf %756, %758 : vector<5x32xf32>
    %c0_432 = arith.constant 0 : index
    %c0_433 = arith.constant 0 : index
    %760 = vector.load %arg4[%c0_432, %c0_433] : memref<32x32xf32, #tpu.memory_space<vmem>>, vector<32x32xf32>
    %cst_434 = arith.constant dense<0.000000e+00> : vector<5x32xf32>
    %761 = tpu.matmul %759, %760, %cst_434 {dimension_numbers = #tpu.dot_dimension_numbers<[1], [0], [0], [1], [0, 0, 1, 1], [], []>} : vector<5x32xf32>, vector<32x32xf32>, vector<5x32xf32> -> vector<5x32xf32>
    %c6_435 = arith.constant 6 : index
    %c0_436 = arith.constant 0 : index
    %762 = vector.load %arg5[%c6_435, %c0_436] : memref<9x32xf32, #tpu.memory_space<vmem>>, vector<1x32xf32>
    %763 = vector.shape_cast %762 : vector<1x32xf32> to vector<32xf32>
    %764 = vector.shape_cast %763 : vector<32xf32> to vector<1x32xf32>
    %765 = vector.broadcast %764 : vector<1x32xf32> to vector<5x32xf32>
    %766 = arith.addf %761, %765 : vector<5x32xf32>
    %cst_437 = arith.constant 0.000000e+00 : f32
    %767 = vector.broadcast %cst_437 : f32 to vector<5x32xf32>
    %768 = arith.subf %767, %766 : vector<5x32xf32>
    %769 = math.exp %768 : vector<5x32xf32>
    %cst_438 = arith.constant 1.000000e+00 : f32
    %770 = vector.broadcast %cst_438 : f32 to vector<5x32xf32>
    %771 = arith.addf %770, %769 : vector<5x32xf32>
    %cst_439 = arith.constant 1.000000e+00 : f32
    %772 = vector.broadcast %cst_439 : f32 to vector<5x32xf32>
    %773 = arith.divf %772, %771 : vector<5x32xf32>
    %774 = arith.mulf %766, %773 : vector<5x32xf32>
    %c7_440 = arith.constant 7 : index
    %c0_441 = arith.constant 0 : index
    %775 = vector.load %arg5[%c7_440, %c0_441] : memref<9x32xf32, #tpu.memory_space<vmem>>, vector<1x32xf32>
    %776 = vector.shape_cast %775 : vector<1x32xf32> to vector<32xf32>
    %777 = vector.shape_cast %776 : vector<32xf32> to vector<1x32xf32>
    %778 = vector.broadcast %777 : vector<1x32xf32> to vector<5x32xf32>
    %779 = arith.mulf %774, %778 : vector<5x32xf32>
    %c8_442 = arith.constant 8 : index
    %c0_443 = arith.constant 0 : index
    %780 = vector.load %arg5[%c8_442, %c0_443] : memref<9x32xf32, #tpu.memory_space<vmem>>, vector<1x32xf32>
    %781 = vector.shape_cast %780 : vector<1x32xf32> to vector<32xf32>
    %782 = vector.shape_cast %781 : vector<32xf32> to vector<1x32xf32>
    %783 = vector.broadcast %782 : vector<1x32xf32> to vector<5x32xf32>
    %784 = arith.addf %779, %783 : vector<5x32xf32>
    %cst_444 = arith.constant dense<0.000000e+00> : vector<32xf32>
    %785 = vector.multi_reduction <add>, %784, %cst_444 [0] : vector<5x32xf32> to vector<32xf32>
    %786 = vector.shape_cast %785 : vector<32xf32> to vector<1x32xf32>
    %787 = arith.addf %660, %786 : vector<1x32xf32>
    %cst_445 = arith.constant 4.000000e-02 : f32
    %788 = vector.broadcast %cst_445 : f32 to vector<1x32xf32>
    %789 = arith.mulf %787, %788 : vector<1x32xf32>
    %c0_446 = arith.constant 0 : index
    %c0_447 = arith.constant 0 : index
    %c0_448 = arith.constant 0 : index
    %790 = vector.load %arg6[%c0_446, %c0_447, %c0_448] : memref<1x1x32xf32, #tpu.memory_space<vmem>>, vector<1x1x32xf32>
    %791 = vector.shape_cast %790 : vector<1x1x32xf32> to vector<1x32xf32>
    %792 = vector.shape_cast %789 : vector<1x32xf32> to vector<1x1x32xf32>
    tpu.vector_store %arg6[%c0_446, %c0_447, %c0_448], %792 {strides = array<i32>} : memref<1x1x32xf32, #tpu.memory_space<vmem>>, vector<1x1x32xf32>,
    return
  }
  func.func @transform_0(%arg0: i32) -> (i32, i32, i32, i32) {
    %c0_i32 = arith.constant 0 : i32
    %c0_i32_0 = arith.constant 0 : i32
    %c0_i32_1 = arith.constant 0 : i32
    %c0_i32_2 = arith.constant 0 : i32
    return %arg0, %c0_i32, %c0_i32_0, %c0_i32_1 : i32, i32, i32, i32
  }
  func.func @transform_1(%arg0: i32) -> (i32, i32) {
    %c0_i32 = arith.constant 0 : i32
    %c0_i32_0 = arith.constant 0 : i32
    %c0_i32_1 = arith.constant 0 : i32
    return %c0_i32, %c0_i32_0 : i32, i32
  }
  func.func @transform_2(%arg0: i32) -> (i32, i32) {
    %c0_i32 = arith.constant 0 : i32
    %c0_i32_0 = arith.constant 0 : i32
    %c0_i32_1 = arith.constant 0 : i32
    return %c0_i32, %c0_i32_0 : i32, i32
  }
  func.func @transform_3(%arg0: i32) -> (i32, i32) {
    %c0_i32 = arith.constant 0 : i32
    %c0_i32_0 = arith.constant 0 : i32
    %c0_i32_1 = arith.constant 0 : i32
    return %c0_i32, %c0_i32_0 : i32, i32
  }
  func.func @transform_4(%arg0: i32) -> (i32, i32) {
    %c0_i32 = arith.constant 0 : i32
    %c0_i32_0 = arith.constant 0 : i32
    %c0_i32_1 = arith.constant 0 : i32
    return %c0_i32, %c0_i32_0 : i32, i32
  }
  func.func @transform_5(%arg0: i32) -> (i32, i32, i32) {
    %c0_i32 = arith.constant 0 : i32
    %c0_i32_0 = arith.constant 0 : i32
    %c0_i32_1 = arith.constant 0 : i32
    return %arg0, %c0_i32, %c0_i32_0 : i32, i32, i32
  }
}

module attributes {stable_mosaic.version = 11 : i64} {
  func.func @_dcovn_branch_kernel(%arg0: i32, %arg1: memref<1x3x3x800xf32, #tpu.memory_space<vmem>>, %arg2: memref<800x32xf32, #tpu.memory_space<vmem>>, %arg3: memref<9x32xf32, #tpu.memory_space<vmem>>, %arg4: memref<32x32xf32, #tpu.memory_space<vmem>>, %arg5: memref<9x32xf32, #tpu.memory_space<vmem>>, %arg6: memref<1x1x32xf32, #tpu.memory_space<vmem>>, %arg7: memref<5x5x32xf32, #tpu.memory_space<vmem>>) attributes {dimension_semantics = [#tpu.dimension_semantics<parallel>], iteration_bounds = array<i64: 2>, scalar_prefetch = 0 : i64, scratch_operands = 1 : i64, tpu.core_type = #tpu.core_type<tc>, window_params = [{transform_indices = @transform_0, window_bounds = array<i64: 1, 3, 3, 800>}, {pipeline_mode = #tpu.pipeline_mode<synchronous>, transform_indices = @transform_1, window_bounds = array<i64: 800, 32>}, {pipeline_mode = #tpu.pipeline_mode<synchronous>, transform_indices = @transform_2, window_bounds = array<i64: 9, 32>}, {pipeline_mode = #tpu.pipeline_mode<synchronous>, transform_indices = @transform_3, window_bounds = array<i64: 32, 32>}, {pipeline_mode = #tpu.pipeline_mode<synchronous>, transform_indices = @transform_4, window_bounds = array<i64: 9, 32>}, {transform_indices = @transform_5, window_bounds = array<i64: 1, 1, 32>}]} {
    %cst = arith.constant 0.000000e+00 : f32
    %0 = vector.broadcast %cst : f32 to vector<5x5x32xf32>
    %c0 = arith.constant 0 : index
    %c0_0 = arith.constant 0 : index
    %c0_1 = arith.constant 0 : index
    %1 = vector.load %arg7[%c0, %c0_0, %c0_1] : memref<5x5x32xf32, #tpu.memory_space<vmem>>, vector<5x5x32xf32>
    tpu.vector_store %arg7[%c0, %c0_0, %c0_1], %0 {strides = array<i32>} : memref<5x5x32xf32, #tpu.memory_space<vmem>>, vector<5x5x32xf32>,
    %c0_2 = arith.constant 0 : index
    %c0_3 = arith.constant 0 : index
    %c0_4 = arith.constant 0 : index
    %c0_5 = arith.constant 0 : index
    %2 = vector.load %arg1[%c0_2, %c0_3, %c0_4, %c0_5] : memref<1x3x3x800xf32, #tpu.memory_space<vmem>>, vector<1x1x3x800xf32>
    %3 = vector.shape_cast %2 : vector<1x1x3x800xf32> to vector<3x800xf32>
    %c0_6 = arith.constant 0 : index
    %c0_7 = arith.constant 0 : index
    %4 = vector.load %arg2[%c0_6, %c0_7] : memref<800x32xf32, #tpu.memory_space<vmem>>, vector<800x32xf32>
    %cst_8 = arith.constant dense<0.000000e+00> : vector<3x32xf32>
    %5 = tpu.matmul %3, %4, %cst_8 {dimension_numbers = #tpu.dot_dimension_numbers<[1], [0], [0], [1], [0, 0, 1, 1], [], []>} : vector<3x800xf32>, vector<800x32xf32>, vector<3x32xf32> -> vector<3x32xf32>
    %c0_9 = arith.constant 0 : index
    %c0_10 = arith.constant 0 : index
    %6 = vector.load %arg5[%c0_9, %c0_10] : memref<9x32xf32, #tpu.memory_space<vmem>>, vector<1x32xf32>
    %7 = vector.shape_cast %6 : vector<1x32xf32> to vector<32xf32>
    %8 = vector.shape_cast %7 : vector<32xf32> to vector<1x32xf32>
    %9 = vector.broadcast %8 : vector<1x32xf32> to vector<3x32xf32>
    %10 = arith.addf %5, %9 : vector<3x32xf32>
    %cst_11 = arith.constant 0.000000e+00 : f32
    %11 = vector.broadcast %cst_11 : f32 to vector<3x32xf32>
    %12 = arith.subf %11, %10 : vector<3x32xf32>
    %13 = math.exp %12 : vector<3x32xf32>
    %cst_12 = arith.constant 1.000000e+00 : f32
    %14 = vector.broadcast %cst_12 : f32 to vector<3x32xf32>
    %15 = arith.addf %14, %13 : vector<3x32xf32>
    %cst_13 = arith.constant 1.000000e+00 : f32
    %16 = vector.broadcast %cst_13 : f32 to vector<3x32xf32>
    %17 = arith.divf %16, %15 : vector<3x32xf32>
    %18 = arith.mulf %10, %17 : vector<3x32xf32>
    %c1 = arith.constant 1 : index
    %c0_14 = arith.constant 0 : index
    %19 = vector.load %arg5[%c1, %c0_14] : memref<9x32xf32, #tpu.memory_space<vmem>>, vector<1x32xf32>
    %20 = vector.shape_cast %19 : vector<1x32xf32> to vector<32xf32>
    %21 = vector.shape_cast %20 : vector<32xf32> to vector<1x32xf32>
    %22 = vector.broadcast %21 : vector<1x32xf32> to vector<3x32xf32>
    %23 = arith.mulf %18, %22 : vector<3x32xf32>
    %c2 = arith.constant 2 : index
    %c0_15 = arith.constant 0 : index
    %24 = vector.load %arg5[%c2, %c0_15] : memref<9x32xf32, #tpu.memory_space<vmem>>, vector<1x32xf32>
    %25 = vector.shape_cast %24 : vector<1x32xf32> to vector<32xf32>
    %26 = vector.shape_cast %25 : vector<32xf32> to vector<1x32xf32>
    %27 = vector.broadcast %26 : vector<1x32xf32> to vector<3x32xf32>
    %28 = arith.addf %23, %27 : vector<3x32xf32>
    %c1_16 = arith.constant 1 : index
    %c1_17 = arith.constant 1 : index
    %c0_18 = arith.constant 0 : index
    %29 = vector.load %arg7[%c1_16, %c1_17, %c0_18] : memref<5x5x32xf32, #tpu.memory_space<vmem>>, vector<1x3x32xf32>
    %30 = vector.shape_cast %29 : vector<1x3x32xf32> to vector<3x32xf32>
    %31 = vector.shape_cast %28 : vector<3x32xf32> to vector<1x3x32xf32>
    tpu.vector_store %arg7[%c1_16, %c1_17, %c0_18], %31 {strides = array<i32>} : memref<5x5x32xf32, #tpu.memory_space<vmem>>, vector<1x3x32xf32>,
    %c0_19 = arith.constant 0 : index
    %c1_20 = arith.constant 1 : index
    %c0_21 = arith.constant 0 : index
    %c0_22 = arith.constant 0 : index
    %32 = vector.load %arg1[%c0_19, %c1_20, %c0_21, %c0_22] : memref<1x3x3x800xf32, #tpu.memory_space<vmem>>, vector<1x1x3x800xf32>
    %33 = vector.shape_cast %32 : vector<1x1x3x800xf32> to vector<3x800xf32>
    %c0_23 = arith.constant 0 : index
    %c0_24 = arith.constant 0 : index
    %34 = vector.load %arg2[%c0_23, %c0_24] : memref<800x32xf32, #tpu.memory_space<vmem>>, vector<800x32xf32>
    %cst_25 = arith.constant dense<0.000000e+00> : vector<3x32xf32>
    %35 = tpu.matmul %33, %34, %cst_25 {dimension_numbers = #tpu.dot_dimension_numbers<[1], [0], [0], [1], [0, 0, 1, 1], [], []>} : vector<3x800xf32>, vector<800x32xf32>, vector<3x32xf32> -> vector<3x32xf32>
    %c0_26 = arith.constant 0 : index
    %c0_27 = arith.constant 0 : index
    %36 = vector.load %arg5[%c0_26, %c0_27] : memref<9x32xf32, #tpu.memory_space<vmem>>, vector<1x32xf32>
    %37 = vector.shape_cast %36 : vector<1x32xf32> to vector<32xf32>
    %38 = vector.shape_cast %37 : vector<32xf32> to vector<1x32xf32>
    %39 = vector.broadcast %38 : vector<1x32xf32> to vector<3x32xf32>
    %40 = arith.addf %35, %39 : vector<3x32xf32>
    %cst_28 = arith.constant 0.000000e+00 : f32
    %41 = vector.broadcast %cst_28 : f32 to vector<3x32xf32>
    %42 = arith.subf %41, %40 : vector<3x32xf32>
    %43 = math.exp %42 : vector<3x32xf32>
    %cst_29 = arith.constant 1.000000e+00 : f32
    %44 = vector.broadcast %cst_29 : f32 to vector<3x32xf32>
    %45 = arith.addf %44, %43 : vector<3x32xf32>
    %cst_30 = arith.constant 1.000000e+00 : f32
    %46 = vector.broadcast %cst_30 : f32 to vector<3x32xf32>
    %47 = arith.divf %46, %45 : vector<3x32xf32>
    %48 = arith.mulf %40, %47 : vector<3x32xf32>
    %c1_31 = arith.constant 1 : index
    %c0_32 = arith.constant 0 : index
    %49 = vector.load %arg5[%c1_31, %c0_32] : memref<9x32xf32, #tpu.memory_space<vmem>>, vector<1x32xf32>
    %50 = vector.shape_cast %49 : vector<1x32xf32> to vector<32xf32>
    %51 = vector.shape_cast %50 : vector<32xf32> to vector<1x32xf32>
    %52 = vector.broadcast %51 : vector<1x32xf32> to vector<3x32xf32>
    %53 = arith.mulf %48, %52 : vector<3x32xf32>
    %c2_33 = arith.constant 2 : index
    %c0_34 = arith.constant 0 : index
    %54 = vector.load %arg5[%c2_33, %c0_34] : memref<9x32xf32, #tpu.memory_space<vmem>>, vector<1x32xf32>
    %55 = vector.shape_cast %54 : vector<1x32xf32> to vector<32xf32>
    %56 = vector.shape_cast %55 : vector<32xf32> to vector<1x32xf32>
    %57 = vector.broadcast %56 : vector<1x32xf32> to vector<3x32xf32>
    %58 = arith.addf %53, %57 : vector<3x32xf32>
    %c2_35 = arith.constant 2 : index
    %c1_36 = arith.constant 1 : index
    %c0_37 = arith.constant 0 : index
    %59 = vector.load %arg7[%c2_35, %c1_36, %c0_37] : memref<5x5x32xf32, #tpu.memory_space<vmem>>, vector<1x3x32xf32>
    %60 = vector.shape_cast %59 : vector<1x3x32xf32> to vector<3x32xf32>
    %61 = vector.shape_cast %58 : vector<3x32xf32> to vector<1x3x32xf32>
    tpu.vector_store %arg7[%c2_35, %c1_36, %c0_37], %61 {strides = array<i32>} : memref<5x5x32xf32, #tpu.memory_space<vmem>>, vector<1x3x32xf32>,
    %c0_38 = arith.constant 0 : index
    %c2_39 = arith.constant 2 : index
    %c0_40 = arith.constant 0 : index
    %c0_41 = arith.constant 0 : index
    %62 = vector.load %arg1[%c0_38, %c2_39, %c0_40, %c0_41] : memref<1x3x3x800xf32, #tpu.memory_space<vmem>>, vector<1x1x3x800xf32>
    %63 = vector.shape_cast %62 : vector<1x1x3x800xf32> to vector<3x800xf32>
    %c0_42 = arith.constant 0 : index
    %c0_43 = arith.constant 0 : index
    %64 = vector.load %arg2[%c0_42, %c0_43] : memref<800x32xf32, #tpu.memory_space<vmem>>, vector<800x32xf32>
    %cst_44 = arith.constant dense<0.000000e+00> : vector<3x32xf32>
    %65 = tpu.matmul %63, %64, %cst_44 {dimension_numbers = #tpu.dot_dimension_numbers<[1], [0], [0], [1], [0, 0, 1, 1], [], []>} : vector<3x800xf32>, vector<800x32xf32>, vector<3x32xf32> -> vector<3x32xf32>
    %c0_45 = arith.constant 0 : index
    %c0_46 = arith.constant 0 : index
    %66 = vector.load %arg5[%c0_45, %c0_46] : memref<9x32xf32, #tpu.memory_space<vmem>>, vector<1x32xf32>
    %67 = vector.shape_cast %66 : vector<1x32xf32> to vector<32xf32>
    %68 = vector.shape_cast %67 : vector<32xf32> to vector<1x32xf32>
    %69 = vector.broadcast %68 : vector<1x32xf32> to vector<3x32xf32>
    %70 = arith.addf %65, %69 : vector<3x32xf32>
    %cst_47 = arith.constant 0.000000e+00 : f32
    %71 = vector.broadcast %cst_47 : f32 to vector<3x32xf32>
    %72 = arith.subf %71, %70 : vector<3x32xf32>
    %73 = math.exp %72 : vector<3x32xf32>
    %cst_48 = arith.constant 1.000000e+00 : f32
    %74 = vector.broadcast %cst_48 : f32 to vector<3x32xf32>
    %75 = arith.addf %74, %73 : vector<3x32xf32>
    %cst_49 = arith.constant 1.000000e+00 : f32
    %76 = vector.broadcast %cst_49 : f32 to vector<3x32xf32>
    %77 = arith.divf %76, %75 : vector<3x32xf32>
    %78 = arith.mulf %70, %77 : vector<3x32xf32>
    %c1_50 = arith.constant 1 : index
    %c0_51 = arith.constant 0 : index
    %79 = vector.load %arg5[%c1_50, %c0_51] : memref<9x32xf32, #tpu.memory_space<vmem>>, vector<1x32xf32>
    %80 = vector.shape_cast %79 : vector<1x32xf32> to vector<32xf32>
    %81 = vector.shape_cast %80 : vector<32xf32> to vector<1x32xf32>
    %82 = vector.broadcast %81 : vector<1x32xf32> to vector<3x32xf32>
    %83 = arith.mulf %78, %82 : vector<3x32xf32>
    %c2_52 = arith.constant 2 : index
    %c0_53 = arith.constant 0 : index
    %84 = vector.load %arg5[%c2_52, %c0_53] : memref<9x32xf32, #tpu.memory_space<vmem>>, vector<1x32xf32>
    %85 = vector.shape_cast %84 : vector<1x32xf32> to vector<32xf32>
    %86 = vector.shape_cast %85 : vector<32xf32> to vector<1x32xf32>
    %87 = vector.broadcast %86 : vector<1x32xf32> to vector<3x32xf32>
    %88 = arith.addf %83, %87 : vector<3x32xf32>
    %c3 = arith.constant 3 : index
    %c1_54 = arith.constant 1 : index
    %c0_55 = arith.constant 0 : index
    %89 = vector.load %arg7[%c3, %c1_54, %c0_55] : memref<5x5x32xf32, #tpu.memory_space<vmem>>, vector<1x3x32xf32>
    %90 = vector.shape_cast %89 : vector<1x3x32xf32> to vector<3x32xf32>
    %91 = vector.shape_cast %88 : vector<3x32xf32> to vector<1x3x32xf32>
    tpu.vector_store %arg7[%c3, %c1_54, %c0_55], %91 {strides = array<i32>} : memref<5x5x32xf32, #tpu.memory_space<vmem>>, vector<1x3x32xf32>,
    %cst_56 = arith.constant 0.000000e+00 : f32
    %92 = vector.broadcast %cst_56 : f32 to vector<1x32xf32>
    %cst_57 = arith.constant 0.000000e+00 : f32
    %93 = vector.broadcast %cst_57 : f32 to vector<3x32xf32>
    %c0_58 = arith.constant 0 : index
    %c0_59 = arith.constant 0 : index
    %c0_60 = arith.constant 0 : index
    %94 = vector.load %arg7[%c0_58, %c0_59, %c0_60] : memref<5x5x32xf32, #tpu.memory_space<vmem>>, vector<1x3x32xf32>
    %95 = vector.shape_cast %94 : vector<1x3x32xf32> to vector<3x32xf32>
    %c0_61 = arith.constant 0 : index
    %c0_62 = arith.constant 0 : index
    %96 = vector.load %arg3[%c0_61, %c0_62] : memref<9x32xf32, #tpu.memory_space<vmem>>, vector<1x32xf32>
    %97 = vector.shape_cast %96 : vector<1x32xf32> to vector<32xf32>
    %98 = vector.shape_cast %97 : vector<32xf32> to vector<1x32xf32>
    %99 = vector.broadcast %98 : vector<1x32xf32> to vector<3x32xf32>
    %100 = arith.mulf %95, %99 : vector<3x32xf32>
    %101 = arith.addf %93, %100 : vector<3x32xf32>
    %c0_63 = arith.constant 0 : index
    %c1_64 = arith.constant 1 : index
    %c0_65 = arith.constant 0 : index
    %102 = vector.load %arg7[%c0_63, %c1_64, %c0_65] : memref<5x5x32xf32, #tpu.memory_space<vmem>>, vector<1x3x32xf32>
    %103 = vector.shape_cast %102 : vector<1x3x32xf32> to vector<3x32xf32>
    %c1_66 = arith.constant 1 : index
    %c0_67 = arith.constant 0 : index
    %104 = vector.load %arg3[%c1_66, %c0_67] : memref<9x32xf32, #tpu.memory_space<vmem>>, vector<1x32xf32>
    %105 = vector.shape_cast %104 : vector<1x32xf32> to vector<32xf32>
    %106 = vector.shape_cast %105 : vector<32xf32> to vector<1x32xf32>
    %107 = vector.broadcast %106 : vector<1x32xf32> to vector<3x32xf32>
    %108 = arith.mulf %103, %107 : vector<3x32xf32>
    %109 = arith.addf %101, %108 : vector<3x32xf32>
    %c0_68 = arith.constant 0 : index
    %c2_69 = arith.constant 2 : index
    %c0_70 = arith.constant 0 : index
    %110 = vector.load %arg7[%c0_68, %c2_69, %c0_70] : memref<5x5x32xf32, #tpu.memory_space<vmem>>, vector<1x3x32xf32>
    %111 = vector.shape_cast %110 : vector<1x3x32xf32> to vector<3x32xf32>
    %c2_71 = arith.constant 2 : index
    %c0_72 = arith.constant 0 : index
    %112 = vector.load %arg3[%c2_71, %c0_72] : memref<9x32xf32, #tpu.memory_space<vmem>>, vector<1x32xf32>
    %113 = vector.shape_cast %112 : vector<1x32xf32> to vector<32xf32>
    %114 = vector.shape_cast %113 : vector<32xf32> to vector<1x32xf32>
    %115 = vector.broadcast %114 : vector<1x32xf32> to vector<3x32xf32>
    %116 = arith.mulf %111, %115 : vector<3x32xf32>
    %117 = arith.addf %109, %116 : vector<3x32xf32>
    %c1_73 = arith.constant 1 : index
    %c0_74 = arith.constant 0 : index
    %c0_75 = arith.constant 0 : index
    %118 = vector.load %arg7[%c1_73, %c0_74, %c0_75] : memref<5x5x32xf32, #tpu.memory_space<vmem>>, vector<1x3x32xf32>
    %119 = vector.shape_cast %118 : vector<1x3x32xf32> to vector<3x32xf32>
    %c3_76 = arith.constant 3 : index
    %c0_77 = arith.constant 0 : index
    %120 = vector.load %arg3[%c3_76, %c0_77] : memref<9x32xf32, #tpu.memory_space<vmem>>, vector<1x32xf32>
    %121 = vector.shape_cast %120 : vector<1x32xf32> to vector<32xf32>
    %122 = vector.shape_cast %121 : vector<32xf32> to vector<1x32xf32>
    %123 = vector.broadcast %122 : vector<1x32xf32> to vector<3x32xf32>
    %124 = arith.mulf %119, %123 : vector<3x32xf32>
    %125 = arith.addf %117, %124 : vector<3x32xf32>
    %c1_78 = arith.constant 1 : index
    %c1_79 = arith.constant 1 : index
    %c0_80 = arith.constant 0 : index
    %126 = vector.load %arg7[%c1_78, %c1_79, %c0_80] : memref<5x5x32xf32, #tpu.memory_space<vmem>>, vector<1x3x32xf32>
    %127 = vector.shape_cast %126 : vector<1x3x32xf32> to vector<3x32xf32>
    %c4 = arith.constant 4 : index
    %c0_81 = arith.constant 0 : index
    %128 = vector.load %arg3[%c4, %c0_81] : memref<9x32xf32, #tpu.memory_space<vmem>>, vector<1x32xf32>
    %129 = vector.shape_cast %128 : vector<1x32xf32> to vector<32xf32>
    %130 = vector.shape_cast %129 : vector<32xf32> to vector<1x32xf32>
    %131 = vector.broadcast %130 : vector<1x32xf32> to vector<3x32xf32>
    %132 = arith.mulf %127, %131 : vector<3x32xf32>
    %133 = arith.addf %125, %132 : vector<3x32xf32>
    %c1_82 = arith.constant 1 : index
    %c2_83 = arith.constant 2 : index
    %c0_84 = arith.constant 0 : index
    %134 = vector.load %arg7[%c1_82, %c2_83, %c0_84] : memref<5x5x32xf32, #tpu.memory_space<vmem>>, vector<1x3x32xf32>
    %135 = vector.shape_cast %134 : vector<1x3x32xf32> to vector<3x32xf32>
    %c5 = arith.constant 5 : index
    %c0_85 = arith.constant 0 : index
    %136 = vector.load %arg3[%c5, %c0_85] : memref<9x32xf32, #tpu.memory_space<vmem>>, vector<1x32xf32>
    %137 = vector.shape_cast %136 : vector<1x32xf32> to vector<32xf32>
    %138 = vector.shape_cast %137 : vector<32xf32> to vector<1x32xf32>
    %139 = vector.broadcast %138 : vector<1x32xf32> to vector<3x32xf32>
    %140 = arith.mulf %135, %139 : vector<3x32xf32>
    %141 = arith.addf %133, %140 : vector<3x32xf32>
    %c2_86 = arith.constant 2 : index
    %c0_87 = arith.constant 0 : index
    %c0_88 = arith.constant 0 : index
    %142 = vector.load %arg7[%c2_86, %c0_87, %c0_88] : memref<5x5x32xf32, #tpu.memory_space<vmem>>, vector<1x3x32xf32>
    %143 = vector.shape_cast %142 : vector<1x3x32xf32> to vector<3x32xf32>
    %c6 = arith.constant 6 : index
    %c0_89 = arith.constant 0 : index
    %144 = vector.load %arg3[%c6, %c0_89] : memref<9x32xf32, #tpu.memory_space<vmem>>, vector<1x32xf32>
    %145 = vector.shape_cast %144 : vector<1x32xf32> to vector<32xf32>
    %146 = vector.shape_cast %145 : vector<32xf32> to vector<1x32xf32>
    %147 = vector.broadcast %146 : vector<1x32xf32> to vector<3x32xf32>
    %148 = arith.mulf %143, %147 : vector<3x32xf32>
    %149 = arith.addf %141, %148 : vector<3x32xf32>
    %c2_90 = arith.constant 2 : index
    %c1_91 = arith.constant 1 : index
    %c0_92 = arith.constant 0 : index
    %150 = vector.load %arg7[%c2_90, %c1_91, %c0_92] : memref<5x5x32xf32, #tpu.memory_space<vmem>>, vector<1x3x32xf32>
    %151 = vector.shape_cast %150 : vector<1x3x32xf32> to vector<3x32xf32>
    %c7 = arith.constant 7 : index
    %c0_93 = arith.constant 0 : index
    %152 = vector.load %arg3[%c7, %c0_93] : memref<9x32xf32, #tpu.memory_space<vmem>>, vector<1x32xf32>
    %153 = vector.shape_cast %152 : vector<1x32xf32> to vector<32xf32>
    %154 = vector.shape_cast %153 : vector<32xf32> to vector<1x32xf32>
    %155 = vector.broadcast %154 : vector<1x32xf32> to vector<3x32xf32>
    %156 = arith.mulf %151, %155 : vector<3x32xf32>
    %157 = arith.addf %149, %156 : vector<3x32xf32>
    %c2_94 = arith.constant 2 : index
    %c2_95 = arith.constant 2 : index
    %c0_96 = arith.constant 0 : index
    %158 = vector.load %arg7[%c2_94, %c2_95, %c0_96] : memref<5x5x32xf32, #tpu.memory_space<vmem>>, vector<1x3x32xf32>
    %159 = vector.shape_cast %158 : vector<1x3x32xf32> to vector<3x32xf32>
    %c8 = arith.constant 8 : index
    %c0_97 = arith.constant 0 : index
    %160 = vector.load %arg3[%c8, %c0_97] : memref<9x32xf32, #tpu.memory_space<vmem>>, vector<1x32xf32>
    %161 = vector.shape_cast %160 : vector<1x32xf32> to vector<32xf32>
    %162 = vector.shape_cast %161 : vector<32xf32> to vector<1x32xf32>
    %163 = vector.broadcast %162 : vector<1x32xf32> to vector<3x32xf32>
    %164 = arith.mulf %159, %163 : vector<3x32xf32>
    %165 = arith.addf %157, %164 : vector<3x32xf32>
    %c3_98 = arith.constant 3 : index
    %c0_99 = arith.constant 0 : index
    %166 = vector.load %arg5[%c3_98, %c0_99] : memref<9x32xf32, #tpu.memory_space<vmem>>, vector<1x32xf32>
    %167 = vector.shape_cast %166 : vector<1x32xf32> to vector<32xf32>
    %168 = vector.shape_cast %167 : vector<32xf32> to vector<1x32xf32>
    %169 = vector.broadcast %168 : vector<1x32xf32> to vector<3x32xf32>
    %170 = arith.addf %165, %169 : vector<3x32xf32>
    %cst_100 = arith.constant 0.000000e+00 : f32
    %171 = vector.broadcast %cst_100 : f32 to vector<3x32xf32>
    %172 = arith.subf %171, %170 : vector<3x32xf32>
    %173 = math.exp %172 : vector<3x32xf32>
    %cst_101 = arith.constant 1.000000e+00 : f32
    %174 = vector.broadcast %cst_101 : f32 to vector<3x32xf32>
    %175 = arith.addf %174, %173 : vector<3x32xf32>
    %cst_102 = arith.constant 1.000000e+00 : f32
    %176 = vector.broadcast %cst_102 : f32 to vector<3x32xf32>
    %177 = arith.divf %176, %175 : vector<3x32xf32>
    %178 = arith.mulf %170, %177 : vector<3x32xf32>
    %c4_103 = arith.constant 4 : index
    %c0_104 = arith.constant 0 : index
    %179 = vector.load %arg5[%c4_103, %c0_104] : memref<9x32xf32, #tpu.memory_space<vmem>>, vector<1x32xf32>
    %180 = vector.shape_cast %179 : vector<1x32xf32> to vector<32xf32>
    %181 = vector.shape_cast %180 : vector<32xf32> to vector<1x32xf32>
    %182 = vector.broadcast %181 : vector<1x32xf32> to vector<3x32xf32>
    %183 = arith.mulf %178, %182 : vector<3x32xf32>
    %c5_105 = arith.constant 5 : index
    %c0_106 = arith.constant 0 : index
    %184 = vector.load %arg5[%c5_105, %c0_106] : memref<9x32xf32, #tpu.memory_space<vmem>>, vector<1x32xf32>
    %185 = vector.shape_cast %184 : vector<1x32xf32> to vector<32xf32>
    %186 = vector.shape_cast %185 : vector<32xf32> to vector<1x32xf32>
    %187 = vector.broadcast %186 : vector<1x32xf32> to vector<3x32xf32>
    %188 = arith.addf %183, %187 : vector<3x32xf32>
    %c1_107 = arith.constant 1 : index
    %c1_108 = arith.constant 1 : index
    %c0_109 = arith.constant 0 : index
    %189 = vector.load %arg7[%c1_107, %c1_108, %c0_109] : memref<5x5x32xf32, #tpu.memory_space<vmem>>, vector<1x3x32xf32>
    %190 = vector.shape_cast %189 : vector<1x3x32xf32> to vector<3x32xf32>
    %191 = arith.addf %188, %190 : vector<3x32xf32>
    %c0_110 = arith.constant 0 : index
    %c0_111 = arith.constant 0 : index
    %192 = vector.load %arg4[%c0_110, %c0_111] : memref<32x32xf32, #tpu.memory_space<vmem>>, vector<32x32xf32>
    %cst_112 = arith.constant dense<0.000000e+00> : vector<3x32xf32>
    %193 = tpu.matmul %191, %192, %cst_112 {dimension_numbers = #tpu.dot_dimension_numbers<[1], [0], [0], [1], [0, 0, 1, 1], [], []>} : vector<3x32xf32>, vector<32x32xf32>, vector<3x32xf32> -> vector<3x32xf32>
    %c6_113 = arith.constant 6 : index
    %c0_114 = arith.constant 0 : index
    %194 = vector.load %arg5[%c6_113, %c0_114] : memref<9x32xf32, #tpu.memory_space<vmem>>, vector<1x32xf32>
    %195 = vector.shape_cast %194 : vector<1x32xf32> to vector<32xf32>
    %196 = vector.shape_cast %195 : vector<32xf32> to vector<1x32xf32>
    %197 = vector.broadcast %196 : vector<1x32xf32> to vector<3x32xf32>
    %198 = arith.addf %193, %197 : vector<3x32xf32>
    %cst_115 = arith.constant 0.000000e+00 : f32
    %199 = vector.broadcast %cst_115 : f32 to vector<3x32xf32>
    %200 = arith.subf %199, %198 : vector<3x32xf32>
    %201 = math.exp %200 : vector<3x32xf32>
    %cst_116 = arith.constant 1.000000e+00 : f32
    %202 = vector.broadcast %cst_116 : f32 to vector<3x32xf32>
    %203 = arith.addf %202, %201 : vector<3x32xf32>
    %cst_117 = arith.constant 1.000000e+00 : f32
    %204 = vector.broadcast %cst_117 : f32 to vector<3x32xf32>
    %205 = arith.divf %204, %203 : vector<3x32xf32>
    %206 = arith.mulf %198, %205 : vector<3x32xf32>
    %c7_118 = arith.constant 7 : index
    %c0_119 = arith.constant 0 : index
    %207 = vector.load %arg5[%c7_118, %c0_119] : memref<9x32xf32, #tpu.memory_space<vmem>>, vector<1x32xf32>
    %208 = vector.shape_cast %207 : vector<1x32xf32> to vector<32xf32>
    %209 = vector.shape_cast %208 : vector<32xf32> to vector<1x32xf32>
    %210 = vector.broadcast %209 : vector<1x32xf32> to vector<3x32xf32>
    %211 = arith.mulf %206, %210 : vector<3x32xf32>
    %c8_120 = arith.constant 8 : index
    %c0_121 = arith.constant 0 : index
    %212 = vector.load %arg5[%c8_120, %c0_121] : memref<9x32xf32, #tpu.memory_space<vmem>>, vector<1x32xf32>
    %213 = vector.shape_cast %212 : vector<1x32xf32> to vector<32xf32>
    %214 = vector.shape_cast %213 : vector<32xf32> to vector<1x32xf32>
    %215 = vector.broadcast %214 : vector<1x32xf32> to vector<3x32xf32>
    %216 = arith.addf %211, %215 : vector<3x32xf32>
    %cst_122 = arith.constant dense<0.000000e+00> : vector<32xf32>
    %217 = vector.multi_reduction <add>, %216, %cst_122 [0] : vector<3x32xf32> to vector<32xf32>
    %218 = vector.shape_cast %217 : vector<32xf32> to vector<1x32xf32>
    %219 = arith.addf %92, %218 : vector<1x32xf32>
    %cst_123 = arith.constant 0.000000e+00 : f32
    %220 = vector.broadcast %cst_123 : f32 to vector<3x32xf32>
    %c1_124 = arith.constant 1 : index
    %c0_125 = arith.constant 0 : index
    %c0_126 = arith.constant 0 : index
    %221 = vector.load %arg7[%c1_124, %c0_125, %c0_126] : memref<5x5x32xf32, #tpu.memory_space<vmem>>, vector<1x3x32xf32>
    %222 = vector.shape_cast %221 : vector<1x3x32xf32> to vector<3x32xf32>
    %c0_127 = arith.constant 0 : index
    %c0_128 = arith.constant 0 : index
    %223 = vector.load %arg3[%c0_127, %c0_128] : memref<9x32xf32, #tpu.memory_space<vmem>>, vector<1x32xf32>
    %224 = vector.shape_cast %223 : vector<1x32xf32> to vector<32xf32>
    %225 = vector.shape_cast %224 : vector<32xf32> to vector<1x32xf32>
    %226 = vector.broadcast %225 : vector<1x32xf32> to vector<3x32xf32>
    %227 = arith.mulf %222, %226 : vector<3x32xf32>
    %228 = arith.addf %220, %227 : vector<3x32xf32>
    %c1_129 = arith.constant 1 : index
    %c1_130 = arith.constant 1 : index
    %c0_131 = arith.constant 0 : index
    %229 = vector.load %arg7[%c1_129, %c1_130, %c0_131] : memref<5x5x32xf32, #tpu.memory_space<vmem>>, vector<1x3x32xf32>
    %230 = vector.shape_cast %229 : vector<1x3x32xf32> to vector<3x32xf32>
    %c1_132 = arith.constant 1 : index
    %c0_133 = arith.constant 0 : index
    %231 = vector.load %arg3[%c1_132, %c0_133] : memref<9x32xf32, #tpu.memory_space<vmem>>, vector<1x32xf32>
    %232 = vector.shape_cast %231 : vector<1x32xf32> to vector<32xf32>
    %233 = vector.shape_cast %232 : vector<32xf32> to vector<1x32xf32>
    %234 = vector.broadcast %233 : vector<1x32xf32> to vector<3x32xf32>
    %235 = arith.mulf %230, %234 : vector<3x32xf32>
    %236 = arith.addf %228, %235 : vector<3x32xf32>
    %c1_134 = arith.constant 1 : index
    %c2_135 = arith.constant 2 : index
    %c0_136 = arith.constant 0 : index
    %237 = vector.load %arg7[%c1_134, %c2_135, %c0_136] : memref<5x5x32xf32, #tpu.memory_space<vmem>>, vector<1x3x32xf32>
    %238 = vector.shape_cast %237 : vector<1x3x32xf32> to vector<3x32xf32>
    %c2_137 = arith.constant 2 : index
    %c0_138 = arith.constant 0 : index
    %239 = vector.load %arg3[%c2_137, %c0_138] : memref<9x32xf32, #tpu.memory_space<vmem>>, vector<1x32xf32>
    %240 = vector.shape_cast %239 : vector<1x32xf32> to vector<32xf32>
    %241 = vector.shape_cast %240 : vector<32xf32> to vector<1x32xf32>
    %242 = vector.broadcast %241 : vector<1x32xf32> to vector<3x32xf32>
    %243 = arith.mulf %238, %242 : vector<3x32xf32>
    %244 = arith.addf %236, %243 : vector<3x32xf32>
    %c2_139 = arith.constant 2 : index
    %c0_140 = arith.constant 0 : index
    %c0_141 = arith.constant 0 : index
    %245 = vector.load %arg7[%c2_139, %c0_140, %c0_141] : memref<5x5x32xf32, #tpu.memory_space<vmem>>, vector<1x3x32xf32>
    %246 = vector.shape_cast %245 : vector<1x3x32xf32> to vector<3x32xf32>
    %c3_142 = arith.constant 3 : index
    %c0_143 = arith.constant 0 : index
    %247 = vector.load %arg3[%c3_142, %c0_143] : memref<9x32xf32, #tpu.memory_space<vmem>>, vector<1x32xf32>
    %248 = vector.shape_cast %247 : vector<1x32xf32> to vector<32xf32>
    %249 = vector.shape_cast %248 : vector<32xf32> to vector<1x32xf32>
    %250 = vector.broadcast %249 : vector<1x32xf32> to vector<3x32xf32>
    %251 = arith.mulf %246, %250 : vector<3x32xf32>
    %252 = arith.addf %244, %251 : vector<3x32xf32>
    %c2_144 = arith.constant 2 : index
    %c1_145 = arith.constant 1 : index
    %c0_146 = arith.constant 0 : index
    %253 = vector.load %arg7[%c2_144, %c1_145, %c0_146] : memref<5x5x32xf32, #tpu.memory_space<vmem>>, vector<1x3x32xf32>
    %254 = vector.shape_cast %253 : vector<1x3x32xf32> to vector<3x32xf32>
    %c4_147 = arith.constant 4 : index
    %c0_148 = arith.constant 0 : index
    %255 = vector.load %arg3[%c4_147, %c0_148] : memref<9x32xf32, #tpu.memory_space<vmem>>, vector<1x32xf32>
    %256 = vector.shape_cast %255 : vector<1x32xf32> to vector<32xf32>
    %257 = vector.shape_cast %256 : vector<32xf32> to vector<1x32xf32>
    %258 = vector.broadcast %257 : vector<1x32xf32> to vector<3x32xf32>
    %259 = arith.mulf %254, %258 : vector<3x32xf32>
    %260 = arith.addf %252, %259 : vector<3x32xf32>
    %c2_149 = arith.constant 2 : index
    %c2_150 = arith.constant 2 : index
    %c0_151 = arith.constant 0 : index
    %261 = vector.load %arg7[%c2_149, %c2_150, %c0_151] : memref<5x5x32xf32, #tpu.memory_space<vmem>>, vector<1x3x32xf32>
    %262 = vector.shape_cast %261 : vector<1x3x32xf32> to vector<3x32xf32>
    %c5_152 = arith.constant 5 : index
    %c0_153 = arith.constant 0 : index
    %263 = vector.load %arg3[%c5_152, %c0_153] : memref<9x32xf32, #tpu.memory_space<vmem>>, vector<1x32xf32>
    %264 = vector.shape_cast %263 : vector<1x32xf32> to vector<32xf32>
    %265 = vector.shape_cast %264 : vector<32xf32> to vector<1x32xf32>
    %266 = vector.broadcast %265 : vector<1x32xf32> to vector<3x32xf32>
    %267 = arith.mulf %262, %266 : vector<3x32xf32>
    %268 = arith.addf %260, %267 : vector<3x32xf32>
    %c3_154 = arith.constant 3 : index
    %c0_155 = arith.constant 0 : index
    %c0_156 = arith.constant 0 : index
    %269 = vector.load %arg7[%c3_154, %c0_155, %c0_156] : memref<5x5x32xf32, #tpu.memory_space<vmem>>, vector<1x3x32xf32>
    %270 = vector.shape_cast %269 : vector<1x3x32xf32> to vector<3x32xf32>
    %c6_157 = arith.constant 6 : index
    %c0_158 = arith.constant 0 : index
    %271 = vector.load %arg3[%c6_157, %c0_158] : memref<9x32xf32, #tpu.memory_space<vmem>>, vector<1x32xf32>
    %272 = vector.shape_cast %271 : vector<1x32xf32> to vector<32xf32>
    %273 = vector.shape_cast %272 : vector<32xf32> to vector<1x32xf32>
    %274 = vector.broadcast %273 : vector<1x32xf32> to vector<3x32xf32>
    %275 = arith.mulf %270, %274 : vector<3x32xf32>
    %276 = arith.addf %268, %275 : vector<3x32xf32>
    %c3_159 = arith.constant 3 : index
    %c1_160 = arith.constant 1 : index
    %c0_161 = arith.constant 0 : index
    %277 = vector.load %arg7[%c3_159, %c1_160, %c0_161] : memref<5x5x32xf32, #tpu.memory_space<vmem>>, vector<1x3x32xf32>
    %278 = vector.shape_cast %277 : vector<1x3x32xf32> to vector<3x32xf32>
    %c7_162 = arith.constant 7 : index
    %c0_163 = arith.constant 0 : index
    %279 = vector.load %arg3[%c7_162, %c0_163] : memref<9x32xf32, #tpu.memory_space<vmem>>, vector<1x32xf32>
    %280 = vector.shape_cast %279 : vector<1x32xf32> to vector<32xf32>
    %281 = vector.shape_cast %280 : vector<32xf32> to vector<1x32xf32>
    %282 = vector.broadcast %281 : vector<1x32xf32> to vector<3x32xf32>
    %283 = arith.mulf %278, %282 : vector<3x32xf32>
    %284 = arith.addf %276, %283 : vector<3x32xf32>
    %c3_164 = arith.constant 3 : index
    %c2_165 = arith.constant 2 : index
    %c0_166 = arith.constant 0 : index
    %285 = vector.load %arg7[%c3_164, %c2_165, %c0_166] : memref<5x5x32xf32, #tpu.memory_space<vmem>>, vector<1x3x32xf32>
    %286 = vector.shape_cast %285 : vector<1x3x32xf32> to vector<3x32xf32>
    %c8_167 = arith.constant 8 : index
    %c0_168 = arith.constant 0 : index
    %287 = vector.load %arg3[%c8_167, %c0_168] : memref<9x32xf32, #tpu.memory_space<vmem>>, vector<1x32xf32>
    %288 = vector.shape_cast %287 : vector<1x32xf32> to vector<32xf32>
    %289 = vector.shape_cast %288 : vector<32xf32> to vector<1x32xf32>
    %290 = vector.broadcast %289 : vector<1x32xf32> to vector<3x32xf32>
    %291 = arith.mulf %286, %290 : vector<3x32xf32>
    %292 = arith.addf %284, %291 : vector<3x32xf32>
    %c3_169 = arith.constant 3 : index
    %c0_170 = arith.constant 0 : index
    %293 = vector.load %arg5[%c3_169, %c0_170] : memref<9x32xf32, #tpu.memory_space<vmem>>, vector<1x32xf32>
    %294 = vector.shape_cast %293 : vector<1x32xf32> to vector<32xf32>
    %295 = vector.shape_cast %294 : vector<32xf32> to vector<1x32xf32>
    %296 = vector.broadcast %295 : vector<1x32xf32> to vector<3x32xf32>
    %297 = arith.addf %292, %296 : vector<3x32xf32>
    %cst_171 = arith.constant 0.000000e+00 : f32
    %298 = vector.broadcast %cst_171 : f32 to vector<3x32xf32>
    %299 = arith.subf %298, %297 : vector<3x32xf32>
    %300 = math.exp %299 : vector<3x32xf32>
    %cst_172 = arith.constant 1.000000e+00 : f32
    %301 = vector.broadcast %cst_172 : f32 to vector<3x32xf32>
    %302 = arith.addf %301, %300 : vector<3x32xf32>
    %cst_173 = arith.constant 1.000000e+00 : f32
    %303 = vector.broadcast %cst_173 : f32 to vector<3x32xf32>
    %304 = arith.divf %303, %302 : vector<3x32xf32>
    %305 = arith.mulf %297, %304 : vector<3x32xf32>
    %c4_174 = arith.constant 4 : index
    %c0_175 = arith.constant 0 : index
    %306 = vector.load %arg5[%c4_174, %c0_175] : memref<9x32xf32, #tpu.memory_space<vmem>>, vector<1x32xf32>
    %307 = vector.shape_cast %306 : vector<1x32xf32> to vector<32xf32>
    %308 = vector.shape_cast %307 : vector<32xf32> to vector<1x32xf32>
    %309 = vector.broadcast %308 : vector<1x32xf32> to vector<3x32xf32>
    %310 = arith.mulf %305, %309 : vector<3x32xf32>
    %c5_176 = arith.constant 5 : index
    %c0_177 = arith.constant 0 : index
    %311 = vector.load %arg5[%c5_176, %c0_177] : memref<9x32xf32, #tpu.memory_space<vmem>>, vector<1x32xf32>
    %312 = vector.shape_cast %311 : vector<1x32xf32> to vector<32xf32>
    %313 = vector.shape_cast %312 : vector<32xf32> to vector<1x32xf32>
    %314 = vector.broadcast %313 : vector<1x32xf32> to vector<3x32xf32>
    %315 = arith.addf %310, %314 : vector<3x32xf32>
    %c2_178 = arith.constant 2 : index
    %c1_179 = arith.constant 1 : index
    %c0_180 = arith.constant 0 : index
    %316 = vector.load %arg7[%c2_178, %c1_179, %c0_180] : memref<5x5x32xf32, #tpu.memory_space<vmem>>, vector<1x3x32xf32>
    %317 = vector.shape_cast %316 : vector<1x3x32xf32> to vector<3x32xf32>
    %318 = arith.addf %315, %317 : vector<3x32xf32>
    %c0_181 = arith.constant 0 : index
    %c0_182 = arith.constant 0 : index
    %319 = vector.load %arg4[%c0_181, %c0_182] : memref<32x32xf32, #tpu.memory_space<vmem>>, vector<32x32xf32>
    %cst_183 = arith.constant dense<0.000000e+00> : vector<3x32xf32>
    %320 = tpu.matmul %318, %319, %cst_183 {dimension_numbers = #tpu.dot_dimension_numbers<[1], [0], [0], [1], [0, 0, 1, 1], [], []>} : vector<3x32xf32>, vector<32x32xf32>, vector<3x32xf32> -> vector<3x32xf32>
    %c6_184 = arith.constant 6 : index
    %c0_185 = arith.constant 0 : index
    %321 = vector.load %arg5[%c6_184, %c0_185] : memref<9x32xf32, #tpu.memory_space<vmem>>, vector<1x32xf32>
    %322 = vector.shape_cast %321 : vector<1x32xf32> to vector<32xf32>
    %323 = vector.shape_cast %322 : vector<32xf32> to vector<1x32xf32>
    %324 = vector.broadcast %323 : vector<1x32xf32> to vector<3x32xf32>
    %325 = arith.addf %320, %324 : vector<3x32xf32>
    %cst_186 = arith.constant 0.000000e+00 : f32
    %326 = vector.broadcast %cst_186 : f32 to vector<3x32xf32>
    %327 = arith.subf %326, %325 : vector<3x32xf32>
    %328 = math.exp %327 : vector<3x32xf32>
    %cst_187 = arith.constant 1.000000e+00 : f32
    %329 = vector.broadcast %cst_187 : f32 to vector<3x32xf32>
    %330 = arith.addf %329, %328 : vector<3x32xf32>
    %cst_188 = arith.constant 1.000000e+00 : f32
    %331 = vector.broadcast %cst_188 : f32 to vector<3x32xf32>
    %332 = arith.divf %331, %330 : vector<3x32xf32>
    %333 = arith.mulf %325, %332 : vector<3x32xf32>
    %c7_189 = arith.constant 7 : index
    %c0_190 = arith.constant 0 : index
    %334 = vector.load %arg5[%c7_189, %c0_190] : memref<9x32xf32, #tpu.memory_space<vmem>>, vector<1x32xf32>
    %335 = vector.shape_cast %334 : vector<1x32xf32> to vector<32xf32>
    %336 = vector.shape_cast %335 : vector<32xf32> to vector<1x32xf32>
    %337 = vector.broadcast %336 : vector<1x32xf32> to vector<3x32xf32>
    %338 = arith.mulf %333, %337 : vector<3x32xf32>
    %c8_191 = arith.constant 8 : index
    %c0_192 = arith.constant 0 : index
    %339 = vector.load %arg5[%c8_191, %c0_192] : memref<9x32xf32, #tpu.memory_space<vmem>>, vector<1x32xf32>
    %340 = vector.shape_cast %339 : vector<1x32xf32> to vector<32xf32>
    %341 = vector.shape_cast %340 : vector<32xf32> to vector<1x32xf32>
    %342 = vector.broadcast %341 : vector<1x32xf32> to vector<3x32xf32>
    %343 = arith.addf %338, %342 : vector<3x32xf32>
    %cst_193 = arith.constant dense<0.000000e+00> : vector<32xf32>
    %344 = vector.multi_reduction <add>, %343, %cst_193 [0] : vector<3x32xf32> to vector<32xf32>
    %345 = vector.shape_cast %344 : vector<32xf32> to vector<1x32xf32>
    %346 = arith.addf %219, %345 : vector<1x32xf32>
    %cst_194 = arith.constant 0.000000e+00 : f32
    %347 = vector.broadcast %cst_194 : f32 to vector<3x32xf32>
    %c2_195 = arith.constant 2 : index
    %c0_196 = arith.constant 0 : index
    %c0_197 = arith.constant 0 : index
    %348 = vector.load %arg7[%c2_195, %c0_196, %c0_197] : memref<5x5x32xf32, #tpu.memory_space<vmem>>, vector<1x3x32xf32>
    %349 = vector.shape_cast %348 : vector<1x3x32xf32> to vector<3x32xf32>
    %c0_198 = arith.constant 0 : index
    %c0_199 = arith.constant 0 : index
    %350 = vector.load %arg3[%c0_198, %c0_199] : memref<9x32xf32, #tpu.memory_space<vmem>>, vector<1x32xf32>
    %351 = vector.shape_cast %350 : vector<1x32xf32> to vector<32xf32>
    %352 = vector.shape_cast %351 : vector<32xf32> to vector<1x32xf32>
    %353 = vector.broadcast %352 : vector<1x32xf32> to vector<3x32xf32>
    %354 = arith.mulf %349, %353 : vector<3x32xf32>
    %355 = arith.addf %347, %354 : vector<3x32xf32>
    %c2_200 = arith.constant 2 : index
    %c1_201 = arith.constant 1 : index
    %c0_202 = arith.constant 0 : index
    %356 = vector.load %arg7[%c2_200, %c1_201, %c0_202] : memref<5x5x32xf32, #tpu.memory_space<vmem>>, vector<1x3x32xf32>
    %357 = vector.shape_cast %356 : vector<1x3x32xf32> to vector<3x32xf32>
    %c1_203 = arith.constant 1 : index
    %c0_204 = arith.constant 0 : index
    %358 = vector.load %arg3[%c1_203, %c0_204] : memref<9x32xf32, #tpu.memory_space<vmem>>, vector<1x32xf32>
    %359 = vector.shape_cast %358 : vector<1x32xf32> to vector<32xf32>
    %360 = vector.shape_cast %359 : vector<32xf32> to vector<1x32xf32>
    %361 = vector.broadcast %360 : vector<1x32xf32> to vector<3x32xf32>
    %362 = arith.mulf %357, %361 : vector<3x32xf32>
    %363 = arith.addf %355, %362 : vector<3x32xf32>
    %c2_205 = arith.constant 2 : index
    %c2_206 = arith.constant 2 : index
    %c0_207 = arith.constant 0 : index
    %364 = vector.load %arg7[%c2_205, %c2_206, %c0_207] : memref<5x5x32xf32, #tpu.memory_space<vmem>>, vector<1x3x32xf32>
    %365 = vector.shape_cast %364 : vector<1x3x32xf32> to vector<3x32xf32>
    %c2_208 = arith.constant 2 : index
    %c0_209 = arith.constant 0 : index
    %366 = vector.load %arg3[%c2_208, %c0_209] : memref<9x32xf32, #tpu.memory_space<vmem>>, vector<1x32xf32>
    %367 = vector.shape_cast %366 : vector<1x32xf32> to vector<32xf32>
    %368 = vector.shape_cast %367 : vector<32xf32> to vector<1x32xf32>
    %369 = vector.broadcast %368 : vector<1x32xf32> to vector<3x32xf32>
    %370 = arith.mulf %365, %369 : vector<3x32xf32>
    %371 = arith.addf %363, %370 : vector<3x32xf32>
    %c3_210 = arith.constant 3 : index
    %c0_211 = arith.constant 0 : index
    %c0_212 = arith.constant 0 : index
    %372 = vector.load %arg7[%c3_210, %c0_211, %c0_212] : memref<5x5x32xf32, #tpu.memory_space<vmem>>, vector<1x3x32xf32>
    %373 = vector.shape_cast %372 : vector<1x3x32xf32> to vector<3x32xf32>
    %c3_213 = arith.constant 3 : index
    %c0_214 = arith.constant 0 : index
    %374 = vector.load %arg3[%c3_213, %c0_214] : memref<9x32xf32, #tpu.memory_space<vmem>>, vector<1x32xf32>
    %375 = vector.shape_cast %374 : vector<1x32xf32> to vector<32xf32>
    %376 = vector.shape_cast %375 : vector<32xf32> to vector<1x32xf32>
    %377 = vector.broadcast %376 : vector<1x32xf32> to vector<3x32xf32>
    %378 = arith.mulf %373, %377 : vector<3x32xf32>
    %379 = arith.addf %371, %378 : vector<3x32xf32>
    %c3_215 = arith.constant 3 : index
    %c1_216 = arith.constant 1 : index
    %c0_217 = arith.constant 0 : index
    %380 = vector.load %arg7[%c3_215, %c1_216, %c0_217] : memref<5x5x32xf32, #tpu.memory_space<vmem>>, vector<1x3x32xf32>
    %381 = vector.shape_cast %380 : vector<1x3x32xf32> to vector<3x32xf32>
    %c4_218 = arith.constant 4 : index
    %c0_219 = arith.constant 0 : index
    %382 = vector.load %arg3[%c4_218, %c0_219] : memref<9x32xf32, #tpu.memory_space<vmem>>, vector<1x32xf32>
    %383 = vector.shape_cast %382 : vector<1x32xf32> to vector<32xf32>
    %384 = vector.shape_cast %383 : vector<32xf32> to vector<1x32xf32>
    %385 = vector.broadcast %384 : vector<1x32xf32> to vector<3x32xf32>
    %386 = arith.mulf %381, %385 : vector<3x32xf32>
    %387 = arith.addf %379, %386 : vector<3x32xf32>
    %c3_220 = arith.constant 3 : index
    %c2_221 = arith.constant 2 : index
    %c0_222 = arith.constant 0 : index
    %388 = vector.load %arg7[%c3_220, %c2_221, %c0_222] : memref<5x5x32xf32, #tpu.memory_space<vmem>>, vector<1x3x32xf32>
    %389 = vector.shape_cast %388 : vector<1x3x32xf32> to vector<3x32xf32>
    %c5_223 = arith.constant 5 : index
    %c0_224 = arith.constant 0 : index
    %390 = vector.load %arg3[%c5_223, %c0_224] : memref<9x32xf32, #tpu.memory_space<vmem>>, vector<1x32xf32>
    %391 = vector.shape_cast %390 : vector<1x32xf32> to vector<32xf32>
    %392 = vector.shape_cast %391 : vector<32xf32> to vector<1x32xf32>
    %393 = vector.broadcast %392 : vector<1x32xf32> to vector<3x32xf32>
    %394 = arith.mulf %389, %393 : vector<3x32xf32>
    %395 = arith.addf %387, %394 : vector<3x32xf32>
    %c4_225 = arith.constant 4 : index
    %c0_226 = arith.constant 0 : index
    %c0_227 = arith.constant 0 : index
    %396 = vector.load %arg7[%c4_225, %c0_226, %c0_227] : memref<5x5x32xf32, #tpu.memory_space<vmem>>, vector<1x3x32xf32>
    %397 = vector.shape_cast %396 : vector<1x3x32xf32> to vector<3x32xf32>
    %c6_228 = arith.constant 6 : index
    %c0_229 = arith.constant 0 : index
    %398 = vector.load %arg3[%c6_228, %c0_229] : memref<9x32xf32, #tpu.memory_space<vmem>>, vector<1x32xf32>
    %399 = vector.shape_cast %398 : vector<1x32xf32> to vector<32xf32>
    %400 = vector.shape_cast %399 : vector<32xf32> to vector<1x32xf32>
    %401 = vector.broadcast %400 : vector<1x32xf32> to vector<3x32xf32>
    %402 = arith.mulf %397, %401 : vector<3x32xf32>
    %403 = arith.addf %395, %402 : vector<3x32xf32>
    %c4_230 = arith.constant 4 : index
    %c1_231 = arith.constant 1 : index
    %c0_232 = arith.constant 0 : index
    %404 = vector.load %arg7[%c4_230, %c1_231, %c0_232] : memref<5x5x32xf32, #tpu.memory_space<vmem>>, vector<1x3x32xf32>
    %405 = vector.shape_cast %404 : vector<1x3x32xf32> to vector<3x32xf32>
    %c7_233 = arith.constant 7 : index
    %c0_234 = arith.constant 0 : index
    %406 = vector.load %arg3[%c7_233, %c0_234] : memref<9x32xf32, #tpu.memory_space<vmem>>, vector<1x32xf32>
    %407 = vector.shape_cast %406 : vector<1x32xf32> to vector<32xf32>
    %408 = vector.shape_cast %407 : vector<32xf32> to vector<1x32xf32>
    %409 = vector.broadcast %408 : vector<1x32xf32> to vector<3x32xf32>
    %410 = arith.mulf %405, %409 : vector<3x32xf32>
    %411 = arith.addf %403, %410 : vector<3x32xf32>
    %c4_235 = arith.constant 4 : index
    %c2_236 = arith.constant 2 : index
    %c0_237 = arith.constant 0 : index
    %412 = vector.load %arg7[%c4_235, %c2_236, %c0_237] : memref<5x5x32xf32, #tpu.memory_space<vmem>>, vector<1x3x32xf32>
    %413 = vector.shape_cast %412 : vector<1x3x32xf32> to vector<3x32xf32>
    %c8_238 = arith.constant 8 : index
    %c0_239 = arith.constant 0 : index
    %414 = vector.load %arg3[%c8_238, %c0_239] : memref<9x32xf32, #tpu.memory_space<vmem>>, vector<1x32xf32>
    %415 = vector.shape_cast %414 : vector<1x32xf32> to vector<32xf32>
    %416 = vector.shape_cast %415 : vector<32xf32> to vector<1x32xf32>
    %417 = vector.broadcast %416 : vector<1x32xf32> to vector<3x32xf32>
    %418 = arith.mulf %413, %417 : vector<3x32xf32>
    %419 = arith.addf %411, %418 : vector<3x32xf32>
    %c3_240 = arith.constant 3 : index
    %c0_241 = arith.constant 0 : index
    %420 = vector.load %arg5[%c3_240, %c0_241] : memref<9x32xf32, #tpu.memory_space<vmem>>, vector<1x32xf32>
    %421 = vector.shape_cast %420 : vector<1x32xf32> to vector<32xf32>
    %422 = vector.shape_cast %421 : vector<32xf32> to vector<1x32xf32>
    %423 = vector.broadcast %422 : vector<1x32xf32> to vector<3x32xf32>
    %424 = arith.addf %419, %423 : vector<3x32xf32>
    %cst_242 = arith.constant 0.000000e+00 : f32
    %425 = vector.broadcast %cst_242 : f32 to vector<3x32xf32>
    %426 = arith.subf %425, %424 : vector<3x32xf32>
    %427 = math.exp %426 : vector<3x32xf32>
    %cst_243 = arith.constant 1.000000e+00 : f32
    %428 = vector.broadcast %cst_243 : f32 to vector<3x32xf32>
    %429 = arith.addf %428, %427 : vector<3x32xf32>
    %cst_244 = arith.constant 1.000000e+00 : f32
    %430 = vector.broadcast %cst_244 : f32 to vector<3x32xf32>
    %431 = arith.divf %430, %429 : vector<3x32xf32>
    %432 = arith.mulf %424, %431 : vector<3x32xf32>
    %c4_245 = arith.constant 4 : index
    %c0_246 = arith.constant 0 : index
    %433 = vector.load %arg5[%c4_245, %c0_246] : memref<9x32xf32, #tpu.memory_space<vmem>>, vector<1x32xf32>
    %434 = vector.shape_cast %433 : vector<1x32xf32> to vector<32xf32>
    %435 = vector.shape_cast %434 : vector<32xf32> to vector<1x32xf32>
    %436 = vector.broadcast %435 : vector<1x32xf32> to vector<3x32xf32>
    %437 = arith.mulf %432, %436 : vector<3x32xf32>
    %c5_247 = arith.constant 5 : index
    %c0_248 = arith.constant 0 : index
    %438 = vector.load %arg5[%c5_247, %c0_248] : memref<9x32xf32, #tpu.memory_space<vmem>>, vector<1x32xf32>
    %439 = vector.shape_cast %438 : vector<1x32xf32> to vector<32xf32>
    %440 = vector.shape_cast %439 : vector<32xf32> to vector<1x32xf32>
    %441 = vector.broadcast %440 : vector<1x32xf32> to vector<3x32xf32>
    %442 = arith.addf %437, %441 : vector<3x32xf32>
    %c3_249 = arith.constant 3 : index
    %c1_250 = arith.constant 1 : index
    %c0_251 = arith.constant 0 : index
    %443 = vector.load %arg7[%c3_249, %c1_250, %c0_251] : memref<5x5x32xf32, #tpu.memory_space<vmem>>, vector<1x3x32xf32>
    %444 = vector.shape_cast %443 : vector<1x3x32xf32> to vector<3x32xf32>
    %445 = arith.addf %442, %444 : vector<3x32xf32>
    %c0_252 = arith.constant 0 : index
    %c0_253 = arith.constant 0 : index
    %446 = vector.load %arg4[%c0_252, %c0_253] : memref<32x32xf32, #tpu.memory_space<vmem>>, vector<32x32xf32>
    %cst_254 = arith.constant dense<0.000000e+00> : vector<3x32xf32>
    %447 = tpu.matmul %445, %446, %cst_254 {dimension_numbers = #tpu.dot_dimension_numbers<[1], [0], [0], [1], [0, 0, 1, 1], [], []>} : vector<3x32xf32>, vector<32x32xf32>, vector<3x32xf32> -> vector<3x32xf32>
    %c6_255 = arith.constant 6 : index
    %c0_256 = arith.constant 0 : index
    %448 = vector.load %arg5[%c6_255, %c0_256] : memref<9x32xf32, #tpu.memory_space<vmem>>, vector<1x32xf32>
    %449 = vector.shape_cast %448 : vector<1x32xf32> to vector<32xf32>
    %450 = vector.shape_cast %449 : vector<32xf32> to vector<1x32xf32>
    %451 = vector.broadcast %450 : vector<1x32xf32> to vector<3x32xf32>
    %452 = arith.addf %447, %451 : vector<3x32xf32>
    %cst_257 = arith.constant 0.000000e+00 : f32
    %453 = vector.broadcast %cst_257 : f32 to vector<3x32xf32>
    %454 = arith.subf %453, %452 : vector<3x32xf32>
    %455 = math.exp %454 : vector<3x32xf32>
    %cst_258 = arith.constant 1.000000e+00 : f32
    %456 = vector.broadcast %cst_258 : f32 to vector<3x32xf32>
    %457 = arith.addf %456, %455 : vector<3x32xf32>
    %cst_259 = arith.constant 1.000000e+00 : f32
    %458 = vector.broadcast %cst_259 : f32 to vector<3x32xf32>
    %459 = arith.divf %458, %457 : vector<3x32xf32>
    %460 = arith.mulf %452, %459 : vector<3x32xf32>
    %c7_260 = arith.constant 7 : index
    %c0_261 = arith.constant 0 : index
    %461 = vector.load %arg5[%c7_260, %c0_261] : memref<9x32xf32, #tpu.memory_space<vmem>>, vector<1x32xf32>
    %462 = vector.shape_cast %461 : vector<1x32xf32> to vector<32xf32>
    %463 = vector.shape_cast %462 : vector<32xf32> to vector<1x32xf32>
    %464 = vector.broadcast %463 : vector<1x32xf32> to vector<3x32xf32>
    %465 = arith.mulf %460, %464 : vector<3x32xf32>
    %c8_262 = arith.constant 8 : index
    %c0_263 = arith.constant 0 : index
    %466 = vector.load %arg5[%c8_262, %c0_263] : memref<9x32xf32, #tpu.memory_space<vmem>>, vector<1x32xf32>
    %467 = vector.shape_cast %466 : vector<1x32xf32> to vector<32xf32>
    %468 = vector.shape_cast %467 : vector<32xf32> to vector<1x32xf32>
    %469 = vector.broadcast %468 : vector<1x32xf32> to vector<3x32xf32>
    %470 = arith.addf %465, %469 : vector<3x32xf32>
    %cst_264 = arith.constant dense<0.000000e+00> : vector<32xf32>
    %471 = vector.multi_reduction <add>, %470, %cst_264 [0] : vector<3x32xf32> to vector<32xf32>
    %472 = vector.shape_cast %471 : vector<32xf32> to vector<1x32xf32>
    %473 = arith.addf %346, %472 : vector<1x32xf32>
    %cst_265 = arith.constant 0.111111112 : f32
    %474 = vector.broadcast %cst_265 : f32 to vector<1x32xf32>
    %475 = arith.mulf %473, %474 : vector<1x32xf32>
    %c0_266 = arith.constant 0 : index
    %c0_267 = arith.constant 0 : index
    %c0_268 = arith.constant 0 : index
    %476 = vector.load %arg6[%c0_266, %c0_267, %c0_268] : memref<1x1x32xf32, #tpu.memory_space<vmem>>, vector<1x1x32xf32>
    %477 = vector.shape_cast %476 : vector<1x1x32xf32> to vector<1x32xf32>
    %478 = vector.shape_cast %475 : vector<1x32xf32> to vector<1x1x32xf32>
    tpu.vector_store %arg6[%c0_266, %c0_267, %c0_268], %478 {strides = array<i32>} : memref<1x1x32xf32, #tpu.memory_space<vmem>>, vector<1x1x32xf32>,
    return
  }
  func.func @transform_0(%arg0: i32) -> (i32, i32, i32, i32) {
    %c0_i32 = arith.constant 0 : i32
    %c0_i32_0 = arith.constant 0 : i32
    %c0_i32_1 = arith.constant 0 : i32
    %c0_i32_2 = arith.constant 0 : i32
    return %arg0, %c0_i32, %c0_i32_0, %c0_i32_1 : i32, i32, i32, i32
  }
  func.func @transform_1(%arg0: i32) -> (i32, i32) {
    %c0_i32 = arith.constant 0 : i32
    %c0_i32_0 = arith.constant 0 : i32
    %c0_i32_1 = arith.constant 0 : i32
    return %c0_i32, %c0_i32_0 : i32, i32
  }
  func.func @transform_2(%arg0: i32) -> (i32, i32) {
    %c0_i32 = arith.constant 0 : i32
    %c0_i32_0 = arith.constant 0 : i32
    %c0_i32_1 = arith.constant 0 : i32
    return %c0_i32, %c0_i32_0 : i32, i32
  }
  func.func @transform_3(%arg0: i32) -> (i32, i32) {
    %c0_i32 = arith.constant 0 : i32
    %c0_i32_0 = arith.constant 0 : i32
    %c0_i32_1 = arith.constant 0 : i32
    return %c0_i32, %c0_i32_0 : i32, i32
  }
  func.func @transform_4(%arg0: i32) -> (i32, i32) {
    %c0_i32 = arith.constant 0 : i32
    %c0_i32_0 = arith.constant 0 : i32
    %c0_i32_1 = arith.constant 0 : i32
    return %c0_i32, %c0_i32_0 : i32, i32
  }
  func.func @transform_5(%arg0: i32) -> (i32, i32, i32) {
    %c0_i32 = arith.constant 0 : i32
    %c0_i32_0 = arith.constant 0 : i32
    %c0_i32_1 = arith.constant 0 : i32
    return %arg0, %c0_i32, %c0_i32_0 : i32, i32, i32
  }
}

module attributes {stable_mosaic.version = 11 : i64} {
  func.func @_dcovn_branch_kernel(%arg0: i32, %arg1: memref<1x2x2x1568xf32, #tpu.memory_space<vmem>>, %arg2: memref<1568x32xf32, #tpu.memory_space<vmem>>, %arg3: memref<9x32xf32, #tpu.memory_space<vmem>>, %arg4: memref<32x32xf32, #tpu.memory_space<vmem>>, %arg5: memref<9x32xf32, #tpu.memory_space<vmem>>, %arg6: memref<1x1x32xf32, #tpu.memory_space<vmem>>, %arg7: memref<4x4x32xf32, #tpu.memory_space<vmem>>) attributes {dimension_semantics = [#tpu.dimension_semantics<parallel>], iteration_bounds = array<i64: 2>, scalar_prefetch = 0 : i64, scratch_operands = 1 : i64, tpu.core_type = #tpu.core_type<tc>, window_params = [{transform_indices = @transform_0, window_bounds = array<i64: 1, 2, 2, 1568>}, {pipeline_mode = #tpu.pipeline_mode<synchronous>, transform_indices = @transform_1, window_bounds = array<i64: 1568, 32>}, {pipeline_mode = #tpu.pipeline_mode<synchronous>, transform_indices = @transform_2, window_bounds = array<i64: 9, 32>}, {pipeline_mode = #tpu.pipeline_mode<synchronous>, transform_indices = @transform_3, window_bounds = array<i64: 32, 32>}, {pipeline_mode = #tpu.pipeline_mode<synchronous>, transform_indices = @transform_4, window_bounds = array<i64: 9, 32>}, {transform_indices = @transform_5, window_bounds = array<i64: 1, 1, 32>}]} {
    %cst = arith.constant 0.000000e+00 : f32
    %0 = vector.broadcast %cst : f32 to vector<4x4x32xf32>
    %c0 = arith.constant 0 : index
    %c0_0 = arith.constant 0 : index
    %c0_1 = arith.constant 0 : index
    %1 = vector.load %arg7[%c0, %c0_0, %c0_1] : memref<4x4x32xf32, #tpu.memory_space<vmem>>, vector<4x4x32xf32>
    tpu.vector_store %arg7[%c0, %c0_0, %c0_1], %0 {strides = array<i32>} : memref<4x4x32xf32, #tpu.memory_space<vmem>>, vector<4x4x32xf32>,
    %c0_2 = arith.constant 0 : index
    %c0_3 = arith.constant 0 : index
    %c0_4 = arith.constant 0 : index
    %c0_5 = arith.constant 0 : index
    %2 = vector.load %arg1[%c0_2, %c0_3, %c0_4, %c0_5] : memref<1x2x2x1568xf32, #tpu.memory_space<vmem>>, vector<1x1x2x1568xf32>
    %3 = vector.shape_cast %2 : vector<1x1x2x1568xf32> to vector<2x1568xf32>
    %c0_6 = arith.constant 0 : index
    %c0_7 = arith.constant 0 : index
    %4 = vector.load %arg2[%c0_6, %c0_7] : memref<1568x32xf32, #tpu.memory_space<vmem>>, vector<1568x32xf32>
    %cst_8 = arith.constant dense<0.000000e+00> : vector<2x32xf32>
    %5 = tpu.matmul %3, %4, %cst_8 {dimension_numbers = #tpu.dot_dimension_numbers<[1], [0], [0], [1], [0, 0, 1, 1], [], []>} : vector<2x1568xf32>, vector<1568x32xf32>, vector<2x32xf32> -> vector<2x32xf32>
    %c0_9 = arith.constant 0 : index
    %c0_10 = arith.constant 0 : index
    %6 = vector.load %arg5[%c0_9, %c0_10] : memref<9x32xf32, #tpu.memory_space<vmem>>, vector<1x32xf32>
    %7 = vector.shape_cast %6 : vector<1x32xf32> to vector<32xf32>
    %8 = vector.shape_cast %7 : vector<32xf32> to vector<1x32xf32>
    %9 = vector.broadcast %8 : vector<1x32xf32> to vector<2x32xf32>
    %10 = arith.addf %5, %9 : vector<2x32xf32>
    %cst_11 = arith.constant 0.000000e+00 : f32
    %11 = vector.broadcast %cst_11 : f32 to vector<2x32xf32>
    %12 = arith.subf %11, %10 : vector<2x32xf32>
    %13 = math.exp %12 : vector<2x32xf32>
    %cst_12 = arith.constant 1.000000e+00 : f32
    %14 = vector.broadcast %cst_12 : f32 to vector<2x32xf32>
    %15 = arith.addf %14, %13 : vector<2x32xf32>
    %cst_13 = arith.constant 1.000000e+00 : f32
    %16 = vector.broadcast %cst_13 : f32 to vector<2x32xf32>
    %17 = arith.divf %16, %15 : vector<2x32xf32>
    %18 = arith.mulf %10, %17 : vector<2x32xf32>
    %c1 = arith.constant 1 : index
    %c0_14 = arith.constant 0 : index
    %19 = vector.load %arg5[%c1, %c0_14] : memref<9x32xf32, #tpu.memory_space<vmem>>, vector<1x32xf32>
    %20 = vector.shape_cast %19 : vector<1x32xf32> to vector<32xf32>
    %21 = vector.shape_cast %20 : vector<32xf32> to vector<1x32xf32>
    %22 = vector.broadcast %21 : vector<1x32xf32> to vector<2x32xf32>
    %23 = arith.mulf %18, %22 : vector<2x32xf32>
    %c2 = arith.constant 2 : index
    %c0_15 = arith.constant 0 : index
    %24 = vector.load %arg5[%c2, %c0_15] : memref<9x32xf32, #tpu.memory_space<vmem>>, vector<1x32xf32>
    %25 = vector.shape_cast %24 : vector<1x32xf32> to vector<32xf32>
    %26 = vector.shape_cast %25 : vector<32xf32> to vector<1x32xf32>
    %27 = vector.broadcast %26 : vector<1x32xf32> to vector<2x32xf32>
    %28 = arith.addf %23, %27 : vector<2x32xf32>
    %c1_16 = arith.constant 1 : index
    %c1_17 = arith.constant 1 : index
    %c0_18 = arith.constant 0 : index
    %29 = vector.load %arg7[%c1_16, %c1_17, %c0_18] : memref<4x4x32xf32, #tpu.memory_space<vmem>>, vector<1x2x32xf32>
    %30 = vector.shape_cast %29 : vector<1x2x32xf32> to vector<2x32xf32>
    %31 = vector.shape_cast %28 : vector<2x32xf32> to vector<1x2x32xf32>
    tpu.vector_store %arg7[%c1_16, %c1_17, %c0_18], %31 {strides = array<i32>} : memref<4x4x32xf32, #tpu.memory_space<vmem>>, vector<1x2x32xf32>,
    %c0_19 = arith.constant 0 : index
    %c1_20 = arith.constant 1 : index
    %c0_21 = arith.constant 0 : index
    %c0_22 = arith.constant 0 : index
    %32 = vector.load %arg1[%c0_19, %c1_20, %c0_21, %c0_22] : memref<1x2x2x1568xf32, #tpu.memory_space<vmem>>, vector<1x1x2x1568xf32>
    %33 = vector.shape_cast %32 : vector<1x1x2x1568xf32> to vector<2x1568xf32>
    %c0_23 = arith.constant 0 : index
    %c0_24 = arith.constant 0 : index
    %34 = vector.load %arg2[%c0_23, %c0_24] : memref<1568x32xf32, #tpu.memory_space<vmem>>, vector<1568x32xf32>
    %cst_25 = arith.constant dense<0.000000e+00> : vector<2x32xf32>
    %35 = tpu.matmul %33, %34, %cst_25 {dimension_numbers = #tpu.dot_dimension_numbers<[1], [0], [0], [1], [0, 0, 1, 1], [], []>} : vector<2x1568xf32>, vector<1568x32xf32>, vector<2x32xf32> -> vector<2x32xf32>
    %c0_26 = arith.constant 0 : index
    %c0_27 = arith.constant 0 : index
    %36 = vector.load %arg5[%c0_26, %c0_27] : memref<9x32xf32, #tpu.memory_space<vmem>>, vector<1x32xf32>
    %37 = vector.shape_cast %36 : vector<1x32xf32> to vector<32xf32>
    %38 = vector.shape_cast %37 : vector<32xf32> to vector<1x32xf32>
    %39 = vector.broadcast %38 : vector<1x32xf32> to vector<2x32xf32>
    %40 = arith.addf %35, %39 : vector<2x32xf32>
    %cst_28 = arith.constant 0.000000e+00 : f32
    %41 = vector.broadcast %cst_28 : f32 to vector<2x32xf32>
    %42 = arith.subf %41, %40 : vector<2x32xf32>
    %43 = math.exp %42 : vector<2x32xf32>
    %cst_29 = arith.constant 1.000000e+00 : f32
    %44 = vector.broadcast %cst_29 : f32 to vector<2x32xf32>
    %45 = arith.addf %44, %43 : vector<2x32xf32>
    %cst_30 = arith.constant 1.000000e+00 : f32
    %46 = vector.broadcast %cst_30 : f32 to vector<2x32xf32>
    %47 = arith.divf %46, %45 : vector<2x32xf32>
    %48 = arith.mulf %40, %47 : vector<2x32xf32>
    %c1_31 = arith.constant 1 : index
    %c0_32 = arith.constant 0 : index
    %49 = vector.load %arg5[%c1_31, %c0_32] : memref<9x32xf32, #tpu.memory_space<vmem>>, vector<1x32xf32>
    %50 = vector.shape_cast %49 : vector<1x32xf32> to vector<32xf32>
    %51 = vector.shape_cast %50 : vector<32xf32> to vector<1x32xf32>
    %52 = vector.broadcast %51 : vector<1x32xf32> to vector<2x32xf32>
    %53 = arith.mulf %48, %52 : vector<2x32xf32>
    %c2_33 = arith.constant 2 : index
    %c0_34 = arith.constant 0 : index
    %54 = vector.load %arg5[%c2_33, %c0_34] : memref<9x32xf32, #tpu.memory_space<vmem>>, vector<1x32xf32>
    %55 = vector.shape_cast %54 : vector<1x32xf32> to vector<32xf32>
    %56 = vector.shape_cast %55 : vector<32xf32> to vector<1x32xf32>
    %57 = vector.broadcast %56 : vector<1x32xf32> to vector<2x32xf32>
    %58 = arith.addf %53, %57 : vector<2x32xf32>
    %c2_35 = arith.constant 2 : index
    %c1_36 = arith.constant 1 : index
    %c0_37 = arith.constant 0 : index
    %59 = vector.load %arg7[%c2_35, %c1_36, %c0_37] : memref<4x4x32xf32, #tpu.memory_space<vmem>>, vector<1x2x32xf32>
    %60 = vector.shape_cast %59 : vector<1x2x32xf32> to vector<2x32xf32>
    %61 = vector.shape_cast %58 : vector<2x32xf32> to vector<1x2x32xf32>
    tpu.vector_store %arg7[%c2_35, %c1_36, %c0_37], %61 {strides = array<i32>} : memref<4x4x32xf32, #tpu.memory_space<vmem>>, vector<1x2x32xf32>,
    %cst_38 = arith.constant 0.000000e+00 : f32
    %62 = vector.broadcast %cst_38 : f32 to vector<1x32xf32>
    %cst_39 = arith.constant 0.000000e+00 : f32
    %63 = vector.broadcast %cst_39 : f32 to vector<2x32xf32>
    %c0_40 = arith.constant 0 : index
    %c0_41 = arith.constant 0 : index
    %c0_42 = arith.constant 0 : index
    %64 = vector.load %arg7[%c0_40, %c0_41, %c0_42] : memref<4x4x32xf32, #tpu.memory_space<vmem>>, vector<1x2x32xf32>
    %65 = vector.shape_cast %64 : vector<1x2x32xf32> to vector<2x32xf32>
    %c0_43 = arith.constant 0 : index
    %c0_44 = arith.constant 0 : index
    %66 = vector.load %arg3[%c0_43, %c0_44] : memref<9x32xf32, #tpu.memory_space<vmem>>, vector<1x32xf32>
    %67 = vector.shape_cast %66 : vector<1x32xf32> to vector<32xf32>
    %68 = vector.shape_cast %67 : vector<32xf32> to vector<1x32xf32>
    %69 = vector.broadcast %68 : vector<1x32xf32> to vector<2x32xf32>
    %70 = arith.mulf %65, %69 : vector<2x32xf32>
    %71 = arith.addf %63, %70 : vector<2x32xf32>
    %c0_45 = arith.constant 0 : index
    %c1_46 = arith.constant 1 : index
    %c0_47 = arith.constant 0 : index
    %72 = vector.load %arg7[%c0_45, %c1_46, %c0_47] : memref<4x4x32xf32, #tpu.memory_space<vmem>>, vector<1x2x32xf32>
    %73 = vector.shape_cast %72 : vector<1x2x32xf32> to vector<2x32xf32>
    %c1_48 = arith.constant 1 : index
    %c0_49 = arith.constant 0 : index
    %74 = vector.load %arg3[%c1_48, %c0_49] : memref<9x32xf32, #tpu.memory_space<vmem>>, vector<1x32xf32>
    %75 = vector.shape_cast %74 : vector<1x32xf32> to vector<32xf32>
    %76 = vector.shape_cast %75 : vector<32xf32> to vector<1x32xf32>
    %77 = vector.broadcast %76 : vector<1x32xf32> to vector<2x32xf32>
    %78 = arith.mulf %73, %77 : vector<2x32xf32>
    %79 = arith.addf %71, %78 : vector<2x32xf32>
    %c0_50 = arith.constant 0 : index
    %c2_51 = arith.constant 2 : index
    %c0_52 = arith.constant 0 : index
    %80 = vector.load %arg7[%c0_50, %c2_51, %c0_52] : memref<4x4x32xf32, #tpu.memory_space<vmem>>, vector<1x2x32xf32>
    %81 = vector.shape_cast %80 : vector<1x2x32xf32> to vector<2x32xf32>
    %c2_53 = arith.constant 2 : index
    %c0_54 = arith.constant 0 : index
    %82 = vector.load %arg3[%c2_53, %c0_54] : memref<9x32xf32, #tpu.memory_space<vmem>>, vector<1x32xf32>
    %83 = vector.shape_cast %82 : vector<1x32xf32> to vector<32xf32>
    %84 = vector.shape_cast %83 : vector<32xf32> to vector<1x32xf32>
    %85 = vector.broadcast %84 : vector<1x32xf32> to vector<2x32xf32>
    %86 = arith.mulf %81, %85 : vector<2x32xf32>
    %87 = arith.addf %79, %86 : vector<2x32xf32>
    %c1_55 = arith.constant 1 : index
    %c0_56 = arith.constant 0 : index
    %c0_57 = arith.constant 0 : index
    %88 = vector.load %arg7[%c1_55, %c0_56, %c0_57] : memref<4x4x32xf32, #tpu.memory_space<vmem>>, vector<1x2x32xf32>
    %89 = vector.shape_cast %88 : vector<1x2x32xf32> to vector<2x32xf32>
    %c3 = arith.constant 3 : index
    %c0_58 = arith.constant 0 : index
    %90 = vector.load %arg3[%c3, %c0_58] : memref<9x32xf32, #tpu.memory_space<vmem>>, vector<1x32xf32>
    %91 = vector.shape_cast %90 : vector<1x32xf32> to vector<32xf32>
    %92 = vector.shape_cast %91 : vector<32xf32> to vector<1x32xf32>
    %93 = vector.broadcast %92 : vector<1x32xf32> to vector<2x32xf32>
    %94 = arith.mulf %89, %93 : vector<2x32xf32>
    %95 = arith.addf %87, %94 : vector<2x32xf32>
    %c1_59 = arith.constant 1 : index
    %c1_60 = arith.constant 1 : index
    %c0_61 = arith.constant 0 : index
    %96 = vector.load %arg7[%c1_59, %c1_60, %c0_61] : memref<4x4x32xf32, #tpu.memory_space<vmem>>, vector<1x2x32xf32>
    %97 = vector.shape_cast %96 : vector<1x2x32xf32> to vector<2x32xf32>
    %c4 = arith.constant 4 : index
    %c0_62 = arith.constant 0 : index
    %98 = vector.load %arg3[%c4, %c0_62] : memref<9x32xf32, #tpu.memory_space<vmem>>, vector<1x32xf32>
    %99 = vector.shape_cast %98 : vector<1x32xf32> to vector<32xf32>
    %100 = vector.shape_cast %99 : vector<32xf32> to vector<1x32xf32>
    %101 = vector.broadcast %100 : vector<1x32xf32> to vector<2x32xf32>
    %102 = arith.mulf %97, %101 : vector<2x32xf32>
    %103 = arith.addf %95, %102 : vector<2x32xf32>
    %c1_63 = arith.constant 1 : index
    %c2_64 = arith.constant 2 : index
    %c0_65 = arith.constant 0 : index
    %104 = vector.load %arg7[%c1_63, %c2_64, %c0_65] : memref<4x4x32xf32, #tpu.memory_space<vmem>>, vector<1x2x32xf32>
    %105 = vector.shape_cast %104 : vector<1x2x32xf32> to vector<2x32xf32>
    %c5 = arith.constant 5 : index
    %c0_66 = arith.constant 0 : index
    %106 = vector.load %arg3[%c5, %c0_66] : memref<9x32xf32, #tpu.memory_space<vmem>>, vector<1x32xf32>
    %107 = vector.shape_cast %106 : vector<1x32xf32> to vector<32xf32>
    %108 = vector.shape_cast %107 : vector<32xf32> to vector<1x32xf32>
    %109 = vector.broadcast %108 : vector<1x32xf32> to vector<2x32xf32>
    %110 = arith.mulf %105, %109 : vector<2x32xf32>
    %111 = arith.addf %103, %110 : vector<2x32xf32>
    %c2_67 = arith.constant 2 : index
    %c0_68 = arith.constant 0 : index
    %c0_69 = arith.constant 0 : index
    %112 = vector.load %arg7[%c2_67, %c0_68, %c0_69] : memref<4x4x32xf32, #tpu.memory_space<vmem>>, vector<1x2x32xf32>
    %113 = vector.shape_cast %112 : vector<1x2x32xf32> to vector<2x32xf32>
    %c6 = arith.constant 6 : index
    %c0_70 = arith.constant 0 : index
    %114 = vector.load %arg3[%c6, %c0_70] : memref<9x32xf32, #tpu.memory_space<vmem>>, vector<1x32xf32>
    %115 = vector.shape_cast %114 : vector<1x32xf32> to vector<32xf32>
    %116 = vector.shape_cast %115 : vector<32xf32> to vector<1x32xf32>
    %117 = vector.broadcast %116 : vector<1x32xf32> to vector<2x32xf32>
    %118 = arith.mulf %113, %117 : vector<2x32xf32>
    %119 = arith.addf %111, %118 : vector<2x32xf32>
    %c2_71 = arith.constant 2 : index
    %c1_72 = arith.constant 1 : index
    %c0_73 = arith.constant 0 : index
    %120 = vector.load %arg7[%c2_71, %c1_72, %c0_73] : memref<4x4x32xf32, #tpu.memory_space<vmem>>, vector<1x2x32xf32>
    %121 = vector.shape_cast %120 : vector<1x2x32xf32> to vector<2x32xf32>
    %c7 = arith.constant 7 : index
    %c0_74 = arith.constant 0 : index
    %122 = vector.load %arg3[%c7, %c0_74] : memref<9x32xf32, #tpu.memory_space<vmem>>, vector<1x32xf32>
    %123 = vector.shape_cast %122 : vector<1x32xf32> to vector<32xf32>
    %124 = vector.shape_cast %123 : vector<32xf32> to vector<1x32xf32>
    %125 = vector.broadcast %124 : vector<1x32xf32> to vector<2x32xf32>
    %126 = arith.mulf %121, %125 : vector<2x32xf32>
    %127 = arith.addf %119, %126 : vector<2x32xf32>
    %c2_75 = arith.constant 2 : index
    %c2_76 = arith.constant 2 : index
    %c0_77 = arith.constant 0 : index
    %128 = vector.load %arg7[%c2_75, %c2_76, %c0_77] : memref<4x4x32xf32, #tpu.memory_space<vmem>>, vector<1x2x32xf32>
    %129 = vector.shape_cast %128 : vector<1x2x32xf32> to vector<2x32xf32>
    %c8 = arith.constant 8 : index
    %c0_78 = arith.constant 0 : index
    %130 = vector.load %arg3[%c8, %c0_78] : memref<9x32xf32, #tpu.memory_space<vmem>>, vector<1x32xf32>
    %131 = vector.shape_cast %130 : vector<1x32xf32> to vector<32xf32>
    %132 = vector.shape_cast %131 : vector<32xf32> to vector<1x32xf32>
    %133 = vector.broadcast %132 : vector<1x32xf32> to vector<2x32xf32>
    %134 = arith.mulf %129, %133 : vector<2x32xf32>
    %135 = arith.addf %127, %134 : vector<2x32xf32>
    %c3_79 = arith.constant 3 : index
    %c0_80 = arith.constant 0 : index
    %136 = vector.load %arg5[%c3_79, %c0_80] : memref<9x32xf32, #tpu.memory_space<vmem>>, vector<1x32xf32>
    %137 = vector.shape_cast %136 : vector<1x32xf32> to vector<32xf32>
    %138 = vector.shape_cast %137 : vector<32xf32> to vector<1x32xf32>
    %139 = vector.broadcast %138 : vector<1x32xf32> to vector<2x32xf32>
    %140 = arith.addf %135, %139 : vector<2x32xf32>
    %cst_81 = arith.constant 0.000000e+00 : f32
    %141 = vector.broadcast %cst_81 : f32 to vector<2x32xf32>
    %142 = arith.subf %141, %140 : vector<2x32xf32>
    %143 = math.exp %142 : vector<2x32xf32>
    %cst_82 = arith.constant 1.000000e+00 : f32
    %144 = vector.broadcast %cst_82 : f32 to vector<2x32xf32>
    %145 = arith.addf %144, %143 : vector<2x32xf32>
    %cst_83 = arith.constant 1.000000e+00 : f32
    %146 = vector.broadcast %cst_83 : f32 to vector<2x32xf32>
    %147 = arith.divf %146, %145 : vector<2x32xf32>
    %148 = arith.mulf %140, %147 : vector<2x32xf32>
    %c4_84 = arith.constant 4 : index
    %c0_85 = arith.constant 0 : index
    %149 = vector.load %arg5[%c4_84, %c0_85] : memref<9x32xf32, #tpu.memory_space<vmem>>, vector<1x32xf32>
    %150 = vector.shape_cast %149 : vector<1x32xf32> to vector<32xf32>
    %151 = vector.shape_cast %150 : vector<32xf32> to vector<1x32xf32>
    %152 = vector.broadcast %151 : vector<1x32xf32> to vector<2x32xf32>
    %153 = arith.mulf %148, %152 : vector<2x32xf32>
    %c5_86 = arith.constant 5 : index
    %c0_87 = arith.constant 0 : index
    %154 = vector.load %arg5[%c5_86, %c0_87] : memref<9x32xf32, #tpu.memory_space<vmem>>, vector<1x32xf32>
    %155 = vector.shape_cast %154 : vector<1x32xf32> to vector<32xf32>
    %156 = vector.shape_cast %155 : vector<32xf32> to vector<1x32xf32>
    %157 = vector.broadcast %156 : vector<1x32xf32> to vector<2x32xf32>
    %158 = arith.addf %153, %157 : vector<2x32xf32>
    %c1_88 = arith.constant 1 : index
    %c1_89 = arith.constant 1 : index
    %c0_90 = arith.constant 0 : index
    %159 = vector.load %arg7[%c1_88, %c1_89, %c0_90] : memref<4x4x32xf32, #tpu.memory_space<vmem>>, vector<1x2x32xf32>
    %160 = vector.shape_cast %159 : vector<1x2x32xf32> to vector<2x32xf32>
    %161 = arith.addf %158, %160 : vector<2x32xf32>
    %c0_91 = arith.constant 0 : index
    %c0_92 = arith.constant 0 : index
    %162 = vector.load %arg4[%c0_91, %c0_92] : memref<32x32xf32, #tpu.memory_space<vmem>>, vector<32x32xf32>
    %cst_93 = arith.constant dense<0.000000e+00> : vector<2x32xf32>
    %163 = tpu.matmul %161, %162, %cst_93 {dimension_numbers = #tpu.dot_dimension_numbers<[1], [0], [0], [1], [0, 0, 1, 1], [], []>} : vector<2x32xf32>, vector<32x32xf32>, vector<2x32xf32> -> vector<2x32xf32>
    %c6_94 = arith.constant 6 : index
    %c0_95 = arith.constant 0 : index
    %164 = vector.load %arg5[%c6_94, %c0_95] : memref<9x32xf32, #tpu.memory_space<vmem>>, vector<1x32xf32>
    %165 = vector.shape_cast %164 : vector<1x32xf32> to vector<32xf32>
    %166 = vector.shape_cast %165 : vector<32xf32> to vector<1x32xf32>
    %167 = vector.broadcast %166 : vector<1x32xf32> to vector<2x32xf32>
    %168 = arith.addf %163, %167 : vector<2x32xf32>
    %cst_96 = arith.constant 0.000000e+00 : f32
    %169 = vector.broadcast %cst_96 : f32 to vector<2x32xf32>
    %170 = arith.subf %169, %168 : vector<2x32xf32>
    %171 = math.exp %170 : vector<2x32xf32>
    %cst_97 = arith.constant 1.000000e+00 : f32
    %172 = vector.broadcast %cst_97 : f32 to vector<2x32xf32>
    %173 = arith.addf %172, %171 : vector<2x32xf32>
    %cst_98 = arith.constant 1.000000e+00 : f32
    %174 = vector.broadcast %cst_98 : f32 to vector<2x32xf32>
    %175 = arith.divf %174, %173 : vector<2x32xf32>
    %176 = arith.mulf %168, %175 : vector<2x32xf32>
    %c7_99 = arith.constant 7 : index
    %c0_100 = arith.constant 0 : index
    %177 = vector.load %arg5[%c7_99, %c0_100] : memref<9x32xf32, #tpu.memory_space<vmem>>, vector<1x32xf32>
    %178 = vector.shape_cast %177 : vector<1x32xf32> to vector<32xf32>
    %179 = vector.shape_cast %178 : vector<32xf32> to vector<1x32xf32>
    %180 = vector.broadcast %179 : vector<1x32xf32> to vector<2x32xf32>
    %181 = arith.mulf %176, %180 : vector<2x32xf32>
    %c8_101 = arith.constant 8 : index
    %c0_102 = arith.constant 0 : index
    %182 = vector.load %arg5[%c8_101, %c0_102] : memref<9x32xf32, #tpu.memory_space<vmem>>, vector<1x32xf32>
    %183 = vector.shape_cast %182 : vector<1x32xf32> to vector<32xf32>
    %184 = vector.shape_cast %183 : vector<32xf32> to vector<1x32xf32>
    %185 = vector.broadcast %184 : vector<1x32xf32> to vector<2x32xf32>
    %186 = arith.addf %181, %185 : vector<2x32xf32>
    %cst_103 = arith.constant dense<0.000000e+00> : vector<32xf32>
    %187 = vector.multi_reduction <add>, %186, %cst_103 [0] : vector<2x32xf32> to vector<32xf32>
    %188 = vector.shape_cast %187 : vector<32xf32> to vector<1x32xf32>
    %189 = arith.addf %62, %188 : vector<1x32xf32>
    %cst_104 = arith.constant 0.000000e+00 : f32
    %190 = vector.broadcast %cst_104 : f32 to vector<2x32xf32>
    %c1_105 = arith.constant 1 : index
    %c0_106 = arith.constant 0 : index
    %c0_107 = arith.constant 0 : index
    %191 = vector.load %arg7[%c1_105, %c0_106, %c0_107] : memref<4x4x32xf32, #tpu.memory_space<vmem>>, vector<1x2x32xf32>
    %192 = vector.shape_cast %191 : vector<1x2x32xf32> to vector<2x32xf32>
    %c0_108 = arith.constant 0 : index
    %c0_109 = arith.constant 0 : index
    %193 = vector.load %arg3[%c0_108, %c0_109] : memref<9x32xf32, #tpu.memory_space<vmem>>, vector<1x32xf32>
    %194 = vector.shape_cast %193 : vector<1x32xf32> to vector<32xf32>
    %195 = vector.shape_cast %194 : vector<32xf32> to vector<1x32xf32>
    %196 = vector.broadcast %195 : vector<1x32xf32> to vector<2x32xf32>
    %197 = arith.mulf %192, %196 : vector<2x32xf32>
    %198 = arith.addf %190, %197 : vector<2x32xf32>
    %c1_110 = arith.constant 1 : index
    %c1_111 = arith.constant 1 : index
    %c0_112 = arith.constant 0 : index
    %199 = vector.load %arg7[%c1_110, %c1_111, %c0_112] : memref<4x4x32xf32, #tpu.memory_space<vmem>>, vector<1x2x32xf32>
    %200 = vector.shape_cast %199 : vector<1x2x32xf32> to vector<2x32xf32>
    %c1_113 = arith.constant 1 : index
    %c0_114 = arith.constant 0 : index
    %201 = vector.load %arg3[%c1_113, %c0_114] : memref<9x32xf32, #tpu.memory_space<vmem>>, vector<1x32xf32>
    %202 = vector.shape_cast %201 : vector<1x32xf32> to vector<32xf32>
    %203 = vector.shape_cast %202 : vector<32xf32> to vector<1x32xf32>
    %204 = vector.broadcast %203 : vector<1x32xf32> to vector<2x32xf32>
    %205 = arith.mulf %200, %204 : vector<2x32xf32>
    %206 = arith.addf %198, %205 : vector<2x32xf32>
    %c1_115 = arith.constant 1 : index
    %c2_116 = arith.constant 2 : index
    %c0_117 = arith.constant 0 : index
    %207 = vector.load %arg7[%c1_115, %c2_116, %c0_117] : memref<4x4x32xf32, #tpu.memory_space<vmem>>, vector<1x2x32xf32>
    %208 = vector.shape_cast %207 : vector<1x2x32xf32> to vector<2x32xf32>
    %c2_118 = arith.constant 2 : index
    %c0_119 = arith.constant 0 : index
    %209 = vector.load %arg3[%c2_118, %c0_119] : memref<9x32xf32, #tpu.memory_space<vmem>>, vector<1x32xf32>
    %210 = vector.shape_cast %209 : vector<1x32xf32> to vector<32xf32>
    %211 = vector.shape_cast %210 : vector<32xf32> to vector<1x32xf32>
    %212 = vector.broadcast %211 : vector<1x32xf32> to vector<2x32xf32>
    %213 = arith.mulf %208, %212 : vector<2x32xf32>
    %214 = arith.addf %206, %213 : vector<2x32xf32>
    %c2_120 = arith.constant 2 : index
    %c0_121 = arith.constant 0 : index
    %c0_122 = arith.constant 0 : index
    %215 = vector.load %arg7[%c2_120, %c0_121, %c0_122] : memref<4x4x32xf32, #tpu.memory_space<vmem>>, vector<1x2x32xf32>
    %216 = vector.shape_cast %215 : vector<1x2x32xf32> to vector<2x32xf32>
    %c3_123 = arith.constant 3 : index
    %c0_124 = arith.constant 0 : index
    %217 = vector.load %arg3[%c3_123, %c0_124] : memref<9x32xf32, #tpu.memory_space<vmem>>, vector<1x32xf32>
    %218 = vector.shape_cast %217 : vector<1x32xf32> to vector<32xf32>
    %219 = vector.shape_cast %218 : vector<32xf32> to vector<1x32xf32>
    %220 = vector.broadcast %219 : vector<1x32xf32> to vector<2x32xf32>
    %221 = arith.mulf %216, %220 : vector<2x32xf32>
    %222 = arith.addf %214, %221 : vector<2x32xf32>
    %c2_125 = arith.constant 2 : index
    %c1_126 = arith.constant 1 : index
    %c0_127 = arith.constant 0 : index
    %223 = vector.load %arg7[%c2_125, %c1_126, %c0_127] : memref<4x4x32xf32, #tpu.memory_space<vmem>>, vector<1x2x32xf32>
    %224 = vector.shape_cast %223 : vector<1x2x32xf32> to vector<2x32xf32>
    %c4_128 = arith.constant 4 : index
    %c0_129 = arith.constant 0 : index
    %225 = vector.load %arg3[%c4_128, %c0_129] : memref<9x32xf32, #tpu.memory_space<vmem>>, vector<1x32xf32>
    %226 = vector.shape_cast %225 : vector<1x32xf32> to vector<32xf32>
    %227 = vector.shape_cast %226 : vector<32xf32> to vector<1x32xf32>
    %228 = vector.broadcast %227 : vector<1x32xf32> to vector<2x32xf32>
    %229 = arith.mulf %224, %228 : vector<2x32xf32>
    %230 = arith.addf %222, %229 : vector<2x32xf32>
    %c2_130 = arith.constant 2 : index
    %c2_131 = arith.constant 2 : index
    %c0_132 = arith.constant 0 : index
    %231 = vector.load %arg7[%c2_130, %c2_131, %c0_132] : memref<4x4x32xf32, #tpu.memory_space<vmem>>, vector<1x2x32xf32>
    %232 = vector.shape_cast %231 : vector<1x2x32xf32> to vector<2x32xf32>
    %c5_133 = arith.constant 5 : index
    %c0_134 = arith.constant 0 : index
    %233 = vector.load %arg3[%c5_133, %c0_134] : memref<9x32xf32, #tpu.memory_space<vmem>>, vector<1x32xf32>
    %234 = vector.shape_cast %233 : vector<1x32xf32> to vector<32xf32>
    %235 = vector.shape_cast %234 : vector<32xf32> to vector<1x32xf32>
    %236 = vector.broadcast %235 : vector<1x32xf32> to vector<2x32xf32>
    %237 = arith.mulf %232, %236 : vector<2x32xf32>
    %238 = arith.addf %230, %237 : vector<2x32xf32>
    %c3_135 = arith.constant 3 : index
    %c0_136 = arith.constant 0 : index
    %c0_137 = arith.constant 0 : index
    %239 = vector.load %arg7[%c3_135, %c0_136, %c0_137] : memref<4x4x32xf32, #tpu.memory_space<vmem>>, vector<1x2x32xf32>
    %240 = vector.shape_cast %239 : vector<1x2x32xf32> to vector<2x32xf32>
    %c6_138 = arith.constant 6 : index
    %c0_139 = arith.constant 0 : index
    %241 = vector.load %arg3[%c6_138, %c0_139] : memref<9x32xf32, #tpu.memory_space<vmem>>, vector<1x32xf32>
    %242 = vector.shape_cast %241 : vector<1x32xf32> to vector<32xf32>
    %243 = vector.shape_cast %242 : vector<32xf32> to vector<1x32xf32>
    %244 = vector.broadcast %243 : vector<1x32xf32> to vector<2x32xf32>
    %245 = arith.mulf %240, %244 : vector<2x32xf32>
    %246 = arith.addf %238, %245 : vector<2x32xf32>
    %c3_140 = arith.constant 3 : index
    %c1_141 = arith.constant 1 : index
    %c0_142 = arith.constant 0 : index
    %247 = vector.load %arg7[%c3_140, %c1_141, %c0_142] : memref<4x4x32xf32, #tpu.memory_space<vmem>>, vector<1x2x32xf32>
    %248 = vector.shape_cast %247 : vector<1x2x32xf32> to vector<2x32xf32>
    %c7_143 = arith.constant 7 : index
    %c0_144 = arith.constant 0 : index
    %249 = vector.load %arg3[%c7_143, %c0_144] : memref<9x32xf32, #tpu.memory_space<vmem>>, vector<1x32xf32>
    %250 = vector.shape_cast %249 : vector<1x32xf32> to vector<32xf32>
    %251 = vector.shape_cast %250 : vector<32xf32> to vector<1x32xf32>
    %252 = vector.broadcast %251 : vector<1x32xf32> to vector<2x32xf32>
    %253 = arith.mulf %248, %252 : vector<2x32xf32>
    %254 = arith.addf %246, %253 : vector<2x32xf32>
    %c3_145 = arith.constant 3 : index
    %c2_146 = arith.constant 2 : index
    %c0_147 = arith.constant 0 : index
    %255 = vector.load %arg7[%c3_145, %c2_146, %c0_147] : memref<4x4x32xf32, #tpu.memory_space<vmem>>, vector<1x2x32xf32>
    %256 = vector.shape_cast %255 : vector<1x2x32xf32> to vector<2x32xf32>
    %c8_148 = arith.constant 8 : index
    %c0_149 = arith.constant 0 : index
    %257 = vector.load %arg3[%c8_148, %c0_149] : memref<9x32xf32, #tpu.memory_space<vmem>>, vector<1x32xf32>
    %258 = vector.shape_cast %257 : vector<1x32xf32> to vector<32xf32>
    %259 = vector.shape_cast %258 : vector<32xf32> to vector<1x32xf32>
    %260 = vector.broadcast %259 : vector<1x32xf32> to vector<2x32xf32>
    %261 = arith.mulf %256, %260 : vector<2x32xf32>
    %262 = arith.addf %254, %261 : vector<2x32xf32>
    %c3_150 = arith.constant 3 : index
    %c0_151 = arith.constant 0 : index
    %263 = vector.load %arg5[%c3_150, %c0_151] : memref<9x32xf32, #tpu.memory_space<vmem>>, vector<1x32xf32>
    %264 = vector.shape_cast %263 : vector<1x32xf32> to vector<32xf32>
    %265 = vector.shape_cast %264 : vector<32xf32> to vector<1x32xf32>
    %266 = vector.broadcast %265 : vector<1x32xf32> to vector<2x32xf32>
    %267 = arith.addf %262, %266 : vector<2x32xf32>
    %cst_152 = arith.constant 0.000000e+00 : f32
    %268 = vector.broadcast %cst_152 : f32 to vector<2x32xf32>
    %269 = arith.subf %268, %267 : vector<2x32xf32>
    %270 = math.exp %269 : vector<2x32xf32>
    %cst_153 = arith.constant 1.000000e+00 : f32
    %271 = vector.broadcast %cst_153 : f32 to vector<2x32xf32>
    %272 = arith.addf %271, %270 : vector<2x32xf32>
    %cst_154 = arith.constant 1.000000e+00 : f32
    %273 = vector.broadcast %cst_154 : f32 to vector<2x32xf32>
    %274 = arith.divf %273, %272 : vector<2x32xf32>
    %275 = arith.mulf %267, %274 : vector<2x32xf32>
    %c4_155 = arith.constant 4 : index
    %c0_156 = arith.constant 0 : index
    %276 = vector.load %arg5[%c4_155, %c0_156] : memref<9x32xf32, #tpu.memory_space<vmem>>, vector<1x32xf32>
    %277 = vector.shape_cast %276 : vector<1x32xf32> to vector<32xf32>
    %278 = vector.shape_cast %277 : vector<32xf32> to vector<1x32xf32>
    %279 = vector.broadcast %278 : vector<1x32xf32> to vector<2x32xf32>
    %280 = arith.mulf %275, %279 : vector<2x32xf32>
    %c5_157 = arith.constant 5 : index
    %c0_158 = arith.constant 0 : index
    %281 = vector.load %arg5[%c5_157, %c0_158] : memref<9x32xf32, #tpu.memory_space<vmem>>, vector<1x32xf32>
    %282 = vector.shape_cast %281 : vector<1x32xf32> to vector<32xf32>
    %283 = vector.shape_cast %282 : vector<32xf32> to vector<1x32xf32>
    %284 = vector.broadcast %283 : vector<1x32xf32> to vector<2x32xf32>
    %285 = arith.addf %280, %284 : vector<2x32xf32>
    %c2_159 = arith.constant 2 : index
    %c1_160 = arith.constant 1 : index
    %c0_161 = arith.constant 0 : index
    %286 = vector.load %arg7[%c2_159, %c1_160, %c0_161] : memref<4x4x32xf32, #tpu.memory_space<vmem>>, vector<1x2x32xf32>
    %287 = vector.shape_cast %286 : vector<1x2x32xf32> to vector<2x32xf32>
    %288 = arith.addf %285, %287 : vector<2x32xf32>
    %c0_162 = arith.constant 0 : index
    %c0_163 = arith.constant 0 : index
    %289 = vector.load %arg4[%c0_162, %c0_163] : memref<32x32xf32, #tpu.memory_space<vmem>>, vector<32x32xf32>
    %cst_164 = arith.constant dense<0.000000e+00> : vector<2x32xf32>
    %290 = tpu.matmul %288, %289, %cst_164 {dimension_numbers = #tpu.dot_dimension_numbers<[1], [0], [0], [1], [0, 0, 1, 1], [], []>} : vector<2x32xf32>, vector<32x32xf32>, vector<2x32xf32> -> vector<2x32xf32>
    %c6_165 = arith.constant 6 : index
    %c0_166 = arith.constant 0 : index
    %291 = vector.load %arg5[%c6_165, %c0_166] : memref<9x32xf32, #tpu.memory_space<vmem>>, vector<1x32xf32>
    %292 = vector.shape_cast %291 : vector<1x32xf32> to vector<32xf32>
    %293 = vector.shape_cast %292 : vector<32xf32> to vector<1x32xf32>
    %294 = vector.broadcast %293 : vector<1x32xf32> to vector<2x32xf32>
    %295 = arith.addf %290, %294 : vector<2x32xf32>
    %cst_167 = arith.constant 0.000000e+00 : f32
    %296 = vector.broadcast %cst_167 : f32 to vector<2x32xf32>
    %297 = arith.subf %296, %295 : vector<2x32xf32>
    %298 = math.exp %297 : vector<2x32xf32>
    %cst_168 = arith.constant 1.000000e+00 : f32
    %299 = vector.broadcast %cst_168 : f32 to vector<2x32xf32>
    %300 = arith.addf %299, %298 : vector<2x32xf32>
    %cst_169 = arith.constant 1.000000e+00 : f32
    %301 = vector.broadcast %cst_169 : f32 to vector<2x32xf32>
    %302 = arith.divf %301, %300 : vector<2x32xf32>
    %303 = arith.mulf %295, %302 : vector<2x32xf32>
    %c7_170 = arith.constant 7 : index
    %c0_171 = arith.constant 0 : index
    %304 = vector.load %arg5[%c7_170, %c0_171] : memref<9x32xf32, #tpu.memory_space<vmem>>, vector<1x32xf32>
    %305 = vector.shape_cast %304 : vector<1x32xf32> to vector<32xf32>
    %306 = vector.shape_cast %305 : vector<32xf32> to vector<1x32xf32>
    %307 = vector.broadcast %306 : vector<1x32xf32> to vector<2x32xf32>
    %308 = arith.mulf %303, %307 : vector<2x32xf32>
    %c8_172 = arith.constant 8 : index
    %c0_173 = arith.constant 0 : index
    %309 = vector.load %arg5[%c8_172, %c0_173] : memref<9x32xf32, #tpu.memory_space<vmem>>, vector<1x32xf32>
    %310 = vector.shape_cast %309 : vector<1x32xf32> to vector<32xf32>
    %311 = vector.shape_cast %310 : vector<32xf32> to vector<1x32xf32>
    %312 = vector.broadcast %311 : vector<1x32xf32> to vector<2x32xf32>
    %313 = arith.addf %308, %312 : vector<2x32xf32>
    %cst_174 = arith.constant dense<0.000000e+00> : vector<32xf32>
    %314 = vector.multi_reduction <add>, %313, %cst_174 [0] : vector<2x32xf32> to vector<32xf32>
    %315 = vector.shape_cast %314 : vector<32xf32> to vector<1x32xf32>
    %316 = arith.addf %189, %315 : vector<1x32xf32>
    %cst_175 = arith.constant 2.500000e-01 : f32
    %317 = vector.broadcast %cst_175 : f32 to vector<1x32xf32>
    %318 = arith.mulf %316, %317 : vector<1x32xf32>
    %c0_176 = arith.constant 0 : index
    %c0_177 = arith.constant 0 : index
    %c0_178 = arith.constant 0 : index
    %319 = vector.load %arg6[%c0_176, %c0_177, %c0_178] : memref<1x1x32xf32, #tpu.memory_space<vmem>>, vector<1x1x32xf32>
    %320 = vector.shape_cast %319 : vector<1x1x32xf32> to vector<1x32xf32>
    %321 = vector.shape_cast %318 : vector<1x32xf32> to vector<1x1x32xf32>
    tpu.vector_store %arg6[%c0_176, %c0_177, %c0_178], %321 {strides = array<i32>} : memref<1x1x32xf32, #tpu.memory_space<vmem>>, vector<1x1x32xf32>,
    return
  }
  func.func @transform_0(%arg0: i32) -> (i32, i32, i32, i32) {
    %c0_i32 = arith.constant 0 : i32
    %c0_i32_0 = arith.constant 0 : i32
    %c0_i32_1 = arith.constant 0 : i32
    %c0_i32_2 = arith.constant 0 : i32
    return %arg0, %c0_i32, %c0_i32_0, %c0_i32_1 : i32, i32, i32, i32
  }
  func.func @transform_1(%arg0: i32) -> (i32, i32) {
    %c0_i32 = arith.constant 0 : i32
    %c0_i32_0 = arith.constant 0 : i32
    %c0_i32_1 = arith.constant 0 : i32
    return %c0_i32, %c0_i32_0 : i32, i32
  }
  func.func @transform_2(%arg0: i32) -> (i32, i32) {
    %c0_i32 = arith.constant 0 : i32
    %c0_i32_0 = arith.constant 0 : i32
    %c0_i32_1 = arith.constant 0 : i32
    return %c0_i32, %c0_i32_0 : i32, i32
  }
  func.func @transform_3(%arg0: i32) -> (i32, i32) {
    %c0_i32 = arith.constant 0 : i32
    %c0_i32_0 = arith.constant 0 : i32
    %c0_i32_1 = arith.constant 0 : i32
    return %c0_i32, %c0_i32_0 : i32, i32
  }
  func.func @transform_4(%arg0: i32) -> (i32, i32) {
    %c0_i32 = arith.constant 0 : i32
    %c0_i32_0 = arith.constant 0 : i32
    %c0_i32_1 = arith.constant 0 : i32
    return %c0_i32, %c0_i32_0 : i32, i32
  }
  func.func @transform_5(%arg0: i32) -> (i32, i32, i32) {
    %c0_i32 = arith.constant 0 : i32
    %c0_i32_0 = arith.constant 0 : i32
    %c0_i32_1 = arith.constant 0 : i32
    return %arg0, %c0_i32, %c0_i32_0 : i32, i32, i32
  }
}

module attributes {stable_mosaic.version = 11 : i64} {
  func.func @_seam_head_kernel(%arg0: i32, %arg1: memref<1x256x32xf32, #tpu.memory_space<vmem>>, %arg2: memref<1x1x32xf32, #tpu.memory_space<vmem>>, %arg3: memref<1x1x32xf32, #tpu.memory_space<vmem>>, %arg4: memref<1x1x32xf32, #tpu.memory_space<vmem>>, %arg5: memref<2x32xf32, #tpu.memory_space<vmem>>, %arg6: memref<2x32xf32, #tpu.memory_space<vmem>>, %arg7: memref<1x256x32xf32, #tpu.memory_space<vmem>>) attributes {dimension_semantics = [#tpu.dimension_semantics<parallel>], iteration_bounds = array<i64: 2>, scalar_prefetch = 0 : i64, scratch_operands = 0 : i64, tpu.core_type = #tpu.core_type<tc>, window_params = [{transform_indices = @transform_0, window_bounds = array<i64: 1, 256, 32>}, {transform_indices = @transform_1, window_bounds = array<i64: 1, 1, 32>}, {transform_indices = @transform_2, window_bounds = array<i64: 1, 1, 32>}, {transform_indices = @transform_3, window_bounds = array<i64: 1, 1, 32>}, {pipeline_mode = #tpu.pipeline_mode<synchronous>, transform_indices = @transform_4, window_bounds = array<i64: 2, 32>}, {pipeline_mode = #tpu.pipeline_mode<synchronous>, transform_indices = @transform_5, window_bounds = array<i64: 2, 32>}, {transform_indices = @transform_6, window_bounds = array<i64: 1, 256, 32>}]} {
    %c0 = arith.constant 0 : index
    %c0_0 = arith.constant 0 : index
    %c0_1 = arith.constant 0 : index
    %0 = vector.load %arg1[%c0, %c0_0, %c0_1] : memref<1x256x32xf32, #tpu.memory_space<vmem>>, vector<1x256x32xf32>
    %1 = vector.shape_cast %0 : vector<1x256x32xf32> to vector<256x32xf32>
    %cst = arith.constant dense<0.000000e+00> : vector<32xf32>
    %2 = vector.multi_reduction <add>, %1, %cst [0] : vector<256x32xf32> to vector<32xf32>
    %3 = vector.shape_cast %2 : vector<32xf32> to vector<1x32xf32>
    %cst_2 = arith.constant 2.560000e+02 : f32
    %4 = vector.broadcast %cst_2 : f32 to vector<1x32xf32>
    %5 = arith.divf %3, %4 : vector<1x32xf32>
    %c0_3 = arith.constant 0 : index
    %c0_4 = arith.constant 0 : index
    %c0_5 = arith.constant 0 : index
    %6 = vector.load %arg2[%c0_3, %c0_4, %c0_5] : memref<1x1x32xf32, #tpu.memory_space<vmem>>, vector<1x1x32xf32>
    %7 = vector.shape_cast %6 : vector<1x1x32xf32> to vector<1x32xf32>
    %c0_6 = arith.constant 0 : index
    %c0_7 = arith.constant 0 : index
    %c0_8 = arith.constant 0 : index
    %8 = vector.load %arg3[%c0_6, %c0_7, %c0_8] : memref<1x1x32xf32, #tpu.memory_space<vmem>>, vector<1x1x32xf32>
    %9 = vector.shape_cast %8 : vector<1x1x32xf32> to vector<1x32xf32>
    %10 = arith.addf %7, %9 : vector<1x32xf32>
    %c0_9 = arith.constant 0 : index
    %c0_10 = arith.constant 0 : index
    %c0_11 = arith.constant 0 : index
    %11 = vector.load %arg4[%c0_9, %c0_10, %c0_11] : memref<1x1x32xf32, #tpu.memory_space<vmem>>, vector<1x1x32xf32>
    %12 = vector.shape_cast %11 : vector<1x1x32xf32> to vector<1x32xf32>
    %13 = arith.addf %10, %12 : vector<1x32xf32>
    %14 = arith.addf %13, %5 : vector<1x32xf32>
    %cst_12 = arith.constant 2.500000e-01 : f32
    %15 = vector.broadcast %cst_12 : f32 to vector<1x32xf32>
    %16 = arith.mulf %14, %15 : vector<1x32xf32>
    %cst_13 = arith.constant 0.000000e+00 : f32
    %17 = vector.broadcast %cst_13 : f32 to vector<1x32xf32>
    %c0_14 = arith.constant 0 : index
    %c0_15 = arith.constant 0 : index
    %18 = vector.load %arg5[%c0_14, %c0_15] : memref<2x32xf32, #tpu.memory_space<vmem>>, vector<1x32xf32>
    %19 = vector.shape_cast %18 : vector<1x32xf32> to vector<32xf32>
    %20 = vector.shape_cast %19 : vector<32xf32> to vector<1x32xf32>
    %21 = arith.mulf %16, %20 : vector<1x32xf32>
    %22 = vector.shape_cast %21 : vector<1x32xf32> to vector<1x1x32xf32>
    %cst_16 = arith.constant dense<0.000000e+00> : vector<1xf32>
    %23 = vector.multi_reduction <add>, %22, %cst_16 [1, 2] : vector<1x1x32xf32> to vector<1xf32>
    %24 = vector.shape_cast %23 : vector<1xf32> to vector<1x1x1xf32>
    %25 = vector.extract %24[0, 0, 0] : f32 from vector<1x1x1xf32>
    %cst_17 = arith.constant 0.000000e+00 : f32
    %26 = arith.maximumf %25, %cst_17 : f32
    %c0_18 = arith.constant 0 : index
    %c0_19 = arith.constant 0 : index
    %27 = vector.load %arg6[%c0_18, %c0_19] : memref<2x32xf32, #tpu.memory_space<vmem>>, vector<1x32xf32>
    %28 = vector.shape_cast %27 : vector<1x32xf32> to vector<32xf32>
    %29 = vector.broadcast %26 : f32 to vector<32xf32>
    %30 = arith.mulf %29, %28 : vector<32xf32>
    %31 = vector.shape_cast %30 : vector<32xf32> to vector<1x32xf32>
    %32 = arith.addf %17, %31 : vector<1x32xf32>
    %c1 = arith.constant 1 : index
    %c0_20 = arith.constant 0 : index
    %33 = vector.load %arg5[%c1, %c0_20] : memref<2x32xf32, #tpu.memory_space<vmem>>, vector<1x32xf32>
    %34 = vector.shape_cast %33 : vector<1x32xf32> to vector<32xf32>
    %35 = vector.shape_cast %34 : vector<32xf32> to vector<1x32xf32>
    %36 = arith.mulf %16, %35 : vector<1x32xf32>
    %37 = vector.shape_cast %36 : vector<1x32xf32> to vector<1x1x32xf32>
    %cst_21 = arith.constant dense<0.000000e+00> : vector<1xf32>
    %38 = vector.multi_reduction <add>, %37, %cst_21 [1, 2] : vector<1x1x32xf32> to vector<1xf32>
    %39 = vector.shape_cast %38 : vector<1xf32> to vector<1x1x1xf32>
    %40 = vector.extract %39[0, 0, 0] : f32 from vector<1x1x1xf32>
    %cst_22 = arith.constant 0.000000e+00 : f32
    %41 = arith.maximumf %40, %cst_22 : f32
    %c1_23 = arith.constant 1 : index
    %c0_24 = arith.constant 0 : index
    %42 = vector.load %arg6[%c1_23, %c0_24] : memref<2x32xf32, #tpu.memory_space<vmem>>, vector<1x32xf32>
    %43 = vector.shape_cast %42 : vector<1x32xf32> to vector<32xf32>
    %44 = vector.broadcast %41 : f32 to vector<32xf32>
    %45 = arith.mulf %44, %43 : vector<32xf32>
    %46 = vector.shape_cast %45 : vector<32xf32> to vector<1x32xf32>
    %47 = arith.addf %32, %46 : vector<1x32xf32>
    %cst_25 = arith.constant 0.000000e+00 : f32
    %48 = vector.broadcast %cst_25 : f32 to vector<1x32xf32>
    %49 = arith.subf %48, %47 : vector<1x32xf32>
    %50 = math.exp %49 : vector<1x32xf32>
    %cst_26 = arith.constant 1.000000e+00 : f32
    %51 = vector.broadcast %cst_26 : f32 to vector<1x32xf32>
    %52 = arith.addf %51, %50 : vector<1x32xf32>
    %cst_27 = arith.constant 1.000000e+00 : f32
    %53 = vector.broadcast %cst_27 : f32 to vector<1x32xf32>
    %54 = arith.divf %53, %52 : vector<1x32xf32>
    %55 = math.exp %54 : vector<1x32xf32>
    %56 = vector.broadcast %55 : vector<1x32xf32> to vector<256x32xf32>
    %57 = arith.mulf %1, %56 : vector<256x32xf32>
    %c0_28 = arith.constant 0 : index
    %c0_29 = arith.constant 0 : index
    %c0_30 = arith.constant 0 : index
    %58 = vector.load %arg7[%c0_28, %c0_29, %c0_30] : memref<1x256x32xf32, #tpu.memory_space<vmem>>, vector<1x256x32xf32>
    %59 = vector.shape_cast %58 : vector<1x256x32xf32> to vector<256x32xf32>
    %60 = vector.shape_cast %57 : vector<256x32xf32> to vector<1x256x32xf32>
    tpu.vector_store %arg7[%c0_28, %c0_29, %c0_30], %60 {strides = array<i32>} : memref<1x256x32xf32, #tpu.memory_space<vmem>>, vector<1x256x32xf32>,
    return
  }
  func.func @transform_0(%arg0: i32) -> (i32, i32, i32) {
    %c0_i32 = arith.constant 0 : i32
    %c0_i32_0 = arith.constant 0 : i32
    %c0_i32_1 = arith.constant 0 : i32
    return %arg0, %c0_i32, %c0_i32_0 : i32, i32, i32
  }
  func.func @transform_1(%arg0: i32) -> (i32, i32, i32) {
    %c0_i32 = arith.constant 0 : i32
    %c0_i32_0 = arith.constant 0 : i32
    %c0_i32_1 = arith.constant 0 : i32
    return %arg0, %c0_i32, %c0_i32_0 : i32, i32, i32
  }
  func.func @transform_2(%arg0: i32) -> (i32, i32, i32) {
    %c0_i32 = arith.constant 0 : i32
    %c0_i32_0 = arith.constant 0 : i32
    %c0_i32_1 = arith.constant 0 : i32
    return %arg0, %c0_i32, %c0_i32_0 : i32, i32, i32
  }
  func.func @transform_3(%arg0: i32) -> (i32, i32, i32) {
    %c0_i32 = arith.constant 0 : i32
    %c0_i32_0 = arith.constant 0 : i32
    %c0_i32_1 = arith.constant 0 : i32
    return %arg0, %c0_i32, %c0_i32_0 : i32, i32, i32
  }
  func.func @transform_4(%arg0: i32) -> (i32, i32) {
    %c0_i32 = arith.constant 0 : i32
    %c0_i32_0 = arith.constant 0 : i32
    %c0_i32_1 = arith.constant 0 : i32
    return %c0_i32, %c0_i32_0 : i32, i32
  }
  func.func @transform_5(%arg0: i32) -> (i32, i32) {
    %c0_i32 = arith.constant 0 : i32
    %c0_i32_0 = arith.constant 0 : i32
    %c0_i32_1 = arith.constant 0 : i32
    return %c0_i32, %c0_i32_0 : i32, i32
  }
  func.func @transform_6(%arg0: i32) -> (i32, i32, i32) {
    %c0_i32 = arith.constant 0 : i32
    %c0_i32_0 = arith.constant 0 : i32
    %c0_i32_1 = arith.constant 0 : i32
    return %arg0, %c0_i32, %c0_i32_0 : i32, i32, i32
  }
}

</mosaic_0001>

<llo_original>
// kernel: multi_seam_forward.4
$region0: #{multi_seam_forward.4}
  #allocation0 [shape = 'u32[]', space=smem, size = 0x4, offset = 0x4, fixed_abs, tag = 'smem constant byte address 0x4 - core index']
  #allocation1 [shape = 'u32[72,128]{1,0:T(1,128)}', space=vmem, size = 0x9000, scoped, tag = 'internal scratch']
  #allocation2 [shape = 'f32[7,7,32]{2,1,0:T(8,128)}', space=vmem, size = 0x7000, scoped, tag = 'scratch operand']
  %s0 = inlined_call_operand.vmem [shape: f32[2,5,5,288], index: 0, kind: input, shape index: {}]
  %s1 = inlined_call_operand.vmem [shape: f32[288,32], index: 1, kind: input, shape index: {}]
  %s2 = inlined_call_operand.vmem [shape: f32[9,32], index: 2, kind: input, shape index: {}]
  %s3 = inlined_call_operand.vmem [shape: f32[32,32], index: 3, kind: input, shape index: {}]
  %s4 = inlined_call_operand.vmem [shape: f32[9,32], index: 4, kind: input, shape index: {}]
  %s5 = inlined_call_operand.vmem [shape: f32[2,1,32], index: 5, kind: output, shape index: {}]
  %s6 = sld [smem:[#allocation0]]
  $region53: #{multi_seam_forward.4} parent=0
    _
  %s8 = ssub.s32 1, %s6
  %s9 = scalar_select 0, %s8, %s6
  loop: start=0, step=1, limit=4
  $region2: #{multi_seam_forward.4} parent=0 // loop_pre_header
    _
  $region3: #{multi_seam_forward.4} parent=0 // loop_header
    %s11 = sphi 0, %s15
    %p12 = scmp.ge.s32.totalorder %s11, 4
    %s21 = sphi 0, %s23
    %s24 = sphi 0, %s21
    %s25 = sphi 0, %s24
    %s41 = sphi 0, %s25
    %s45 = sphi 0, %s45
    %s47 = sphi 0, %s45
    %s48 = sphi 0, %s47
    %s62 = sphi 0, %s48
    %s66 = sphi 0, %s66
    %s68 = sphi 0, %s66
    %s69 = sphi 0, %s68
    %s83 = sphi 0, %s69
    %s87 = sphi 0, %s87
    %s89 = sphi 0, %s87
    %s90 = sphi 0, %s89
    %s104 = sphi 0, %s90
    %s108 = sphi 0, %s108
    %s110 = sphi 0, %s108
    %s111 = sphi 0, %s110
    %s125 = sphi 0, %s111
    %s131 = sphi 0, %s133
    %s134 = sphi 0, %s131
    %s135 = sphi 0, %s134
    %s151 = sphi 0, %s135
  $region4: #{multi_seam_forward.4} parent=0 // loop_header_branch
    %14 = sbr.rel (%p12) target = $region8
  $region5: #{multi_seam_forward.4} parent=0 // loop_body
    %s16 = ssub.s32 %s11, 1
    %s17 = ssub.s32 %s11, 2
    %s18 = sadd.s32 %s11, 1
    %s19 = ssub.s32 %s11, %s18
    %p20 = scmp.eq.s32.totalorder %s19, 0
    %s22 = sadd.s32 %s21, 1
    %s23 = scalar_select %p20, %s21, %s22
    %p26 = pneg %p20
    %p27 = scmp.eq.s32.totalorder %s11, 1
    %p28 = por %p26, %p27
    %p29 = scmp.ne.s32.totalorder %s21, %s24
    %p30 = scmp.eq.s32.totalorder %s11, 0
    %p31 = por %p29, %p30
    %p32 = scmp.ne.s32.totalorder %s21, %s24
    %p33 = scmp.eq.s32.totalorder %s16, 1
    %p34 = por %p32, %p33
    %p35 = scmp.ne.s32.totalorder %s24, %s25
    %p36 = scmp.eq.s32.totalorder %s16, 0
    %p37 = por %p35, %p36
    %p38 = scmp.ne.s32.totalorder %s24, %s25
    %p39 = scmp.eq.s32.totalorder %s17, 1
    %p40 = por %p38, %p39
    %p42 = scmp.ne.s32.totalorder %s25, %s41
    %p43 = scmp.eq.s32.totalorder %s17, 0
    %p44 = por %p42, %p43
    %s46 = sadd.s32 %s45, 1
    %p49 = scmp.eq.s32.totalorder %s11, 1
    %p50 = scmp.ne.s32.totalorder %s45, %s47
    %p51 = scmp.eq.s32.totalorder %s11, 0
    %p52 = por %p50, %p51
    %p53 = scmp.ne.s32.totalorder %s45, %s47
    %p54 = scmp.eq.s32.totalorder %s16, 1
    %p55 = por %p53, %p54
    %p56 = scmp.ne.s32.totalorder %s47, %s48
    %p57 = scmp.eq.s32.totalorder %s16, 0
    %p58 = por %p56, %p57
    %p59 = scmp.ne.s32.totalorder %s47, %s48
    %p60 = scmp.eq.s32.totalorder %s17, 1
    %p61 = por %p59, %p60
    %p63 = scmp.ne.s32.totalorder %s48, %s62
    %p64 = scmp.eq.s32.totalorder %s17, 0
    %p65 = por %p63, %p64
    %s67 = sadd.s32 %s66, 1
    %p70 = scmp.eq.s32.totalorder %s11, 1
    %p71 = scmp.ne.s32.totalorder %s66, %s68
    %p72 = scmp.eq.s32.totalorder %s11, 0
    %p73 = por %p71, %p72
    %p74 = scmp.ne.s32.totalorder %s66, %s68
    %p75 = scmp.eq.s32.totalorder %s16, 1
    %p76 = por %p74, %p75
    %p77 = scmp.ne.s32.totalorder %s68, %s69
    %p78 = scmp.eq.s32.totalorder %s16, 0
    %p79 = por %p77, %p78
    %p80 = scmp.ne.s32.totalorder %s68, %s69
    %p81 = scmp.eq.s32.totalorder %s17, 1
    %p82 = por %p80, %p81
    %p84 = scmp.ne.s32.totalorder %s69, %s83
    %p85 = scmp.eq.s32.totalorder %s17, 0
    %p86 = por %p84, %p85
    %s88 = sadd.s32 %s87, 1
    %p91 = scmp.eq.s32.totalorder %s11, 1
    %p92 = scmp.ne.s32.totalorder %s87, %s89
    %p93 = scmp.eq.s32.totalorder %s11, 0
    %p94 = por %p92, %p93
    %p95 = scmp.ne.s32.totalorder %s87, %s89
    %p96 = scmp.eq.s32.totalorder %s16, 1
    %p97 = por %p95, %p96
    %p98 = scmp.ne.s32.totalorder %s89, %s90
    %p99 = scmp.eq.s32.totalorder %s16, 0
    %p100 = por %p98, %p99
    %p101 = scmp.ne.s32.totalorder %s89, %s90
    %p102 = scmp.eq.s32.totalorder %s17, 1
    %p103 = por %p101, %p102
    %p105 = scmp.ne.s32.totalorder %s90, %s104
    %p106 = scmp.eq.s32.totalorder %s17, 0
    %p107 = por %p105, %p106
    %s109 = sadd.s32 %s108, 1
    %p112 = scmp.eq.s32.totalorder %s11, 1
    %p113 = scmp.ne.s32.totalorder %s108, %s110
    %p114 = scmp.eq.s32.totalorder %s11, 0
    %p115 = por %p113, %p114
    %p116 = scmp.ne.s32.totalorder %s108, %s110
    %p117 = scmp.eq.s32.totalorder %s16, 1
    %p118 = por %p116, %p117
    %p119 = scmp.ne.s32.totalorder %s110, %s111
    %p120 = scmp.eq.s32.totalorder %s16, 0
    %p121 = por %p119, %p120
    %p122 = scmp.ne.s32.totalorder %s110, %s111
    %p123 = scmp.eq.s32.totalorder %s17, 1
    %p124 = por %p122, %p123
    %p126 = scmp.ne.s32.totalorder %s111, %s125
    %p127 = scmp.eq.s32.totalorder %s17, 0
    %p128 = por %p126, %p127
    %s129 = ssub.s32 %s11, %s18
    %p130 = scmp.eq.s32.totalorder %s129, 0
    %s132 = sadd.s32 %s131, 1
    %s133 = scalar_select %p130, %s131, %s132
    %p136 = pneg %p130
    %p137 = scmp.eq.s32.totalorder %s11, 1
    %p138 = por %p136, %p137
    %p139 = scmp.ne.s32.totalorder %s131, %s134
    %p140 = scmp.eq.s32.totalorder %s11, 0
    %p141 = por %p139, %p140
    %p142 = scmp.ne.s32.totalorder %s131, %s134
    %p143 = scmp.eq.s32.totalorder %s16, 1
    %p144 = por %p142, %p143
    %p145 = scmp.ne.s32.totalorder %s134, %s135
    %p146 = scmp.eq.s32.totalorder %s16, 0
    %p147 = por %p145, %p146
    %p148 = scmp.ne.s32.totalorder %s134, %s135
    %p149 = scmp.eq.s32.totalorder %s17, 1
    %p150 = por %p148, %p149
    %p152 = scmp.ne.s32.totalorder %s135, %s151
    %p153 = scmp.eq.s32.totalorder %s17, 0
    %p154 = por %p152, %p153
    %p155 = scmp.le.s32.totalorder 1, %s11
    %p156 = scmp.lt.s32.totalorder %s11, 3
    %p157 = pnand %p155, %p156
    %p158 = pneg %p157
    // Predicated region
    $region9: #{multi_seam_forward.4} parent=5 // pred_check
      _
    $region10: #{multi_seam_forward.4} parent=5 // pred_check_branch
      %160 = sbr.rel (%p157) target = $region12
    $region11: #{multi_seam_forward.4} parent=5 // pred_region
      %s161 = ssub.s32 %s11, 1
      // Predicated region
      $region13: #{multi_seam_forward.4} parent=11 // pred_check
        %p162 = pneg %p58
      $region14: #{multi_seam_forward.4} parent=11 // pred_check_branch
        %164 = sbr.rel (%p162) target = $region16
      $region15: #{multi_seam_forward.4} parent=11 // pred_region
        _
      $region16: #{multi_seam_forward.4} parent=11 // pred_fallthru
        _
      // Predicated region
      $region17: #{multi_seam_forward.4} parent=11 // pred_check
        %p165 = pneg %p79
      $region18: #{multi_seam_forward.4} parent=11 // pred_check_branch
        %167 = sbr.rel (%p165) target = $region20
      $region19: #{multi_seam_forward.4} parent=11 // pred_region
        _
      $region20: #{multi_seam_forward.4} parent=11 // pred_fallthru
        _
      // Predicated region
      $region21: #{multi_seam_forward.4} parent=11 // pred_check
        %p168 = pneg %p100
      $region22: #{multi_seam_forward.4} parent=11 // pred_check_branch
        %170 = sbr.rel (%p168) target = $region24
      $region23: #{multi_seam_forward.4} parent=11 // pred_region
        _
      $region24: #{multi_seam_forward.4} parent=11 // pred_fallthru
        _
      // Predicated region
      $region25: #{multi_seam_forward.4} parent=11 // pred_check
        %p171 = pneg %p121
      $region26: #{multi_seam_forward.4} parent=11 // pred_check_branch
        %173 = sbr.rel (%p171) target = $region28
      $region27: #{multi_seam_forward.4} parent=11 // pred_region
        _
      $region28: #{multi_seam_forward.4} parent=11 // pred_fallthru
        _
    $region12: #{multi_seam_forward.4} parent=5 // pred_fallthru
      _
    %p174 = scmp.lt.s32.totalorder %s11, 2
    // Predicated region
    $region29: #{multi_seam_forward.4} parent=5 // pred_check
      %p175 = pneg %p174
    $region30: #{multi_seam_forward.4} parent=5 // pred_check_branch
      %177 = sbr.rel (%p175) target = $region32
    $region31: #{multi_seam_forward.4} parent=5 // pred_region
      // Predicated region
      $region33: #{multi_seam_forward.4} parent=31 // pred_check
        %p178 = pneg %p31
      $region34: #{multi_seam_forward.4} parent=31 // pred_check_branch
        %180 = sbr.rel (%p178) target = $region36
      $region35: #{multi_seam_forward.4} parent=31 // pred_region
        %p181 = scmp.lt.s32.totalorder %s11, 1
        %s182 = scalar_select %p181, %s11, 1
        %s183 = smul.addr %s182, 15
        %s184 = smul.addr %s183, 8
        %s185 = scalar_lea.vmem %s0, %s184
      $region36: #{multi_seam_forward.4} parent=31 // pred_fallthru
        _
    $region32: #{multi_seam_forward.4} parent=5 // pred_fallthru
      _
    %p186 = scmp.le.s32.totalorder 1, %s11
    %p187 = scmp.lt.s32.totalorder %s11, 3
    %p188 = pnand %p186, %p187
    %p189 = pneg %p188
    // Predicated region
    $region37: #{multi_seam_forward.4} parent=5 // pred_check
      _
    $region38: #{multi_seam_forward.4} parent=5 // pred_check_branch
      %191 = sbr.rel (%p188) target = $region40
    $region39: #{multi_seam_forward.4} parent=5 // pred_region
      %s192 = ssub.s32 %s11, 1
      %p193 = scmp.lt.s32.totalorder %s16, 1
      %s194 = scalar_select %p193, %s16, 1
      %s195 = smul.addr %s194, 15
      %s196 = smul.addr %s195, 8
      %s197 = scalar_lea.vmem %s0, %s196
      %p198 = pneg %p37
      %p199 = pneg %p34
      %p200 = pneg %p58
      %p201 = pneg %p55
      %p202 = pneg %p79
      %p203 = pneg %p76
      %p204 = pneg %p100
      %p205 = pneg %p97
      %p206 = pneg %p121
      %p207 = pneg %p118
      %p208 = pneg %p147
      %p209 = pneg %p144
      %p210 = scmp.lt.s32.totalorder %s16, 1
      %s211 = scalar_select %p210, %s16, 1
      %s212 = scalar_lea.vmem %s5, %s211
      %p213 = scmp.lt.s32.totalorder %s16, 1
      %s214 = scalar_select %p213, %s16, 1
      %s215 = smul.addr %s214, 15
      %s216 = smul.addr %s215, 8
      %s217 = scalar_lea.vmem %s0, %s216
      %p218 = scmp.lt.s32.totalorder %s16, 1
      %s219 = scalar_select %p218, %s16, 1
      %s220 = scalar_lea.vmem %s5, %s219
      %vm221 = vcmask 260096
      %222 = vst.msk [vmem:[#allocation2] sm:$0x7f] %vm221, 0.0
      %223 = vst.msk [vmem:[#allocation2 + $0x8] sm:$0x7f] %vm221, 0.0
      %224 = vst.msk [vmem:[#allocation2 + $0x10] sm:$0x7f] %vm221, 0.0
      %225 = vst.msk [vmem:[#allocation2 + $0x18] sm:$0x7f] %vm221, 0.0
      %226 = vst.msk [vmem:[#allocation2 + $0x20] sm:$0x7f] %vm221, 0.0
      %227 = vst.msk [vmem:[#allocation2 + $0x28] sm:$0x7f] %vm221, 0.0
      %228 = vst.msk [vmem:[#allocation2 + $0x30] sm:$0x7f] %vm221, 0.0
      %v229 = vld [vmem:[%s217] sm:$0x1f]
      %v230 = vld [vmem:[%s217 + $0x8] sm:$0x1f]
      %v231 = vld [vmem:[%s217 + $0x10] sm:$0x1f]
      %v232 = vld [vmem:[%s1] sm:$0xff]
      %v233 = vld [vmem:[%s1 + $0x8] sm:$0xff]
      %v234 = vld [vmem:[%s1 + $0x10] sm:$0xff]
      %v235 = vld [vmem:[%s1 + $0x18] sm:$0xff]
      %v236 = vld [vmem:[%s1 + $0x20] sm:$0xff]
      %v237 = vld [vmem:[%s1 + $0x28] sm:$0xff]
      %v238 = vld [vmem:[%s1 + $0x30] sm:$0xff]
      %v239 = vld [vmem:[%s1 + $0x38] sm:$0xff]
      %v240 = vld [vmem:[%s1 + $0x40] sm:$0xff]
      %v241 = vld [vmem:[%s1 + $0x48] sm:$0xff]
      %v242 = vld [vmem:[%s1 + $0x50] sm:$0xff]
      %v243 = vld [vmem:[%s1 + $0x58] sm:$0xff]
      %v244 = vld [vmem:[%s1 + $0x60] sm:$0xff]
      %v245 = vld [vmem:[%s1 + $0x68] sm:$0xff]
      %v246 = vld [vmem:[%s1 + $0x70] sm:$0xff]
      %v247 = vld [vmem:[%s1 + $0x78] sm:$0xff]
      %v248 = vld [vmem:[%s1 + $0x80] sm:$0xff]
      %v249 = vld [vmem:[%s1 + $0x88] sm:$0xff]
      %v250 = vld [vmem:[%s1 + $0x90] sm:$0xff]
      %v251 = vld [vmem:[%s1 + $0x98] sm:$0xff]
      %v252 = vld [vmem:[%s1 + $0xa0] sm:$0xff]
      %v253 = vld [vmem:[%s1 + $0xa8] sm:$0xff]
      %v254 = vld [vmem:[%s1 + $0xb0] sm:$0xff]
      %v255 = vld [vmem:[%s1 + $0xb8] sm:$0xff]
      %v256 = vld [vmem:[%s1 + $0xc0] sm:$0xff]
      %v257 = vld [vmem:[%s1 + $0xc8] sm:$0xff]
      %v258 = vld [vmem:[%s1 + $0xd0] sm:$0xff]
      %v259 = vld [vmem:[%s1 + $0xd8] sm:$0xff]
      %v260 = vld [vmem:[%s1 + $0xe0] sm:$0xff]
      %v261 = vld [vmem:[%s1 + $0xe8] sm:$0xff]
      %v262 = vld [vmem:[%s1 + $0xf0] sm:$0xff]
      %v263 = vld [vmem:[%s1 + $0xf8] sm:$0xff]
      %v264 = vld [vmem:[%s1 + $0x100] sm:$0xff]
      %v265 = vld [vmem:[%s1 + $0x108] sm:$0xff]
      %v266 = vld [vmem:[%s1 + $0x110] sm:$0xff]
      %v267 = vld [vmem:[%s1 + $0x118] sm:$0xff]
      %v268 = vld [vmem:[%s4] sm:$0x1]
      %v269 = vperm.slane %v268, 0
      %vm270 = vcmask 261120
      %v272 = vsel %vm270, %v231, 0
      %274 = vmatpush.msra.mxu0 %v247
      %275 = vmatpush.msra.mxu0 %v246
      %276 = vmatpush.msra.mxu0 %v245
      %277 = vmatpush.msra.mxu0 %v244
      %278 = vmatpush.msra.mxu0 %v243
      %279 = vmatpush.msra.mxu0 %v242
      %280 = vmatpush.msra.mxu0 %v241
      %281 = vmatpush.msra.mxu0 %v240
      %282 = vmatpush.msra.mxu0 %v239
      %283 = vmatpush.msra.mxu0 %v238
      %284 = vmatpush.msra.mxu0 %v237
      %285 = vmatpush.msra.mxu0 %v236
      %286 = vmatpush.msra.mxu0 %v235
      %287 = vmatpush.msra.mxu0 %v234
      %288 = vmatpush.msra.mxu0 %v233
      %289 = vmatpush.msra.mxu0 %v232
      %290 = vmatmul.f32.gmra.mxu0 %v229
      %v291 = vpop.f32.mrf.mxu0
      %v292 = vadd.f32 %v269, %v291
      %293 = vdwg.mxu0
      %294 = vmatpush.msra.mxu0 %v263
      %295 = vmatpush.msra.mxu0 %v262
      %296 = vmatpush.msra.mxu0 %v261
      %297 = vmatpush.msra.mxu0 %v260
      %298 = vmatpush.msra.mxu0 %v259
      %299 = vmatpush.msra.mxu0 %v258
      %300 = vmatpush.msra.mxu0 %v257
      %301 = vmatpush.msra.mxu0 %v256
      %302 = vmatpush.msra.mxu0 %v255
      %303 = vmatpush.msra.mxu0 %v254
      %304 = vmatpush.msra.mxu0 %v253
      %305 = vmatpush.msra.mxu0 %v252
      %306 = vmatpush.msra.mxu0 %v251
      %307 = vmatpush.msra.mxu0 %v250
      %308 = vmatpush.msra.mxu0 %v249
      %309 = vmatpush.msra.mxu0 %v248
      %310 = vmatmul.f32.gmra.mxu0 %v230
      %v311 = vpop.f32.mrf.mxu0
      %v312 = vadd.f32 %v292, %v311
      %313 = vdwg.mxu0
      %314 = vmatpush.msra.mxu0 0.0
      %315 = vmatpush.msra.mxu0 0.0
      %316 = vmatpush.msra.mxu0 0.0
      %317 = vmatpush.msra.mxu0 0.0
      %318 = vmatpush.msra.mxu0 0.0
      %319 = vmatpush.msra.mxu0 0.0
      %320 = vmatpush.msra.mxu0 0.0
      %321 = vmatpush.msra.mxu0 0.0
      %322 = vmatpush.msra.mxu0 0.0
      %323 = vmatpush.msra.mxu0 0.0
      %324 = vmatpush.msra.mxu0 0.0
      %325 = vmatpush.msra.mxu0 0.0
      %326 = vmatpush.msra.mxu0 %v267
      %327 = vmatpush.msra.mxu0 %v266
      %328 = vmatpush.msra.mxu0 %v265
      %329 = vmatpush.msra.mxu0 %v264
      %330 = vmatmul.f32.gmra.mxu0 %v272
      %v331 = vpop.f32.mrf.mxu0
      %v332 = vadd.f32 %v312, %v331
      %333 = vdwg.mxu0
      %v334 = vsub.f32 0.0, %v332
      %v335 = vmul.f32 %v334, 1.442695
      %v336 = vpow.pop %v335
      %v337 = vadd.f32 %v336, 1.0
      %v338 = vrcp.pop %v337
      %v339 = vmul.f32 %v337, %v338
      %v340 = vsub.f32 1.0, %v339
      %v341 = vmul.f32 %v338, %v340
      %v342 = vadd.f32 %v338, %v341
      %vm343 = vweird.f32 %v337
      %vm344 = vweird.f32 %v338
      %vm345 = vmor %vm343, %vm344
      %v346 = vsel %vm345, %v338, %v342
      %v347 = vand.u32 2147483647, %v337
      %vm348 = vcmp.eq.f32.partialorder %v347, 8.507059e+37
      %v349 = vand.u32 %v337, 2147483648
      %v350 = vor.u32 1.1754944e-38, %v349
      %v351 = vsel %vm348, %v350, %v346
      %v352 = vmul.f32 1.0, %v351
      %v353 = vmul.f32 %v332, %v352
      %v354 = vld [vmem:[%s4 + $0x1] sm:$0x1]
      %v355 = vperm.slane %v354, 0
      %v356 = vmul.f32 %v353, %v355
      %v357 = vld [vmem:[%s4 + $0x2] sm:$0x1]
      %v358 = vperm.slane %v357, 0
      %v359 = vadd.f32 %v356, %v358
      %s360 = scalar_lea.vmem [#allocation2], 8
      %vm361 = vcmask 258048
      %362 = vst.msk [vmem:[%s360 + $0x1] sm:$0x1f] %vm361, %v359
      %s363 = scalar_lea.vmem %s217, 24
      %v364 = vld [vmem:[%s363] sm:$0x1f]
      %v365 = vld [vmem:[%s363 + $0x8] sm:$0x1f]
      %v366 = vld [vmem:[%s363 + $0x10] sm:$0x1f]
      %v367 = vld [vmem:[%s1] sm:$0xff]
      %v368 = vld [vmem:[%s1 + $0x8] sm:$0xff]
      %v369 = vld [vmem:[%s1 + $0x10] sm:$0xff]
      %v370 = vld [vmem:[%s1 + $0x18] sm:$0xff]
      %v371 = vld [vmem:[%s1 + $0x20] sm:$0xff]
      %v372 = vld [vmem:[%s1 + $0x28] sm:$0xff]
      %v373 = vld [vmem:[%s1 + $0x30] sm:$0xff]
      %v374 = vld [vmem:[%s1 + $0x38] sm:$0xff]
      %v375 = vld [vmem:[%s1 + $0x40] sm:$0xff]
      %v376 = vld [vmem:[%s1 + $0x48] sm:$0xff]
      %v377 = vld [vmem:[%s1 + $0x50] sm:$0xff]
      %v378 = vld [vmem:[%s1 + $0x58] sm:$0xff]
      %v379 = vld [vmem:[%s1 + $0x60] sm:$0xff]
      %v380 = vld [vmem:[%s1 + $0x68] sm:$0xff]
      %v381 = vld [vmem:[%s1 + $0x70] sm:$0xff]
      %v382 = vld [vmem:[%s1 + $0x78] sm:$0xff]
      %v383 = vld [vmem:[%s1 + $0x80] sm:$0xff]
      %v384 = vld [vmem:[%s1 + $0x88] sm:$0xff]
      %v385 = vld [vmem:[%s1 + $0x90] sm:$0xff]
      %v386 = vld [vmem:[%s1 + $0x98] sm:$0xff]
      %v387 = vld [vmem:[%s1 + $0xa0] sm:$0xff]
      %v388 = vld [vmem:[%s1 + $0xa8] sm:$0xff]
      %v389 = vld [vmem:[%s1 + $0xb0] sm:$0xff]
      %v390 = vld [vmem:[%s1 + $0xb8] sm:$0xff]
      %v391 = vld [vmem:[%s1 + $0xc0] sm:$0xff]
      %v392 = vld [vmem:[%s1 + $0xc8] sm:$0xff]
      %v393 = vld [vmem:[%s1 + $0xd0] sm:$0xff]
      %v394 = vld [vmem:[%s1 + $0xd8] sm:$0xff]
      %v395 = vld [vmem:[%s1 + $0xe0] sm:$0xff]
      %v396 = vld [vmem:[%s1 + $0xe8] sm:$0xff]
      %v397 = vld [vmem:[%s1 + $0xf0] sm:$0xff]
      %v398 = vld [vmem:[%s1 + $0xf8] sm:$0xff]
      %v399 = vld [vmem:[%s1 + $0x100] sm:$0xff]
      %v400 = vld [vmem:[%s1 + $0x108] sm:$0xff]
      %v401 = vld [vmem:[%s1 + $0x110] sm:$0xff]
      %v402 = vld [vmem:[%s1 + $0x118] sm:$0xff]
      %v403 = vld [vmem:[%s4] sm:$0x1]
      %v404 = vperm.slane %v403, 0
      %v406 = vsel %vm270, %v366, 0
      %408 = vmatpush.msra.mxu0 %v382
      %409 = vmatpush.msra.mxu0 %v381
      %410 = vmatpush.msra.mxu0 %v380
      %411 = vmatpush.msra.mxu0 %v379
      %412 = vmatpush.msra.mxu0 %v378
      %413 = vmatpush.msra.mxu0 %v377
      %414 = vmatpush.msra.mxu0 %v376
      %415 = vmatpush.msra.mxu0 %v375
      %416 = vmatpush.msra.mxu0 %v374
      %417 = vmatpush.msra.mxu0 %v373
      %418 = vmatpush.msra.mxu0 %v372
      %419 = vmatpush.msra.mxu0 %v371
      %420 = vmatpush.msra.mxu0 %v370
      %421 = vmatpush.msra.mxu0 %v369
      %422 = vmatpush.msra.mxu0 %v368
      %423 = vmatpush.msra.mxu0 %v367
      %424 = vmatmul.f32.gmra.mxu0 %v364
      %v425 = vpop.f32.mrf.mxu0
      %v426 = vadd.f32 %v404, %v425
      %427 = vdwg.mxu0
      %428 = vmatpush.msra.mxu0 %v398
      %429 = vmatpush.msra.mxu0 %v397
      %430 = vmatpush.msra.mxu0 %v396
      %431 = vmatpush.msra.mxu0 %v395
      %432 = vmatpush.msra.mxu0 %v394
      %433 = vmatpush.msra.mxu0 %v393
      %434 = vmatpush.msra.mxu0 %v392
      %435 = vmatpush.msra.mxu0 %v391
      %436 = vmatpush.msra.mxu0 %v390
      %437 = vmatpush.msra.mxu0 %v389
      %438 = vmatpush.msra.mxu0 %v388
      %439 = vmatpush.msra.mxu0 %v387
      %440 = vmatpush.msra.mxu0 %v386
      %441 = vmatpush.msra.mxu0 %v385
      %442 = vmatpush.msra.mxu0 %v384
      %443 = vmatpush.msra.mxu0 %v383
      %444 = vmatmul.f32.gmra.mxu0 %v365
      %v445 = vpop.f32.mrf.mxu0
      %v446 = vadd.f32 %v426, %v445
      %447 = vdwg.mxu0
      %448 = vmatpush.msra.mxu0 0.0
      %449 = vmatpush.msra.mxu0 0.0
      %450 = vmatpush.msra.mxu0 0.0
      %451 = vmatpush.msra.mxu0 0.0
      %452 = vmatpush.msra.mxu0 0.0
      %453 = vmatpush.msra.mxu0 0.0
      %454 = vmatpush.msra.mxu0 0.0
      %455 = vmatpush.msra.mxu0 0.0
      %456 = vmatpush.msra.mxu0 0.0
      %457 = vmatpush.msra.mxu0 0.0
      %458 = vmatpush.msra.mxu0 0.0
      %459 = vmatpush.msra.mxu0 0.0
      %460 = vmatpush.msra.mxu0 %v402
      %461 = vmatpush.msra.mxu0 %v401
      %462 = vmatpush.msra.mxu0 %v400
      %463 = vmatpush.msra.mxu0 %v399
      %464 = vmatmul.f32.gmra.mxu0 %v406
      %v465 = vpop.f32.mrf.mxu0
      %v466 = vadd.f32 %v446, %v465
      %467 = vdwg.mxu0
      %v468 = vsub.f32 0.0, %v466
      %v469 = vmul.f32 %v468, 1.442695
      %v470 = vpow.pop %v469
      %v471 = vadd.f32 %v470, 1.0
      %v472 = vrcp.pop %v471
      %v473 = vmul.f32 %v471, %v472
      %v474 = vsub.f32 1.0, %v473
      %v475 = vmul.f32 %v472, %v474
      %v476 = vadd.f32 %v472, %v475
      %vm477 = vweird.f32 %v471
      %vm478 = vweird.f32 %v472
      %vm479 = vmor %vm477, %vm478
      %v480 = vsel %vm479, %v472, %v476
      %v481 = vand.u32 2147483647, %v471
      %vm482 = vcmp.eq.f32.partialorder %v481, 8.507059e+37
      %v483 = vand.u32 %v471, 2147483648
      %v484 = vor.u32 1.1754944e-38, %v483
      %v485 = vsel %vm482, %v484, %v480
      %v486 = vmul.f32 1.0, %v485
      %v487 = vmul.f32 %v466, %v486
      %v488 = vld [vmem:[%s4 + $0x1] sm:$0x1]
      %v489 = vperm.slane %v488, 0
      %v490 = vmul.f32 %v487, %v489
      %v491 = vld [vmem:[%s4 + $0x2] sm:$0x1]
      %v492 = vperm.slane %v491, 0
      %v493 = vadd.f32 %v490, %v492
      %s494 = scalar_lea.vmem [#allocation2], 16
      %495 = vst.msk [vmem:[%s494 + $0x1] sm:$0x1f] %vm361, %v493
      %s496 = scalar_lea.vmem %s217, 48
      %v497 = vld [vmem:[%s496] sm:$0x1f]
      %v498 = vld [vmem:[%s496 + $0x8] sm:$0x1f]
      %v499 = vld [vmem:[%s496 + $0x10] sm:$0x1f]
      %v500 = vld [vmem:[%s1] sm:$0xff]
      %v501 = vld [vmem:[%s1 + $0x8] sm:$0xff]
      %v502 = vld [vmem:[%s1 + $0x10] sm:$0xff]
      %v503 = vld [vmem:[%s1 + $0x18] sm:$0xff]
      %v504 = vld [vmem:[%s1 + $0x20] sm:$0xff]
      %v505 = vld [vmem:[%s1 + $0x28] sm:$0xff]
      %v506 = vld [vmem:[%s1 + $0x30] sm:$0xff]
      %v507 = vld [vmem:[%s1 + $0x38] sm:$0xff]
      %v508 = vld [vmem:[%s1 + $0x40] sm:$0xff]
      %v509 = vld [vmem:[%s1 + $0x48] sm:$0xff]
      %v510 = vld [vmem:[%s1 + $0x50] sm:$0xff]
      %v511 = vld [vmem:[%s1 + $0x58] sm:$0xff]
      %v512 = vld [vmem:[%s1 + $0x60] sm:$0xff]
      %v513 = vld [vmem:[%s1 + $0x68] sm:$0xff]
      %v514 = vld [vmem:[%s1 + $0x70] sm:$0xff]
      %v515 = vld [vmem:[%s1 + $0x78] sm:$0xff]
      %v516 = vld [vmem:[%s1 + $0x80] sm:$0xff]
      %v517 = vld [vmem:[%s1 + $0x88] sm:$0xff]
      %v518 = vld [vmem:[%s1 + $0x90] sm:$0xff]
      %v519 = vld [vmem:[%s1 + $0x98] sm:$0xff]
      %v520 = vld [vmem:[%s1 + $0xa0] sm:$0xff]
      %v521 = vld [vmem:[%s1 + $0xa8] sm:$0xff]
      %v522 = vld [vmem:[%s1 + $0xb0] sm:$0xff]
      %v523 = vld [vmem:[%s1 + $0xb8] sm:$0xff]
      %v524 = vld [vmem:[%s1 + $0xc0] sm:$0xff]
      %v525 = vld [vmem:[%s1 + $0xc8] sm:$0xff]
      %v526 = vld [vmem:[%s1 + $0xd0] sm:$0xff]
      %v527 = vld [vmem:[%s1 + $0xd8] sm:$0xff]
      %v528 = vld [vmem:[%s1 + $0xe0] sm:$0xff]
      %v529 = vld [vmem:[%s1 + $0xe8] sm:$0xff]
      %v530 = vld [vmem:[%s1 + $0xf0] sm:$0xff]
      %v531 = vld [vmem:[%s1 + $0xf8] sm:$0xff]
      %v532 = vld [vmem:[%s1 + $0x100] sm:$0xff]
      %v533 = vld [vmem:[%s1 + $0x108] sm:$0xff]
      %v534 = vld [vmem:[%s1 + $0x110] sm:$0xff]
      %v535 = vld [vmem:[%s1 + $0x118] sm:$0xff]
      %v536 = vld [vmem:[%s4] sm:$0x1]
      %v537 = vperm.slane %v536, 0
      %v539 = vsel %vm270, %v499, 0
      %541 = vmatpush.msra.mxu0 %v515
      %542 = vmatpush.msra.mxu0 %v514
      %543 = vmatpush.msra.mxu0 %v513
      %544 = vmatpush.msra.mxu0 %v512
      %545 = vmatpush.msra.mxu0 %v511
      %546 = vmatpush.msra.mxu0 %v510
      %547 = vmatpush.msra.mxu0 %v509
      %548 = vmatpush.msra.mxu0 %v508
      %549 = vmatpush.msra.mxu0 %v507
      %550 = vmatpush.msra.mxu0 %v506
      %551 = vmatpush.msra.mxu0 %v505
      %552 = vmatpush.msra.mxu0 %v504
      %553 = vmatpush.msra.mxu0 %v503
      %554 = vmatpush.msra.mxu0 %v502
      %555 = vmatpush.msra.mxu0 %v501
      %556 = vmatpush.msra.mxu0 %v500
      %557 = vmatmul.f32.gmra.mxu0 %v497
      %v558 = vpop.f32.mrf.mxu0
      %v559 = vadd.f32 %v537, %v558
      %560 = vdwg.mxu0
      %561 = vmatpush.msra.mxu0 %v531
      %562 = vmatpush.msra.mxu0 %v530
      %563 = vmatpush.msra.mxu0 %v529
      %564 = vmatpush.msra.mxu0 %v528
      %565 = vmatpush.msra.mxu0 %v527
      %566 = vmatpush.msra.mxu0 %v526
      %567 = vmatpush.msra.mxu0 %v525
      %568 = vmatpush.msra.mxu0 %v524
      %569 = vmatpush.msra.mxu0 %v523
      %570 = vmatpush.msra.mxu0 %v522
      %571 = vmatpush.msra.mxu0 %v521
      %572 = vmatpush.msra.mxu0 %v520
      %573 = vmatpush.msra.mxu0 %v519
      %574 = vmatpush.msra.mxu0 %v518
      %575 = vmatpush.msra.mxu0 %v517
      %576 = vmatpush.msra.mxu0 %v516
      %577 = vmatmul.f32.gmra.mxu0 %v498
      %v578 = vpop.f32.mrf.mxu0
      %v579 = vadd.f32 %v559, %v578
      %580 = vdwg.mxu0
      %581 = vmatpush.msra.mxu0 0.0
      %582 = vmatpush.msra.mxu0 0.0
      %583 = vmatpush.msra.mxu0 0.0
      %584 = vmatpush.msra.mxu0 0.0
      %585 = vmatpush.msra.mxu0 0.0
      %586 = vmatpush.msra.mxu0 0.0
      %587 = vmatpush.msra.mxu0 0.0
      %588 = vmatpush.msra.mxu0 0.0
      %589 = vmatpush.msra.mxu0 0.0
      %590 = vmatpush.msra.mxu0 0.0
      %591 = vmatpush.msra.mxu0 0.0
      %592 = vmatpush.msra.mxu0 0.0
      %593 = vmatpush.msra.mxu0 %v535
      %594 = vmatpush.msra.mxu0 %v534
      %595 = vmatpush.msra.mxu0 %v533
      %596 = vmatpush.msra.mxu0 %v532
      %597 = vmatmul.f32.gmra.mxu0 %v539
      %v598 = vpop.f32.mrf.mxu0
      %v599 = vadd.f32 %v579, %v598
      %600 = vdwg.mxu0
      %v601 = vsub.f32 0.0, %v599
      %v602 = vmul.f32 %v601, 1.442695
      %v603 = vpow.pop %v602
      %v604 = vadd.f32 %v603, 1.0
      %v605 = vrcp.pop %v604
      %v606 = vmul.f32 %v604, %v605
      %v607 = vsub.f32 1.0, %v606
      %v608 = vmul.f32 %v605, %v607
      %v609 = vadd.f32 %v605, %v608
      %vm610 = vweird.f32 %v604
      %vm611 = vweird.f32 %v605
      %vm612 = vmor %vm610, %vm611
      %v613 = vsel %vm612, %v605, %v609
      %v614 = vand.u32 2147483647, %v604
      %vm615 = vcmp.eq.f32.partialorder %v614, 8.507059e+37
      %v616 = vand.u32 %v604, 2147483648
      %v617 = vor.u32 1.1754944e-38, %v616
      %v618 = vsel %vm615, %v617, %v613
      %v619 = vmul.f32 1.0, %v618
      %v620 = vmul.f32 %v599, %v619
      %v621 = vld [vmem:[%s4 + $0x1] sm:$0x1]
      %v622 = vperm.slane %v621, 0
      %v623 = vmul.f32 %v620, %v622
      %v624 = vld [vmem:[%s4 + $0x2] sm:$0x1]
      %v625 = vperm.slane %v624, 0
      %v626 = vadd.f32 %v623, %v625
      %s627 = scalar_lea.vmem [#allocation2], 24
      %628 = vst.msk [vmem:[%s627 + $0x1] sm:$0x1f] %vm361, %v626
      %s629 = scalar_lea.vmem %s217, 72
      %v630 = vld [vmem:[%s629] sm:$0x1f]
      %v631 = vld [vmem:[%s629 + $0x8] sm:$0x1f]
      %v632 = vld [vmem:[%s629 + $0x10] sm:$0x1f]
      %v633 = vld [vmem:[%s1] sm:$0xff]
      %v634 = vld [vmem:[%s1 + $0x8] sm:$0xff]
      %v635 = vld [vmem:[%s1 + $0x10] sm:$0xff]
      %v636 = vld [vmem:[%s1 + $0x18] sm:$0xff]
      %v637 = vld [vmem:[%s1 + $0x20] sm:$0xff]
      %v638 = vld [vmem:[%s1 + $0x28] sm:$0xff]
      %v639 = vld [vmem:[%s1 + $0x30] sm:$0xff]
      %v640 = vld [vmem:[%s1 + $0x38] sm:$0xff]
      %v641 = vld [vmem:[%s1 + $0x40] sm:$0xff]
      %v642 = vld [vmem:[%s1 + $0x48] sm:$0xff]
      %v643 = vld [vmem:[%s1 + $0x50] sm:$0xff]
      %v644 = vld [vmem:[%s1 + $0x58] sm:$0xff]
      %v645 = vld [vmem:[%s1 + $0x60] sm:$0xff]
      %v646 = vld [vmem:[%s1 + $0x68] sm:$0xff]
      %v647 = vld [vmem:[%s1 + $0x70] sm:$0xff]
      %v648 = vld [vmem:[%s1 + $0x78] sm:$0xff]
      %v649 = vld [vmem:[%s1 + $0x80] sm:$0xff]
      %v650 = vld [vmem:[%s1 + $0x88] sm:$0xff]
      %v651 = vld [vmem:[%s1 + $0x90] sm:$0xff]
      %v652 = vld [vmem:[%s1 + $0x98] sm:$0xff]
      %v653 = vld [vmem:[%s1 + $0xa0] sm:$0xff]
      %v654 = vld [vmem:[%s1 + $0xa8] sm:$0xff]
      %v655 = vld [vmem:[%s1 + $0xb0] sm:$0xff]
      %v656 = vld [vmem:[%s1 + $0xb8] sm:$0xff]
      %v657 = vld [vmem:[%s1 + $0xc0] sm:$0xff]
      %v658 = vld [vmem:[%s1 + $0xc8] sm:$0xff]
      %v659 = vld [vmem:[%s1 + $0xd0] sm:$0xff]
      %v660 = vld [vmem:[%s1 + $0xd8] sm:$0xff]
      %v661 = vld [vmem:[%s1 + $0xe0] sm:$0xff]
      %v662 = vld [vmem:[%s1 + $0xe8] sm:$0xff]
      %v663 = vld [vmem:[%s1 + $0xf0] sm:$0xff]
      %v664 = vld [vmem:[%s1 + $0xf8] sm:$0xff]
      %v665 = vld [vmem:[%s1 + $0x100] sm:$0xff]
      %v666 = vld [vmem:[%s1 + $0x108] sm:$0xff]
      %v667 = vld [vmem:[%s1 + $0x110] sm:$0xff]
      %v668 = vld [vmem:[%s1 + $0x118] sm:$0xff]
      %v669 = vld [vmem:[%s4] sm:$0x1]
      %v670 = vperm.slane %v669, 0
      %v672 = vsel %vm270, %v632, 0
      %674 = vmatpush.msra.mxu0 %v648
      %675 = vmatpush.msra.mxu0 %v647
      %676 = vmatpush.msra.mxu0 %v646
      %677 = vmatpush.msra.mxu0 %v645
      %678 = vmatpush.msra.mxu0 %v644
      %679 = vmatpush.msra.mxu0 %v643
      %680 = vmatpush.msra.mxu0 %v642
      %681 = vmatpush.msra.mxu0 %v641
      %682 = vmatpush.msra.mxu0 %v640
      %683 = vmatpush.msra.mxu0 %v639
      %684 = vmatpush.msra.mxu0 %v638
      %685 = vmatpush.msra.mxu0 %v637
      %686 = vmatpush.msra.mxu0 %v636
      %687 = vmatpush.msra.mxu0 %v635
      %688 = vmatpush.msra.mxu0 %v634
      %689 = vmatpush.msra.mxu0 %v633
      %690 = vmatmul.f32.gmra.mxu0 %v630
      %v691 = vpop.f32.mrf.mxu0
      %v692 = vadd.f32 %v670, %v691
      %693 = vdwg.mxu0
      %694 = vmatpush.msra.mxu0 %v664
      %695 = vmatpush.msra.mxu0 %v663
      %696 = vmatpush.msra.mxu0 %v662
      %697 = vmatpush.msra.mxu0 %v661
      %698 = vmatpush.msra.mxu0 %v660
      %699 = vmatpush.msra.mxu0 %v659
      %700 = vmatpush.msra.mxu0 %v658
      %701 = vmatpush.msra.mxu0 %v657
      %702 = vmatpush.msra.mxu0 %v656
      %703 = vmatpush.msra.mxu0 %v655
      %704 = vmatpush.msra.mxu0 %v654
      %705 = vmatpush.msra.mxu0 %v653
      %706 = vmatpush.msra.mxu0 %v652
      %707 = vmatpush.msra.mxu0 %v651
      %708 = vmatpush.msra.mxu0 %v650
      %709 = vmatpush.msra.mxu0 %v649
      %710 = vmatmul.f32.gmra.mxu0 %v631
      %v711 = vpop.f32.mrf.mxu0
      %v712 = vadd.f32 %v692, %v711
      %713 = vdwg.mxu0
      %714 = vmatpush.msra.mxu0 0.0
      %715 = vmatpush.msra.mxu0 0.0
      %716 = vmatpush.msra.mxu0 0.0
      %717 = vmatpush.msra.mxu0 0.0
      %718 = vmatpush.msra.mxu0 0.0
      %719 = vmatpush.msra.mxu0 0.0
      %720 = vmatpush.msra.mxu0 0.0
      %721 = vmatpush.msra.mxu0 0.0
      %722 = vmatpush.msra.mxu0 0.0
      %723 = vmatpush.msra.mxu0 0.0
      %724 = vmatpush.msra.mxu0 0.0
      %725 = vmatpush.msra.mxu0 0.0
      %726 = vmatpush.msra.mxu0 %v668
      %727 = vmatpush.msra.mxu0 %v667
      %728 = vmatpush.msra.mxu0 %v666
      %729 = vmatpush.msra.mxu0 %v665
      %730 = vmatmul.f32.gmra.mxu0 %v672
      %v731 = vpop.f32.mrf.mxu0
      %v732 = vadd.f32 %v712, %v731
      %733 = vdwg.mxu0
      %v734 = vsub.f32 0.0, %v732
      %v735 = vmul.f32 %v734, 1.442695
      %v736 = vpow.pop %v735
      %v737 = vadd.f32 %v736, 1.0
      %v738 = vrcp.pop %v737
      %v739 = vmul.f32 %v737, %v738
      %v740 = vsub.f32 1.0, %v739
      %v741 = vmul.f32 %v738, %v740
      %v742 = vadd.f32 %v738, %v741
      %vm743 = vweird.f32 %v737
      %vm744 = vweird.f32 %v738
      %vm745 = vmor %vm743, %vm744
      %v746 = vsel %vm745, %v738, %v742
      %v747 = vand.u32 2147483647, %v737
      %vm748 = vcmp.eq.f32.partialorder %v747, 8.507059e+37
      %v749 = vand.u32 %v737, 2147483648
      %v750 = vor.u32 1.1754944e-38, %v749
      %v751 = vsel %vm748, %v750, %v746
      %v752 = vmul.f32 1.0, %v751
      %v753 = vmul.f32 %v732, %v752
      %v754 = vld [vmem:[%s4 + $0x1] sm:$0x1]
      %v755 = vperm.slane %v754, 0
      %v756 = vmul.f32 %v753, %v755
      %v757 = vld [vmem:[%s4 + $0x2] sm:$0x1]
      %v758 = vperm.slane %v757, 0
      %v759 = vadd.f32 %v756, %v758
      %s760 = scalar_lea.vmem [#allocation2], 32
      %761 = vst.msk [vmem:[%s760 + $0x1] sm:$0x1f] %vm361, %v759
      %s762 = scalar_lea.vmem %s217, 96
      %v763 = vld [vmem:[%s762] sm:$0x1f]
      %v764 = vld [vmem:[%s762 + $0x8] sm:$0x1f]
      %v765 = vld [vmem:[%s762 + $0x10] sm:$0x1f]
      %v766 = vld [vmem:[%s1] sm:$0xff]
      %v767 = vld [vmem:[%s1 + $0x8] sm:$0xff]
      %v768 = vld [vmem:[%s1 + $0x10] sm:$0xff]
      %v769 = vld [vmem:[%s1 + $0x18] sm:$0xff]
      %v770 = vld [vmem:[%s1 + $0x20] sm:$0xff]
      %v771 = vld [vmem:[%s1 + $0x28] sm:$0xff]
      %v772 = vld [vmem:[%s1 + $0x30] sm:$0xff]
      %v773 = vld [vmem:[%s1 + $0x38] sm:$0xff]
      %v774 = vld [vmem:[%s1 + $0x40] sm:$0xff]
      %v775 = vld [vmem:[%s1 + $0x48] sm:$0xff]
      %v776 = vld [vmem:[%s1 + $0x50] sm:$0xff]
      %v777 = vld [vmem:[%s1 + $0x58] sm:$0xff]
      %v778 = vld [vmem:[%s1 + $0x60] sm:$0xff]
      %v779 = vld [vmem:[%s1 + $0x68] sm:$0xff]
      %v780 = vld [vmem:[%s1 + $0x70] sm:$0xff]
      %v781 = vld [vmem:[%s1 + $0x78] sm:$0xff]
      %v782 = vld [vmem:[%s1 + $0x80] sm:$0xff]
      %v783 = vld [vmem:[%s1 + $0x88] sm:$0xff]
      %v784 = vld [vmem:[%s1 + $0x90] sm:$0xff]
      %v785 = vld [vmem:[%s1 + $0x98] sm:$0xff]
      %v786 = vld [vmem:[%s1 + $0xa0] sm:$0xff]
      %v787 = vld [vmem:[%s1 + $0xa8] sm:$0xff]
      %v788 = vld [vmem:[%s1 + $0xb0] sm:$0xff]
      %v789 = vld [vmem:[%s1 + $0xb8] sm:$0xff]
      %v790 = vld [vmem:[%s1 + $0xc0] sm:$0xff]
      %v791 = vld [vmem:[%s1 + $0xc8] sm:$0xff]
      %v792 = vld [vmem:[%s1 + $0xd0] sm:$0xff]
      %v793 = vld [vmem:[%s1 + $0xd8] sm:$0xff]
      %v794 = vld [vmem:[%s1 + $0xe0] sm:$0xff]
      %v795 = vld [vmem:[%s1 + $0xe8] sm:$0xff]
      %v796 = vld [vmem:[%s1 + $0xf0] sm:$0xff]
      %v797 = vld [vmem:[%s1 + $0xf8] sm:$0xff]
      %v798 = vld [vmem:[%s1 + $0x100] sm:$0xff]
      %v799 = vld [vmem:[%s1 + $0x108] sm:$0xff]
      %v800 = vld [vmem:[%s1 + $0x110] sm:$0xff]
      %v801 = vld [vmem:[%s1 + $0x118] sm:$0xff]
      %v802 = vld [vmem:[%s4] sm:$0x1]
      %v803 = vperm.slane %v802, 0
      %v805 = vsel %vm270, %v765, 0
      %807 = vmatpush.msra.mxu0 %v781
      %808 = vmatpush.msra.mxu0 %v780
      %809 = vmatpush.msra.mxu0 %v779
      %810 = vmatpush.msra.mxu0 %v778
      %811 = vmatpush.msra.mxu0 %v777
      %812 = vmatpush.msra.mxu0 %v776
      %813 = vmatpush.msra.mxu0 %v775
      %814 = vmatpush.msra.mxu0 %v774
      %815 = vmatpush.msra.mxu0 %v773
      %816 = vmatpush.msra.mxu0 %v772
      %817 = vmatpush.msra.mxu0 %v771
      %818 = vmatpush.msra.mxu0 %v770
      %819 = vmatpush.msra.mxu0 %v769
      %820 = vmatpush.msra.mxu0 %v768
      %821 = vmatpush.msra.mxu0 %v767
      %822 = vmatpush.msra.mxu0 %v766
      %823 = vmatmul.f32.gmra.mxu0 %v763
      %v824 = vpop.f32.mrf.mxu0
      %v825 = vadd.f32 %v803, %v824
      %826 = vdwg.mxu0
      %827 = vmatpush.msra.mxu0 %v797
      %828 = vmatpush.msra.mxu0 %v796
      %829 = vmatpush.msra.mxu0 %v795
      %830 = vmatpush.msra.mxu0 %v794
      %831 = vmatpush.msra.mxu0 %v793
      %832 = vmatpush.msra.mxu0 %v792
      %833 = vmatpush.msra.mxu0 %v791
      %834 = vmatpush.msra.mxu0 %v790
      %835 = vmatpush.msra.mxu0 %v789
      %836 = vmatpush.msra.mxu0 %v788
      %837 = vmatpush.msra.mxu0 %v787
      %838 = vmatpush.msra.mxu0 %v786
      %839 = vmatpush.msra.mxu0 %v785
      %840 = vmatpush.msra.mxu0 %v784
      %841 = vmatpush.msra.mxu0 %v783
      %842 = vmatpush.msra.mxu0 %v782
      %843 = vmatmul.f32.gmra.mxu0 %v764
      %v844 = vpop.f32.mrf.mxu0
      %v845 = vadd.f32 %v825, %v844
      %846 = vdwg.mxu0
      %847 = vmatpush.msra.mxu0 0.0
      %848 = vmatpush.msra.mxu0 0.0
      %849 = vmatpush.msra.mxu0 0.0
      %850 = vmatpush.msra.mxu0 0.0
      %851 = vmatpush.msra.mxu0 0.0
      %852 = vmatpush.msra.mxu0 0.0
      %853 = vmatpush.msra.mxu0 0.0
      %854 = vmatpush.msra.mxu0 0.0
      %855 = vmatpush.msra.mxu0 0.0
      %856 = vmatpush.msra.mxu0 0.0
      %857 = vmatpush.msra.mxu0 0.0
      %858 = vmatpush.msra.mxu0 0.0
      %859 = vmatpush.msra.mxu0 %v801
      %860 = vmatpush.msra.mxu0 %v800
      %861 = vmatpush.msra.mxu0 %v799
      %862 = vmatpush.msra.mxu0 %v798
      %863 = vmatmul.f32.gmra.mxu0 %v805
      %v864 = vpop.f32.mrf.mxu0
      %v865 = vadd.f32 %v845, %v864
      %866 = vdwg.mxu0
      %v867 = vsub.f32 0.0, %v865
      %v868 = vmul.f32 %v867, 1.442695
      %v869 = vpow.pop %v868
      %v870 = vadd.f32 %v869, 1.0
      %v871 = vrcp.pop %v870
      %v872 = vmul.f32 %v870, %v871
      %v873 = vsub.f32 1.0, %v872
      %v874 = vmul.f32 %v871, %v873
      %v875 = vadd.f32 %v871, %v874
      %vm876 = vweird.f32 %v870
      %vm877 = vweird.f32 %v871
      %vm878 = vmor %vm876, %vm877
      %v879 = vsel %vm878, %v871, %v875
      %v880 = vand.u32 2147483647, %v870
      %vm881 = vcmp.eq.f32.partialorder %v880, 8.507059e+37
      %v882 = vand.u32 %v870, 2147483648
      %v883 = vor.u32 1.1754944e-38, %v882
      %v884 = vsel %vm881, %v883, %v879
      %v885 = vmul.f32 1.0, %v884
      %v886 = vmul.f32 %v865, %v885
      %v887 = vld [vmem:[%s4 + $0x1] sm:$0x1]
      %v888 = vperm.slane %v887, 0
      %v889 = vmul.f32 %v886, %v888
      %v890 = vld [vmem:[%s4 + $0x2] sm:$0x1]
      %v891 = vperm.slane %v890, 0
      %v892 = vadd.f32 %v889, %v891
      %s893 = scalar_lea.vmem [#allocation2], 40
      %894 = vst.msk [vmem:[%s893 + $0x1] sm:$0x1f] %vm361, %v892
      %v895 = vld [vmem:[#allocation2] sm:$0x1f]
      %v896 = vld [vmem:[%s2] sm:$0x1]
      %v897 = vperm.slane %v896, 0
      %v898 = vmul.f32 %v895, %v897
      %v899 = vadd.f32 %v898, 0.0
      %v900 = vld [vmem:[#allocation2 + $0x1] sm:$0x1f]
      %v901 = vld [vmem:[%s2 + $0x1] sm:$0x1]
      %v902 = vperm.slane %v901, 0
      %v903 = vmul.f32 %v900, %v902
      %v904 = vadd.f32 %v899, %v903
      %v905 = vld [vmem:[#allocation2 + $0x2] sm:$0x1f]
      %v906 = vld [vmem:[%s2 + $0x2] sm:$0x1]
      %v907 = vperm.slane %v906, 0
      %v908 = vmul.f32 %v905, %v907
      %v909 = vadd.f32 %v904, %v908
      %v910 = vld [vmem:[%s360] sm:$0x1f]
      %v911 = vld [vmem:[%s2 + $0x3] sm:$0x1]
      %v912 = vperm.slane %v911, 0
      %v913 = vmul.f32 %v910, %v912
      %v914 = vadd.f32 %v909, %v913
      %v915 = vld [vmem:[%s360 + $0x1] sm:$0x1f]
      %v916 = vld [vmem:[%s2 + $0x4] sm:$0x1]
      %v917 = vperm.slane %v916, 0
      %v918 = vmul.f32 %v915, %v917
      %v919 = vadd.f32 %v914, %v918
      %v920 = vld [vmem:[%s360 + $0x2] sm:$0x1f]
      %v921 = vld [vmem:[%s2 + $0x5] sm:$0x1]
      %v922 = vperm.slane %v921, 0
      %v923 = vmul.f32 %v920, %v922
      %v924 = vadd.f32 %v919, %v923
      %v925 = vld [vmem:[%s494] sm:$0x1f]
      %v926 = vld [vmem:[%s2 + $0x6] sm:$0x1]
      %v927 = vperm.slane %v926, 0
      %v928 = vmul.f32 %v925, %v927
      %v929 = vadd.f32 %v924, %v928
      %v930 = vld [vmem:[%s494 + $0x1] sm:$0x1f]
      %v931 = vld [vmem:[%s2 + $0x7] sm:$0x1]
      %v932 = vperm.slane %v931, 0
      %v933 = vmul.f32 %v930, %v932
      %v934 = vadd.f32 %v929, %v933
      %v935 = vld [vmem:[%s494 + $0x2] sm:$0x1f]
      %v936 = vld [vmem:[%s2 + $0x8] sm:$0x1]
      %v937 = vperm.slane %v936, 0
      %v938 = vmul.f32 %v935, %v937
      %v939 = vadd.f32 %v934, %v938
      %v940 = vld [vmem:[%s4 + $0x3] sm:$0x1]
      %v941 = vperm.slane %v940, 0
      %v942 = vadd.f32 %v939, %v941
      %v943 = vsub.f32 0.0, %v942
      %v944 = vmul.f32 %v943, 1.442695
      %v945 = vpow.pop %v944
      %v946 = vadd.f32 %v945, 1.0
      %v947 = vrcp.pop %v946
      %v948 = vmul.f32 %v946, %v947
      %v949 = vsub.f32 1.0, %v948
      %v950 = vmul.f32 %v947, %v949
      %v951 = vadd.f32 %v947, %v950
      %vm952 = vweird.f32 %v946
      %vm953 = vweird.f32 %v947
      %vm954 = vmor %vm952, %vm953
      %v955 = vsel %vm954, %v947, %v951
      %v956 = vand.u32 2147483647, %v946
      %vm957 = vcmp.eq.f32.partialorder %v956, 8.507059e+37
      %v958 = vand.u32 %v946, 2147483648
      %v959 = vor.u32 1.1754944e-38, %v958
      %v960 = vsel %vm957, %v959, %v955
      %v961 = vmul.f32 1.0, %v960
      %v962 = vmul.f32 %v942, %v961
      %v963 = vld [vmem:[%s4 + $0x4] sm:$0x1]
      %v964 = vperm.slane %v963, 0
      %v965 = vmul.f32 %v962, %v964
      %v966 = vld [vmem:[%s4 + $0x5] sm:$0x1]
      %v967 = vperm.slane %v966, 0
      %v968 = vadd.f32 %v965, %v967
      %v969 = vadd.f32 %v968, %v915
      %v970 = vld [vmem:[%s3] sm:$0xff]
      %v971 = vld [vmem:[%s3 + $0x8] sm:$0xff]
      %v972 = vld [vmem:[%s3 + $0x10] sm:$0xff]
      %v973 = vld [vmem:[%s3 + $0x18] sm:$0xff]
      %v974 = vld [vmem:[%s4 + $0x6] sm:$0x1]
      %v975 = vperm.slane %v974, 0
      %v977 = vsel %vm270, %v969, 0
      %979 = vmatpush.msra.mxu0 0.0
      %980 = vmatpush.msra.mxu0 0.0
      %981 = vmatpush.msra.mxu0 0.0
      %982 = vmatpush.msra.mxu0 0.0
      %983 = vmatpush.msra.mxu0 0.0
      %984 = vmatpush.msra.mxu0 0.0
      %985 = vmatpush.msra.mxu0 0.0
      %986 = vmatpush.msra.mxu0 0.0
      %987 = vmatpush.msra.mxu0 0.0
      %988 = vmatpush.msra.mxu0 0.0
      %989 = vmatpush.msra.mxu0 0.0
      %990 = vmatpush.msra.mxu0 0.0
      %991 = vmatpush.msra.mxu0 %v973
      %992 = vmatpush.msra.mxu0 %v972
      %993 = vmatpush.msra.mxu0 %v971
      %994 = vmatpush.msra.mxu0 %v970
      %995 = vmatmul.f32.gmra.mxu0 %v977
      %v996 = vpop.f32.mrf.mxu0
      %v997 = vadd.f32 %v975, %v996
      %998 = vdwg.mxu0
      %v999 = vsub.f32 0.0, %v997
      %v1000 = vmul.f32 %v999, 1.442695
      %v1001 = vpow.pop %v1000
      %v1002 = vadd.f32 %v1001, 1.0
      %v1003 = vrcp.pop %v1002
      %v1004 = vmul.f32 %v1002, %v1003
      %v1005 = vsub.f32 1.0, %v1004
      %v1006 = vmul.f32 %v1003, %v1005
      %v1007 = vadd.f32 %v1003, %v1006
      %vm1008 = vweird.f32 %v1002
      %vm1009 = vweird.f32 %v1003
      %vm1010 = vmor %vm1008, %vm1009
      %v1011 = vsel %vm1010, %v1003, %v1007
      %v1012 = vand.u32 2147483647, %v1002
      %vm1013 = vcmp.eq.f32.partialorder %v1012, 8.507059e+37
      %v1014 = vand.u32 %v1002, 2147483648
      %v1015 = vor.u32 1.1754944e-38, %v1014
      %v1016 = vsel %vm1013, %v1015, %v1011
      %v1017 = vmul.f32 1.0, %v1016
      %v1018 = vmul.f32 %v997, %v1017
      %v1019 = vld [vmem:[%s4 + $0x7] sm:$0x1]
      %v1020 = vperm.slane %v1019, 0
      %v1021 = vmul.f32 %v1018, %v1020
      %v1022 = vld [vmem:[%s4 + $0x8] sm:$0x1]
      %v1023 = vperm.slane %v1022, 0
      %v1024 = vadd.f32 %v1021, %v1023
      %v1025 = vsel %vm361, %v1024, 0.0
      %v1026 = vrot.slane %v1025, 4
      %v1027 = vadd.f32 %v1025, %v1026
      %v1028 = vrot.slane %v1027, 2
      %v1029 = vadd.f32 %v1027, %v1028
      %v1030 = vrot.slane %v1029, 1
      %v1031 = vadd.f32 %v1029, %v1030
      %v1032 = vadd.f32 %v1031, 0.0
      %v1033 = vmul.f32 %v910, %v897
      %v1034 = vadd.f32 %v1033, 0.0
      %v1035 = vmul.f32 %v915, %v902
      %v1036 = vadd.f32 %v1034, %v1035
      %v1037 = vmul.f32 %v920, %v907
      %v1038 = vadd.f32 %v1036, %v1037
      %v1039 = vmul.f32 %v925, %v912
      %v1040 = vadd.f32 %v1038, %v1039
      %v1041 = vmul.f32 %v930, %v917
      %v1042 = vadd.f32 %v1040, %v1041
      %v1043 = vmul.f32 %v935, %v922
      %v1044 = vadd.f32 %v1042, %v1043
      %v1045 = vld [vmem:[%s627] sm:$0x1f]
      %v1046 = vmul.f32 %v1045, %v927
      %v1047 = vadd.f32 %v1044, %v1046
      %v1048 = vld [vmem:[%s627 + $0x1] sm:$0x1f]
      %v1049 = vmul.f32 %v1048, %v932
      %v1050 = vadd.f32 %v1047, %v1049
      %v1051 = vld [vmem:[%s627 + $0x2] sm:$0x1f]
      %v1052 = vmul.f32 %v1051, %v937
      %v1053 = vadd.f32 %v1050, %v1052
      %v1054 = vadd.f32 %v1053, %v941
      %v1055 = vsub.f32 0.0, %v1054
      %v1056 = vmul.f32 %v1055, 1.442695
      %v1057 = vpow.pop %v1056
      %v1058 = vadd.f32 %v1057, 1.0
      %v1059 = vrcp.pop %v1058
      %v1060 = vmul.f32 %v1058, %v1059
      %v1061 = vsub.f32 1.0, %v1060
      %v1062 = vmul.f32 %v1059, %v1061
      %v1063 = vadd.f32 %v1059, %v1062
      %vm1064 = vweird.f32 %v1058
      %vm1065 = vweird.f32 %v1059
      %vm1066 = vmor %vm1064, %vm1065
      %v1067 = vsel %vm1066, %v1059, %v1063
      %v1068 = vand.u32 2147483647, %v1058
      %vm1069 = vcmp.eq.f32.partialorder %v1068, 8.507059e+37
      %v1070 = vand.u32 %v1058, 2147483648
      %v1071 = vor.u32 1.1754944e-38, %v1070
      %v1072 = vsel %vm1069, %v1071, %v1067
      %v1073 = vmul.f32 1.0, %v1072
      %v1074 = vmul.f32 %v1054, %v1073
      %v1075 = vmul.f32 %v1074, %v964
      %v1076 = vadd.f32 %v1075, %v967
      %v1077 = vadd.f32 %v1076, %v930
      %v1079 = vsel %vm270, %v1077, 0
      %1081 = vmatpush.msra.mxu0 0.0
      %1082 = vmatpush.msra.mxu0 0.0
      %1083 = vmatpush.msra.mxu0 0.0
      %1084 = vmatpush.msra.mxu0 0.0
      %1085 = vmatpush.msra.mxu0 0.0
      %1086 = vmatpush.msra.mxu0 0.0
      %1087 = vmatpush.msra.mxu0 0.0
      %1088 = vmatpush.msra.mxu0 0.0
      %1089 = vmatpush.msra.mxu0 0.0
      %1090 = vmatpush.msra.mxu0 0.0
      %1091 = vmatpush.msra.mxu0 0.0
      %1092 = vmatpush.msra.mxu0 0.0
      %1093 = vmatpush.msra.mxu0 %v973
      %1094 = vmatpush.msra.mxu0 %v972
      %1095 = vmatpush.msra.mxu0 %v971
      %1096 = vmatpush.msra.mxu0 %v970
      %1097 = vmatmul.f32.gmra.mxu0 %v1079
      %v1098 = vpop.f32.mrf.mxu0
      %v1099 = vadd.f32 %v975, %v1098
      %1100 = vdwg.mxu0
      %v1101 = vsub.f32 0.0, %v1099
      %v1102 = vmul.f32 %v1101, 1.442695
      %v1103 = vpow.pop %v1102
      %v1104 = vadd.f32 %v1103, 1.0
      %v1105 = vrcp.pop %v1104
      %v1106 = vmul.f32 %v1104, %v1105
      %v1107 = vsub.f32 1.0, %v1106
      %v1108 = vmul.f32 %v1105, %v1107
      %v1109 = vadd.f32 %v1105, %v1108
      %vm1110 = vweird.f32 %v1104
      %vm1111 = vweird.f32 %v1105
      %vm1112 = vmor %vm1110, %vm1111
      %v1113 = vsel %vm1112, %v1105, %v1109
      %v1114 = vand.u32 2147483647, %v1104
      %vm1115 = vcmp.eq.f32.partialorder %v1114, 8.507059e+37
      %v1116 = vand.u32 %v1104, 2147483648
      %v1117 = vor.u32 1.1754944e-38, %v1116
      %v1118 = vsel %vm1115, %v1117, %v1113
      %v1119 = vmul.f32 1.0, %v1118
      %v1120 = vmul.f32 %v1099, %v1119
      %v1121 = vmul.f32 %v1120, %v1020
      %v1122 = vadd.f32 %v1121, %v1023
      %v1123 = vsel %vm361, %v1122, 0.0
      %v1124 = vrot.slane %v1123, 4
      %v1125 = vadd.f32 %v1123, %v1124
      %v1126 = vrot.slane %v1125, 2
      %v1127 = vadd.f32 %v1125, %v1126
      %v1128 = vrot.slane %v1127, 1
      %v1129 = vadd.f32 %v1127, %v1128
      %v1130 = vadd.f32 %v1032, %v1129
      %v1131 = vmul.f32 %v925, %v897
      %v1132 = vadd.f32 %v1131, 0.0
      %v1133 = vmul.f32 %v930, %v902
      %v1134 = vadd.f32 %v1132, %v1133
      %v1135 = vmul.f32 %v935, %v907
      %v1136 = vadd.f32 %v1134, %v1135
      %v1137 = vmul.f32 %v1045, %v912
      %v1138 = vadd.f32 %v1136, %v1137
      %v1139 = vmul.f32 %v1048, %v917
      %v1140 = vadd.f32 %v1138, %v1139
      %v1141 = vmul.f32 %v1051, %v922
      %v1142 = vadd.f32 %v1140, %v1141
      %v1143 = vld [vmem:[%s760] sm:$0x1f]
      %v1144 = vmul.f32 %v1143, %v927
      %v1145 = vadd.f32 %v1142, %v1144
      %v1146 = vld [vmem:[%s760 + $0x1] sm:$0x1f]
      %v1147 = vmul.f32 %v1146, %v932
      %v1148 = vadd.f32 %v1145, %v1147
      %v1149 = vld [vmem:[%s760 + $0x2] sm:$0x1f]
      %v1150 = vmul.f32 %v1149, %v937
      %v1151 = vadd.f32 %v1148, %v1150
      %v1152 = vadd.f32 %v1151, %v941
      %v1153 = vsub.f32 0.0, %v1152
      %v1154 = vmul.f32 %v1153, 1.442695
      %v1155 = vpow.pop %v1154
      %v1156 = vadd.f32 %v1155, 1.0
      %v1157 = vrcp.pop %v1156
      %v1158 = vmul.f32 %v1156, %v1157
      %v1159 = vsub.f32 1.0, %v1158
      %v1160 = vmul.f32 %v1157, %v1159
      %v1161 = vadd.f32 %v1157, %v1160
      %vm1162 = vweird.f32 %v1156
      %vm1163 = vweird.f32 %v1157
      %vm1164 = vmor %vm1162, %vm1163
      %v1165 = vsel %vm1164, %v1157, %v1161
      %v1166 = vand.u32 2147483647, %v1156
      %vm1167 = vcmp.eq.f32.partialorder %v1166, 8.507059e+37
      %v1168 = vand.u32 %v1156, 2147483648
      %v1169 = vor.u32 1.1754944e-38, %v1168
      %v1170 = vsel %vm1167, %v1169, %v1165
      %v1171 = vmul.f32 1.0, %v1170
      %v1172 = vmul.f32 %v1152, %v1171
      %v1173 = vmul.f32 %v1172, %v964
      %v1174 = vadd.f32 %v1173, %v967
      %v1175 = vadd.f32 %v1174, %v1048
      %v1177 = vsel %vm270, %v1175, 0
      %1179 = vmatpush.msra.mxu0 0.0
      %1180 = vmatpush.msra.mxu0 0.0
      %1181 = vmatpush.msra.mxu0 0.0
      %1182 = vmatpush.msra.mxu0 0.0
      %1183 = vmatpush.msra.mxu0 0.0
      %1184 = vmatpush.msra.mxu0 0.0
      %1185 = vmatpush.msra.mxu0 0.0
      %1186 = vmatpush.msra.mxu0 0.0
      %1187 = vmatpush.msra.mxu0 0.0
      %1188 = vmatpush.msra.mxu0 0.0
      %1189 = vmatpush.msra.mxu0 0.0
      %1190 = vmatpush.msra.mxu0 0.0
      %1191 = vmatpush.msra.mxu0 %v973
      %1192 = vmatpush.msra.mxu0 %v972
      %1193 = vmatpush.msra.mxu0 %v971
      %1194 = vmatpush.msra.mxu0 %v970
      %1195 = vmatmul.f32.gmra.mxu0 %v1177
      %v1196 = vpop.f32.mrf.mxu0
      %v1197 = vadd.f32 %v975, %v1196
      %1198 = vdwg.mxu0
      %v1199 = vsub.f32 0.0, %v1197
      %v1200 = vmul.f32 %v1199, 1.442695
      %v1201 = vpow.pop %v1200
      %v1202 = vadd.f32 %v1201, 1.0
      %v1203 = vrcp.pop %v1202
      %v1204 = vmul.f32 %v1202, %v1203
      %v1205 = vsub.f32 1.0, %v1204
      %v1206 = vmul.f32 %v1203, %v1205
      %v1207 = vadd.f32 %v1203, %v1206
      %vm1208 = vweird.f32 %v1202
      %vm1209 = vweird.f32 %v1203
      %vm1210 = vmor %vm1208, %vm1209
      %v1211 = vsel %vm1210, %v1203, %v1207
      %v1212 = vand.u32 2147483647, %v1202
      %vm1213 = vcmp.eq.f32.partialorder %v1212, 8.507059e+37
      %v1214 = vand.u32 %v1202, 2147483648
      %v1215 = vor.u32 1.1754944e-38, %v1214
      %v1216 = vsel %vm1213, %v1215, %v1211
      %v1217 = vmul.f32 1.0, %v1216
      %v1218 = vmul.f32 %v1197, %v1217
      %v1219 = vmul.f32 %v1218, %v1020
      %v1220 = vadd.f32 %v1219, %v1023
      %v1221 = vsel %vm361, %v1220, 0.0
      %v1222 = vrot.slane %v1221, 4
      %v1223 = vadd.f32 %v1221, %v1222
      %v1224 = vrot.slane %v1223, 2
      %v1225 = vadd.f32 %v1223, %v1224
      %v1226 = vrot.slane %v1225, 1
      %v1227 = vadd.f32 %v1225, %v1226
      %v1228 = vadd.f32 %v1130, %v1227
      %v1229 = vmul.f32 %v1045, %v897
      %v1230 = vadd.f32 %v1229, 0.0
      %v1231 = vmul.f32 %v1048, %v902
      %v1232 = vadd.f32 %v1230, %v1231
      %v1233 = vmul.f32 %v1051, %v907
      %v1234 = vadd.f32 %v1232, %v1233
      %v1235 = vmul.f32 %v1143, %v912
      %v1236 = vadd.f32 %v1234, %v1235
      %v1237 = vmul.f32 %v1146, %v917
      %v1238 = vadd.f32 %v1236, %v1237
      %v1239 = vmul.f32 %v1149, %v922
      %v1240 = vadd.f32 %v1238, %v1239
      %v1241 = vld [vmem:[%s893] sm:$0x1f]
      %v1242 = vmul.f32 %v1241, %v927
      %v1243 = vadd.f32 %v1240, %v1242
      %v1244 = vld [vmem:[%s893 + $0x1] sm:$0x1f]
      %v1245 = vmul.f32 %v1244, %v932
      %v1246 = vadd.f32 %v1243, %v1245
      %v1247 = vld [vmem:[%s893 + $0x2] sm:$0x1f]
      %v1248 = vmul.f32 %v1247, %v937
      %v1249 = vadd.f32 %v1246, %v1248
      %v1250 = vadd.f32 %v1249, %v941
      %v1251 = vsub.f32 0.0, %v1250
      %v1252 = vmul.f32 %v1251, 1.442695
      %v1253 = vpow.pop %v1252
      %v1254 = vadd.f32 %v1253, 1.0
      %v1255 = vrcp.pop %v1254
      %v1256 = vmul.f32 %v1254, %v1255
      %v1257 = vsub.f32 1.0, %v1256
      %v1258 = vmul.f32 %v1255, %v1257
      %v1259 = vadd.f32 %v1255, %v1258
      %vm1260 = vweird.f32 %v1254
      %vm1261 = vweird.f32 %v1255
      %vm1262 = vmor %vm1260, %vm1261
      %v1263 = vsel %vm1262, %v1255, %v1259
      %v1264 = vand.u32 2147483647, %v1254
      %vm1265 = vcmp.eq.f32.partialorder %v1264, 8.507059e+37
      %v1266 = vand.u32 %v1254, 2147483648
      %v1267 = vor.u32 1.1754944e-38, %v1266
      %v1268 = vsel %vm1265, %v1267, %v1263
      %v1269 = vmul.f32 1.0, %v1268
      %v1270 = vmul.f32 %v1250, %v1269
      %v1271 = vmul.f32 %v1270, %v964
      %v1272 = vadd.f32 %v1271, %v967
      %v1273 = vadd.f32 %v1272, %v1146
      %v1275 = vsel %vm270, %v1273, 0
      %1277 = vmatpush.msra.mxu0 0.0
      %1278 = vmatpush.msra.mxu0 0.0
      %1279 = vmatpush.msra.mxu0 0.0
      %1280 = vmatpush.msra.mxu0 0.0
      %1281 = vmatpush.msra.mxu0 0.0
      %1282 = vmatpush.msra.mxu0 0.0
      %1283 = vmatpush.msra.mxu0 0.0
      %1284 = vmatpush.msra.mxu0 0.0
      %1285 = vmatpush.msra.mxu0 0.0
      %1286 = vmatpush.msra.mxu0 0.0
      %1287 = vmatpush.msra.mxu0 0.0
      %1288 = vmatpush.msra.mxu0 0.0
      %1289 = vmatpush.msra.mxu0 %v973
      %1290 = vmatpush.msra.mxu0 %v972
      %1291 = vmatpush.msra.mxu0 %v971
      %1292 = vmatpush.msra.mxu0 %v970
      %1293 = vmatmul.f32.gmra.mxu0 %v1275
      %v1294 = vpop.f32.mrf.mxu0
      %v1295 = vadd.f32 %v975, %v1294
      %1296 = vdwg.mxu0
      %v1297 = vsub.f32 0.0, %v1295
      %v1298 = vmul.f32 %v1297, 1.442695
      %v1299 = vpow.pop %v1298
      %v1300 = vadd.f32 %v1299, 1.0
      %v1301 = vrcp.pop %v1300
      %v1302 = vmul.f32 %v1300, %v1301
      %v1303 = vsub.f32 1.0, %v1302
      %v1304 = vmul.f32 %v1301, %v1303
      %v1305 = vadd.f32 %v1301, %v1304
      %vm1306 = vweird.f32 %v1300
      %vm1307 = vweird.f32 %v1301
      %vm1308 = vmor %vm1306, %vm1307
      %v1309 = vsel %vm1308, %v1301, %v1305
      %v1310 = vand.u32 2147483647, %v1300
      %vm1311 = vcmp.eq.f32.partialorder %v1310, 8.507059e+37
      %v1312 = vand.u32 %v1300, 2147483648
      %v1313 = vor.u32 1.1754944e-38, %v1312
      %v1314 = vsel %vm1311, %v1313, %v1309
      %v1315 = vmul.f32 1.0, %v1314
      %v1316 = vmul.f32 %v1295, %v1315
      %v1317 = vmul.f32 %v1316, %v1020
      %v1318 = vadd.f32 %v1317, %v1023
      %v1319 = vsel %vm361, %v1318, 0.0
      %v1320 = vrot.slane %v1319, 4
      %v1321 = vadd.f32 %v1319, %v1320
      %v1322 = vrot.slane %v1321, 2
      %v1323 = vadd.f32 %v1321, %v1322
      %v1324 = vrot.slane %v1323, 1
      %v1325 = vadd.f32 %v1323, %v1324
      %v1326 = vadd.f32 %v1228, %v1325
      %v1327 = vmul.f32 %v1143, %v897
      %v1328 = vadd.f32 %v1327, 0.0
      %v1329 = vmul.f32 %v1146, %v902
      %v1330 = vadd.f32 %v1328, %v1329
      %v1331 = vmul.f32 %v1149, %v907
      %v1332 = vadd.f32 %v1330, %v1331
      %v1333 = vmul.f32 %v1241, %v912
      %v1334 = vadd.f32 %v1332, %v1333
      %v1335 = vmul.f32 %v1244, %v917
      %v1336 = vadd.f32 %v1334, %v1335
      %v1337 = vmul.f32 %v1247, %v922
      %v1338 = vadd.f32 %v1336, %v1337
      %s1339 = scalar_lea.vmem [#allocation2], 48
      %v1340 = vld [vmem:[%s1339] sm:$0x1f]
      %v1341 = vmul.f32 %v1340, %v927
      %v1342 = vadd.f32 %v1338, %v1341
      %v1343 = vld [vmem:[%s1339 + $0x1] sm:$0x1f]
      %v1344 = vmul.f32 %v1343, %v932
      %v1345 = vadd.f32 %v1342, %v1344
      %v1346 = vld [vmem:[%s1339 + $0x2] sm:$0x1f]
      %v1347 = vmul.f32 %v1346, %v937
      %v1348 = vadd.f32 %v1345, %v1347
      %v1349 = vadd.f32 %v1348, %v941
      %v1350 = vsub.f32 0.0, %v1349
      %v1351 = vmul.f32 %v1350, 1.442695
      %v1352 = vpow.pop %v1351
      %v1353 = vadd.f32 %v1352, 1.0
      %v1354 = vrcp.pop %v1353
      %v1355 = vmul.f32 %v1353, %v1354
      %v1356 = vsub.f32 1.0, %v1355
      %v1357 = vmul.f32 %v1354, %v1356
      %v1358 = vadd.f32 %v1354, %v1357
      %vm1359 = vweird.f32 %v1353
      %vm1360 = vweird.f32 %v1354
      %vm1361 = vmor %vm1359, %vm1360
      %v1362 = vsel %vm1361, %v1354, %v1358
      %v1363 = vand.u32 2147483647, %v1353
      %vm1364 = vcmp.eq.f32.partialorder %v1363, 8.507059e+37
      %v1365 = vand.u32 %v1353, 2147483648
      %v1366 = vor.u32 1.1754944e-38, %v1365
      %v1367 = vsel %vm1364, %v1366, %v1362
      %v1368 = vmul.f32 1.0, %v1367
      %v1369 = vmul.f32 %v1349, %v1368
      %v1370 = vmul.f32 %v1369, %v964
      %v1371 = vadd.f32 %v1370, %v967
      %v1372 = vadd.f32 %v1371, %v1244
      %v1374 = vsel %vm270, %v1372, 0
      %1376 = vmatpush.msra.mxu0 0.0
      %1377 = vmatpush.msra.mxu0 0.0
      %1378 = vmatpush.msra.mxu0 0.0
      %1379 = vmatpush.msra.mxu0 0.0
      %1380 = vmatpush.msra.mxu0 0.0
      %1381 = vmatpush.msra.mxu0 0.0
      %1382 = vmatpush.msra.mxu0 0.0
      %1383 = vmatpush.msra.mxu0 0.0
      %1384 = vmatpush.msra.mxu0 0.0
      %1385 = vmatpush.msra.mxu0 0.0
      %1386 = vmatpush.msra.mxu0 0.0
      %1387 = vmatpush.msra.mxu0 0.0
      %1388 = vmatpush.msra.mxu0 %v973
      %1389 = vmatpush.msra.mxu0 %v972
      %1390 = vmatpush.msra.mxu0 %v971
      %1391 = vmatpush.msra.mxu0 %v970
      %1392 = vmatmul.f32.gmra.mxu0 %v1374
      %v1393 = vpop.f32.mrf.mxu0
      %v1394 = vadd.f32 %v975, %v1393
      %1395 = vdwg.mxu0
      %v1396 = vsub.f32 0.0, %v1394
      %v1397 = vmul.f32 %v1396, 1.442695
      %v1398 = vpow.pop %v1397
      %v1399 = vadd.f32 %v1398, 1.0
      %v1400 = vrcp.pop %v1399
      %v1401 = vmul.f32 %v1399, %v1400
      %v1402 = vsub.f32 1.0, %v1401
      %v1403 = vmul.f32 %v1400, %v1402
      %v1404 = vadd.f32 %v1400, %v1403
      %vm1405 = vweird.f32 %v1399
      %vm1406 = vweird.f32 %v1400
      %vm1407 = vmor %vm1405, %vm1406
      %v1408 = vsel %vm1407, %v1400, %v1404
      %v1409 = vand.u32 2147483647, %v1399
      %vm1410 = vcmp.eq.f32.partialorder %v1409, 8.507059e+37
      %v1411 = vand.u32 %v1399, 2147483648
      %v1412 = vor.u32 1.1754944e-38, %v1411
      %v1413 = vsel %vm1410, %v1412, %v1408
      %v1414 = vmul.f32 1.0, %v1413
      %v1415 = vmul.f32 %v1394, %v1414
      %v1416 = vmul.f32 %v1415, %v1020
      %v1417 = vadd.f32 %v1416, %v1023
      %v1418 = vsel %vm361, %v1417, 0.0
      %v1419 = vrot.slane %v1418, 4
      %v1420 = vadd.f32 %v1418, %v1419
      %v1421 = vrot.slane %v1420, 2
      %v1422 = vadd.f32 %v1420, %v1421
      %v1423 = vrot.slane %v1422, 1
      %v1424 = vadd.f32 %v1422, %v1423
      %v1425 = vadd.f32 %v1326, %v1424
      %v1426 = vmul.f32 %v1425, 0.04
      %vm1427 = vcmask 253952
      %1428 = vst.msk [vmem:[%s220] sm:$0x1] %vm1427, %v1426
      %p1429 = scmp.lt.s32.totalorder %s16, 1
      %s1430 = scalar_select %p1429, %s16, 1
      %s1431 = scalar_lea.vmem %s5, %s1430
      // Predicated region
      $region41: #{multi_seam_forward.4} parent=39 // pred_check
        %p1432 = pneg %p144
      $region42: #{multi_seam_forward.4} parent=39 // pred_check_branch
        %1434 = sbr.rel (%p1432) target = $region44
      $region43: #{multi_seam_forward.4} parent=39 // pred_region
        _
      $region44: #{multi_seam_forward.4} parent=39 // pred_fallthru
        _
    $region40: #{multi_seam_forward.4} parent=5 // pred_fallthru
      _
    %p1435 = scmp.le.s32.totalorder 2, %s11
    // Predicated region
    $region45: #{multi_seam_forward.4} parent=5 // pred_check
      %p1436 = pneg %p1435
    $region46: #{multi_seam_forward.4} parent=5 // pred_check_branch
      %1438 = sbr.rel (%p1436) target = $region48
    $region47: #{multi_seam_forward.4} parent=5 // pred_region
      %s1439 = ssub.s32 %s11, 2
      // Predicated region
      $region49: #{multi_seam_forward.4} parent=47 // pred_check
        %p1440 = pneg %p150
      $region50: #{multi_seam_forward.4} parent=47 // pred_check_branch
        %1442 = sbr.rel (%p1440) target = $region52
      $region51: #{multi_seam_forward.4} parent=47 // pred_region
        %p1443 = scmp.lt.s32.totalorder %s17, 1
        %s1444 = scalar_select %p1443, %s17, 1
        %s1445 = scalar_lea.vmem %s5, %s1444
      $region52: #{multi_seam_forward.4} parent=47 // pred_fallthru
        _
    $region48: #{multi_seam_forward.4} parent=5 // pred_fallthru
      _
  $region6: #{multi_seam_forward.4} parent=0 // loop_footer
    %s15 = sadd.s32 1, %s11
  $region7: #{multi_seam_forward.4} parent=0 // loop_footer_branch
    %10 = sbr.rel target = $region3
  $region8: #{multi_seam_forward.4} parent=0 // loop_exit
    _

// kernel: multi_seam_forward.5
$region0: #{multi_seam_forward.5}
  #allocation0 [shape = 'u32[]', space=smem, size = 0x4, offset = 0x4, fixed_abs, tag = 'smem constant byte address 0x4 - core index']
  #allocation1 [shape = 'u32[72,128]{1,0:T(1,128)}', space=vmem, size = 0x9000, scoped, tag = 'internal scratch']
  #allocation2 [shape = 'f32[5,5,32]{2,1,0:T(8,128)}', space=vmem, size = 0x5000, scoped, tag = 'scratch operand']
  %s0 = inlined_call_operand.vmem [shape: f32[2,3,3,800], index: 0, kind: input, shape index: {}]
  %s1 = inlined_call_operand.vmem [shape: f32[800,32], index: 1, kind: input, shape index: {}]
  %s2 = inlined_call_operand.vmem [shape: f32[9,32], index: 2, kind: input, shape index: {}]
  %s3 = inlined_call_operand.vmem [shape: f32[32,32], index: 3, kind: input, shape index: {}]
  %s4 = inlined_call_operand.vmem [shape: f32[9,32], index: 4, kind: input, shape index: {}]
  %s5 = inlined_call_operand.vmem [shape: f32[2,1,32], index: 5, kind: output, shape index: {}]
  %s6 = sld [smem:[#allocation0]]
  $region53: #{multi_seam_forward.5} parent=0
    _
  %s8 = ssub.s32 1, %s6
  %s9 = scalar_select 0, %s8, %s6
  loop: start=0, step=1, limit=4
  $region2: #{multi_seam_forward.5} parent=0 // loop_pre_header
    _
  $region3: #{multi_seam_forward.5} parent=0 // loop_header
    %s11 = sphi 0, %s15
    %p12 = scmp.ge.s32.totalorder %s11, 4
    %s21 = sphi 0, %s23
    %s24 = sphi 0, %s21
    %s25 = sphi 0, %s24
    %s41 = sphi 0, %s25
    %s45 = sphi 0, %s45
    %s47 = sphi 0, %s45
    %s48 = sphi 0, %s47
    %s62 = sphi 0, %s48
    %s66 = sphi 0, %s66
    %s68 = sphi 0, %s66
    %s69 = sphi 0, %s68
    %s83 = sphi 0, %s69
    %s87 = sphi 0, %s87
    %s89 = sphi 0, %s87
    %s90 = sphi 0, %s89
    %s104 = sphi 0, %s90
    %s108 = sphi 0, %s108
    %s110 = sphi 0, %s108
    %s111 = sphi 0, %s110
    %s125 = sphi 0, %s111
    %s131 = sphi 0, %s133
    %s134 = sphi 0, %s131
    %s135 = sphi 0, %s134
    %s151 = sphi 0, %s135
  $region4: #{multi_seam_forward.5} parent=0 // loop_header_branch
    %14 = sbr.rel (%p12) target = $region8
  $region5: #{multi_seam_forward.5} parent=0 // loop_body
    %s16 = ssub.s32 %s11, 1
    %s17 = ssub.s32 %s11, 2
    %s18 = sadd.s32 %s11, 1
    %s19 = ssub.s32 %s11, %s18
    %p20 = scmp.eq.s32.totalorder %s19, 0
    %s22 = sadd.s32 %s21, 1
    %s23 = scalar_select %p20, %s21, %s22
    %p26 = pneg %p20
    %p27 = scmp.eq.s32.totalorder %s11, 1
    %p28 = por %p26, %p27
    %p29 = scmp.ne.s32.totalorder %s21, %s24
    %p30 = scmp.eq.s32.totalorder %s11, 0
    %p31 = por %p29, %p30
    %p32 = scmp.ne.s32.totalorder %s21, %s24
    %p33 = scmp.eq.s32.totalorder %s16, 1
    %p34 = por %p32, %p33
    %p35 = scmp.ne.s32.totalorder %s24, %s25
    %p36 = scmp.eq.s32.totalorder %s16, 0
    %p37 = por %p35, %p36
    %p38 = scmp.ne.s32.totalorder %s24, %s25
    %p39 = scmp.eq.s32.totalorder %s17, 1
    %p40 = por %p38, %p39
    %p42 = scmp.ne.s32.totalorder %s25, %s41
    %p43 = scmp.eq.s32.totalorder %s17, 0
    %p44 = por %p42, %p43
    %s46 = sadd.s32 %s45, 1
    %p49 = scmp.eq.s32.totalorder %s11, 1
    %p50 = scmp.ne.s32.totalorder %s45, %s47
    %p51 = scmp.eq.s32.totalorder %s11, 0
    %p52 = por %p50, %p51
    %p53 = scmp.ne.s32.totalorder %s45, %s47
    %p54 = scmp.eq.s32.totalorder %s16, 1
    %p55 = por %p53, %p54
    %p56 = scmp.ne.s32.totalorder %s47, %s48
    %p57 = scmp.eq.s32.totalorder %s16, 0
    %p58 = por %p56, %p57
    %p59 = scmp.ne.s32.totalorder %s47, %s48
    %p60 = scmp.eq.s32.totalorder %s17, 1
    %p61 = por %p59, %p60
    %p63 = scmp.ne.s32.totalorder %s48, %s62
    %p64 = scmp.eq.s32.totalorder %s17, 0
    %p65 = por %p63, %p64
    %s67 = sadd.s32 %s66, 1
    %p70 = scmp.eq.s32.totalorder %s11, 1
    %p71 = scmp.ne.s32.totalorder %s66, %s68
    %p72 = scmp.eq.s32.totalorder %s11, 0
    %p73 = por %p71, %p72
    %p74 = scmp.ne.s32.totalorder %s66, %s68
    %p75 = scmp.eq.s32.totalorder %s16, 1
    %p76 = por %p74, %p75
    %p77 = scmp.ne.s32.totalorder %s68, %s69
    %p78 = scmp.eq.s32.totalorder %s16, 0
    %p79 = por %p77, %p78
    %p80 = scmp.ne.s32.totalorder %s68, %s69
    %p81 = scmp.eq.s32.totalorder %s17, 1
    %p82 = por %p80, %p81
    %p84 = scmp.ne.s32.totalorder %s69, %s83
    %p85 = scmp.eq.s32.totalorder %s17, 0
    %p86 = por %p84, %p85
    %s88 = sadd.s32 %s87, 1
    %p91 = scmp.eq.s32.totalorder %s11, 1
    %p92 = scmp.ne.s32.totalorder %s87, %s89
    %p93 = scmp.eq.s32.totalorder %s11, 0
    %p94 = por %p92, %p93
    %p95 = scmp.ne.s32.totalorder %s87, %s89
    %p96 = scmp.eq.s32.totalorder %s16, 1
    %p97 = por %p95, %p96
    %p98 = scmp.ne.s32.totalorder %s89, %s90
    %p99 = scmp.eq.s32.totalorder %s16, 0
    %p100 = por %p98, %p99
    %p101 = scmp.ne.s32.totalorder %s89, %s90
    %p102 = scmp.eq.s32.totalorder %s17, 1
    %p103 = por %p101, %p102
    %p105 = scmp.ne.s32.totalorder %s90, %s104
    %p106 = scmp.eq.s32.totalorder %s17, 0
    %p107 = por %p105, %p106
    %s109 = sadd.s32 %s108, 1
    %p112 = scmp.eq.s32.totalorder %s11, 1
    %p113 = scmp.ne.s32.totalorder %s108, %s110
    %p114 = scmp.eq.s32.totalorder %s11, 0
    %p115 = por %p113, %p114
    %p116 = scmp.ne.s32.totalorder %s108, %s110
    %p117 = scmp.eq.s32.totalorder %s16, 1
    %p118 = por %p116, %p117
    %p119 = scmp.ne.s32.totalorder %s110, %s111
    %p120 = scmp.eq.s32.totalorder %s16, 0
    %p121 = por %p119, %p120
    %p122 = scmp.ne.s32.totalorder %s110, %s111
    %p123 = scmp.eq.s32.totalorder %s17, 1
    %p124 = por %p122, %p123
    %p126 = scmp.ne.s32.totalorder %s111, %s125
    %p127 = scmp.eq.s32.totalorder %s17, 0
    %p128 = por %p126, %p127
    %s129 = ssub.s32 %s11, %s18
    %p130 = scmp.eq.s32.totalorder %s129, 0
    %s132 = sadd.s32 %s131, 1
    %s133 = scalar_select %p130, %s131, %s132
    %p136 = pneg %p130
    %p137 = scmp.eq.s32.totalorder %s11, 1
    %p138 = por %p136, %p137
    %p139 = scmp.ne.s32.totalorder %s131, %s134
    %p140 = scmp.eq.s32.totalorder %s11, 0
    %p141 = por %p139, %p140
    %p142 = scmp.ne.s32.totalorder %s131, %s134
    %p143 = scmp.eq.s32.totalorder %s16, 1
    %p144 = por %p142, %p143
    %p145 = scmp.ne.s32.totalorder %s134, %s135
    %p146 = scmp.eq.s32.totalorder %s16, 0
    %p147 = por %p145, %p146
    %p148 = scmp.ne.s32.totalorder %s134, %s135
    %p149 = scmp.eq.s32.totalorder %s17, 1
    %p150 = por %p148, %p149
    %p152 = scmp.ne.s32.totalorder %s135, %s151
    %p153 = scmp.eq.s32.totalorder %s17, 0
    %p154 = por %p152, %p153
    %p155 = scmp.le.s32.totalorder 1, %s11
    %p156 = scmp.lt.s32.totalorder %s11, 3
    %p157 = pnand %p155, %p156
    %p158 = pneg %p157
    // Predicated region
    $region9: #{multi_seam_forward.5} parent=5 // pred_check
      _
    $region10: #{multi_seam_forward.5} parent=5 // pred_check_branch
      %160 = sbr.rel (%p157) target = $region12
    $region11: #{multi_seam_forward.5} parent=5 // pred_region
      %s161 = ssub.s32 %s11, 1
      // Predicated region
      $region13: #{multi_seam_forward.5} parent=11 // pred_check
        %p162 = pneg %p58
      $region14: #{multi_seam_forward.5} parent=11 // pred_check_branch
        %164 = sbr.rel (%p162) target = $region16
      $region15: #{multi_seam_forward.5} parent=11 // pred_region
        _
      $region16: #{multi_seam_forward.5} parent=11 // pred_fallthru
        _
      // Predicated region
      $region17: #{multi_seam_forward.5} parent=11 // pred_check
        %p165 = pneg %p79
      $region18: #{multi_seam_forward.5} parent=11 // pred_check_branch
        %167 = sbr.rel (%p165) target = $region20
      $region19: #{multi_seam_forward.5} parent=11 // pred_region
        _
      $region20: #{multi_seam_forward.5} parent=11 // pred_fallthru
        _
      // Predicated region
      $region21: #{multi_seam_forward.5} parent=11 // pred_check
        %p168 = pneg %p100
      $region22: #{multi_seam_forward.5} parent=11 // pred_check_branch
        %170 = sbr.rel (%p168) target = $region24
      $region23: #{multi_seam_forward.5} parent=11 // pred_region
        _
      $region24: #{multi_seam_forward.5} parent=11 // pred_fallthru
        _
      // Predicated region
      $region25: #{multi_seam_forward.5} parent=11 // pred_check
        %p171 = pneg %p121
      $region26: #{multi_seam_forward.5} parent=11 // pred_check_branch
        %173 = sbr.rel (%p171) target = $region28
      $region27: #{multi_seam_forward.5} parent=11 // pred_region
        _
      $region28: #{multi_seam_forward.5} parent=11 // pred_fallthru
        _
    $region12: #{multi_seam_forward.5} parent=5 // pred_fallthru
      _
    %p174 = scmp.lt.s32.totalorder %s11, 2
    // Predicated region
    $region29: #{multi_seam_forward.5} parent=5 // pred_check
      %p175 = pneg %p174
    $region30: #{multi_seam_forward.5} parent=5 // pred_check_branch
      %177 = sbr.rel (%p175) target = $region32
    $region31: #{multi_seam_forward.5} parent=5 // pred_region
      // Predicated region
      $region33: #{multi_seam_forward.5} parent=31 // pred_check
        %p178 = pneg %p31
      $region34: #{multi_seam_forward.5} parent=31 // pred_check_branch
        %180 = sbr.rel (%p178) target = $region36
      $region35: #{multi_seam_forward.5} parent=31 // pred_region
        %p181 = scmp.lt.s32.totalorder %s11, 1
        %s182 = scalar_select %p181, %s11, 1
        %s183 = smul.addr %s182, 21
        %s184 = smul.addr %s183, 4
        %s185 = scalar_lea.vmem %s0, %s184
      $region36: #{multi_seam_forward.5} parent=31 // pred_fallthru
        _
    $region32: #{multi_seam_forward.5} parent=5 // pred_fallthru
      _
    %p186 = scmp.le.s32.totalorder 1, %s11
    %p187 = scmp.lt.s32.totalorder %s11, 3
    %p188 = pnand %p186, %p187
    %p189 = pneg %p188
    // Predicated region
    $region37: #{multi_seam_forward.5} parent=5 // pred_check
      _
    $region38: #{multi_seam_forward.5} parent=5 // pred_check_branch
      %191 = sbr.rel (%p188) target = $region40
    $region39: #{multi_seam_forward.5} parent=5 // pred_region
      %s192 = ssub.s32 %s11, 1
      %p193 = scmp.lt.s32.totalorder %s16, 1
      %s194 = scalar_select %p193, %s16, 1
      %s195 = smul.addr %s194, 21
      %s196 = smul.addr %s195, 4
      %s197 = scalar_lea.vmem %s0, %s196
      %p198 = pneg %p37
      %p199 = pneg %p34
      %p200 = pneg %p58
      %p201 = pneg %p55
      %p202 = pneg %p79
      %p203 = pneg %p76
      %p204 = pneg %p100
      %p205 = pneg %p97
      %p206 = pneg %p121
      %p207 = pneg %p118
      %p208 = pneg %p147
      %p209 = pneg %p144
      %p210 = scmp.lt.s32.totalorder %s16, 1
      %s211 = scalar_select %p210, %s16, 1
      %s212 = scalar_lea.vmem %s5, %s211
      %p213 = scmp.lt.s32.totalorder %s16, 1
      %s214 = scalar_select %p213, %s16, 1
      %s215 = smul.addr %s214, 21
      %s216 = smul.addr %s215, 4
      %s217 = scalar_lea.vmem %s0, %s216
      %p218 = scmp.lt.s32.totalorder %s16, 1
      %s219 = scalar_select %p218, %s16, 1
      %s220 = scalar_lea.vmem %s5, %s219
      %vm221 = vcmask 258048
      %222 = vst.msk [vmem:[#allocation2] sm:$0x1f] %vm221, 0.0
      %223 = vst.msk [vmem:[#allocation2 + $0x8] sm:$0x1f] %vm221, 0.0
      %224 = vst.msk [vmem:[#allocation2 + $0x10] sm:$0x1f] %vm221, 0.0
      %225 = vst.msk [vmem:[#allocation2 + $0x18] sm:$0x1f] %vm221, 0.0
      %226 = vst.msk [vmem:[#allocation2 + $0x20] sm:$0x1f] %vm221, 0.0
      %v227 = vld [vmem:[%s217] sm:$0x77]
      %v228 = vld [vmem:[%s217 + $0x8] sm:$0x77]
      %v229 = vld [vmem:[%s217 + $0x10] sm:$0x77]
      %v230 = vld [vmem:[%s217 + $0x18] sm:$0x7]
      %v231 = vld [vmem:[%s1] sm:$0xff]
      %v232 = vld [vmem:[%s1 + $0x8] sm:$0xff]
      %v233 = vld [vmem:[%s1 + $0x10] sm:$0xff]
      %v234 = vld [vmem:[%s1 + $0x18] sm:$0xff]
      %v235 = vld [vmem:[%s1 + $0x20] sm:$0xff]
      %v236 = vld [vmem:[%s1 + $0x28] sm:$0xff]
      %v237 = vld [vmem:[%s1 + $0x30] sm:$0xff]
      %v238 = vld [vmem:[%s1 + $0x38] sm:$0xff]
      %v239 = vld [vmem:[%s1 + $0x40] sm:$0xff]
      %v240 = vld [vmem:[%s1 + $0x48] sm:$0xff]
      %v241 = vld [vmem:[%s1 + $0x50] sm:$0xff]
      %v242 = vld [vmem:[%s1 + $0x58] sm:$0xff]
      %v243 = vld [vmem:[%s1 + $0x60] sm:$0xff]
      %v244 = vld [vmem:[%s1 + $0x68] sm:$0xff]
      %v245 = vld [vmem:[%s1 + $0x70] sm:$0xff]
      %v246 = vld [vmem:[%s1 + $0x78] sm:$0xff]
      %v247 = vld [vmem:[%s1 + $0x80] sm:$0xff]
      %v248 = vld [vmem:[%s1 + $0x88] sm:$0xff]
      %v249 = vld [vmem:[%s1 + $0x90] sm:$0xff]
      %v250 = vld [vmem:[%s1 + $0x98] sm:$0xff]
      %v251 = vld [vmem:[%s1 + $0xa0] sm:$0xff]
      %v252 = vld [vmem:[%s1 + $0xa8] sm:$0xff]
      %v253 = vld [vmem:[%s1 + $0xb0] sm:$0xff]
      %v254 = vld [vmem:[%s1 + $0xb8] sm:$0xff]
      %v255 = vld [vmem:[%s1 + $0xc0] sm:$0xff]
      %v256 = vld [vmem:[%s1 + $0xc8] sm:$0xff]
      %v257 = vld [vmem:[%s1 + $0xd0] sm:$0xff]
      %v258 = vld [vmem:[%s1 + $0xd8] sm:$0xff]
      %v259 = vld [vmem:[%s1 + $0xe0] sm:$0xff]
      %v260 = vld [vmem:[%s1 + $0xe8] sm:$0xff]
      %v261 = vld [vmem:[%s1 + $0xf0] sm:$0xff]
      %v262 = vld [vmem:[%s1 + $0xf8] sm:$0xff]
      %v263 = vld [vmem:[%s1 + $0x100] sm:$0xff]
      %v264 = vld [vmem:[%s1 + $0x108] sm:$0xff]
      %v265 = vld [vmem:[%s1 + $0x110] sm:$0xff]
      %v266 = vld [vmem:[%s1 + $0x118] sm:$0xff]
      %v267 = vld [vmem:[%s1 + $0x120] sm:$0xff]
      %v268 = vld [vmem:[%s1 + $0x128] sm:$0xff]
      %v269 = vld [vmem:[%s1 + $0x130] sm:$0xff]
      %v270 = vld [vmem:[%s1 + $0x138] sm:$0xff]
      %v271 = vld [vmem:[%s1 + $0x140] sm:$0xff]
      %v272 = vld [vmem:[%s1 + $0x148] sm:$0xff]
      %v273 = vld [vmem:[%s1 + $0x150] sm:$0xff]
      %v274 = vld [vmem:[%s1 + $0x158] sm:$0xff]
      %v275 = vld [vmem:[%s1 + $0x160] sm:$0xff]
      %v276 = vld [vmem:[%s1 + $0x168] sm:$0xff]
      %v277 = vld [vmem:[%s1 + $0x170] sm:$0xff]
      %v278 = vld [vmem:[%s1 + $0x178] sm:$0xff]
      %v279 = vld [vmem:[%s1 + $0x180] sm:$0xff]
      %v280 = vld [vmem:[%s1 + $0x188] sm:$0xff]
      %v281 = vld [vmem:[%s1 + $0x190] sm:$0xff]
      %v282 = vld [vmem:[%s1 + $0x198] sm:$0xff]
      %v283 = vld [vmem:[%s1 + $0x1a0] sm:$0xff]
      %v284 = vld [vmem:[%s1 + $0x1a8] sm:$0xff]
      %v285 = vld [vmem:[%s1 + $0x1b0] sm:$0xff]
      %v286 = vld [vmem:[%s1 + $0x1b8] sm:$0xff]
      %v287 = vld [vmem:[%s1 + $0x1c0] sm:$0xff]
      %v288 = vld [vmem:[%s1 + $0x1c8] sm:$0xff]
      %v289 = vld [vmem:[%s1 + $0x1d0] sm:$0xff]
      %v290 = vld [vmem:[%s1 + $0x1d8] sm:$0xff]
      %v291 = vld [vmem:[%s1 + $0x1e0] sm:$0xff]
      %v292 = vld [vmem:[%s1 + $0x1e8] sm:$0xff]
      %v293 = vld [vmem:[%s1 + $0x1f0] sm:$0xff]
      %v294 = vld [vmem:[%s1 + $0x1f8] sm:$0xff]
      %v295 = vld [vmem:[%s1 + $0x200] sm:$0xff]
      %v296 = vld [vmem:[%s1 + $0x208] sm:$0xff]
      %v297 = vld [vmem:[%s1 + $0x210] sm:$0xff]
      %v298 = vld [vmem:[%s1 + $0x218] sm:$0xff]
      %v299 = vld [vmem:[%s1 + $0x220] sm:$0xff]
      %v300 = vld [vmem:[%s1 + $0x228] sm:$0xff]
      %v301 = vld [vmem:[%s1 + $0x230] sm:$0xff]
      %v302 = vld [vmem:[%s1 + $0x238] sm:$0xff]
      %v303 = vld [vmem:[%s1 + $0x240] sm:$0xff]
      %v304 = vld [vmem:[%s1 + $0x248] sm:$0xff]
      %v305 = vld [vmem:[%s1 + $0x250] sm:$0xff]
      %v306 = vld [vmem:[%s1 + $0x258] sm:$0xff]
      %v307 = vld [vmem:[%s1 + $0x260] sm:$0xff]
      %v308 = vld [vmem:[%s1 + $0x268] sm:$0xff]
      %v309 = vld [vmem:[%s1 + $0x270] sm:$0xff]
      %v310 = vld [vmem:[%s1 + $0x278] sm:$0xff]
      %v311 = vld [vmem:[%s1 + $0x280] sm:$0xff]
      %v312 = vld [vmem:[%s1 + $0x288] sm:$0xff]
      %v313 = vld [vmem:[%s1 + $0x290] sm:$0xff]
      %v314 = vld [vmem:[%s1 + $0x298] sm:$0xff]
      %v315 = vld [vmem:[%s1 + $0x2a0] sm:$0xff]
      %v316 = vld [vmem:[%s1 + $0x2a8] sm:$0xff]
      %v317 = vld [vmem:[%s1 + $0x2b0] sm:$0xff]
      %v318 = vld [vmem:[%s1 + $0x2b8] sm:$0xff]
      %v319 = vld [vmem:[%s1 + $0x2c0] sm:$0xff]
      %v320 = vld [vmem:[%s1 + $0x2c8] sm:$0xff]
      %v321 = vld [vmem:[%s1 + $0x2d0] sm:$0xff]
      %v322 = vld [vmem:[%s1 + $0x2d8] sm:$0xff]
      %v323 = vld [vmem:[%s1 + $0x2e0] sm:$0xff]
      %v324 = vld [vmem:[%s1 + $0x2e8] sm:$0xff]
      %v325 = vld [vmem:[%s1 + $0x2f0] sm:$0xff]
      %v326 = vld [vmem:[%s1 + $0x2f8] sm:$0xff]
      %v327 = vld [vmem:[%s1 + $0x300] sm:$0xff]
      %v328 = vld [vmem:[%s1 + $0x308] sm:$0xff]
      %v329 = vld [vmem:[%s1 + $0x310] sm:$0xff]
      %v330 = vld [vmem:[%s1 + $0x318] sm:$0xff]
      %v331 = vld [vmem:[%s4] sm:$0x1]
      %v332 = vperm.slane %v331, 0
      %337 = vst [vmem:[#allocation1] ss:$2 sm:$0xff] %v227
      %s338 = scalar_lea.vmem [#allocation1], 16
      %339 = vst [vmem:[%s338] ss:$2 sm:$0xff] %v228
      %s340 = scalar_lea.vmem [#allocation1], 32
      %341 = vst [vmem:[%s340] ss:$2 sm:$0xff] %v229
      %s342 = scalar_lea.vmem [#allocation1], 48
      %343 = vst [vmem:[%s342] ss:$2 sm:$0xff] %v230
      %v344 = vld.sshfl [vmem:[#allocation1] sm:$0xff pattern:$0x75316420]
      %v345 = vld.sshfl [vmem:[#allocation1 + $0x8] sm:$0xff pattern:$0x75316420]
      %v346 = vld.sshfl [vmem:[#allocation1 + $0x10] sm:$0xff pattern:$0x75316420]
      %v347 = vld.sshfl [vmem:[#allocation1 + $0x18] sm:$0xff pattern:$0x75316420]
      %v348 = vld.sshfl [vmem:[#allocation1 + $0x20] sm:$0xff pattern:$0x75316420]
      %v349 = vld.sshfl [vmem:[#allocation1 + $0x28] sm:$0xff pattern:$0x75316420]
      %v350 = vld.sshfl [vmem:[#allocation1 + $0x30] sm:$0xff pattern:$0x75316420]
      %vm357 = vcmask 261120
      %v358 = vsel %vm357, %v350, 0
      %360 = vmatpush.msra.mxu0 %v246
      %361 = vmatpush.msra.mxu0 %v245
      %362 = vmatpush.msra.mxu0 %v244
      %363 = vmatpush.msra.mxu0 %v243
      %364 = vmatpush.msra.mxu0 %v242
      %365 = vmatpush.msra.mxu0 %v241
      %366 = vmatpush.msra.mxu0 %v240
      %367 = vmatpush.msra.mxu0 %v239
      %368 = vmatpush.msra.mxu0 %v238
      %369 = vmatpush.msra.mxu0 %v237
      %370 = vmatpush.msra.mxu0 %v236
      %371 = vmatpush.msra.mxu0 %v235
      %372 = vmatpush.msra.mxu0 %v234
      %373 = vmatpush.msra.mxu0 %v233
      %374 = vmatpush.msra.mxu0 %v232
      %375 = vmatpush.msra.mxu0 %v231
      %376 = vmatmul.f32.gmra.mxu0 %v344
      %v377 = vpop.f32.mrf.mxu0
      %v378 = vadd.f32 %v332, %v377
      %379 = vdwg.mxu0
      %380 = vmatpush.msra.mxu0 %v262
      %381 = vmatpush.msra.mxu0 %v261
      %382 = vmatpush.msra.mxu0 %v260
      %383 = vmatpush.msra.mxu0 %v259
      %384 = vmatpush.msra.mxu0 %v258
      %385 = vmatpush.msra.mxu0 %v257
      %386 = vmatpush.msra.mxu0 %v256
      %387 = vmatpush.msra.mxu0 %v255
      %388 = vmatpush.msra.mxu0 %v254
      %389 = vmatpush.msra.mxu0 %v253
      %390 = vmatpush.msra.mxu0 %v252
      %391 = vmatpush.msra.mxu0 %v251
      %392 = vmatpush.msra.mxu0 %v250
      %393 = vmatpush.msra.mxu0 %v249
      %394 = vmatpush.msra.mxu0 %v248
      %395 = vmatpush.msra.mxu0 %v247
      %396 = vmatmul.f32.gmra.mxu0 %v345
      %v397 = vpop.f32.mrf.mxu0
      %v398 = vadd.f32 %v378, %v397
      %399 = vdwg.mxu0
      %400 = vmatpush.msra.mxu0 %v278
      %401 = vmatpush.msra.mxu0 %v277
      %402 = vmatpush.msra.mxu0 %v276
      %403 = vmatpush.msra.mxu0 %v275
      %404 = vmatpush.msra.mxu0 %v274
      %405 = vmatpush.msra.mxu0 %v273
      %406 = vmatpush.msra.mxu0 %v272
      %407 = vmatpush.msra.mxu0 %v271
      %408 = vmatpush.msra.mxu0 %v270
      %409 = vmatpush.msra.mxu0 %v269
      %410 = vmatpush.msra.mxu0 %v268
      %411 = vmatpush.msra.mxu0 %v267
      %412 = vmatpush.msra.mxu0 %v266
      %413 = vmatpush.msra.mxu0 %v265
      %414 = vmatpush.msra.mxu0 %v264
      %415 = vmatpush.msra.mxu0 %v263
      %416 = vmatmul.f32.gmra.mxu0 %v346
      %v417 = vpop.f32.mrf.mxu0
      %v418 = vadd.f32 %v398, %v417
      %419 = vdwg.mxu0
      %420 = vmatpush.msra.mxu0 %v294
      %421 = vmatpush.msra.mxu0 %v293
      %422 = vmatpush.msra.mxu0 %v292
      %423 = vmatpush.msra.mxu0 %v291
      %424 = vmatpush.msra.mxu0 %v290
      %425 = vmatpush.msra.mxu0 %v289
      %426 = vmatpush.msra.mxu0 %v288
      %427 = vmatpush.msra.mxu0 %v287
      %428 = vmatpush.msra.mxu0 %v286
      %429 = vmatpush.msra.mxu0 %v285
      %430 = vmatpush.msra.mxu0 %v284
      %431 = vmatpush.msra.mxu0 %v283
      %432 = vmatpush.msra.mxu0 %v282
      %433 = vmatpush.msra.mxu0 %v281
      %434 = vmatpush.msra.mxu0 %v280
      %435 = vmatpush.msra.mxu0 %v279
      %436 = vmatmul.f32.gmra.mxu0 %v347
      %v437 = vpop.f32.mrf.mxu0
      %v438 = vadd.f32 %v418, %v437
      %439 = vdwg.mxu0
      %440 = vmatpush.msra.mxu0 %v310
      %441 = vmatpush.msra.mxu0 %v309
      %442 = vmatpush.msra.mxu0 %v308
      %443 = vmatpush.msra.mxu0 %v307
      %444 = vmatpush.msra.mxu0 %v306
      %445 = vmatpush.msra.mxu0 %v305
      %446 = vmatpush.msra.mxu0 %v304
      %447 = vmatpush.msra.mxu0 %v303
      %448 = vmatpush.msra.mxu0 %v302
      %449 = vmatpush.msra.mxu0 %v301
      %450 = vmatpush.msra.mxu0 %v300
      %451 = vmatpush.msra.mxu0 %v299
      %452 = vmatpush.msra.mxu0 %v298
      %453 = vmatpush.msra.mxu0 %v297
      %454 = vmatpush.msra.mxu0 %v296
      %455 = vmatpush.msra.mxu0 %v295
      %456 = vmatmul.f32.gmra.mxu0 %v348
      %v457 = vpop.f32.mrf.mxu0
      %v458 = vadd.f32 %v438, %v457
      %459 = vdwg.mxu0
      %460 = vmatpush.msra.mxu0 %v326
      %461 = vmatpush.msra.mxu0 %v325
      %462 = vmatpush.msra.mxu0 %v324
      %463 = vmatpush.msra.mxu0 %v323
      %464 = vmatpush.msra.mxu0 %v322
      %465 = vmatpush.msra.mxu0 %v321
      %466 = vmatpush.msra.mxu0 %v320
      %467 = vmatpush.msra.mxu0 %v319
      %468 = vmatpush.msra.mxu0 %v318
      %469 = vmatpush.msra.mxu0 %v317
      %470 = vmatpush.msra.mxu0 %v316
      %471 = vmatpush.msra.mxu0 %v315
      %472 = vmatpush.msra.mxu0 %v314
      %473 = vmatpush.msra.mxu0 %v313
      %474 = vmatpush.msra.mxu0 %v312
      %475 = vmatpush.msra.mxu0 %v311
      %476 = vmatmul.f32.gmra.mxu0 %v349
      %v477 = vpop.f32.mrf.mxu0
      %v478 = vadd.f32 %v458, %v477
      %479 = vdwg.mxu0
      %480 = vmatpush.msra.mxu0 0.0
      %481 = vmatpush.msra.mxu0 0.0
      %482 = vmatpush.msra.mxu0 0.0
      %483 = vmatpush.msra.mxu0 0.0
      %484 = vmatpush.msra.mxu0 0.0
      %485 = vmatpush.msra.mxu0 0.0
      %486 = vmatpush.msra.mxu0 0.0
      %487 = vmatpush.msra.mxu0 0.0
      %488 = vmatpush.msra.mxu0 0.0
      %489 = vmatpush.msra.mxu0 0.0
      %490 = vmatpush.msra.mxu0 0.0
      %491 = vmatpush.msra.mxu0 0.0
      %492 = vmatpush.msra.mxu0 %v330
      %493 = vmatpush.msra.mxu0 %v329
      %494 = vmatpush.msra.mxu0 %v328
      %495 = vmatpush.msra.mxu0 %v327
      %496 = vmatmul.f32.gmra.mxu0 %v358
      %v497 = vpop.f32.mrf.mxu0
      %v498 = vadd.f32 %v478, %v497
      %499 = vdwg.mxu0
      %v500 = vsub.f32 0.0, %v498
      %v501 = vmul.f32 %v500, 1.442695
      %v502 = vpow.pop %v501
      %v503 = vadd.f32 %v502, 1.0
      %v504 = vrcp.pop %v503
      %v505 = vmul.f32 %v503, %v504
      %v506 = vsub.f32 1.0, %v505
      %v507 = vmul.f32 %v504, %v506
      %v508 = vadd.f32 %v504, %v507
      %vm509 = vweird.f32 %v503
      %vm510 = vweird.f32 %v504
      %vm511 = vmor %vm509, %vm510
      %v512 = vsel %vm511, %v504, %v508
      %v513 = vand.u32 2147483647, %v503
      %vm514 = vcmp.eq.f32.partialorder %v513, 8.507059e+37
      %v515 = vand.u32 %v503, 2147483648
      %v516 = vor.u32 1.1754944e-38, %v515
      %v517 = vsel %vm514, %v516, %v512
      %v518 = vmul.f32 1.0, %v517
      %v519 = vmul.f32 %v498, %v518
      %v520 = vld [vmem:[%s4 + $0x1] sm:$0x1]
      %v521 = vperm.slane %v520, 0
      %v522 = vmul.f32 %v519, %v521
      %v523 = vld [vmem:[%s4 + $0x2] sm:$0x1]
      %v524 = vperm.slane %v523, 0
      %v525 = vadd.f32 %v522, %v524
      %s526 = scalar_lea.vmem [#allocation2], 8
      %vm527 = vcmask 256000
      %528 = vst.msk [vmem:[%s526 + $0x1] sm:$0x7] %vm527, %v525
      %s529 = scalar_lea.vmem %s217, 28
      %v530 = vld [vmem:[%s529] sm:$0x77]
      %v531 = vld [vmem:[%s529 + $0x8] sm:$0x77]
      %v532 = vld [vmem:[%s529 + $0x10] sm:$0x77]
      %v533 = vld [vmem:[%s529 + $0x18] sm:$0x7]
      %v534 = vld [vmem:[%s1] sm:$0xff]
      %v535 = vld [vmem:[%s1 + $0x8] sm:$0xff]
      %v536 = vld [vmem:[%s1 + $0x10] sm:$0xff]
      %v537 = vld [vmem:[%s1 + $0x18] sm:$0xff]
      %v538 = vld [vmem:[%s1 + $0x20] sm:$0xff]
      %v539 = vld [vmem:[%s1 + $0x28] sm:$0xff]
      %v540 = vld [vmem:[%s1 + $0x30] sm:$0xff]
      %v541 = vld [vmem:[%s1 + $0x38] sm:$0xff]
      %v542 = vld [vmem:[%s1 + $0x40] sm:$0xff]
      %v543 = vld [vmem:[%s1 + $0x48] sm:$0xff]
      %v544 = vld [vmem:[%s1 + $0x50] sm:$0xff]
      %v545 = vld [vmem:[%s1 + $0x58] sm:$0xff]
      %v546 = vld [vmem:[%s1 + $0x60] sm:$0xff]
      %v547 = vld [vmem:[%s1 + $0x68] sm:$0xff]
      %v548 = vld [vmem:[%s1 + $0x70] sm:$0xff]
      %v549 = vld [vmem:[%s1 + $0x78] sm:$0xff]
      %v550 = vld [vmem:[%s1 + $0x80] sm:$0xff]
      %v551 = vld [vmem:[%s1 + $0x88] sm:$0xff]
      %v552 = vld [vmem:[%s1 + $0x90] sm:$0xff]
      %v553 = vld [vmem:[%s1 + $0x98] sm:$0xff]
      %v554 = vld [vmem:[%s1 + $0xa0] sm:$0xff]
      %v555 = vld [vmem:[%s1 + $0xa8] sm:$0xff]
      %v556 = vld [vmem:[%s1 + $0xb0] sm:$0xff]
      %v557 = vld [vmem:[%s1 + $0xb8] sm:$0xff]
      %v558 = vld [vmem:[%s1 + $0xc0] sm:$0xff]
      %v559 = vld [vmem:[%s1 + $0xc8] sm:$0xff]
      %v560 = vld [vmem:[%s1 + $0xd0] sm:$0xff]
      %v561 = vld [vmem:[%s1 + $0xd8] sm:$0xff]
      %v562 = vld [vmem:[%s1 + $0xe0] sm:$0xff]
      %v563 = vld [vmem:[%s1 + $0xe8] sm:$0xff]
      %v564 = vld [vmem:[%s1 + $0xf0] sm:$0xff]
      %v565 = vld [vmem:[%s1 + $0xf8] sm:$0xff]
      %v566 = vld [vmem:[%s1 + $0x100] sm:$0xff]
      %v567 = vld [vmem:[%s1 + $0x108] sm:$0xff]
      %v568 = vld [vmem:[%s1 + $0x110] sm:$0xff]
      %v569 = vld [vmem:[%s1 + $0x118] sm:$0xff]
      %v570 = vld [vmem:[%s1 + $0x120] sm:$0xff]
      %v571 = vld [vmem:[%s1 + $0x128] sm:$0xff]
      %v572 = vld [vmem:[%s1 + $0x130] sm:$0xff]
      %v573 = vld [vmem:[%s1 + $0x138] sm:$0xff]
      %v574 = vld [vmem:[%s1 + $0x140] sm:$0xff]
      %v575 = vld [vmem:[%s1 + $0x148] sm:$0xff]
      %v576 = vld [vmem:[%s1 + $0x150] sm:$0xff]
      %v577 = vld [vmem:[%s1 + $0x158] sm:$0xff]
      %v578 = vld [vmem:[%s1 + $0x160] sm:$0xff]
      %v579 = vld [vmem:[%s1 + $0x168] sm:$0xff]
      %v580 = vld [vmem:[%s1 + $0x170] sm:$0xff]
      %v581 = vld [vmem:[%s1 + $0x178] sm:$0xff]
      %v582 = vld [vmem:[%s1 + $0x180] sm:$0xff]
      %v583 = vld [vmem:[%s1 + $0x188] sm:$0xff]
      %v584 = vld [vmem:[%s1 + $0x190] sm:$0xff]
      %v585 = vld [vmem:[%s1 + $0x198] sm:$0xff]
      %v586 = vld [vmem:[%s1 + $0x1a0] sm:$0xff]
      %v587 = vld [vmem:[%s1 + $0x1a8] sm:$0xff]
      %v588 = vld [vmem:[%s1 + $0x1b0] sm:$0xff]
      %v589 = vld [vmem:[%s1 + $0x1b8] sm:$0xff]
      %v590 = vld [vmem:[%s1 + $0x1c0] sm:$0xff]
      %v591 = vld [vmem:[%s1 + $0x1c8] sm:$0xff]
      %v592 = vld [vmem:[%s1 + $0x1d0] sm:$0xff]
      %v593 = vld [vmem:[%s1 + $0x1d8] sm:$0xff]
      %v594 = vld [vmem:[%s1 + $0x1e0] sm:$0xff]
      %v595 = vld [vmem:[%s1 + $0x1e8] sm:$0xff]
      %v596 = vld [vmem:[%s1 + $0x1f0] sm:$0xff]
      %v597 = vld [vmem:[%s1 + $0x1f8] sm:$0xff]
      %v598 = vld [vmem:[%s1 + $0x200] sm:$0xff]
      %v599 = vld [vmem:[%s1 + $0x208] sm:$0xff]
      %v600 = vld [vmem:[%s1 + $0x210] sm:$0xff]
      %v601 = vld [vmem:[%s1 + $0x218] sm:$0xff]
      %v602 = vld [vmem:[%s1 + $0x220] sm:$0xff]
      %v603 = vld [vmem:[%s1 + $0x228] sm:$0xff]
      %v604 = vld [vmem:[%s1 + $0x230] sm:$0xff]
      %v605 = vld [vmem:[%s1 + $0x238] sm:$0xff]
      %v606 = vld [vmem:[%s1 + $0x240] sm:$0xff]
      %v607 = vld [vmem:[%s1 + $0x248] sm:$0xff]
      %v608 = vld [vmem:[%s1 + $0x250] sm:$0xff]
      %v609 = vld [vmem:[%s1 + $0x258] sm:$0xff]
      %v610 = vld [vmem:[%s1 + $0x260] sm:$0xff]
      %v611 = vld [vmem:[%s1 + $0x268] sm:$0xff]
      %v612 = vld [vmem:[%s1 + $0x270] sm:$0xff]
      %v613 = vld [vmem:[%s1 + $0x278] sm:$0xff]
      %v614 = vld [vmem:[%s1 + $0x280] sm:$0xff]
      %v615 = vld [vmem:[%s1 + $0x288] sm:$0xff]
      %v616 = vld [vmem:[%s1 + $0x290] sm:$0xff]
      %v617 = vld [vmem:[%s1 + $0x298] sm:$0xff]
      %v618 = vld [vmem:[%s1 + $0x2a0] sm:$0xff]
      %v619 = vld [vmem:[%s1 + $0x2a8] sm:$0xff]
      %v620 = vld [vmem:[%s1 + $0x2b0] sm:$0xff]
      %v621 = vld [vmem:[%s1 + $0x2b8] sm:$0xff]
      %v622 = vld [vmem:[%s1 + $0x2c0] sm:$0xff]
      %v623 = vld [vmem:[%s1 + $0x2c8] sm:$0xff]
      %v624 = vld [vmem:[%s1 + $0x2d0] sm:$0xff]
      %v625 = vld [vmem:[%s1 + $0x2d8] sm:$0xff]
      %v626 = vld [vmem:[%s1 + $0x2e0] sm:$0xff]
      %v627 = vld [vmem:[%s1 + $0x2e8] sm:$0xff]
      %v628 = vld [vmem:[%s1 + $0x2f0] sm:$0xff]
      %v629 = vld [vmem:[%s1 + $0x2f8] sm:$0xff]
      %v630 = vld [vmem:[%s1 + $0x300] sm:$0xff]
      %v631 = vld [vmem:[%s1 + $0x308] sm:$0xff]
      %v632 = vld [vmem:[%s1 + $0x310] sm:$0xff]
      %v633 = vld [vmem:[%s1 + $0x318] sm:$0xff]
      %v634 = vld [vmem:[%s4] sm:$0x1]
      %v635 = vperm.slane %v634, 0
      %640 = vst [vmem:[#allocation1] ss:$2 sm:$0xff] %v530
      %s641 = scalar_lea.vmem [#allocation1], 16
      %642 = vst [vmem:[%s641] ss:$2 sm:$0xff] %v531
      %s643 = scalar_lea.vmem [#allocation1], 32
      %644 = vst [vmem:[%s643] ss:$2 sm:$0xff] %v532
      %s645 = scalar_lea.vmem [#allocation1], 48
      %646 = vst [vmem:[%s645] ss:$2 sm:$0xff] %v533
      %v647 = vld.sshfl [vmem:[#allocation1] sm:$0xff pattern:$0x75316420]
      %v648 = vld.sshfl [vmem:[#allocation1 + $0x8] sm:$0xff pattern:$0x75316420]
      %v649 = vld.sshfl [vmem:[#allocation1 + $0x10] sm:$0xff pattern:$0x75316420]
      %v650 = vld.sshfl [vmem:[#allocation1 + $0x18] sm:$0xff pattern:$0x75316420]
      %v651 = vld.sshfl [vmem:[#allocation1 + $0x20] sm:$0xff pattern:$0x75316420]
      %v652 = vld.sshfl [vmem:[#allocation1 + $0x28] sm:$0xff pattern:$0x75316420]
      %v653 = vld.sshfl [vmem:[#allocation1 + $0x30] sm:$0xff pattern:$0x75316420]
      %v660 = vsel %vm357, %v653, 0
      %662 = vmatpush.msra.mxu0 %v549
      %663 = vmatpush.msra.mxu0 %v548
      %664 = vmatpush.msra.mxu0 %v547
      %665 = vmatpush.msra.mxu0 %v546
      %666 = vmatpush.msra.mxu0 %v545
      %667 = vmatpush.msra.mxu0 %v544
      %668 = vmatpush.msra.mxu0 %v543
      %669 = vmatpush.msra.mxu0 %v542
      %670 = vmatpush.msra.mxu0 %v541
      %671 = vmatpush.msra.mxu0 %v540
      %672 = vmatpush.msra.mxu0 %v539
      %673 = vmatpush.msra.mxu0 %v538
      %674 = vmatpush.msra.mxu0 %v537
      %675 = vmatpush.msra.mxu0 %v536
      %676 = vmatpush.msra.mxu0 %v535
      %677 = vmatpush.msra.mxu0 %v534
      %678 = vmatmul.f32.gmra.mxu0 %v647
      %v679 = vpop.f32.mrf.mxu0
      %v680 = vadd.f32 %v635, %v679
      %681 = vdwg.mxu0
      %682 = vmatpush.msra.mxu0 %v565
      %683 = vmatpush.msra.mxu0 %v564
      %684 = vmatpush.msra.mxu0 %v563
      %685 = vmatpush.msra.mxu0 %v562
      %686 = vmatpush.msra.mxu0 %v561
      %687 = vmatpush.msra.mxu0 %v560
      %688 = vmatpush.msra.mxu0 %v559
      %689 = vmatpush.msra.mxu0 %v558
      %690 = vmatpush.msra.mxu0 %v557
      %691 = vmatpush.msra.mxu0 %v556
      %692 = vmatpush.msra.mxu0 %v555
      %693 = vmatpush.msra.mxu0 %v554
      %694 = vmatpush.msra.mxu0 %v553
      %695 = vmatpush.msra.mxu0 %v552
      %696 = vmatpush.msra.mxu0 %v551
      %697 = vmatpush.msra.mxu0 %v550
      %698 = vmatmul.f32.gmra.mxu0 %v648
      %v699 = vpop.f32.mrf.mxu0
      %v700 = vadd.f32 %v680, %v699
      %701 = vdwg.mxu0
      %702 = vmatpush.msra.mxu0 %v581
      %703 = vmatpush.msra.mxu0 %v580
      %704 = vmatpush.msra.mxu0 %v579
      %705 = vmatpush.msra.mxu0 %v578
      %706 = vmatpush.msra.mxu0 %v577
      %707 = vmatpush.msra.mxu0 %v576
      %708 = vmatpush.msra.mxu0 %v575
      %709 = vmatpush.msra.mxu0 %v574
      %710 = vmatpush.msra.mxu0 %v573
      %711 = vmatpush.msra.mxu0 %v572
      %712 = vmatpush.msra.mxu0 %v571
      %713 = vmatpush.msra.mxu0 %v570
      %714 = vmatpush.msra.mxu0 %v569
      %715 = vmatpush.msra.mxu0 %v568
      %716 = vmatpush.msra.mxu0 %v567
      %717 = vmatpush.msra.mxu0 %v566
      %718 = vmatmul.f32.gmra.mxu0 %v649
      %v719 = vpop.f32.mrf.mxu0
      %v720 = vadd.f32 %v700, %v719
      %721 = vdwg.mxu0
      %722 = vmatpush.msra.mxu0 %v597
      %723 = vmatpush.msra.mxu0 %v596
      %724 = vmatpush.msra.mxu0 %v595
      %725 = vmatpush.msra.mxu0 %v594
      %726 = vmatpush.msra.mxu0 %v593
      %727 = vmatpush.msra.mxu0 %v592
      %728 = vmatpush.msra.mxu0 %v591
      %729 = vmatpush.msra.mxu0 %v590
      %730 = vmatpush.msra.mxu0 %v589
      %731 = vmatpush.msra.mxu0 %v588
      %732 = vmatpush.msra.mxu0 %v587
      %733 = vmatpush.msra.mxu0 %v586
      %734 = vmatpush.msra.mxu0 %v585
      %735 = vmatpush.msra.mxu0 %v584
      %736 = vmatpush.msra.mxu0 %v583
      %737 = vmatpush.msra.mxu0 %v582
      %738 = vmatmul.f32.gmra.mxu0 %v650
      %v739 = vpop.f32.mrf.mxu0
      %v740 = vadd.f32 %v720, %v739
      %741 = vdwg.mxu0
      %742 = vmatpush.msra.mxu0 %v613
      %743 = vmatpush.msra.mxu0 %v612
      %744 = vmatpush.msra.mxu0 %v611
      %745 = vmatpush.msra.mxu0 %v610
      %746 = vmatpush.msra.mxu0 %v609
      %747 = vmatpush.msra.mxu0 %v608
      %748 = vmatpush.msra.mxu0 %v607
      %749 = vmatpush.msra.mxu0 %v606
      %750 = vmatpush.msra.mxu0 %v605
      %751 = vmatpush.msra.mxu0 %v604
      %752 = vmatpush.msra.mxu0 %v603
      %753 = vmatpush.msra.mxu0 %v602
      %754 = vmatpush.msra.mxu0 %v601
      %755 = vmatpush.msra.mxu0 %v600
      %756 = vmatpush.msra.mxu0 %v599
      %757 = vmatpush.msra.mxu0 %v598
      %758 = vmatmul.f32.gmra.mxu0 %v651
      %v759 = vpop.f32.mrf.mxu0
      %v760 = vadd.f32 %v740, %v759
      %761 = vdwg.mxu0
      %762 = vmatpush.msra.mxu0 %v629
      %763 = vmatpush.msra.mxu0 %v628
      %764 = vmatpush.msra.mxu0 %v627
      %765 = vmatpush.msra.mxu0 %v626
      %766 = vmatpush.msra.mxu0 %v625
      %767 = vmatpush.msra.mxu0 %v624
      %768 = vmatpush.msra.mxu0 %v623
      %769 = vmatpush.msra.mxu0 %v622
      %770 = vmatpush.msra.mxu0 %v621
      %771 = vmatpush.msra.mxu0 %v620
      %772 = vmatpush.msra.mxu0 %v619
      %773 = vmatpush.msra.mxu0 %v618
      %774 = vmatpush.msra.mxu0 %v617
      %775 = vmatpush.msra.mxu0 %v616
      %776 = vmatpush.msra.mxu0 %v615
      %777 = vmatpush.msra.mxu0 %v614
      %778 = vmatmul.f32.gmra.mxu0 %v652
      %v779 = vpop.f32.mrf.mxu0
      %v780 = vadd.f32 %v760, %v779
      %781 = vdwg.mxu0
      %782 = vmatpush.msra.mxu0 0.0
      %783 = vmatpush.msra.mxu0 0.0
      %784 = vmatpush.msra.mxu0 0.0
      %785 = vmatpush.msra.mxu0 0.0
      %786 = vmatpush.msra.mxu0 0.0
      %787 = vmatpush.msra.mxu0 0.0
      %788 = vmatpush.msra.mxu0 0.0
      %789 = vmatpush.msra.mxu0 0.0
      %790 = vmatpush.msra.mxu0 0.0
      %791 = vmatpush.msra.mxu0 0.0
      %792 = vmatpush.msra.mxu0 0.0
      %793 = vmatpush.msra.mxu0 0.0
      %794 = vmatpush.msra.mxu0 %v633
      %795 = vmatpush.msra.mxu0 %v632
      %796 = vmatpush.msra.mxu0 %v631
      %797 = vmatpush.msra.mxu0 %v630
      %798 = vmatmul.f32.gmra.mxu0 %v660
      %v799 = vpop.f32.mrf.mxu0
      %v800 = vadd.f32 %v780, %v799
      %801 = vdwg.mxu0
      %v802 = vsub.f32 0.0, %v800
      %v803 = vmul.f32 %v802, 1.442695
      %v804 = vpow.pop %v803
      %v805 = vadd.f32 %v804, 1.0
      %v806 = vrcp.pop %v805
      %v807 = vmul.f32 %v805, %v806
      %v808 = vsub.f32 1.0, %v807
      %v809 = vmul.f32 %v806, %v808
      %v810 = vadd.f32 %v806, %v809
      %vm811 = vweird.f32 %v805
      %vm812 = vweird.f32 %v806
      %vm813 = vmor %vm811, %vm812
      %v814 = vsel %vm813, %v806, %v810
      %v815 = vand.u32 2147483647, %v805
      %vm816 = vcmp.eq.f32.partialorder %v815, 8.507059e+37
      %v817 = vand.u32 %v805, 2147483648
      %v818 = vor.u32 1.1754944e-38, %v817
      %v819 = vsel %vm816, %v818, %v814
      %v820 = vmul.f32 1.0, %v819
      %v821 = vmul.f32 %v800, %v820
      %v822 = vld [vmem:[%s4 + $0x1] sm:$0x1]
      %v823 = vperm.slane %v822, 0
      %v824 = vmul.f32 %v821, %v823
      %v825 = vld [vmem:[%s4 + $0x2] sm:$0x1]
      %v826 = vperm.slane %v825, 0
      %v827 = vadd.f32 %v824, %v826
      %s828 = scalar_lea.vmem [#allocation2], 16
      %829 = vst.msk [vmem:[%s828 + $0x1] sm:$0x7] %vm527, %v827
      %s830 = scalar_lea.vmem %s217, 56
      %v831 = vld [vmem:[%s830] sm:$0x77]
      %v832 = vld [vmem:[%s830 + $0x8] sm:$0x77]
      %v833 = vld [vmem:[%s830 + $0x10] sm:$0x77]
      %v834 = vld [vmem:[%s830 + $0x18] sm:$0x7]
      %v835 = vld [vmem:[%s1] sm:$0xff]
      %v836 = vld [vmem:[%s1 + $0x8] sm:$0xff]
      %v837 = vld [vmem:[%s1 + $0x10] sm:$0xff]
      %v838 = vld [vmem:[%s1 + $0x18] sm:$0xff]
      %v839 = vld [vmem:[%s1 + $0x20] sm:$0xff]
      %v840 = vld [vmem:[%s1 + $0x28] sm:$0xff]
      %v841 = vld [vmem:[%s1 + $0x30] sm:$0xff]
      %v842 = vld [vmem:[%s1 + $0x38] sm:$0xff]
      %v843 = vld [vmem:[%s1 + $0x40] sm:$0xff]
      %v844 = vld [vmem:[%s1 + $0x48] sm:$0xff]
      %v845 = vld [vmem:[%s1 + $0x50] sm:$0xff]
      %v846 = vld [vmem:[%s1 + $0x58] sm:$0xff]
      %v847 = vld [vmem:[%s1 + $0x60] sm:$0xff]
      %v848 = vld [vmem:[%s1 + $0x68] sm:$0xff]
      %v849 = vld [vmem:[%s1 + $0x70] sm:$0xff]
      %v850 = vld [vmem:[%s1 + $0x78] sm:$0xff]
      %v851 = vld [vmem:[%s1 + $0x80] sm:$0xff]
      %v852 = vld [vmem:[%s1 + $0x88] sm:$0xff]
      %v853 = vld [vmem:[%s1 + $0x90] sm:$0xff]
      %v854 = vld [vmem:[%s1 + $0x98] sm:$0xff]
      %v855 = vld [vmem:[%s1 + $0xa0] sm:$0xff]
      %v856 = vld [vmem:[%s1 + $0xa8] sm:$0xff]
      %v857 = vld [vmem:[%s1 + $0xb0] sm:$0xff]
      %v858 = vld [vmem:[%s1 + $0xb8] sm:$0xff]
      %v859 = vld [vmem:[%s1 + $0xc0] sm:$0xff]
      %v860 = vld [vmem:[%s1 + $0xc8] sm:$0xff]
      %v861 = vld [vmem:[%s1 + $0xd0] sm:$0xff]
      %v862 = vld [vmem:[%s1 + $0xd8] sm:$0xff]
      %v863 = vld [vmem:[%s1 + $0xe0] sm:$0xff]
      %v864 = vld [vmem:[%s1 + $0xe8] sm:$0xff]
      %v865 = vld [vmem:[%s1 + $0xf0] sm:$0xff]
      %v866 = vld [vmem:[%s1 + $0xf8] sm:$0xff]
      %v867 = vld [vmem:[%s1 + $0x100] sm:$0xff]
      %v868 = vld [vmem:[%s1 + $0x108] sm:$0xff]
      %v869 = vld [vmem:[%s1 + $0x110] sm:$0xff]
      %v870 = vld [vmem:[%s1 + $0x118] sm:$0xff]
      %v871 = vld [vmem:[%s1 + $0x120] sm:$0xff]
      %v872 = vld [vmem:[%s1 + $0x128] sm:$0xff]
      %v873 = vld [vmem:[%s1 + $0x130] sm:$0xff]
      %v874 = vld [vmem:[%s1 + $0x138] sm:$0xff]
      %v875 = vld [vmem:[%s1 + $0x140] sm:$0xff]
      %v876 = vld [vmem:[%s1 + $0x148] sm:$0xff]
      %v877 = vld [vmem:[%s1 + $0x150] sm:$0xff]
      %v878 = vld [vmem:[%s1 + $0x158] sm:$0xff]
      %v879 = vld [vmem:[%s1 + $0x160] sm:$0xff]
      %v880 = vld [vmem:[%s1 + $0x168] sm:$0xff]
      %v881 = vld [vmem:[%s1 + $0x170] sm:$0xff]
      %v882 = vld [vmem:[%s1 + $0x178] sm:$0xff]
      %v883 = vld [vmem:[%s1 + $0x180] sm:$0xff]
      %v884 = vld [vmem:[%s1 + $0x188] sm:$0xff]
      %v885 = vld [vmem:[%s1 + $0x190] sm:$0xff]
      %v886 = vld [vmem:[%s1 + $0x198] sm:$0xff]
      %v887 = vld [vmem:[%s1 + $0x1a0] sm:$0xff]
      %v888 = vld [vmem:[%s1 + $0x1a8] sm:$0xff]
      %v889 = vld [vmem:[%s1 + $0x1b0] sm:$0xff]
      %v890 = vld [vmem:[%s1 + $0x1b8] sm:$0xff]
      %v891 = vld [vmem:[%s1 + $0x1c0] sm:$0xff]
      %v892 = vld [vmem:[%s1 + $0x1c8] sm:$0xff]
      %v893 = vld [vmem:[%s1 + $0x1d0] sm:$0xff]
      %v894 = vld [vmem:[%s1 + $0x1d8] sm:$0xff]
      %v895 = vld [vmem:[%s1 + $0x1e0] sm:$0xff]
      %v896 = vld [vmem:[%s1 + $0x1e8] sm:$0xff]
      %v897 = vld [vmem:[%s1 + $0x1f0] sm:$0xff]
      %v898 = vld [vmem:[%s1 + $0x1f8] sm:$0xff]
      %v899 = vld [vmem:[%s1 + $0x200] sm:$0xff]
      %v900 = vld [vmem:[%s1 + $0x208] sm:$0xff]
      %v901 = vld [vmem:[%s1 + $0x210] sm:$0xff]
      %v902 = vld [vmem:[%s1 + $0x218] sm:$0xff]
      %v903 = vld [vmem:[%s1 + $0x220] sm:$0xff]
      %v904 = vld [vmem:[%s1 + $0x228] sm:$0xff]
      %v905 = vld [vmem:[%s1 + $0x230] sm:$0xff]
      %v906 = vld [vmem:[%s1 + $0x238] sm:$0xff]
      %v907 = vld [vmem:[%s1 + $0x240] sm:$0xff]
      %v908 = vld [vmem:[%s1 + $0x248] sm:$0xff]
      %v909 = vld [vmem:[%s1 + $0x250] sm:$0xff]
      %v910 = vld [vmem:[%s1 + $0x258] sm:$0xff]
      %v911 = vld [vmem:[%s1 + $0x260] sm:$0xff]
      %v912 = vld [vmem:[%s1 + $0x268] sm:$0xff]
      %v913 = vld [vmem:[%s1 + $0x270] sm:$0xff]
      %v914 = vld [vmem:[%s1 + $0x278] sm:$0xff]
      %v915 = vld [vmem:[%s1 + $0x280] sm:$0xff]
      %v916 = vld [vmem:[%s1 + $0x288] sm:$0xff]
      %v917 = vld [vmem:[%s1 + $0x290] sm:$0xff]
      %v918 = vld [vmem:[%s1 + $0x298] sm:$0xff]
      %v919 = vld [vmem:[%s1 + $0x2a0] sm:$0xff]
      %v920 = vld [vmem:[%s1 + $0x2a8] sm:$0xff]
      %v921 = vld [vmem:[%s1 + $0x2b0] sm:$0xff]
      %v922 = vld [vmem:[%s1 + $0x2b8] sm:$0xff]
      %v923 = vld [vmem:[%s1 + $0x2c0] sm:$0xff]
      %v924 = vld [vmem:[%s1 + $0x2c8] sm:$0xff]
      %v925 = vld [vmem:[%s1 + $0x2d0] sm:$0xff]
      %v926 = vld [vmem:[%s1 + $0x2d8] sm:$0xff]
      %v927 = vld [vmem:[%s1 + $0x2e0] sm:$0xff]
      %v928 = vld [vmem:[%s1 + $0x2e8] sm:$0xff]
      %v929 = vld [vmem:[%s1 + $0x2f0] sm:$0xff]
      %v930 = vld [vmem:[%s1 + $0x2f8] sm:$0xff]
      %v931 = vld [vmem:[%s1 + $0x300] sm:$0xff]
      %v932 = vld [vmem:[%s1 + $0x308] sm:$0xff]
      %v933 = vld [vmem:[%s1 + $0x310] sm:$0xff]
      %v934 = vld [vmem:[%s1 + $0x318] sm:$0xff]
      %v935 = vld [vmem:[%s4] sm:$0x1]
      %v936 = vperm.slane %v935, 0
      %941 = vst [vmem:[#allocation1] ss:$2 sm:$0xff] %v831
      %s942 = scalar_lea.vmem [#allocation1], 16
      %943 = vst [vmem:[%s942] ss:$2 sm:$0xff] %v832
      %s944 = scalar_lea.vmem [#allocation1], 32
      %945 = vst [vmem:[%s944] ss:$2 sm:$0xff] %v833
      %s946 = scalar_lea.vmem [#allocation1], 48
      %947 = vst [vmem:[%s946] ss:$2 sm:$0xff] %v834
      %v948 = vld.sshfl [vmem:[#allocation1] sm:$0xff pattern:$0x75316420]
      %v949 = vld.sshfl [vmem:[#allocation1 + $0x8] sm:$0xff pattern:$0x75316420]
      %v950 = vld.sshfl [vmem:[#allocation1 + $0x10] sm:$0xff pattern:$0x75316420]
      %v951 = vld.sshfl [vmem:[#allocation1 + $0x18] sm:$0xff pattern:$0x75316420]
      %v952 = vld.sshfl [vmem:[#allocation1 + $0x20] sm:$0xff pattern:$0x75316420]
      %v953 = vld.sshfl [vmem:[#allocation1 + $0x28] sm:$0xff pattern:$0x75316420]
      %v954 = vld.sshfl [vmem:[#allocation1 + $0x30] sm:$0xff pattern:$0x75316420]
      %v961 = vsel %vm357, %v954, 0
      %963 = vmatpush.msra.mxu0 %v850
      %964 = vmatpush.msra.mxu0 %v849
      %965 = vmatpush.msra.mxu0 %v848
      %966 = vmatpush.msra.mxu0 %v847
      %967 = vmatpush.msra.mxu0 %v846
      %968 = vmatpush.msra.mxu0 %v845
      %969 = vmatpush.msra.mxu0 %v844
      %970 = vmatpush.msra.mxu0 %v843
      %971 = vmatpush.msra.mxu0 %v842
      %972 = vmatpush.msra.mxu0 %v841
      %973 = vmatpush.msra.mxu0 %v840
      %974 = vmatpush.msra.mxu0 %v839
      %975 = vmatpush.msra.mxu0 %v838
      %976 = vmatpush.msra.mxu0 %v837
      %977 = vmatpush.msra.mxu0 %v836
      %978 = vmatpush.msra.mxu0 %v835
      %979 = vmatmul.f32.gmra.mxu0 %v948
      %v980 = vpop.f32.mrf.mxu0
      %v981 = vadd.f32 %v936, %v980
      %982 = vdwg.mxu0
      %983 = vmatpush.msra.mxu0 %v866
      %984 = vmatpush.msra.mxu0 %v865
      %985 = vmatpush.msra.mxu0 %v864
      %986 = vmatpush.msra.mxu0 %v863
      %987 = vmatpush.msra.mxu0 %v862
      %988 = vmatpush.msra.mxu0 %v861
      %989 = vmatpush.msra.mxu0 %v860
      %990 = vmatpush.msra.mxu0 %v859
      %991 = vmatpush.msra.mxu0 %v858
      %992 = vmatpush.msra.mxu0 %v857
      %993 = vmatpush.msra.mxu0 %v856
      %994 = vmatpush.msra.mxu0 %v855
      %995 = vmatpush.msra.mxu0 %v854
      %996 = vmatpush.msra.mxu0 %v853
      %997 = vmatpush.msra.mxu0 %v852
      %998 = vmatpush.msra.mxu0 %v851
      %999 = vmatmul.f32.gmra.mxu0 %v949
      %v1000 = vpop.f32.mrf.mxu0
      %v1001 = vadd.f32 %v981, %v1000
      %1002 = vdwg.mxu0
      %1003 = vmatpush.msra.mxu0 %v882
      %1004 = vmatpush.msra.mxu0 %v881
      %1005 = vmatpush.msra.mxu0 %v880
      %1006 = vmatpush.msra.mxu0 %v879
      %1007 = vmatpush.msra.mxu0 %v878
      %1008 = vmatpush.msra.mxu0 %v877
      %1009 = vmatpush.msra.mxu0 %v876
      %1010 = vmatpush.msra.mxu0 %v875
      %1011 = vmatpush.msra.mxu0 %v874
      %1012 = vmatpush.msra.mxu0 %v873
      %1013 = vmatpush.msra.mxu0 %v872
      %1014 = vmatpush.msra.mxu0 %v871
      %1015 = vmatpush.msra.mxu0 %v870
      %1016 = vmatpush.msra.mxu0 %v869
      %1017 = vmatpush.msra.mxu0 %v868
      %1018 = vmatpush.msra.mxu0 %v867
      %1019 = vmatmul.f32.gmra.mxu0 %v950
      %v1020 = vpop.f32.mrf.mxu0
      %v1021 = vadd.f32 %v1001, %v1020
      %1022 = vdwg.mxu0
      %1023 = vmatpush.msra.mxu0 %v898
      %1024 = vmatpush.msra.mxu0 %v897
      %1025 = vmatpush.msra.mxu0 %v896
      %1026 = vmatpush.msra.mxu0 %v895
      %1027 = vmatpush.msra.mxu0 %v894
      %1028 = vmatpush.msra.mxu0 %v893
      %1029 = vmatpush.msra.mxu0 %v892
      %1030 = vmatpush.msra.mxu0 %v891
      %1031 = vmatpush.msra.mxu0 %v890
      %1032 = vmatpush.msra.mxu0 %v889
      %1033 = vmatpush.msra.mxu0 %v888
      %1034 = vmatpush.msra.mxu0 %v887
      %1035 = vmatpush.msra.mxu0 %v886
      %1036 = vmatpush.msra.mxu0 %v885
      %1037 = vmatpush.msra.mxu0 %v884
      %1038 = vmatpush.msra.mxu0 %v883
      %1039 = vmatmul.f32.gmra.mxu0 %v951
      %v1040 = vpop.f32.mrf.mxu0
      %v1041 = vadd.f32 %v1021, %v1040
      %1042 = vdwg.mxu0
      %1043 = vmatpush.msra.mxu0 %v914
      %1044 = vmatpush.msra.mxu0 %v913
      %1045 = vmatpush.msra.mxu0 %v912
      %1046 = vmatpush.msra.mxu0 %v911
      %1047 = vmatpush.msra.mxu0 %v910
      %1048 = vmatpush.msra.mxu0 %v909
      %1049 = vmatpush.msra.mxu0 %v908
      %1050 = vmatpush.msra.mxu0 %v907
      %1051 = vmatpush.msra.mxu0 %v906
      %1052 = vmatpush.msra.mxu0 %v905
      %1053 = vmatpush.msra.mxu0 %v904
      %1054 = vmatpush.msra.mxu0 %v903
      %1055 = vmatpush.msra.mxu0 %v902
      %1056 = vmatpush.msra.mxu0 %v901
      %1057 = vmatpush.msra.mxu0 %v900
      %1058 = vmatpush.msra.mxu0 %v899
      %1059 = vmatmul.f32.gmra.mxu0 %v952
      %v1060 = vpop.f32.mrf.mxu0
      %v1061 = vadd.f32 %v1041, %v1060
      %1062 = vdwg.mxu0
      %1063 = vmatpush.msra.mxu0 %v930
      %1064 = vmatpush.msra.mxu0 %v929
      %1065 = vmatpush.msra.mxu0 %v928
      %1066 = vmatpush.msra.mxu0 %v927
      %1067 = vmatpush.msra.mxu0 %v926
      %1068 = vmatpush.msra.mxu0 %v925
      %1069 = vmatpush.msra.mxu0 %v924
      %1070 = vmatpush.msra.mxu0 %v923
      %1071 = vmatpush.msra.mxu0 %v922
      %1072 = vmatpush.msra.mxu0 %v921
      %1073 = vmatpush.msra.mxu0 %v920
      %1074 = vmatpush.msra.mxu0 %v919
      %1075 = vmatpush.msra.mxu0 %v918
      %1076 = vmatpush.msra.mxu0 %v917
      %1077 = vmatpush.msra.mxu0 %v916
      %1078 = vmatpush.msra.mxu0 %v915
      %1079 = vmatmul.f32.gmra.mxu0 %v953
      %v1080 = vpop.f32.mrf.mxu0
      %v1081 = vadd.f32 %v1061, %v1080
      %1082 = vdwg.mxu0
      %1083 = vmatpush.msra.mxu0 0.0
      %1084 = vmatpush.msra.mxu0 0.0
      %1085 = vmatpush.msra.mxu0 0.0
      %1086 = vmatpush.msra.mxu0 0.0
      %1087 = vmatpush.msra.mxu0 0.0
      %1088 = vmatpush.msra.mxu0 0.0
      %1089 = vmatpush.msra.mxu0 0.0
      %1090 = vmatpush.msra.mxu0 0.0
      %1091 = vmatpush.msra.mxu0 0.0
      %1092 = vmatpush.msra.mxu0 0.0
      %1093 = vmatpush.msra.mxu0 0.0
      %1094 = vmatpush.msra.mxu0 0.0
      %1095 = vmatpush.msra.mxu0 %v934
      %1096 = vmatpush.msra.mxu0 %v933
      %1097 = vmatpush.msra.mxu0 %v932
      %1098 = vmatpush.msra.mxu0 %v931
      %1099 = vmatmul.f32.gmra.mxu0 %v961
      %v1100 = vpop.f32.mrf.mxu0
      %v1101 = vadd.f32 %v1081, %v1100
      %1102 = vdwg.mxu0
      %v1103 = vsub.f32 0.0, %v1101
      %v1104 = vmul.f32 %v1103, 1.442695
      %v1105 = vpow.pop %v1104
      %v1106 = vadd.f32 %v1105, 1.0
      %v1107 = vrcp.pop %v1106
      %v1108 = vmul.f32 %v1106, %v1107
      %v1109 = vsub.f32 1.0, %v1108
      %v1110 = vmul.f32 %v1107, %v1109
      %v1111 = vadd.f32 %v1107, %v1110
      %vm1112 = vweird.f32 %v1106
      %vm1113 = vweird.f32 %v1107
      %vm1114 = vmor %vm1112, %vm1113
      %v1115 = vsel %vm1114, %v1107, %v1111
      %v1116 = vand.u32 2147483647, %v1106
      %vm1117 = vcmp.eq.f32.partialorder %v1116, 8.507059e+37
      %v1118 = vand.u32 %v1106, 2147483648
      %v1119 = vor.u32 1.1754944e-38, %v1118
      %v1120 = vsel %vm1117, %v1119, %v1115
      %v1121 = vmul.f32 1.0, %v1120
      %v1122 = vmul.f32 %v1101, %v1121
      %v1123 = vld [vmem:[%s4 + $0x1] sm:$0x1]
      %v1124 = vperm.slane %v1123, 0
      %v1125 = vmul.f32 %v1122, %v1124
      %v1126 = vld [vmem:[%s4 + $0x2] sm:$0x1]
      %v1127 = vperm.slane %v1126, 0
      %v1128 = vadd.f32 %v1125, %v1127
      %s1129 = scalar_lea.vmem [#allocation2], 24
      %1130 = vst.msk [vmem:[%s1129 + $0x1] sm:$0x7] %vm527, %v1128
      %v1131 = vld [vmem:[#allocation2] sm:$0x7]
      %v1132 = vld [vmem:[%s2] sm:$0x1]
      %v1133 = vperm.slane %v1132, 0
      %v1134 = vmul.f32 %v1131, %v1133
      %v1135 = vadd.f32 %v1134, 0.0
      %v1136 = vld [vmem:[#allocation2 + $0x1] sm:$0x7]
      %v1137 = vld [vmem:[%s2 + $0x1] sm:$0x1]
      %v1138 = vperm.slane %v1137, 0
      %v1139 = vmul.f32 %v1136, %v1138
      %v1140 = vadd.f32 %v1135, %v1139
      %v1141 = vld [vmem:[#allocation2 + $0x2] sm:$0x7]
      %v1142 = vld [vmem:[%s2 + $0x2] sm:$0x1]
      %v1143 = vperm.slane %v1142, 0
      %v1144 = vmul.f32 %v1141, %v1143
      %v1145 = vadd.f32 %v1140, %v1144
      %v1146 = vld [vmem:[%s526] sm:$0x7]
      %v1147 = vld [vmem:[%s2 + $0x3] sm:$0x1]
      %v1148 = vperm.slane %v1147, 0
      %v1149 = vmul.f32 %v1146, %v1148
      %v1150 = vadd.f32 %v1145, %v1149
      %v1151 = vld [vmem:[%s526 + $0x1] sm:$0x7]
      %v1152 = vld [vmem:[%s2 + $0x4] sm:$0x1]
      %v1153 = vperm.slane %v1152, 0
      %v1154 = vmul.f32 %v1151, %v1153
      %v1155 = vadd.f32 %v1150, %v1154
      %v1156 = vld [vmem:[%s526 + $0x2] sm:$0x7]
      %v1157 = vld [vmem:[%s2 + $0x5] sm:$0x1]
      %v1158 = vperm.slane %v1157, 0
      %v1159 = vmul.f32 %v1156, %v1158
      %v1160 = vadd.f32 %v1155, %v1159
      %v1161 = vld [vmem:[%s828] sm:$0x7]
      %v1162 = vld [vmem:[%s2 + $0x6] sm:$0x1]
      %v1163 = vperm.slane %v1162, 0
      %v1164 = vmul.f32 %v1161, %v1163
      %v1165 = vadd.f32 %v1160, %v1164
      %v1166 = vld [vmem:[%s828 + $0x1] sm:$0x7]
      %v1167 = vld [vmem:[%s2 + $0x7] sm:$0x1]
      %v1168 = vperm.slane %v1167, 0
      %v1169 = vmul.f32 %v1166, %v1168
      %v1170 = vadd.f32 %v1165, %v1169
      %v1171 = vld [vmem:[%s828 + $0x2] sm:$0x7]
      %v1172 = vld [vmem:[%s2 + $0x8] sm:$0x1]
      %v1173 = vperm.slane %v1172, 0
      %v1174 = vmul.f32 %v1171, %v1173
      %v1175 = vadd.f32 %v1170, %v1174
      %v1176 = vld [vmem:[%s4 + $0x3] sm:$0x1]
      %v1177 = vperm.slane %v1176, 0
      %v1178 = vadd.f32 %v1175, %v1177
      %v1179 = vsub.f32 0.0, %v1178
      %v1180 = vmul.f32 %v1179, 1.442695
      %v1181 = vpow.pop %v1180
      %v1182 = vadd.f32 %v1181, 1.0
      %v1183 = vrcp.pop %v1182
      %v1184 = vmul.f32 %v1182, %v1183
      %v1185 = vsub.f32 1.0, %v1184
      %v1186 = vmul.f32 %v1183, %v1185
      %v1187 = vadd.f32 %v1183, %v1186
      %vm1188 = vweird.f32 %v1182
      %vm1189 = vweird.f32 %v1183
      %vm1190 = vmor %vm1188, %vm1189
      %v1191 = vsel %vm1190, %v1183, %v1187
      %v1192 = vand.u32 2147483647, %v1182
      %vm1193 = vcmp.eq.f32.partialorder %v1192, 8.507059e+37
      %v1194 = vand.u32 %v1182, 2147483648
      %v1195 = vor.u32 1.1754944e-38, %v1194
      %v1196 = vsel %vm1193, %v1195, %v1191
      %v1197 = vmul.f32 1.0, %v1196
      %v1198 = vmul.f32 %v1178, %v1197
      %v1199 = vld [vmem:[%s4 + $0x4] sm:$0x1]
      %v1200 = vperm.slane %v1199, 0
      %v1201 = vmul.f32 %v1198, %v1200
      %v1202 = vld [vmem:[%s4 + $0x5] sm:$0x1]
      %v1203 = vperm.slane %v1202, 0
      %v1204 = vadd.f32 %v1201, %v1203
      %v1205 = vadd.f32 %v1204, %v1151
      %v1206 = vld [vmem:[%s3] sm:$0xff]
      %v1207 = vld [vmem:[%s3 + $0x8] sm:$0xff]
      %v1208 = vld [vmem:[%s3 + $0x10] sm:$0xff]
      %v1209 = vld [vmem:[%s3 + $0x18] sm:$0xff]
      %v1210 = vld [vmem:[%s4 + $0x6] sm:$0x1]
      %v1211 = vperm.slane %v1210, 0
      %v1213 = vsel %vm357, %v1205, 0
      %1215 = vmatpush.msra.mxu0 0.0
      %1216 = vmatpush.msra.mxu0 0.0
      %1217 = vmatpush.msra.mxu0 0.0
      %1218 = vmatpush.msra.mxu0 0.0
      %1219 = vmatpush.msra.mxu0 0.0
      %1220 = vmatpush.msra.mxu0 0.0
      %1221 = vmatpush.msra.mxu0 0.0
      %1222 = vmatpush.msra.mxu0 0.0
      %1223 = vmatpush.msra.mxu0 0.0
      %1224 = vmatpush.msra.mxu0 0.0
      %1225 = vmatpush.msra.mxu0 0.0
      %1226 = vmatpush.msra.mxu0 0.0
      %1227 = vmatpush.msra.mxu0 %v1209
      %1228 = vmatpush.msra.mxu0 %v1208
      %1229 = vmatpush.msra.mxu0 %v1207
      %1230 = vmatpush.msra.mxu0 %v1206
      %1231 = vmatmul.f32.gmra.mxu0 %v1213
      %v1232 = vpop.f32.mrf.mxu0
      %v1233 = vadd.f32 %v1211, %v1232
      %1234 = vdwg.mxu0
      %v1235 = vsub.f32 0.0, %v1233
      %v1236 = vmul.f32 %v1235, 1.442695
      %v1237 = vpow.pop %v1236
      %v1238 = vadd.f32 %v1237, 1.0
      %v1239 = vrcp.pop %v1238
      %v1240 = vmul.f32 %v1238, %v1239
      %v1241 = vsub.f32 1.0, %v1240
      %v1242 = vmul.f32 %v1239, %v1241
      %v1243 = vadd.f32 %v1239, %v1242
      %vm1244 = vweird.f32 %v1238
      %vm1245 = vweird.f32 %v1239
      %vm1246 = vmor %vm1244, %vm1245
      %v1247 = vsel %vm1246, %v1239, %v1243
      %v1248 = vand.u32 2147483647, %v1238
      %vm1249 = vcmp.eq.f32.partialorder %v1248, 8.507059e+37
      %v1250 = vand.u32 %v1238, 2147483648
      %v1251 = vor.u32 1.1754944e-38, %v1250
      %v1252 = vsel %vm1249, %v1251, %v1247
      %v1253 = vmul.f32 1.0, %v1252
      %v1254 = vmul.f32 %v1233, %v1253
      %v1255 = vld [vmem:[%s4 + $0x7] sm:$0x1]
      %v1256 = vperm.slane %v1255, 0
      %v1257 = vmul.f32 %v1254, %v1256
      %v1258 = vld [vmem:[%s4 + $0x8] sm:$0x1]
      %v1259 = vperm.slane %v1258, 0
      %v1260 = vadd.f32 %v1257, %v1259
      %v1261 = vsel %vm527, %v1260, 0.0
      %v1262 = vrot.slane %v1261, 4
      %v1263 = vadd.f32 %v1261, %v1262
      %v1264 = vrot.slane %v1263, 2
      %v1265 = vadd.f32 %v1263, %v1264
      %v1266 = vrot.slane %v1265, 1
      %v1267 = vadd.f32 %v1265, %v1266
      %v1268 = vadd.f32 %v1267, 0.0
      %v1269 = vmul.f32 %v1146, %v1133
      %v1270 = vadd.f32 %v1269, 0.0
      %v1271 = vmul.f32 %v1151, %v1138
      %v1272 = vadd.f32 %v1270, %v1271
      %v1273 = vmul.f32 %v1156, %v1143
      %v1274 = vadd.f32 %v1272, %v1273
      %v1275 = vmul.f32 %v1161, %v1148
      %v1276 = vadd.f32 %v1274, %v1275
      %v1277 = vmul.f32 %v1166, %v1153
      %v1278 = vadd.f32 %v1276, %v1277
      %v1279 = vmul.f32 %v1171, %v1158
      %v1280 = vadd.f32 %v1278, %v1279
      %v1281 = vld [vmem:[%s1129] sm:$0x7]
      %v1282 = vmul.f32 %v1281, %v1163
      %v1283 = vadd.f32 %v1280, %v1282
      %v1284 = vld [vmem:[%s1129 + $0x1] sm:$0x7]
      %v1285 = vmul.f32 %v1284, %v1168
      %v1286 = vadd.f32 %v1283, %v1285
      %v1287 = vld [vmem:[%s1129 + $0x2] sm:$0x7]
      %v1288 = vmul.f32 %v1287, %v1173
      %v1289 = vadd.f32 %v1286, %v1288
      %v1290 = vadd.f32 %v1289, %v1177
      %v1291 = vsub.f32 0.0, %v1290
      %v1292 = vmul.f32 %v1291, 1.442695
      %v1293 = vpow.pop %v1292
      %v1294 = vadd.f32 %v1293, 1.0
      %v1295 = vrcp.pop %v1294
      %v1296 = vmul.f32 %v1294, %v1295
      %v1297 = vsub.f32 1.0, %v1296
      %v1298 = vmul.f32 %v1295, %v1297
      %v1299 = vadd.f32 %v1295, %v1298
      %vm1300 = vweird.f32 %v1294
      %vm1301 = vweird.f32 %v1295
      %vm1302 = vmor %vm1300, %vm1301
      %v1303 = vsel %vm1302, %v1295, %v1299
      %v1304 = vand.u32 2147483647, %v1294
      %vm1305 = vcmp.eq.f32.partialorder %v1304, 8.507059e+37
      %v1306 = vand.u32 %v1294, 2147483648
      %v1307 = vor.u32 1.1754944e-38, %v1306
      %v1308 = vsel %vm1305, %v1307, %v1303
      %v1309 = vmul.f32 1.0, %v1308
      %v1310 = vmul.f32 %v1290, %v1309
      %v1311 = vmul.f32 %v1310, %v1200
      %v1312 = vadd.f32 %v1311, %v1203
      %v1313 = vadd.f32 %v1312, %v1166
      %v1315 = vsel %vm357, %v1313, 0
      %1317 = vmatpush.msra.mxu0 0.0
      %1318 = vmatpush.msra.mxu0 0.0
      %1319 = vmatpush.msra.mxu0 0.0
      %1320 = vmatpush.msra.mxu0 0.0
      %1321 = vmatpush.msra.mxu0 0.0
      %1322 = vmatpush.msra.mxu0 0.0
      %1323 = vmatpush.msra.mxu0 0.0
      %1324 = vmatpush.msra.mxu0 0.0
      %1325 = vmatpush.msra.mxu0 0.0
      %1326 = vmatpush.msra.mxu0 0.0
      %1327 = vmatpush.msra.mxu0 0.0
      %1328 = vmatpush.msra.mxu0 0.0
      %1329 = vmatpush.msra.mxu0 %v1209
      %1330 = vmatpush.msra.mxu0 %v1208
      %1331 = vmatpush.msra.mxu0 %v1207
      %1332 = vmatpush.msra.mxu0 %v1206
      %1333 = vmatmul.f32.gmra.mxu0 %v1315
      %v1334 = vpop.f32.mrf.mxu0
      %v1335 = vadd.f32 %v1211, %v1334
      %1336 = vdwg.mxu0
      %v1337 = vsub.f32 0.0, %v1335
      %v1338 = vmul.f32 %v1337, 1.442695
      %v1339 = vpow.pop %v1338
      %v1340 = vadd.f32 %v1339, 1.0
      %v1341 = vrcp.pop %v1340
      %v1342 = vmul.f32 %v1340, %v1341
      %v1343 = vsub.f32 1.0, %v1342
      %v1344 = vmul.f32 %v1341, %v1343
      %v1345 = vadd.f32 %v1341, %v1344
      %vm1346 = vweird.f32 %v1340
      %vm1347 = vweird.f32 %v1341
      %vm1348 = vmor %vm1346, %vm1347
      %v1349 = vsel %vm1348, %v1341, %v1345
      %v1350 = vand.u32 2147483647, %v1340
      %vm1351 = vcmp.eq.f32.partialorder %v1350, 8.507059e+37
      %v1352 = vand.u32 %v1340, 2147483648
      %v1353 = vor.u32 1.1754944e-38, %v1352
      %v1354 = vsel %vm1351, %v1353, %v1349
      %v1355 = vmul.f32 1.0, %v1354
      %v1356 = vmul.f32 %v1335, %v1355
      %v1357 = vmul.f32 %v1356, %v1256
      %v1358 = vadd.f32 %v1357, %v1259
      %v1359 = vsel %vm527, %v1358, 0.0
      %v1360 = vrot.slane %v1359, 4
      %v1361 = vadd.f32 %v1359, %v1360
      %v1362 = vrot.slane %v1361, 2
      %v1363 = vadd.f32 %v1361, %v1362
      %v1364 = vrot.slane %v1363, 1
      %v1365 = vadd.f32 %v1363, %v1364
      %v1366 = vadd.f32 %v1268, %v1365
      %v1367 = vmul.f32 %v1161, %v1133
      %v1368 = vadd.f32 %v1367, 0.0
      %v1369 = vmul.f32 %v1166, %v1138
      %v1370 = vadd.f32 %v1368, %v1369
      %v1371 = vmul.f32 %v1171, %v1143
      %v1372 = vadd.f32 %v1370, %v1371
      %v1373 = vmul.f32 %v1281, %v1148
      %v1374 = vadd.f32 %v1372, %v1373
      %v1375 = vmul.f32 %v1284, %v1153
      %v1376 = vadd.f32 %v1374, %v1375
      %v1377 = vmul.f32 %v1287, %v1158
      %v1378 = vadd.f32 %v1376, %v1377
      %s1379 = scalar_lea.vmem [#allocation2], 32
      %v1380 = vld [vmem:[%s1379] sm:$0x7]
      %v1381 = vmul.f32 %v1380, %v1163
      %v1382 = vadd.f32 %v1378, %v1381
      %v1383 = vld [vmem:[%s1379 + $0x1] sm:$0x7]
      %v1384 = vmul.f32 %v1383, %v1168
      %v1385 = vadd.f32 %v1382, %v1384
      %v1386 = vld [vmem:[%s1379 + $0x2] sm:$0x7]
      %v1387 = vmul.f32 %v1386, %v1173
      %v1388 = vadd.f32 %v1385, %v1387
      %v1389 = vadd.f32 %v1388, %v1177
      %v1390 = vsub.f32 0.0, %v1389
      %v1391 = vmul.f32 %v1390, 1.442695
      %v1392 = vpow.pop %v1391
      %v1393 = vadd.f32 %v1392, 1.0
      %v1394 = vrcp.pop %v1393
      %v1395 = vmul.f32 %v1393, %v1394
      %v1396 = vsub.f32 1.0, %v1395
      %v1397 = vmul.f32 %v1394, %v1396
      %v1398 = vadd.f32 %v1394, %v1397
      %vm1399 = vweird.f32 %v1393
      %vm1400 = vweird.f32 %v1394
      %vm1401 = vmor %vm1399, %vm1400
      %v1402 = vsel %vm1401, %v1394, %v1398
      %v1403 = vand.u32 2147483647, %v1393
      %vm1404 = vcmp.eq.f32.partialorder %v1403, 8.507059e+37
      %v1405 = vand.u32 %v1393, 2147483648
      %v1406 = vor.u32 1.1754944e-38, %v1405
      %v1407 = vsel %vm1404, %v1406, %v1402
      %v1408 = vmul.f32 1.0, %v1407
      %v1409 = vmul.f32 %v1389, %v1408
      %v1410 = vmul.f32 %v1409, %v1200
      %v1411 = vadd.f32 %v1410, %v1203
      %v1412 = vadd.f32 %v1411, %v1284
      %v1414 = vsel %vm357, %v1412, 0
      %1416 = vmatpush.msra.mxu0 0.0
      %1417 = vmatpush.msra.mxu0 0.0
      %1418 = vmatpush.msra.mxu0 0.0
      %1419 = vmatpush.msra.mxu0 0.0
      %1420 = vmatpush.msra.mxu0 0.0
      %1421 = vmatpush.msra.mxu0 0.0
      %1422 = vmatpush.msra.mxu0 0.0
      %1423 = vmatpush.msra.mxu0 0.0
      %1424 = vmatpush.msra.mxu0 0.0
      %1425 = vmatpush.msra.mxu0 0.0
      %1426 = vmatpush.msra.mxu0 0.0
      %1427 = vmatpush.msra.mxu0 0.0
      %1428 = vmatpush.msra.mxu0 %v1209
      %1429 = vmatpush.msra.mxu0 %v1208
      %1430 = vmatpush.msra.mxu0 %v1207
      %1431 = vmatpush.msra.mxu0 %v1206
      %1432 = vmatmul.f32.gmra.mxu0 %v1414
      %v1433 = vpop.f32.mrf.mxu0
      %v1434 = vadd.f32 %v1211, %v1433
      %1435 = vdwg.mxu0
      %v1436 = vsub.f32 0.0, %v1434
      %v1437 = vmul.f32 %v1436, 1.442695
      %v1438 = vpow.pop %v1437
      %v1439 = vadd.f32 %v1438, 1.0
      %v1440 = vrcp.pop %v1439
      %v1441 = vmul.f32 %v1439, %v1440
      %v1442 = vsub.f32 1.0, %v1441
      %v1443 = vmul.f32 %v1440, %v1442
      %v1444 = vadd.f32 %v1440, %v1443
      %vm1445 = vweird.f32 %v1439
      %vm1446 = vweird.f32 %v1440
      %vm1447 = vmor %vm1445, %vm1446
      %v1448 = vsel %vm1447, %v1440, %v1444
      %v1449 = vand.u32 2147483647, %v1439
      %vm1450 = vcmp.eq.f32.partialorder %v1449, 8.507059e+37
      %v1451 = vand.u32 %v1439, 2147483648
      %v1452 = vor.u32 1.1754944e-38, %v1451
      %v1453 = vsel %vm1450, %v1452, %v1448
      %v1454 = vmul.f32 1.0, %v1453
      %v1455 = vmul.f32 %v1434, %v1454
      %v1456 = vmul.f32 %v1455, %v1256
      %v1457 = vadd.f32 %v1456, %v1259
      %v1458 = vsel %vm527, %v1457, 0.0
      %v1459 = vrot.slane %v1458, 4
      %v1460 = vadd.f32 %v1458, %v1459
      %v1461 = vrot.slane %v1460, 2
      %v1462 = vadd.f32 %v1460, %v1461
      %v1463 = vrot.slane %v1462, 1
      %v1464 = vadd.f32 %v1462, %v1463
      %v1465 = vadd.f32 %v1366, %v1464
      %v1466 = vmul.f32 %v1465, 0.11111111
      %vm1467 = vcmask 253952
      %1468 = vst.msk [vmem:[%s220] sm:$0x1] %vm1467, %v1466
      %p1469 = scmp.lt.s32.totalorder %s16, 1
      %s1470 = scalar_select %p1469, %s16, 1
      %s1471 = scalar_lea.vmem %s5, %s1470
      // Predicated region
      $region41: #{multi_seam_forward.5} parent=39 // pred_check
        %p1472 = pneg %p144
      $region42: #{multi_seam_forward.5} parent=39 // pred_check_branch
        %1474 = sbr.rel (%p1472) target = $region44
      $region43: #{multi_seam_forward.5} parent=39 // pred_region
        _
      $region44: #{multi_seam_forward.5} parent=39 // pred_fallthru
        _
    $region40: #{multi_seam_forward.5} parent=5 // pred_fallthru
      _
    %p1475 = scmp.le.s32.totalorder 2, %s11
    // Predicated region
    $region45: #{multi_seam_forward.5} parent=5 // pred_check
      %p1476 = pneg %p1475
    $region46: #{multi_seam_forward.5} parent=5 // pred_check_branch
      %1478 = sbr.rel (%p1476) target = $region48
    $region47: #{multi_seam_forward.5} parent=5 // pred_region
      %s1479 = ssub.s32 %s11, 2
      // Predicated region
      $region49: #{multi_seam_forward.5} parent=47 // pred_check
        %p1480 = pneg %p150
      $region50: #{multi_seam_forward.5} parent=47 // pred_check_branch
        %1482 = sbr.rel (%p1480) target = $region52
      $region51: #{multi_seam_forward.5} parent=47 // pred_region
        %p1483 = scmp.lt.s32.totalorder %s17, 1
        %s1484 = scalar_select %p1483, %s17, 1
        %s1485 = scalar_lea.vmem %s5, %s1484
      $region52: #{multi_seam_forward.5} parent=47 // pred_fallthru
        _
    $region48: #{multi_seam_forward.5} parent=5 // pred_fallthru
      _
  $region6: #{multi_seam_forward.5} parent=0 // loop_footer
    %s15 = sadd.s32 1, %s11
  $region7: #{multi_seam_forward.5} parent=0 // loop_footer_branch
    %10 = sbr.rel target = $region3
  $region8: #{multi_seam_forward.5} parent=0 // loop_exit
    _

// kernel: multi_seam_forward.7
$region0: #{multi_seam_forward.7}
  #allocation0 [shape = 'u32[]', space=smem, size = 0x4, offset = 0x4, fixed_abs, tag = 'smem constant byte address 0x4 - core index']
  #allocation1 [shape = 'u32[72,128]{1,0:T(1,128)}', space=vmem, size = 0x9000, scoped, tag = 'internal scratch']
  %s0 = inlined_call_operand.vmem [shape: f32[2,256,32], index: 0, kind: input, shape index: {}]
  %s1 = inlined_call_operand.vmem [shape: f32[2,1,32], index: 1, kind: input, shape index: {}]
  %s2 = inlined_call_operand.vmem [shape: f32[2,1,32], index: 2, kind: input, shape index: {}]
  %s3 = inlined_call_operand.vmem [shape: f32[2,1,32], index: 3, kind: input, shape index: {}]
  %s4 = inlined_call_operand.vmem [shape: f32[2,32], index: 4, kind: input, shape index: {}]
  %s5 = inlined_call_operand.vmem [shape: f32[2,32], index: 5, kind: input, shape index: {}]
  %s6 = inlined_call_operand.hbm [shape: f32[2,256,32], index: 6, kind: output, shape index: {}]
  %s7 = sld [smem:[#allocation0]]
  $region57: #{multi_seam_forward.7} parent=0
    _
  %s9 = ssub.s32 1, %s7
  %s10 = scalar_select 0, %s9, %s7
  $region1: #{multi_seam_forward.7} parent=0
    #allocation2 [shape = 'u8[262144]{0}', space=vmem, size = 0x40000, scoped, tag = 'output window, operand 0']
    #allocation3 [shape = 's32[2]{0}', space=sflag, size = 0x8, scoped, tag = 'scoped memory for multi_seam_forward.7']
    %11 = vsyncpa [#allocation3], 0
    %s12 = scalar_lea.sflag [#allocation3], 1
    %13 = vsyncpa %s12, 0
    loop: start=0, step=1, limit=4
    $region2: #{multi_seam_forward.7} parent=1 // loop_pre_header
      _
    $region3: #{multi_seam_forward.7} parent=1 // loop_header
      %s15 = sphi 0, %s19
      %p16 = scmp.ge.s32.totalorder %s15, 4
      %s25 = sphi 0, %s27
      %s28 = sphi 0, %s25
      %s29 = sphi 0, %s28
      %s45 = sphi 0, %s29
      %s51 = sphi 0, %s53
      %s54 = sphi 0, %s51
      %s55 = sphi 0, %s54
      %s71 = sphi 0, %s55
      %s77 = sphi 0, %s79
      %s80 = sphi 0, %s77
      %s81 = sphi 0, %s80
      %s97 = sphi 0, %s81
      %s103 = sphi 0, %s105
      %s106 = sphi 0, %s103
      %s107 = sphi 0, %s106
      %s123 = sphi 0, %s107
      %s127 = sphi 0, %s127
      %s129 = sphi 0, %s127
      %s130 = sphi 0, %s129
      %s144 = sphi 0, %s130
      %s148 = sphi 0, %s148
      %s150 = sphi 0, %s148
      %s151 = sphi 0, %s150
      %s165 = sphi 0, %s151
      %s171 = sphi 0, %s173
      %s174 = sphi 0, %s171
      %s175 = sphi 0, %s174
      %s191 = sphi 0, %s175
    $region4: #{multi_seam_forward.7} parent=1 // loop_header_branch
      %18 = sbr.rel (%p16) target = $region8
    $region5: #{multi_seam_forward.7} parent=1 // loop_body
      %s20 = ssub.s32 %s15, 1
      %s21 = ssub.s32 %s15, 2
      %s22 = sadd.s32 %s15, 1
      %s23 = ssub.s32 %s15, %s22
      %p24 = scmp.eq.s32.totalorder %s23, 0
      %s26 = sadd.s32 %s25, 1
      %s27 = scalar_select %p24, %s25, %s26
      %p30 = pneg %p24
      %p31 = scmp.eq.s32.totalorder %s15, 1
      %p32 = por %p30, %p31
      %p33 = scmp.ne.s32.totalorder %s25, %s28
      %p34 = scmp.eq.s32.totalorder %s15, 0
      %p35 = por %p33, %p34
      %p36 = scmp.ne.s32.totalorder %s25, %s28
      %p37 = scmp.eq.s32.totalorder %s20, 1
      %p38 = por %p36, %p37
      %p39 = scmp.ne.s32.totalorder %s28, %s29
      %p40 = scmp.eq.s32.totalorder %s20, 0
      %p41 = por %p39, %p40
      %p42 = scmp.ne.s32.totalorder %s28, %s29
      %p43 = scmp.eq.s32.totalorder %s21, 1
      %p44 = por %p42, %p43
      %p46 = scmp.ne.s32.totalorder %s29, %s45
      %p47 = scmp.eq.s32.totalorder %s21, 0
      %p48 = por %p46, %p47
      %s49 = ssub.s32 %s15, %s22
      %p50 = scmp.eq.s32.totalorder %s49, 0
      %s52 = sadd.s32 %s51, 1
      %s53 = scalar_select %p50, %s51, %s52
      %p56 = pneg %p50
      %p57 = scmp.eq.s32.totalorder %s15, 1
      %p58 = por %p56, %p57
      %p59 = scmp.ne.s32.totalorder %s51, %s54
      %p60 = scmp.eq.s32.totalorder %s15, 0
      %p61 = por %p59, %p60
      %p62 = scmp.ne.s32.totalorder %s51, %s54
      %p63 = scmp.eq.s32.totalorder %s20, 1
      %p64 = por %p62, %p63
      %p65 = scmp.ne.s32.totalorder %s54, %s55
      %p66 = scmp.eq.s32.totalorder %s20, 0
      %p67 = por %p65, %p66
      %p68 = scmp.ne.s32.totalorder %s54, %s55
      %p69 = scmp.eq.s32.totalorder %s21, 1
      %p70 = por %p68, %p69
      %p72 = scmp.ne.s32.totalorder %s55, %s71
      %p73 = scmp.eq.s32.totalorder %s21, 0
      %p74 = por %p72, %p73
      %s75 = ssub.s32 %s15, %s22
      %p76 = scmp.eq.s32.totalorder %s75, 0
      %s78 = sadd.s32 %s77, 1
      %s79 = scalar_select %p76, %s77, %s78
      %p82 = pneg %p76
      %p83 = scmp.eq.s32.totalorder %s15, 1
      %p84 = por %p82, %p83
      %p85 = scmp.ne.s32.totalorder %s77, %s80
      %p86 = scmp.eq.s32.totalorder %s15, 0
      %p87 = por %p85, %p86
      %p88 = scmp.ne.s32.totalorder %s77, %s80
      %p89 = scmp.eq.s32.totalorder %s20, 1
      %p90 = por %p88, %p89
      %p91 = scmp.ne.s32.totalorder %s80, %s81
      %p92 = scmp.eq.s32.totalorder %s20, 0
      %p93 = por %p91, %p92
      %p94 = scmp.ne.s32.totalorder %s80, %s81
      %p95 = scmp.eq.s32.totalorder %s21, 1
      %p96 = por %p94, %p95
      %p98 = scmp.ne.s32.totalorder %s81, %s97
      %p99 = scmp.eq.s32.totalorder %s21, 0
      %p100 = por %p98, %p99
      %s101 = ssub.s32 %s15, %s22
      %p102 = scmp.eq.s32.totalorder %s101, 0
      %s104 = sadd.s32 %s103, 1
      %s105 = scalar_select %p102, %s103, %s104
      %p108 = pneg %p102
      %p109 = scmp.eq.s32.totalorder %s15, 1
      %p110 = por %p108, %p109
      %p111 = scmp.ne.s32.totalorder %s103, %s106
      %p112 = scmp.eq.s32.totalorder %s15, 0
      %p113 = por %p111, %p112
      %p114 = scmp.ne.s32.totalorder %s103, %s106
      %p115 = scmp.eq.s32.totalorder %s20, 1
      %p116 = por %p114, %p115
      %p117 = scmp.ne.s32.totalorder %s106, %s107
      %p118 = scmp.eq.s32.totalorder %s20, 0
      %p119 = por %p117, %p118
      %p120 = scmp.ne.s32.totalorder %s106, %s107
      %p121 = scmp.eq.s32.totalorder %s21, 1
      %p122 = por %p120, %p121
      %p124 = scmp.ne.s32.totalorder %s107, %s123
      %p125 = scmp.eq.s32.totalorder %s21, 0
      %p126 = por %p124, %p125
      %s128 = sadd.s32 %s127, 1
      %p131 = scmp.eq.s32.totalorder %s15, 1
      %p132 = scmp.ne.s32.totalorder %s127, %s129
      %p133 = scmp.eq.s32.totalorder %s15, 0
      %p134 = por %p132, %p133
      %p135 = scmp.ne.s32.totalorder %s127, %s129
      %p136 = scmp.eq.s32.totalorder %s20, 1
      %p137 = por %p135, %p136
      %p138 = scmp.ne.s32.totalorder %s129, %s130
      %p139 = scmp.eq.s32.totalorder %s20, 0
      %p140 = por %p138, %p139
      %p141 = scmp.ne.s32.totalorder %s129, %s130
      %p142 = scmp.eq.s32.totalorder %s21, 1
      %p143 = por %p141, %p142
      %p145 = scmp.ne.s32.totalorder %s130, %s144
      %p146 = scmp.eq.s32.totalorder %s21, 0
      %p147 = por %p145, %p146
      %s149 = sadd.s32 %s148, 1
      %p152 = scmp.eq.s32.totalorder %s15, 1
      %p153 = scmp.ne.s32.totalorder %s148, %s150
      %p154 = scmp.eq.s32.totalorder %s15, 0
      %p155 = por %p153, %p154
      %p156 = scmp.ne.s32.totalorder %s148, %s150
      %p157 = scmp.eq.s32.totalorder %s20, 1
      %p158 = por %p156, %p157
      %p159 = scmp.ne.s32.totalorder %s150, %s151
      %p160 = scmp.eq.s32.totalorder %s20, 0
      %p161 = por %p159, %p160
      %p162 = scmp.ne.s32.totalorder %s150, %s151
      %p163 = scmp.eq.s32.totalorder %s21, 1
      %p164 = por %p162, %p163
      %p166 = scmp.ne.s32.totalorder %s151, %s165
      %p167 = scmp.eq.s32.totalorder %s21, 0
      %p168 = por %p166, %p167
      %s169 = ssub.s32 %s15, %s22
      %p170 = scmp.eq.s32.totalorder %s169, 0
      %s172 = sadd.s32 %s171, 1
      %s173 = scalar_select %p170, %s171, %s172
      %p176 = pneg %p170
      %p177 = scmp.eq.s32.totalorder %s15, 1
      %p178 = por %p176, %p177
      %p179 = scmp.ne.s32.totalorder %s171, %s174
      %p180 = scmp.eq.s32.totalorder %s15, 0
      %p181 = por %p179, %p180
      %p182 = scmp.ne.s32.totalorder %s171, %s174
      %p183 = scmp.eq.s32.totalorder %s20, 1
      %p184 = por %p182, %p183
      %p185 = scmp.ne.s32.totalorder %s174, %s175
      %p186 = scmp.eq.s32.totalorder %s20, 0
      %p187 = por %p185, %p186
      %p188 = scmp.ne.s32.totalorder %s174, %s175
      %p189 = scmp.eq.s32.totalorder %s21, 1
      %p190 = por %p188, %p189
      %p192 = scmp.ne.s32.totalorder %s175, %s191
      %p193 = scmp.eq.s32.totalorder %s21, 0
      %p194 = por %p192, %p193
      %p195 = scmp.le.s32.totalorder 1, %s15
      %p196 = scmp.lt.s32.totalorder %s15, 3
      %p197 = pnand %p195, %p196
      %p198 = pneg %p197
      // Predicated region
      $region9: #{multi_seam_forward.7} parent=5 // pred_check
        _
      $region10: #{multi_seam_forward.7} parent=5 // pred_check_branch
        %200 = sbr.rel (%p197) target = $region12
      $region11: #{multi_seam_forward.7} parent=5 // pred_region
        %s201 = ssub.s32 %s15, 1
        // Predicated region
        $region13: #{multi_seam_forward.7} parent=11 // pred_check
          %p202 = pneg %p140
        $region14: #{multi_seam_forward.7} parent=11 // pred_check_branch
          %204 = sbr.rel (%p202) target = $region16
        $region15: #{multi_seam_forward.7} parent=11 // pred_region
          _
        $region16: #{multi_seam_forward.7} parent=11 // pred_fallthru
          _
        // Predicated region
        $region17: #{multi_seam_forward.7} parent=11 // pred_check
          %p205 = pneg %p161
        $region18: #{multi_seam_forward.7} parent=11 // pred_check_branch
          %207 = sbr.rel (%p205) target = $region20
        $region19: #{multi_seam_forward.7} parent=11 // pred_region
          _
        $region20: #{multi_seam_forward.7} parent=11 // pred_fallthru
          _
      $region12: #{multi_seam_forward.7} parent=5 // pred_fallthru
        _
      %p208 = scmp.lt.s32.totalorder %s15, 2
      // Predicated region
      $region21: #{multi_seam_forward.7} parent=5 // pred_check
        %p209 = pneg %p208
      $region22: #{multi_seam_forward.7} parent=5 // pred_check_branch
        %211 = sbr.rel (%p209) target = $region24
      $region23: #{multi_seam_forward.7} parent=5 // pred_region
        // Predicated region
        $region25: #{multi_seam_forward.7} parent=23 // pred_check
          %p212 = pneg %p35
        $region26: #{multi_seam_forward.7} parent=23 // pred_check_branch
          %214 = sbr.rel (%p212) target = $region28
        $region27: #{multi_seam_forward.7} parent=23 // pred_region
          %p215 = scmp.lt.s32.totalorder %s15, 1
          %s216 = scalar_select %p215, %s15, 1
          %s217 = smul.addr %s216, 32
          %s218 = smul.addr %s217, 8
          %s219 = scalar_lea.vmem %s0, %s218
        $region28: #{multi_seam_forward.7} parent=23 // pred_fallthru
          _
        // Predicated region
        $region29: #{multi_seam_forward.7} parent=23 // pred_check
          %p220 = pneg %p61
        $region30: #{multi_seam_forward.7} parent=23 // pred_check_branch
          %222 = sbr.rel (%p220) target = $region32
        $region31: #{multi_seam_forward.7} parent=23 // pred_region
          %p223 = scmp.lt.s32.totalorder %s15, 1
          %s224 = scalar_select %p223, %s15, 1
          %s225 = scalar_lea.vmem %s1, %s224
        $region32: #{multi_seam_forward.7} parent=23 // pred_fallthru
          _
        // Predicated region
        $region33: #{multi_seam_forward.7} parent=23 // pred_check
          %p226 = pneg %p87
        $region34: #{multi_seam_forward.7} parent=23 // pred_check_branch
          %228 = sbr.rel (%p226) target = $region36
        $region35: #{multi_seam_forward.7} parent=23 // pred_region
          %p229 = scmp.lt.s32.totalorder %s15, 1
          %s230 = scalar_select %p229, %s15, 1
          %s231 = scalar_lea.vmem %s2, %s230
        $region36: #{multi_seam_forward.7} parent=23 // pred_fallthru
          _
        // Predicated region
        $region37: #{multi_seam_forward.7} parent=23 // pred_check
          %p232 = pneg %p113
        $region38: #{multi_seam_forward.7} parent=23 // pred_check_branch
          %234 = sbr.rel (%p232) target = $region40
        $region39: #{multi_seam_forward.7} parent=23 // pred_region
          %p235 = scmp.lt.s32.totalorder %s15, 1
          %s236 = scalar_select %p235, %s15, 1
          %s237 = scalar_lea.vmem %s3, %s236
        $region40: #{multi_seam_forward.7} parent=23 // pred_fallthru
          _
      $region24: #{multi_seam_forward.7} parent=5 // pred_fallthru
        _
      %p238 = scmp.le.s32.totalorder 1, %s15
      %p239 = scmp.lt.s32.totalorder %s15, 3
      %p240 = pnand %p238, %p239
      %p241 = pneg %p240
      // Predicated region
      $region41: #{multi_seam_forward.7} parent=5 // pred_check
        _
      $region42: #{multi_seam_forward.7} parent=5 // pred_check_branch
        %243 = sbr.rel (%p240) target = $region44
      $region43: #{multi_seam_forward.7} parent=5 // pred_region
        %s244 = ssub.s32 %s15, 1
        %p245 = scmp.lt.s32.totalorder %s20, 1
        %s246 = scalar_select %p245, %s20, 1
        %s247 = smul.addr %s246, 32
        %s248 = smul.addr %s247, 8
        %s249 = scalar_lea.vmem %s0, %s248
        %p250 = pneg %p41
        %p251 = pneg %p38
        %p252 = scmp.lt.s32.totalorder %s20, 1
        %s253 = scalar_select %p252, %s20, 1
        %s254 = scalar_lea.vmem %s1, %s253
        %p255 = pneg %p67
        %p256 = pneg %p64
        %p257 = scmp.lt.s32.totalorder %s20, 1
        %s258 = scalar_select %p257, %s20, 1
        %s259 = scalar_lea.vmem %s2, %s258
        %p260 = pneg %p93
        %p261 = pneg %p90
        %p262 = scmp.lt.s32.totalorder %s20, 1
        %s263 = scalar_select %p262, %s20, 1
        %s264 = scalar_lea.vmem %s3, %s263
        %p265 = pneg %p119
        %p266 = pneg %p116
        %p267 = pneg %p140
        %p268 = pneg %p137
        %p269 = pneg %p161
        %p270 = pneg %p158
        %p271 = pneg %p187
        %p272 = pneg %p184
        %s273 = sand.u32 %s174, 1
        %s274 = scalar_lea.sflag [#allocation3], %s273
        %s275 = sand.u32 %s174, 1
        %s276 = smul.addr %s275, 256
        %s277 = scalar_lea.vmem [#allocation2], %s276
        %p278 = scmp.lt.s32.totalorder %s20, 1
        %s279 = scalar_select %p278, %s20, 1
        %s280 = smul.addr %s279, 32
        %s281 = smul.addr %s280, 8
        %s282 = scalar_lea.vmem %s0, %s281
        %p283 = scmp.lt.s32.totalorder %s20, 1
        %s284 = scalar_select %p283, %s20, 1
        %s285 = scalar_lea.vmem %s1, %s284
        %p286 = scmp.lt.s32.totalorder %s20, 1
        %s287 = scalar_select %p286, %s20, 1
        %s288 = scalar_lea.vmem %s2, %s287
        %p289 = scmp.lt.s32.totalorder %s20, 1
        %s290 = scalar_select %p289, %s20, 1
        %s291 = scalar_lea.vmem %s3, %s290
        %v292 = vld [vmem:[%s282] sm:$0xff]
        %v293 = vld [vmem:[%s282 + $0x8] sm:$0xff]
        %v294 = vld [vmem:[%s282 + $0x10] sm:$0xff]
        %v295 = vld [vmem:[%s282 + $0x18] sm:$0xff]
        %v296 = vld [vmem:[%s282 + $0x20] sm:$0xff]
        %v297 = vld [vmem:[%s282 + $0x28] sm:$0xff]
        %v298 = vld [vmem:[%s282 + $0x30] sm:$0xff]
        %v299 = vld [vmem:[%s282 + $0x38] sm:$0xff]
        %v300 = vld [vmem:[%s282 + $0x40] sm:$0xff]
        %v301 = vld [vmem:[%s282 + $0x48] sm:$0xff]
        %v302 = vld [vmem:[%s282 + $0x50] sm:$0xff]
        %v303 = vld [vmem:[%s282 + $0x58] sm:$0xff]
        %v304 = vld [vmem:[%s282 + $0x60] sm:$0xff]
        %v305 = vld [vmem:[%s282 + $0x68] sm:$0xff]
        %v306 = vld [vmem:[%s282 + $0x70] sm:$0xff]
        %v307 = vld [vmem:[%s282 + $0x78] sm:$0xff]
        %v308 = vld [vmem:[%s282 + $0x80] sm:$0xff]
        %v309 = vld [vmem:[%s282 + $0x88] sm:$0xff]
        %v310 = vld [vmem:[%s282 + $0x90] sm:$0xff]
        %v311 = vld [vmem:[%s282 + $0x98] sm:$0xff]
        %v312 = vld [vmem:[%s282 + $0xa0] sm:$0xff]
        %v313 = vld [vmem:[%s282 + $0xa8] sm:$0xff]
        %v314 = vld [vmem:[%s282 + $0xb0] sm:$0xff]
        %v315 = vld [vmem:[%s282 + $0xb8] sm:$0xff]
        %v316 = vld [vmem:[%s282 + $0xc0] sm:$0xff]
        %v317 = vld [vmem:[%s282 + $0xc8] sm:$0xff]
        %v318 = vld [vmem:[%s282 + $0xd0] sm:$0xff]
        %v319 = vld [vmem:[%s282 + $0xd8] sm:$0xff]
        %v320 = vld [vmem:[%s282 + $0xe0] sm:$0xff]
        %v321 = vld [vmem:[%s282 + $0xe8] sm:$0xff]
        %v322 = vld [vmem:[%s282 + $0xf0] sm:$0xff]
        %v323 = vld [vmem:[%s282 + $0xf8] sm:$0xff]
        %vm324 = vcmask 261120
        %v325 = vsel %vm324, %v292, 0.0
        %v326 = vsel %vm324, %v293, 0.0
        %v327 = vadd.f32 %v325, %v326
        %v328 = vsel %vm324, %v294, 0.0
        %v329 = vadd.f32 %v327, %v328
        %v330 = vsel %vm324, %v295, 0.0
        %v331 = vadd.f32 %v329, %v330
        %v332 = vsel %vm324, %v296, 0.0
        %v333 = vadd.f32 %v331, %v332
        %v334 = vsel %vm324, %v297, 0.0
        %v335 = vadd.f32 %v333, %v334
        %v336 = vsel %vm324, %v298, 0.0
        %v337 = vadd.f32 %v335, %v336
        %v338 = vsel %vm324, %v299, 0.0
        %v339 = vadd.f32 %v337, %v338
        %v340 = vsel %vm324, %v300, 0.0
        %v341 = vadd.f32 %v339, %v340
        %v342 = vsel %vm324, %v301, 0.0
        %v343 = vadd.f32 %v341, %v342
        %v344 = vsel %vm324, %v302, 0.0
        %v345 = vadd.f32 %v343, %v344
        %v346 = vsel %vm324, %v303, 0.0
        %v347 = vadd.f32 %v345, %v346
        %v348 = vsel %vm324, %v304, 0.0
        %v349 = vadd.f32 %v347, %v348
        %v350 = vsel %vm324, %v305, 0.0
        %v351 = vadd.f32 %v349, %v350
        %v352 = vsel %vm324, %v306, 0.0
        %v353 = vadd.f32 %v351, %v352
        %v354 = vsel %vm324, %v307, 0.0
        %v355 = vadd.f32 %v353, %v354
        %v356 = vsel %vm324, %v308, 0.0
        %v357 = vadd.f32 %v355, %v356
        %v358 = vsel %vm324, %v309, 0.0
        %v359 = vadd.f32 %v357, %v358
        %v360 = vsel %vm324, %v310, 0.0
        %v361 = vadd.f32 %v359, %v360
        %v362 = vsel %vm324, %v311, 0.0
        %v363 = vadd.f32 %v361, %v362
        %v364 = vsel %vm324, %v312, 0.0
        %v365 = vadd.f32 %v363, %v364
        %v366 = vsel %vm324, %v313, 0.0
        %v367 = vadd.f32 %v365, %v366
        %v368 = vsel %vm324, %v314, 0.0
        %v369 = vadd.f32 %v367, %v368
        %v370 = vsel %vm324, %v315, 0.0
        %v371 = vadd.f32 %v369, %v370
        %v372 = vsel %vm324, %v316, 0.0
        %v373 = vadd.f32 %v371, %v372
        %v374 = vsel %vm324, %v317, 0.0
        %v375 = vadd.f32 %v373, %v374
        %v376 = vsel %vm324, %v318, 0.0
        %v377 = vadd.f32 %v375, %v376
        %v378 = vsel %vm324, %v319, 0.0
        %v379 = vadd.f32 %v377, %v378
        %v380 = vsel %vm324, %v320, 0.0
        %v381 = vadd.f32 %v379, %v380
        %v382 = vsel %vm324, %v321, 0.0
        %v383 = vadd.f32 %v381, %v382
        %v384 = vsel %vm324, %v322, 0.0
        %v385 = vadd.f32 %v383, %v384
        %v386 = vsel %vm324, %v323, 0.0
        %v387 = vadd.f32 %v385, %v386
        %v388 = vrot.slane %v387, 4
        %v389 = vadd.f32 %v387, %v388
        %v390 = vrot.slane %v389, 2
        %v391 = vadd.f32 %v389, %v390
        %v392 = vrot.slane %v391, 1
        %v393 = vadd.f32 %v391, %v392
        %v394 = vrcp.pop 256.0
        %v395 = vmul.f32 256.0, %v394
        %v396 = vsub.f32 1.0, %v395
        %v397 = vmul.f32 %v394, %v396
        %v398 = vadd.f32 %v394, %v397
        %vm399 = vweird.f32 %v394
        %v400 = vsel %vm399, %v394, %v398
        %v401 = vmul.f32 %v393, %v400
        %v402 = vld [vmem:[%s285] sm:$0x1]
        %v403 = vld [vmem:[%s288] sm:$0x1]
        %v404 = vadd.f32 %v402, %v403
        %v405 = vld [vmem:[%s291] sm:$0x1]
        %v406 = vadd.f32 %v404, %v405
        %v407 = vadd.f32 %v406, %v401
        %v408 = vmul.f32 %v407, 0.25
        %v409 = vld [vmem:[%s4] sm:$0x1]
        %v410 = vmul.f32 %v408, %v409
        %vm411 = vcmask 253952
        %v412 = vsel %vm411, %v410, 0.0
        %413 = vadd.xlane.f32.xlu0 %v412
        %v414 = vpop.xlane.xlu0 %413
        %v415 = vrot.slane %v414, 4
        %v416 = vadd.f32 %v414, %v415
        %v417 = vrot.slane %v416, 2
        %v418 = vadd.f32 %v416, %v417
        %v419 = vrot.slane %v418, 1
        %v420 = vadd.f32 %v418, %v419
        %s421 = vtos %v420
        %s422 = smax.f32 %s421, 0.0
        %v423 = vld [vmem:[%s5] sm:$0x1]
        %v424 = vstv %s422
        %v425 = vmul.f32 %v424, %v423
        %v426 = vadd.f32 %v425, 0.0
        %v427 = vld [vmem:[%s4 + $0x1] sm:$0x1]
        %v428 = vmul.f32 %v408, %v427
        %v429 = vsel %vm411, %v428, 0.0
        %430 = vadd.xlane.f32.xlu0 %v429
        %v431 = vpop.xlane.xlu0 %430
        %v432 = vrot.slane %v431, 4
        %v433 = vadd.f32 %v431, %v432
        %v434 = vrot.slane %v433, 2
        %v435 = vadd.f32 %v433, %v434
        %v436 = vrot.slane %v435, 1
        %v437 = vadd.f32 %v435, %v436
        %s438 = vtos %v437
        %s439 = smax.f32 %s438, 0.0
        %v440 = vld [vmem:[%s5 + $0x1] sm:$0x1]
        %v441 = vstv %s439
        %v442 = vmul.f32 %v441, %v440
        %v443 = vadd.f32 %v426, %v442
        %v444 = vsub.f32 0.0, %v443
        %v445 = vmul.f32 %v444, 1.442695
        %v446 = vpow.pop %v445
        %v447 = vadd.f32 %v446, 1.0
        %v448 = vrcp.pop %v447
        %v449 = vmul.f32 %v447, %v448
        %v450 = vsub.f32 1.0, %v449
        %v451 = vmul.f32 %v448, %v450
        %v452 = vadd.f32 %v448, %v451
        %vm453 = vweird.f32 %v447
        %vm454 = vweird.f32 %v448
        %vm455 = vmor %vm453, %vm454
        %v456 = vsel %vm455, %v448, %v452
        %v457 = vand.u32 2147483647, %v447
        %vm458 = vcmp.eq.f32.partialorder %v457, 8.507059e+37
        %v459 = vand.u32 %v447, 2147483648
        %v460 = vor.u32 1.1754944e-38, %v459
        %v461 = vsel %vm458, %v460, %v456
        %v462 = vmul.f32 1.0, %v461
        %v463 = vmul.f32 %v462, 1.442695
        %v464 = vpow.pop %v463
        %v465 = vperm.slane %v464, 0
        %v466 = vmul.f32 %v292, %v465
        %v467 = vmul.f32 %v293, %v465
        %v468 = vmul.f32 %v294, %v465
        %v469 = vmul.f32 %v295, %v465
        %v470 = vmul.f32 %v296, %v465
        %v471 = vmul.f32 %v297, %v465
        %v472 = vmul.f32 %v298, %v465
        %v473 = vmul.f32 %v299, %v465
        %v474 = vmul.f32 %v300, %v465
        %v475 = vmul.f32 %v301, %v465
        %v476 = vmul.f32 %v302, %v465
        %v477 = vmul.f32 %v303, %v465
        %v478 = vmul.f32 %v304, %v465
        %v479 = vmul.f32 %v305, %v465
        %v480 = vmul.f32 %v306, %v465
        %v481 = vmul.f32 %v307, %v465
        %v482 = vmul.f32 %v308, %v465
        %v483 = vmul.f32 %v309, %v465
        %v484 = vmul.f32 %v310, %v465
        %v485 = vmul.f32 %v311, %v465
        %v486 = vmul.f32 %v312, %v465
        %v487 = vmul.f32 %v313, %v465
        %v488 = vmul.f32 %v314, %v465
        %v489 = vmul.f32 %v315, %v465
        %v490 = vmul.f32 %v316, %v465
        %v491 = vmul.f32 %v317, %v465
        %v492 = vmul.f32 %v318, %v465
        %v493 = vmul.f32 %v319, %v465
        %v494 = vmul.f32 %v320, %v465
        %v495 = vmul.f32 %v321, %v465
        %v496 = vmul.f32 %v322, %v465
        %v497 = vmul.f32 %v323, %v465
        %498 = vst.msk [vmem:[%s277] sm:$0xff] %vm324, %v466
        %499 = vst.msk [vmem:[%s277 + $0x8] sm:$0xff] %vm324, %v467
        %500 = vst.msk [vmem:[%s277 + $0x10] sm:$0xff] %vm324, %v468
        %501 = vst.msk [vmem:[%s277 + $0x18] sm:$0xff] %vm324, %v469
        %502 = vst.msk [vmem:[%s277 + $0x20] sm:$0xff] %vm324, %v470
        %503 = vst.msk [vmem:[%s277 + $0x28] sm:$0xff] %vm324, %v471
        %504 = vst.msk [vmem:[%s277 + $0x30] sm:$0xff] %vm324, %v472
        %505 = vst.msk [vmem:[%s277 + $0x38] sm:$0xff] %vm324, %v473
        %506 = vst.msk [vmem:[%s277 + $0x40] sm:$0xff] %vm324, %v474
        %507 = vst.msk [vmem:[%s277 + $0x48] sm:$0xff] %vm324, %v475
        %508 = vst.msk [vmem:[%s277 + $0x50] sm:$0xff] %vm324, %v476
        %509 = vst.msk [vmem:[%s277 + $0x58] sm:$0xff] %vm324, %v477
        %510 = vst.msk [vmem:[%s277 + $0x60] sm:$0xff] %vm324, %v478
        %511 = vst.msk [vmem:[%s277 + $0x68] sm:$0xff] %vm324, %v479
        %512 = vst.msk [vmem:[%s277 + $0x70] sm:$0xff] %vm324, %v480
        %513 = vst.msk [vmem:[%s277 + $0x78] sm:$0xff] %vm324, %v481
        %514 = vst.msk [vmem:[%s277 + $0x80] sm:$0xff] %vm324, %v482
        %515 = vst.msk [vmem:[%s277 + $0x88] sm:$0xff] %vm324, %v483
        %516 = vst.msk [vmem:[%s277 + $0x90] sm:$0xff] %vm324, %v484
        %517 = vst.msk [vmem:[%s277 + $0x98] sm:$0xff] %vm324, %v485
        %518 = vst.msk [vmem:[%s277 + $0xa0] sm:$0xff] %vm324, %v486
        %519 = vst.msk [vmem:[%s277 + $0xa8] sm:$0xff] %vm324, %v487
        %520 = vst.msk [vmem:[%s277 + $0xb0] sm:$0xff] %vm324, %v488
        %521 = vst.msk [vmem:[%s277 + $0xb8] sm:$0xff] %vm324, %v489
        %522 = vst.msk [vmem:[%s277 + $0xc0] sm:$0xff] %vm324, %v490
        %523 = vst.msk [vmem:[%s277 + $0xc8] sm:$0xff] %vm324, %v491
        %524 = vst.msk [vmem:[%s277 + $0xd0] sm:$0xff] %vm324, %v492
        %525 = vst.msk [vmem:[%s277 + $0xd8] sm:$0xff] %vm324, %v493
        %526 = vst.msk [vmem:[%s277 + $0xe0] sm:$0xff] %vm324, %v494
        %527 = vst.msk [vmem:[%s277 + $0xe8] sm:$0xff] %vm324, %v495
        %528 = vst.msk [vmem:[%s277 + $0xf0] sm:$0xff] %vm324, %v496
        %529 = vst.msk [vmem:[%s277 + $0xf8] sm:$0xff] %vm324, %v497
        %s530 = sand.u32 %s174, 1
        %s531 = scalar_lea.sflag [#allocation3], %s530
        %s532 = sand.u32 %s174, 1
        %s533 = smul.addr %s532, 256
        %s534 = scalar_lea.vmem [#allocation2], %s533
        // Predicated region
        $region45: #{multi_seam_forward.7} parent=43 // pred_check
          %p535 = pneg %p184
        $region46: #{multi_seam_forward.7} parent=43 // pred_check_branch
          %537 = sbr.rel (%p535) target = $region48
        $region47: #{multi_seam_forward.7} parent=43 // pred_region
          %539 = vsyncadd %s531, 0
          %s540 = smul.addr %s20, 32
          %s541 = smul.addr %s540, 8
          %s542 = scalar_lea.hbm %s6, %s541
          %s543 = sshll.u32 %s534, 4
          %s544 = int_to_ptr.vmem [resolvable:$true] %s543
          %s545 = sshll.u32 %s542, 4
          %s546 = int_to_ptr.hbm [resolvable:$true] %s545
          %551 = dma.vmem_to_hbm [thread:$0]  %s544, 4096, %s546, %s531, 128, 128, 8
        $region48: #{multi_seam_forward.7} parent=43 // pred_fallthru
          _
      $region44: #{multi_seam_forward.7} parent=5 // pred_fallthru
        _
      %p552 = scmp.le.s32.totalorder 2, %s15
      // Predicated region
      $region49: #{multi_seam_forward.7} parent=5 // pred_check
        %p553 = pneg %p552
      $region50: #{multi_seam_forward.7} parent=5 // pred_check_branch
        %555 = sbr.rel (%p553) target = $region52
      $region51: #{multi_seam_forward.7} parent=5 // pred_region
        %s556 = ssub.s32 %s15, 2
        // Predicated region
        $region53: #{multi_seam_forward.7} parent=51 // pred_check
          %p557 = pneg %p190
        $region54: #{multi_seam_forward.7} parent=51 // pred_check_branch
          %559 = sbr.rel (%p557) target = $region56
        $region55: #{multi_seam_forward.7} parent=51 // pred_region
          %s560 = sand.u32 %s175, 1
          %s561 = scalar_lea.sflag [#allocation3], %s560
          %s562 = sand.u32 %s175, 1
          %s563 = smul.addr %s562, 256
          %s564 = scalar_lea.vmem [#allocation2], %s563
          %566 = dma.done %s561, 4096
        $region56: #{multi_seam_forward.7} parent=51 // pred_fallthru
          _
      $region52: #{multi_seam_forward.7} parent=5 // pred_fallthru
        _
    $region6: #{multi_seam_forward.7} parent=1 // loop_footer
      %s19 = sadd.s32 1, %s15
    $region7: #{multi_seam_forward.7} parent=1 // loop_footer_branch
      %14 = sbr.rel target = $region3
    $region8: #{multi_seam_forward.7} parent=1 // loop_exit
      _
    %567 = vsyncpa [#allocation3], 1
    %s568 = scalar_lea.sflag [#allocation3], 1
    %569 = vsyncpa %s568, 1

// kernel: multi_seam_forward.6
$region0: #{multi_seam_forward.6}
  #allocation0 [shape = 'u32[]', space=smem, size = 0x4, offset = 0x4, fixed_abs, tag = 'smem constant byte address 0x4 - core index']
  #allocation1 [shape = 'u32[72,128]{1,0:T(1,128)}', space=vmem, size = 0x9000, scoped, tag = 'internal scratch']
  #allocation2 [shape = 'f32[4,4,32]{2,1,0:T(4,128)}', space=vmem, size = 0x2000, scoped, tag = 'scratch operand']
  %s0 = inlined_call_operand.vmem [shape: f32[2,2,2,1568], index: 0, kind: input, shape index: {}]
  %s1 = inlined_call_operand.vmem [shape: f32[1568,32], index: 1, kind: input, shape index: {}]
  %s2 = inlined_call_operand.vmem [shape: f32[9,32], index: 2, kind: input, shape index: {}]
  %s3 = inlined_call_operand.vmem [shape: f32[32,32], index: 3, kind: input, shape index: {}]
  %s4 = inlined_call_operand.vmem [shape: f32[9,32], index: 4, kind: input, shape index: {}]
  %s5 = inlined_call_operand.vmem [shape: f32[2,1,32], index: 5, kind: output, shape index: {}]
  %s6 = sld [smem:[#allocation0]]
  $region53: #{multi_seam_forward.6} parent=0
    _
  %s8 = ssub.s32 1, %s6
  %s9 = scalar_select 0, %s8, %s6
  loop: start=0, step=1, limit=4
  $region2: #{multi_seam_forward.6} parent=0 // loop_pre_header
    _
  $region3: #{multi_seam_forward.6} parent=0 // loop_header
    %s11 = sphi 0, %s15
    %p12 = scmp.ge.s32.totalorder %s11, 4
    %s21 = sphi 0, %s23
    %s24 = sphi 0, %s21
    %s25 = sphi 0, %s24
    %s41 = sphi 0, %s25
    %s45 = sphi 0, %s45
    %s47 = sphi 0, %s45
    %s48 = sphi 0, %s47
    %s62 = sphi 0, %s48
    %s66 = sphi 0, %s66
    %s68 = sphi 0, %s66
    %s69 = sphi 0, %s68
    %s83 = sphi 0, %s69
    %s87 = sphi 0, %s87
    %s89 = sphi 0, %s87
    %s90 = sphi 0, %s89
    %s104 = sphi 0, %s90
    %s108 = sphi 0, %s108
    %s110 = sphi 0, %s108
    %s111 = sphi 0, %s110
    %s125 = sphi 0, %s111
    %s131 = sphi 0, %s133
    %s134 = sphi 0, %s131
    %s135 = sphi 0, %s134
    %s151 = sphi 0, %s135
  $region4: #{multi_seam_forward.6} parent=0 // loop_header_branch
    %14 = sbr.rel (%p12) target = $region8
  $region5: #{multi_seam_forward.6} parent=0 // loop_body
    %s16 = ssub.s32 %s11, 1
    %s17 = ssub.s32 %s11, 2
    %s18 = sadd.s32 %s11, 1
    %s19 = ssub.s32 %s11, %s18
    %p20 = scmp.eq.s32.totalorder %s19, 0
    %s22 = sadd.s32 %s21, 1
    %s23 = scalar_select %p20, %s21, %s22
    %p26 = pneg %p20
    %p27 = scmp.eq.s32.totalorder %s11, 1
    %p28 = por %p26, %p27
    %p29 = scmp.ne.s32.totalorder %s21, %s24
    %p30 = scmp.eq.s32.totalorder %s11, 0
    %p31 = por %p29, %p30
    %p32 = scmp.ne.s32.totalorder %s21, %s24
    %p33 = scmp.eq.s32.totalorder %s16, 1
    %p34 = por %p32, %p33
    %p35 = scmp.ne.s32.totalorder %s24, %s25
    %p36 = scmp.eq.s32.totalorder %s16, 0
    %p37 = por %p35, %p36
    %p38 = scmp.ne.s32.totalorder %s24, %s25
    %p39 = scmp.eq.s32.totalorder %s17, 1
    %p40 = por %p38, %p39
    %p42 = scmp.ne.s32.totalorder %s25, %s41
    %p43 = scmp.eq.s32.totalorder %s17, 0
    %p44 = por %p42, %p43
    %s46 = sadd.s32 %s45, 1
    %p49 = scmp.eq.s32.totalorder %s11, 1
    %p50 = scmp.ne.s32.totalorder %s45, %s47
    %p51 = scmp.eq.s32.totalorder %s11, 0
    %p52 = por %p50, %p51
    %p53 = scmp.ne.s32.totalorder %s45, %s47
    %p54 = scmp.eq.s32.totalorder %s16, 1
    %p55 = por %p53, %p54
    %p56 = scmp.ne.s32.totalorder %s47, %s48
    %p57 = scmp.eq.s32.totalorder %s16, 0
    %p58 = por %p56, %p57
    %p59 = scmp.ne.s32.totalorder %s47, %s48
    %p60 = scmp.eq.s32.totalorder %s17, 1
    %p61 = por %p59, %p60
    %p63 = scmp.ne.s32.totalorder %s48, %s62
    %p64 = scmp.eq.s32.totalorder %s17, 0
    %p65 = por %p63, %p64
    %s67 = sadd.s32 %s66, 1
    %p70 = scmp.eq.s32.totalorder %s11, 1
    %p71 = scmp.ne.s32.totalorder %s66, %s68
    %p72 = scmp.eq.s32.totalorder %s11, 0
    %p73 = por %p71, %p72
    %p74 = scmp.ne.s32.totalorder %s66, %s68
    %p75 = scmp.eq.s32.totalorder %s16, 1
    %p76 = por %p74, %p75
    %p77 = scmp.ne.s32.totalorder %s68, %s69
    %p78 = scmp.eq.s32.totalorder %s16, 0
    %p79 = por %p77, %p78
    %p80 = scmp.ne.s32.totalorder %s68, %s69
    %p81 = scmp.eq.s32.totalorder %s17, 1
    %p82 = por %p80, %p81
    %p84 = scmp.ne.s32.totalorder %s69, %s83
    %p85 = scmp.eq.s32.totalorder %s17, 0
    %p86 = por %p84, %p85
    %s88 = sadd.s32 %s87, 1
    %p91 = scmp.eq.s32.totalorder %s11, 1
    %p92 = scmp.ne.s32.totalorder %s87, %s89
    %p93 = scmp.eq.s32.totalorder %s11, 0
    %p94 = por %p92, %p93
    %p95 = scmp.ne.s32.totalorder %s87, %s89
    %p96 = scmp.eq.s32.totalorder %s16, 1
    %p97 = por %p95, %p96
    %p98 = scmp.ne.s32.totalorder %s89, %s90
    %p99 = scmp.eq.s32.totalorder %s16, 0
    %p100 = por %p98, %p99
    %p101 = scmp.ne.s32.totalorder %s89, %s90
    %p102 = scmp.eq.s32.totalorder %s17, 1
    %p103 = por %p101, %p102
    %p105 = scmp.ne.s32.totalorder %s90, %s104
    %p106 = scmp.eq.s32.totalorder %s17, 0
    %p107 = por %p105, %p106
    %s109 = sadd.s32 %s108, 1
    %p112 = scmp.eq.s32.totalorder %s11, 1
    %p113 = scmp.ne.s32.totalorder %s108, %s110
    %p114 = scmp.eq.s32.totalorder %s11, 0
    %p115 = por %p113, %p114
    %p116 = scmp.ne.s32.totalorder %s108, %s110
    %p117 = scmp.eq.s32.totalorder %s16, 1
    %p118 = por %p116, %p117
    %p119 = scmp.ne.s32.totalorder %s110, %s111
    %p120 = scmp.eq.s32.totalorder %s16, 0
    %p121 = por %p119, %p120
    %p122 = scmp.ne.s32.totalorder %s110, %s111
    %p123 = scmp.eq.s32.totalorder %s17, 1
    %p124 = por %p122, %p123
    %p126 = scmp.ne.s32.totalorder %s111, %s125
    %p127 = scmp.eq.s32.totalorder %s17, 0
    %p128 = por %p126, %p127
    %s129 = ssub.s32 %s11, %s18
    %p130 = scmp.eq.s32.totalorder %s129, 0
    %s132 = sadd.s32 %s131, 1
    %s133 = scalar_select %p130, %s131, %s132
    %p136 = pneg %p130
    %p137 = scmp.eq.s32.totalorder %s11, 1
    %p138 = por %p136, %p137
    %p139 = scmp.ne.s32.totalorder %s131, %s134
    %p140 = scmp.eq.s32.totalorder %s11, 0
    %p141 = por %p139, %p140
    %p142 = scmp.ne.s32.totalorder %s131, %s134
    %p143 = scmp.eq.s32.totalorder %s16, 1
    %p144 = por %p142, %p143
    %p145 = scmp.ne.s32.totalorder %s134, %s135
    %p146 = scmp.eq.s32.totalorder %s16, 0
    %p147 = por %p145, %p146
    %p148 = scmp.ne.s32.totalorder %s134, %s135
    %p149 = scmp.eq.s32.totalorder %s17, 1
    %p150 = por %p148, %p149
    %p152 = scmp.ne.s32.totalorder %s135, %s151
    %p153 = scmp.eq.s32.totalorder %s17, 0
    %p154 = por %p152, %p153
    %p155 = scmp.le.s32.totalorder 1, %s11
    %p156 = scmp.lt.s32.totalorder %s11, 3
    %p157 = pnand %p155, %p156
    %p158 = pneg %p157
    // Predicated region
    $region9: #{multi_seam_forward.6} parent=5 // pred_check
      _
    $region10: #{multi_seam_forward.6} parent=5 // pred_check_branch
      %160 = sbr.rel (%p157) target = $region12
    $region11: #{multi_seam_forward.6} parent=5 // pred_region
      %s161 = ssub.s32 %s11, 1
      // Predicated region
      $region13: #{multi_seam_forward.6} parent=11 // pred_check
        %p162 = pneg %p58
      $region14: #{multi_seam_forward.6} parent=11 // pred_check_branch
        %164 = sbr.rel (%p162) target = $region16
      $region15: #{multi_seam_forward.6} parent=11 // pred_region
        _
      $region16: #{multi_seam_forward.6} parent=11 // pred_fallthru
        _
      // Predicated region
      $region17: #{multi_seam_forward.6} parent=11 // pred_check
        %p165 = pneg %p79
      $region18: #{multi_seam_forward.6} parent=11 // pred_check_branch
        %167 = sbr.rel (%p165) target = $region20
      $region19: #{multi_seam_forward.6} parent=11 // pred_region
        _
      $region20: #{multi_seam_forward.6} parent=11 // pred_fallthru
        _
      // Predicated region
      $region21: #{multi_seam_forward.6} parent=11 // pred_check
        %p168 = pneg %p100
      $region22: #{multi_seam_forward.6} parent=11 // pred_check_branch
        %170 = sbr.rel (%p168) target = $region24
      $region23: #{multi_seam_forward.6} parent=11 // pred_region
        _
      $region24: #{multi_seam_forward.6} parent=11 // pred_fallthru
        _
      // Predicated region
      $region25: #{multi_seam_forward.6} parent=11 // pred_check
        %p171 = pneg %p121
      $region26: #{multi_seam_forward.6} parent=11 // pred_check_branch
        %173 = sbr.rel (%p171) target = $region28
      $region27: #{multi_seam_forward.6} parent=11 // pred_region
        _
      $region28: #{multi_seam_forward.6} parent=11 // pred_fallthru
        _
    $region12: #{multi_seam_forward.6} parent=5 // pred_fallthru
      _
    %p174 = scmp.lt.s32.totalorder %s11, 2
    // Predicated region
    $region29: #{multi_seam_forward.6} parent=5 // pred_check
      %p175 = pneg %p174
    $region30: #{multi_seam_forward.6} parent=5 // pred_check_branch
      %177 = sbr.rel (%p175) target = $region32
    $region31: #{multi_seam_forward.6} parent=5 // pred_region
      // Predicated region
      $region33: #{multi_seam_forward.6} parent=31 // pred_check
        %p178 = pneg %p31
      $region34: #{multi_seam_forward.6} parent=31 // pred_check_branch
        %180 = sbr.rel (%p178) target = $region36
      $region35: #{multi_seam_forward.6} parent=31 // pred_region
        %p181 = scmp.lt.s32.totalorder %s11, 1
        %s182 = scalar_select %p181, %s11, 1
        %s183 = smul.addr %s182, 26
        %s184 = smul.addr %s183, 2
        %s185 = scalar_lea.vmem %s0, %s184
      $region36: #{multi_seam_forward.6} parent=31 // pred_fallthru
        _
    $region32: #{multi_seam_forward.6} parent=5 // pred_fallthru
      _
    %p186 = scmp.le.s32.totalorder 1, %s11
    %p187 = scmp.lt.s32.totalorder %s11, 3
    %p188 = pnand %p186, %p187
    %p189 = pneg %p188
    // Predicated region
    $region37: #{multi_seam_forward.6} parent=5 // pred_check
      _
    $region38: #{multi_seam_forward.6} parent=5 // pred_check_branch
      %191 = sbr.rel (%p188) target = $region40
    $region39: #{multi_seam_forward.6} parent=5 // pred_region
      %s192 = ssub.s32 %s11, 1
      %p193 = scmp.lt.s32.totalorder %s16, 1
      %s194 = scalar_select %p193, %s16, 1
      %s195 = smul.addr %s194, 26
      %s196 = smul.addr %s195, 2
      %s197 = scalar_lea.vmem %s0, %s196
      %p198 = pneg %p37
      %p199 = pneg %p34
      %p200 = pneg %p58
      %p201 = pneg %p55
      %p202 = pneg %p79
      %p203 = pneg %p76
      %p204 = pneg %p100
      %p205 = pneg %p97
      %p206 = pneg %p121
      %p207 = pneg %p118
      %p208 = pneg %p147
      %p209 = pneg %p144
      %p210 = scmp.lt.s32.totalorder %s16, 1
      %s211 = scalar_select %p210, %s16, 1
      %s212 = scalar_lea.vmem %s5, %s211
      %p213 = scmp.lt.s32.totalorder %s16, 1
      %s214 = scalar_select %p213, %s16, 1
      %s215 = smul.addr %s214, 26
      %s216 = smul.addr %s215, 2
      %s217 = scalar_lea.vmem %s0, %s216
      %p218 = scmp.lt.s32.totalorder %s16, 1
      %s219 = scalar_select %p218, %s16, 1
      %s220 = scalar_lea.vmem %s5, %s219
      %vm221 = vcmask 257024
      %222 = vst.msk [vmem:[#allocation2] sm:$0xf] %vm221, 0.0
      %223 = vst.msk [vmem:[#allocation2 + $0x4] sm:$0xf] %vm221, 0.0
      %224 = vst.msk [vmem:[#allocation2 + $0x8] sm:$0xf] %vm221, 0.0
      %225 = vst.msk [vmem:[#allocation2 + $0xc] sm:$0xf] %vm221, 0.0
      %v226 = vld [vmem:[%s217] sm:$0xff]
      %v227 = vld [vmem:[%s217 + $0x8] sm:$0xff]
      %v228 = vld [vmem:[%s217 + $0x10] sm:$0xff]
      %v229 = vld [vmem:[%s217 + $0x18] sm:$0x3]
      %v230 = vld [vmem:[%s1] sm:$0xff]
      %v231 = vld [vmem:[%s1 + $0x8] sm:$0xff]
      %v232 = vld [vmem:[%s1 + $0x10] sm:$0xff]
      %v233 = vld [vmem:[%s1 + $0x18] sm:$0xff]
      %v234 = vld [vmem:[%s1 + $0x20] sm:$0xff]
      %v235 = vld [vmem:[%s1 + $0x28] sm:$0xff]
      %v236 = vld [vmem:[%s1 + $0x30] sm:$0xff]
      %v237 = vld [vmem:[%s1 + $0x38] sm:$0xff]
      %v238 = vld [vmem:[%s1 + $0x40] sm:$0xff]
      %v239 = vld [vmem:[%s1 + $0x48] sm:$0xff]
      %v240 = vld [vmem:[%s1 + $0x50] sm:$0xff]
      %v241 = vld [vmem:[%s1 + $0x58] sm:$0xff]
      %v242 = vld [vmem:[%s1 + $0x60] sm:$0xff]
      %v243 = vld [vmem:[%s1 + $0x68] sm:$0xff]
      %v244 = vld [vmem:[%s1 + $0x70] sm:$0xff]
      %v245 = vld [vmem:[%s1 + $0x78] sm:$0xff]
      %v246 = vld [vmem:[%s1 + $0x80] sm:$0xff]
      %v247 = vld [vmem:[%s1 + $0x88] sm:$0xff]
      %v248 = vld [vmem:[%s1 + $0x90] sm:$0xff]
      %v249 = vld [vmem:[%s1 + $0x98] sm:$0xff]
      %v250 = vld [vmem:[%s1 + $0xa0] sm:$0xff]
      %v251 = vld [vmem:[%s1 + $0xa8] sm:$0xff]
      %v252 = vld [vmem:[%s1 + $0xb0] sm:$0xff]
      %v253 = vld [vmem:[%s1 + $0xb8] sm:$0xff]
      %v254 = vld [vmem:[%s1 + $0xc0] sm:$0xff]
      %v255 = vld [vmem:[%s1 + $0xc8] sm:$0xff]
      %v256 = vld [vmem:[%s1 + $0xd0] sm:$0xff]
      %v257 = vld [vmem:[%s1 + $0xd8] sm:$0xff]
      %v258 = vld [vmem:[%s1 + $0xe0] sm:$0xff]
      %v259 = vld [vmem:[%s1 + $0xe8] sm:$0xff]
      %v260 = vld [vmem:[%s1 + $0xf0] sm:$0xff]
      %v261 = vld [vmem:[%s1 + $0xf8] sm:$0xff]
      %v262 = vld [vmem:[%s1 + $0x100] sm:$0xff]
      %v263 = vld [vmem:[%s1 + $0x108] sm:$0xff]
      %v264 = vld [vmem:[%s1 + $0x110] sm:$0xff]
      %v265 = vld [vmem:[%s1 + $0x118] sm:$0xff]
      %v266 = vld [vmem:[%s1 + $0x120] sm:$0xff]
      %v267 = vld [vmem:[%s1 + $0x128] sm:$0xff]
      %v268 = vld [vmem:[%s1 + $0x130] sm:$0xff]
      %v269 = vld [vmem:[%s1 + $0x138] sm:$0xff]
      %v270 = vld [vmem:[%s1 + $0x140] sm:$0xff]
      %v271 = vld [vmem:[%s1 + $0x148] sm:$0xff]
      %v272 = vld [vmem:[%s1 + $0x150] sm:$0xff]
      %v273 = vld [vmem:[%s1 + $0x158] sm:$0xff]
      %v274 = vld [vmem:[%s1 + $0x160] sm:$0xff]
      %v275 = vld [vmem:[%s1 + $0x168] sm:$0xff]
      %v276 = vld [vmem:[%s1 + $0x170] sm:$0xff]
      %v277 = vld [vmem:[%s1 + $0x178] sm:$0xff]
      %v278 = vld [vmem:[%s1 + $0x180] sm:$0xff]
      %v279 = vld [vmem:[%s1 + $0x188] sm:$0xff]
      %v280 = vld [vmem:[%s1 + $0x190] sm:$0xff]
      %v281 = vld [vmem:[%s1 + $0x198] sm:$0xff]
      %v282 = vld [vmem:[%s1 + $0x1a0] sm:$0xff]
      %v283 = vld [vmem:[%s1 + $0x1a8] sm:$0xff]
      %v284 = vld [vmem:[%s1 + $0x1b0] sm:$0xff]
      %v285 = vld [vmem:[%s1 + $0x1b8] sm:$0xff]
      %v286 = vld [vmem:[%s1 + $0x1c0] sm:$0xff]
      %v287 = vld [vmem:[%s1 + $0x1c8] sm:$0xff]
      %v288 = vld [vmem:[%s1 + $0x1d0] sm:$0xff]
      %v289 = vld [vmem:[%s1 + $0x1d8] sm:$0xff]
      %v290 = vld [vmem:[%s1 + $0x1e0] sm:$0xff]
      %v291 = vld [vmem:[%s1 + $0x1e8] sm:$0xff]
      %v292 = vld [vmem:[%s1 + $0x1f0] sm:$0xff]
      %v293 = vld [vmem:[%s1 + $0x1f8] sm:$0xff]
      %v294 = vld [vmem:[%s1 + $0x200] sm:$0xff]
      %v295 = vld [vmem:[%s1 + $0x208] sm:$0xff]
      %v296 = vld [vmem:[%s1 + $0x210] sm:$0xff]
      %v297 = vld [vmem:[%s1 + $0x218] sm:$0xff]
      %v298 = vld [vmem:[%s1 + $0x220] sm:$0xff]
      %v299 = vld [vmem:[%s1 + $0x228] sm:$0xff]
      %v300 = vld [vmem:[%s1 + $0x230] sm:$0xff]
      %v301 = vld [vmem:[%s1 + $0x238] sm:$0xff]
      %v302 = vld [vmem:[%s1 + $0x240] sm:$0xff]
      %v303 = vld [vmem:[%s1 + $0x248] sm:$0xff]
      %v304 = vld [vmem:[%s1 + $0x250] sm:$0xff]
      %v305 = vld [vmem:[%s1 + $0x258] sm:$0xff]
      %v306 = vld [vmem:[%s1 + $0x260] sm:$0xff]
      %v307 = vld [vmem:[%s1 + $0x268] sm:$0xff]
      %v308 = vld [vmem:[%s1 + $0x270] sm:$0xff]
      %v309 = vld [vmem:[%s1 + $0x278] sm:$0xff]
      %v310 = vld [vmem:[%s1 + $0x280] sm:$0xff]
      %v311 = vld [vmem:[%s1 + $0x288] sm:$0xff]
      %v312 = vld [vmem:[%s1 + $0x290] sm:$0xff]
      %v313 = vld [vmem:[%s1 + $0x298] sm:$0xff]
      %v314 = vld [vmem:[%s1 + $0x2a0] sm:$0xff]
      %v315 = vld [vmem:[%s1 + $0x2a8] sm:$0xff]
      %v316 = vld [vmem:[%s1 + $0x2b0] sm:$0xff]
      %v317 = vld [vmem:[%s1 + $0x2b8] sm:$0xff]
      %v318 = vld [vmem:[%s1 + $0x2c0] sm:$0xff]
      %v319 = vld [vmem:[%s1 + $0x2c8] sm:$0xff]
      %v320 = vld [vmem:[%s1 + $0x2d0] sm:$0xff]
      %v321 = vld [vmem:[%s1 + $0x2d8] sm:$0xff]
      %v322 = vld [vmem:[%s1 + $0x2e0] sm:$0xff]
      %v323 = vld [vmem:[%s1 + $0x2e8] sm:$0xff]
      %v324 = vld [vmem:[%s1 + $0x2f0] sm:$0xff]
      %v325 = vld [vmem:[%s1 + $0x2f8] sm:$0xff]
      %v326 = vld [vmem:[%s1 + $0x300] sm:$0xff]
      %v327 = vld [vmem:[%s1 + $0x308] sm:$0xff]
      %v328 = vld [vmem:[%s1 + $0x310] sm:$0xff]
      %v329 = vld [vmem:[%s1 + $0x318] sm:$0xff]
      %v330 = vld [vmem:[%s1 + $0x320] sm:$0xff]
      %v331 = vld [vmem:[%s1 + $0x328] sm:$0xff]
      %v332 = vld [vmem:[%s1 + $0x330] sm:$0xff]
      %v333 = vld [vmem:[%s1 + $0x338] sm:$0xff]
      %v334 = vld [vmem:[%s1 + $0x340] sm:$0xff]
      %v335 = vld [vmem:[%s1 + $0x348] sm:$0xff]
      %v336 = vld [vmem:[%s1 + $0x350] sm:$0xff]
      %v337 = vld [vmem:[%s1 + $0x358] sm:$0xff]
      %v338 = vld [vmem:[%s1 + $0x360] sm:$0xff]
      %v339 = vld [vmem:[%s1 + $0x368] sm:$0xff]
      %v340 = vld [vmem:[%s1 + $0x370] sm:$0xff]
      %v341 = vld [vmem:[%s1 + $0x378] sm:$0xff]
      %v342 = vld [vmem:[%s1 + $0x380] sm:$0xff]
      %v343 = vld [vmem:[%s1 + $0x388] sm:$0xff]
      %v344 = vld [vmem:[%s1 + $0x390] sm:$0xff]
      %v345 = vld [vmem:[%s1 + $0x398] sm:$0xff]
      %v346 = vld [vmem:[%s1 + $0x3a0] sm:$0xff]
      %v347 = vld [vmem:[%s1 + $0x3a8] sm:$0xff]
      %v348 = vld [vmem:[%s1 + $0x3b0] sm:$0xff]
      %v349 = vld [vmem:[%s1 + $0x3b8] sm:$0xff]
      %v350 = vld [vmem:[%s1 + $0x3c0] sm:$0xff]
      %v351 = vld [vmem:[%s1 + $0x3c8] sm:$0xff]
      %v352 = vld [vmem:[%s1 + $0x3d0] sm:$0xff]
      %v353 = vld [vmem:[%s1 + $0x3d8] sm:$0xff]
      %v354 = vld [vmem:[%s1 + $0x3e0] sm:$0xff]
      %v355 = vld [vmem:[%s1 + $0x3e8] sm:$0xff]
      %v356 = vld [vmem:[%s1 + $0x3f0] sm:$0xff]
      %v357 = vld [vmem:[%s1 + $0x3f8] sm:$0xff]
      %v358 = vld [vmem:[%s1 + $0x400] sm:$0xff]
      %v359 = vld [vmem:[%s1 + $0x408] sm:$0xff]
      %v360 = vld [vmem:[%s1 + $0x410] sm:$0xff]
      %v361 = vld [vmem:[%s1 + $0x418] sm:$0xff]
      %v362 = vld [vmem:[%s1 + $0x420] sm:$0xff]
      %v363 = vld [vmem:[%s1 + $0x428] sm:$0xff]
      %v364 = vld [vmem:[%s1 + $0x430] sm:$0xff]
      %v365 = vld [vmem:[%s1 + $0x438] sm:$0xff]
      %v366 = vld [vmem:[%s1 + $0x440] sm:$0xff]
      %v367 = vld [vmem:[%s1 + $0x448] sm:$0xff]
      %v368 = vld [vmem:[%s1 + $0x450] sm:$0xff]
      %v369 = vld [vmem:[%s1 + $0x458] sm:$0xff]
      %v370 = vld [vmem:[%s1 + $0x460] sm:$0xff]
      %v371 = vld [vmem:[%s1 + $0x468] sm:$0xff]
      %v372 = vld [vmem:[%s1 + $0x470] sm:$0xff]
      %v373 = vld [vmem:[%s1 + $0x478] sm:$0xff]
      %v374 = vld [vmem:[%s1 + $0x480] sm:$0xff]
      %v375 = vld [vmem:[%s1 + $0x488] sm:$0xff]
      %v376 = vld [vmem:[%s1 + $0x490] sm:$0xff]
      %v377 = vld [vmem:[%s1 + $0x498] sm:$0xff]
      %v378 = vld [vmem:[%s1 + $0x4a0] sm:$0xff]
      %v379 = vld [vmem:[%s1 + $0x4a8] sm:$0xff]
      %v380 = vld [vmem:[%s1 + $0x4b0] sm:$0xff]
      %v381 = vld [vmem:[%s1 + $0x4b8] sm:$0xff]
      %v382 = vld [vmem:[%s1 + $0x4c0] sm:$0xff]
      %v383 = vld [vmem:[%s1 + $0x4c8] sm:$0xff]
      %v384 = vld [vmem:[%s1 + $0x4d0] sm:$0xff]
      %v385 = vld [vmem:[%s1 + $0x4d8] sm:$0xff]
      %v386 = vld [vmem:[%s1 + $0x4e0] sm:$0xff]
      %v387 = vld [vmem:[%s1 + $0x4e8] sm:$0xff]
      %v388 = vld [vmem:[%s1 + $0x4f0] sm:$0xff]
      %v389 = vld [vmem:[%s1 + $0x4f8] sm:$0xff]
      %v390 = vld [vmem:[%s1 + $0x500] sm:$0xff]
      %v391 = vld [vmem:[%s1 + $0x508] sm:$0xff]
      %v392 = vld [vmem:[%s1 + $0x510] sm:$0xff]
      %v393 = vld [vmem:[%s1 + $0x518] sm:$0xff]
      %v394 = vld [vmem:[%s1 + $0x520] sm:$0xff]
      %v395 = vld [vmem:[%s1 + $0x528] sm:$0xff]
      %v396 = vld [vmem:[%s1 + $0x530] sm:$0xff]
      %v397 = vld [vmem:[%s1 + $0x538] sm:$0xff]
      %v398 = vld [vmem:[%s1 + $0x540] sm:$0xff]
      %v399 = vld [vmem:[%s1 + $0x548] sm:$0xff]
      %v400 = vld [vmem:[%s1 + $0x550] sm:$0xff]
      %v401 = vld [vmem:[%s1 + $0x558] sm:$0xff]
      %v402 = vld [vmem:[%s1 + $0x560] sm:$0xff]
      %v403 = vld [vmem:[%s1 + $0x568] sm:$0xff]
      %v404 = vld [vmem:[%s1 + $0x570] sm:$0xff]
      %v405 = vld [vmem:[%s1 + $0x578] sm:$0xff]
      %v406 = vld [vmem:[%s1 + $0x580] sm:$0xff]
      %v407 = vld [vmem:[%s1 + $0x588] sm:$0xff]
      %v408 = vld [vmem:[%s1 + $0x590] sm:$0xff]
      %v409 = vld [vmem:[%s1 + $0x598] sm:$0xff]
      %v410 = vld [vmem:[%s1 + $0x5a0] sm:$0xff]
      %v411 = vld [vmem:[%s1 + $0x5a8] sm:$0xff]
      %v412 = vld [vmem:[%s1 + $0x5b0] sm:$0xff]
      %v413 = vld [vmem:[%s1 + $0x5b8] sm:$0xff]
      %v414 = vld [vmem:[%s1 + $0x5c0] sm:$0xff]
      %v415 = vld [vmem:[%s1 + $0x5c8] sm:$0xff]
      %v416 = vld [vmem:[%s1 + $0x5d0] sm:$0xff]
      %v417 = vld [vmem:[%s1 + $0x5d8] sm:$0xff]
      %v418 = vld [vmem:[%s1 + $0x5e0] sm:$0xff]
      %v419 = vld [vmem:[%s1 + $0x5e8] sm:$0xff]
      %v420 = vld [vmem:[%s1 + $0x5f0] sm:$0xff]
      %v421 = vld [vmem:[%s1 + $0x5f8] sm:$0xff]
      %v422 = vld [vmem:[%s1 + $0x600] sm:$0xff]
      %v423 = vld [vmem:[%s1 + $0x608] sm:$0xff]
      %v424 = vld [vmem:[%s1 + $0x610] sm:$0xff]
      %v425 = vld [vmem:[%s1 + $0x618] sm:$0xff]
      %v426 = vld [vmem:[%s4] sm:$0x1]
      %v427 = vperm.slane %v426, 0
      %432 = vst [vmem:[#allocation1] ss:$4 sm:$0xff] %v226
      %s433 = scalar_lea.vmem [#allocation1], 32
      %434 = vst [vmem:[%s433] ss:$4 sm:$0xff] %v227
      %v435 = vld.sshfl [vmem:[#allocation1] sm:$0xff pattern:$0x73625140]
      %v436 = vld.sshfl [vmem:[#allocation1 + $0x8] sm:$0xff pattern:$0x73625140]
      %v437 = vld.sshfl [vmem:[#allocation1 + $0x10] sm:$0xff pattern:$0x73625140]
      %v438 = vld.sshfl [vmem:[#allocation1 + $0x18] sm:$0xff pattern:$0x73625140]
      %v439 = vld.sshfl [vmem:[#allocation1 + $0x20] sm:$0xff pattern:$0x73625140]
      %v440 = vld.sshfl [vmem:[#allocation1 + $0x28] sm:$0xff pattern:$0x73625140]
      %v441 = vld.sshfl [vmem:[#allocation1 + $0x30] sm:$0xff pattern:$0x73625140]
      %v442 = vld.sshfl [vmem:[#allocation1 + $0x38] sm:$0xff pattern:$0x73625140]
      %443 = vst [vmem:[#allocation1] ss:$4 sm:$0xff] %v228
      %444 = vst [vmem:[%s433] ss:$4 sm:$0xff] %v229
      %v445 = vld.sshfl [vmem:[#allocation1] sm:$0xff pattern:$0x73625140]
      %v446 = vld.sshfl [vmem:[#allocation1 + $0x8] sm:$0xff pattern:$0x73625140]
      %v447 = vld.sshfl [vmem:[#allocation1 + $0x10] sm:$0xff pattern:$0x73625140]
      %v448 = vld.sshfl [vmem:[#allocation1 + $0x18] sm:$0xff pattern:$0x73625140]
      %v449 = vld.sshfl [vmem:[#allocation1 + $0x20] sm:$0xff pattern:$0x73625140]
      %vm462 = vcmask 261120
      %v463 = vsel %vm462, %v449, 0
      %465 = vmatpush.msra.mxu0 %v245
      %466 = vmatpush.msra.mxu0 %v244
      %467 = vmatpush.msra.mxu0 %v243
      %468 = vmatpush.msra.mxu0 %v242
      %469 = vmatpush.msra.mxu0 %v241
      %470 = vmatpush.msra.mxu0 %v240
      %471 = vmatpush.msra.mxu0 %v239
      %472 = vmatpush.msra.mxu0 %v238
      %473 = vmatpush.msra.mxu0 %v237
      %474 = vmatpush.msra.mxu0 %v236
      %475 = vmatpush.msra.mxu0 %v235
      %476 = vmatpush.msra.mxu0 %v234
      %477 = vmatpush.msra.mxu0 %v233
      %478 = vmatpush.msra.mxu0 %v232
      %479 = vmatpush.msra.mxu0 %v231
      %480 = vmatpush.msra.mxu0 %v230
      %481 = vmatmul.f32.gmra.mxu0 %v435
      %v482 = vpop.f32.mrf.mxu0
      %v483 = vadd.f32 %v427, %v482
      %484 = vdwg.mxu0
      %485 = vmatpush.msra.mxu0 %v261
      %486 = vmatpush.msra.mxu0 %v260
      %487 = vmatpush.msra.mxu0 %v259
      %488 = vmatpush.msra.mxu0 %v258
      %489 = vmatpush.msra.mxu0 %v257
      %490 = vmatpush.msra.mxu0 %v256
      %491 = vmatpush.msra.mxu0 %v255
      %492 = vmatpush.msra.mxu0 %v254
      %493 = vmatpush.msra.mxu0 %v253
      %494 = vmatpush.msra.mxu0 %v252
      %495 = vmatpush.msra.mxu0 %v251
      %496 = vmatpush.msra.mxu0 %v250
      %497 = vmatpush.msra.mxu0 %v249
      %498 = vmatpush.msra.mxu0 %v248
      %499 = vmatpush.msra.mxu0 %v247
      %500 = vmatpush.msra.mxu0 %v246
      %501 = vmatmul.f32.gmra.mxu0 %v436
      %v502 = vpop.f32.mrf.mxu0
      %v503 = vadd.f32 %v483, %v502
      %504 = vdwg.mxu0
      %505 = vmatpush.msra.mxu0 %v277
      %506 = vmatpush.msra.mxu0 %v276
      %507 = vmatpush.msra.mxu0 %v275
      %508 = vmatpush.msra.mxu0 %v274
      %509 = vmatpush.msra.mxu0 %v273
      %510 = vmatpush.msra.mxu0 %v272
      %511 = vmatpush.msra.mxu0 %v271
      %512 = vmatpush.msra.mxu0 %v270
      %513 = vmatpush.msra.mxu0 %v269
      %514 = vmatpush.msra.mxu0 %v268
      %515 = vmatpush.msra.mxu0 %v267
      %516 = vmatpush.msra.mxu0 %v266
      %517 = vmatpush.msra.mxu0 %v265
      %518 = vmatpush.msra.mxu0 %v264
      %519 = vmatpush.msra.mxu0 %v263
      %520 = vmatpush.msra.mxu0 %v262
      %521 = vmatmul.f32.gmra.mxu0 %v437
      %v522 = vpop.f32.mrf.mxu0
      %v523 = vadd.f32 %v503, %v522
      %524 = vdwg.mxu0
      %525 = vmatpush.msra.mxu0 %v293
      %526 = vmatpush.msra.mxu0 %v292
      %527 = vmatpush.msra.mxu0 %v291
      %528 = vmatpush.msra.mxu0 %v290
      %529 = vmatpush.msra.mxu0 %v289
      %530 = vmatpush.msra.mxu0 %v288
      %531 = vmatpush.msra.mxu0 %v287
      %532 = vmatpush.msra.mxu0 %v286
      %533 = vmatpush.msra.mxu0 %v285
      %534 = vmatpush.msra.mxu0 %v284
      %535 = vmatpush.msra.mxu0 %v283
      %536 = vmatpush.msra.mxu0 %v282
      %537 = vmatpush.msra.mxu0 %v281
      %538 = vmatpush.msra.mxu0 %v280
      %539 = vmatpush.msra.mxu0 %v279
      %540 = vmatpush.msra.mxu0 %v278
      %541 = vmatmul.f32.gmra.mxu0 %v438
      %v542 = vpop.f32.mrf.mxu0
      %v543 = vadd.f32 %v523, %v542
      %544 = vdwg.mxu0
      %545 = vmatpush.msra.mxu0 %v309
      %546 = vmatpush.msra.mxu0 %v308
      %547 = vmatpush.msra.mxu0 %v307
      %548 = vmatpush.msra.mxu0 %v306
      %549 = vmatpush.msra.mxu0 %v305
      %550 = vmatpush.msra.mxu0 %v304
      %551 = vmatpush.msra.mxu0 %v303
      %552 = vmatpush.msra.mxu0 %v302
      %553 = vmatpush.msra.mxu0 %v301
      %554 = vmatpush.msra.mxu0 %v300
      %555 = vmatpush.msra.mxu0 %v299
      %556 = vmatpush.msra.mxu0 %v298
      %557 = vmatpush.msra.mxu0 %v297
      %558 = vmatpush.msra.mxu0 %v296
      %559 = vmatpush.msra.mxu0 %v295
      %560 = vmatpush.msra.mxu0 %v294
      %561 = vmatmul.f32.gmra.mxu0 %v439
      %v562 = vpop.f32.mrf.mxu0
      %v563 = vadd.f32 %v543, %v562
      %564 = vdwg.mxu0
      %565 = vmatpush.msra.mxu0 %v325
      %566 = vmatpush.msra.mxu0 %v324
      %567 = vmatpush.msra.mxu0 %v323
      %568 = vmatpush.msra.mxu0 %v322
      %569 = vmatpush.msra.mxu0 %v321
      %570 = vmatpush.msra.mxu0 %v320
      %571 = vmatpush.msra.mxu0 %v319
      %572 = vmatpush.msra.mxu0 %v318
      %573 = vmatpush.msra.mxu0 %v317
      %574 = vmatpush.msra.mxu0 %v316
      %575 = vmatpush.msra.mxu0 %v315
      %576 = vmatpush.msra.mxu0 %v314
      %577 = vmatpush.msra.mxu0 %v313
      %578 = vmatpush.msra.mxu0 %v312
      %579 = vmatpush.msra.mxu0 %v311
      %580 = vmatpush.msra.mxu0 %v310
      %581 = vmatmul.f32.gmra.mxu0 %v440
      %v582 = vpop.f32.mrf.mxu0
      %v583 = vadd.f32 %v563, %v582
      %584 = vdwg.mxu0
      %585 = vmatpush.msra.mxu0 %v341
      %586 = vmatpush.msra.mxu0 %v340
      %587 = vmatpush.msra.mxu0 %v339
      %588 = vmatpush.msra.mxu0 %v338
      %589 = vmatpush.msra.mxu0 %v337
      %590 = vmatpush.msra.mxu0 %v336
      %591 = vmatpush.msra.mxu0 %v335
      %592 = vmatpush.msra.mxu0 %v334
      %593 = vmatpush.msra.mxu0 %v333
      %594 = vmatpush.msra.mxu0 %v332
      %595 = vmatpush.msra.mxu0 %v331
      %596 = vmatpush.msra.mxu0 %v330
      %597 = vmatpush.msra.mxu0 %v329
      %598 = vmatpush.msra.mxu0 %v328
      %599 = vmatpush.msra.mxu0 %v327
      %600 = vmatpush.msra.mxu0 %v326
      %601 = vmatmul.f32.gmra.mxu0 %v441
      %v602 = vpop.f32.mrf.mxu0
      %v603 = vadd.f32 %v583, %v602
      %604 = vdwg.mxu0
      %605 = vmatpush.msra.mxu0 %v357
      %606 = vmatpush.msra.mxu0 %v356
      %607 = vmatpush.msra.mxu0 %v355
      %608 = vmatpush.msra.mxu0 %v354
      %609 = vmatpush.msra.mxu0 %v353
      %610 = vmatpush.msra.mxu0 %v352
      %611 = vmatpush.msra.mxu0 %v351
      %612 = vmatpush.msra.mxu0 %v350
      %613 = vmatpush.msra.mxu0 %v349
      %614 = vmatpush.msra.mxu0 %v348
      %615 = vmatpush.msra.mxu0 %v347
      %616 = vmatpush.msra.mxu0 %v346
      %617 = vmatpush.msra.mxu0 %v345
      %618 = vmatpush.msra.mxu0 %v344
      %619 = vmatpush.msra.mxu0 %v343
      %620 = vmatpush.msra.mxu0 %v342
      %621 = vmatmul.f32.gmra.mxu0 %v442
      %v622 = vpop.f32.mrf.mxu0
      %v623 = vadd.f32 %v603, %v622
      %624 = vdwg.mxu0
      %625 = vmatpush.msra.mxu0 %v373
      %626 = vmatpush.msra.mxu0 %v372
      %627 = vmatpush.msra.mxu0 %v371
      %628 = vmatpush.msra.mxu0 %v370
      %629 = vmatpush.msra.mxu0 %v369
      %630 = vmatpush.msra.mxu0 %v368
      %631 = vmatpush.msra.mxu0 %v367
      %632 = vmatpush.msra.mxu0 %v366
      %633 = vmatpush.msra.mxu0 %v365
      %634 = vmatpush.msra.mxu0 %v364
      %635 = vmatpush.msra.mxu0 %v363
      %636 = vmatpush.msra.mxu0 %v362
      %637 = vmatpush.msra.mxu0 %v361
      %638 = vmatpush.msra.mxu0 %v360
      %639 = vmatpush.msra.mxu0 %v359
      %640 = vmatpush.msra.mxu0 %v358
      %641 = vmatmul.f32.gmra.mxu0 %v445
      %v642 = vpop.f32.mrf.mxu0
      %v643 = vadd.f32 %v623, %v642
      %644 = vdwg.mxu0
      %645 = vmatpush.msra.mxu0 %v389
      %646 = vmatpush.msra.mxu0 %v388
      %647 = vmatpush.msra.mxu0 %v387
      %648 = vmatpush.msra.mxu0 %v386
      %649 = vmatpush.msra.mxu0 %v385
      %650 = vmatpush.msra.mxu0 %v384
      %651 = vmatpush.msra.mxu0 %v383
      %652 = vmatpush.msra.mxu0 %v382
      %653 = vmatpush.msra.mxu0 %v381
      %654 = vmatpush.msra.mxu0 %v380
      %655 = vmatpush.msra.mxu0 %v379
      %656 = vmatpush.msra.mxu0 %v378
      %657 = vmatpush.msra.mxu0 %v377
      %658 = vmatpush.msra.mxu0 %v376
      %659 = vmatpush.msra.mxu0 %v375
      %660 = vmatpush.msra.mxu0 %v374
      %661 = vmatmul.f32.gmra.mxu0 %v446
      %v662 = vpop.f32.mrf.mxu0
      %v663 = vadd.f32 %v643, %v662
      %664 = vdwg.mxu0
      %665 = vmatpush.msra.mxu0 %v405
      %666 = vmatpush.msra.mxu0 %v404
      %667 = vmatpush.msra.mxu0 %v403
      %668 = vmatpush.msra.mxu0 %v402
      %669 = vmatpush.msra.mxu0 %v401
      %670 = vmatpush.msra.mxu0 %v400
      %671 = vmatpush.msra.mxu0 %v399
      %672 = vmatpush.msra.mxu0 %v398
      %673 = vmatpush.msra.mxu0 %v397
      %674 = vmatpush.msra.mxu0 %v396
      %675 = vmatpush.msra.mxu0 %v395
      %676 = vmatpush.msra.mxu0 %v394
      %677 = vmatpush.msra.mxu0 %v393
      %678 = vmatpush.msra.mxu0 %v392
      %679 = vmatpush.msra.mxu0 %v391
      %680 = vmatpush.msra.mxu0 %v390
      %681 = vmatmul.f32.gmra.mxu0 %v447
      %v682 = vpop.f32.mrf.mxu0
      %v683 = vadd.f32 %v663, %v682
      %684 = vdwg.mxu0
      %685 = vmatpush.msra.mxu0 %v421
      %686 = vmatpush.msra.mxu0 %v420
      %687 = vmatpush.msra.mxu0 %v419
      %688 = vmatpush.msra.mxu0 %v418
      %689 = vmatpush.msra.mxu0 %v417
      %690 = vmatpush.msra.mxu0 %v416
      %691 = vmatpush.msra.mxu0 %v415
      %692 = vmatpush.msra.mxu0 %v414
      %693 = vmatpush.msra.mxu0 %v413
      %694 = vmatpush.msra.mxu0 %v412
      %695 = vmatpush.msra.mxu0 %v411
      %696 = vmatpush.msra.mxu0 %v410
      %697 = vmatpush.msra.mxu0 %v409
      %698 = vmatpush.msra.mxu0 %v408
      %699 = vmatpush.msra.mxu0 %v407
      %700 = vmatpush.msra.mxu0 %v406
      %701 = vmatmul.f32.gmra.mxu0 %v448
      %v702 = vpop.f32.mrf.mxu0
      %v703 = vadd.f32 %v683, %v702
      %704 = vdwg.mxu0
      %705 = vmatpush.msra.mxu0 0.0
      %706 = vmatpush.msra.mxu0 0.0
      %707 = vmatpush.msra.mxu0 0.0
      %708 = vmatpush.msra.mxu0 0.0
      %709 = vmatpush.msra.mxu0 0.0
      %710 = vmatpush.msra.mxu0 0.0
      %711 = vmatpush.msra.mxu0 0.0
      %712 = vmatpush.msra.mxu0 0.0
      %713 = vmatpush.msra.mxu0 0.0
      %714 = vmatpush.msra.mxu0 0.0
      %715 = vmatpush.msra.mxu0 0.0
      %716 = vmatpush.msra.mxu0 0.0
      %717 = vmatpush.msra.mxu0 %v425
      %718 = vmatpush.msra.mxu0 %v424
      %719 = vmatpush.msra.mxu0 %v423
      %720 = vmatpush.msra.mxu0 %v422
      %721 = vmatmul.f32.gmra.mxu0 %v463
      %v722 = vpop.f32.mrf.mxu0
      %v723 = vadd.f32 %v703, %v722
      %724 = vdwg.mxu0
      %v725 = vsub.f32 0.0, %v723
      %v726 = vmul.f32 %v725, 1.442695
      %v727 = vpow.pop %v726
      %v728 = vadd.f32 %v727, 1.0
      %v729 = vrcp.pop %v728
      %v730 = vmul.f32 %v728, %v729
      %v731 = vsub.f32 1.0, %v730
      %v732 = vmul.f32 %v729, %v731
      %v733 = vadd.f32 %v729, %v732
      %vm734 = vweird.f32 %v728
      %vm735 = vweird.f32 %v729
      %vm736 = vmor %vm734, %vm735
      %v737 = vsel %vm736, %v729, %v733
      %v738 = vand.u32 2147483647, %v728
      %vm739 = vcmp.eq.f32.partialorder %v738, 8.507059e+37
      %v740 = vand.u32 %v728, 2147483648
      %v741 = vor.u32 1.1754944e-38, %v740
      %v742 = vsel %vm739, %v741, %v737
      %v743 = vmul.f32 1.0, %v742
      %v744 = vmul.f32 %v723, %v743
      %v745 = vld [vmem:[%s4 + $0x1] sm:$0x1]
      %v746 = vperm.slane %v745, 0
      %v747 = vmul.f32 %v744, %v746
      %v748 = vld [vmem:[%s4 + $0x2] sm:$0x1]
      %v749 = vperm.slane %v748, 0
      %v750 = vadd.f32 %v747, %v749
      %s751 = scalar_lea.vmem [#allocation2], 4
      %vm752 = vcmask 254976
      %753 = vst.msk [vmem:[%s751 + $0x1] sm:$0x3] %vm752, %v750
      %s754 = scalar_lea.vmem %s217, 26
      %v755 = vld [vmem:[%s754] sm:$0xff]
      %v756 = vld [vmem:[%s754 + $0x8] sm:$0xff]
      %v757 = vld [vmem:[%s754 + $0x10] sm:$0xff]
      %v758 = vld [vmem:[%s754 + $0x18] sm:$0x3]
      %v759 = vld [vmem:[%s1] sm:$0xff]
      %v760 = vld [vmem:[%s1 + $0x8] sm:$0xff]
      %v761 = vld [vmem:[%s1 + $0x10] sm:$0xff]
      %v762 = vld [vmem:[%s1 + $0x18] sm:$0xff]
      %v763 = vld [vmem:[%s1 + $0x20] sm:$0xff]
      %v764 = vld [vmem:[%s1 + $0x28] sm:$0xff]
      %v765 = vld [vmem:[%s1 + $0x30] sm:$0xff]
      %v766 = vld [vmem:[%s1 + $0x38] sm:$0xff]
      %v767 = vld [vmem:[%s1 + $0x40] sm:$0xff]
      %v768 = vld [vmem:[%s1 + $0x48] sm:$0xff]
      %v769 = vld [vmem:[%s1 + $0x50] sm:$0xff]
      %v770 = vld [vmem:[%s1 + $0x58] sm:$0xff]
      %v771 = vld [vmem:[%s1 + $0x60] sm:$0xff]
      %v772 = vld [vmem:[%s1 + $0x68] sm:$0xff]
      %v773 = vld [vmem:[%s1 + $0x70] sm:$0xff]
      %v774 = vld [vmem:[%s1 + $0x78] sm:$0xff]
      %v775 = vld [vmem:[%s1 + $0x80] sm:$0xff]
      %v776 = vld [vmem:[%s1 + $0x88] sm:$0xff]
      %v777 = vld [vmem:[%s1 + $0x90] sm:$0xff]
      %v778 = vld [vmem:[%s1 + $0x98] sm:$0xff]
      %v779 = vld [vmem:[%s1 + $0xa0] sm:$0xff]
      %v780 = vld [vmem:[%s1 + $0xa8] sm:$0xff]
      %v781 = vld [vmem:[%s1 + $0xb0] sm:$0xff]
      %v782 = vld [vmem:[%s1 + $0xb8] sm:$0xff]
      %v783 = vld [vmem:[%s1 + $0xc0] sm:$0xff]
      %v784 = vld [vmem:[%s1 + $0xc8] sm:$0xff]
      %v785 = vld [vmem:[%s1 + $0xd0] sm:$0xff]
      %v786 = vld [vmem:[%s1 + $0xd8] sm:$0xff]
      %v787 = vld [vmem:[%s1 + $0xe0] sm:$0xff]
      %v788 = vld [vmem:[%s1 + $0xe8] sm:$0xff]
      %v789 = vld [vmem:[%s1 + $0xf0] sm:$0xff]
      %v790 = vld [vmem:[%s1 + $0xf8] sm:$0xff]
      %v791 = vld [vmem:[%s1 + $0x100] sm:$0xff]
      %v792 = vld [vmem:[%s1 + $0x108] sm:$0xff]
      %v793 = vld [vmem:[%s1 + $0x110] sm:$0xff]
      %v794 = vld [vmem:[%s1 + $0x118] sm:$0xff]
      %v795 = vld [vmem:[%s1 + $0x120] sm:$0xff]
      %v796 = vld [vmem:[%s1 + $0x128] sm:$0xff]
      %v797 = vld [vmem:[%s1 + $0x130] sm:$0xff]
      %v798 = vld [vmem:[%s1 + $0x138] sm:$0xff]
      %v799 = vld [vmem:[%s1 + $0x140] sm:$0xff]
      %v800 = vld [vmem:[%s1 + $0x148] sm:$0xff]
      %v801 = vld [vmem:[%s1 + $0x150] sm:$0xff]
      %v802 = vld [vmem:[%s1 + $0x158] sm:$0xff]
      %v803 = vld [vmem:[%s1 + $0x160] sm:$0xff]
      %v804 = vld [vmem:[%s1 + $0x168] sm:$0xff]
      %v805 = vld [vmem:[%s1 + $0x170] sm:$0xff]
      %v806 = vld [vmem:[%s1 + $0x178] sm:$0xff]
      %v807 = vld [vmem:[%s1 + $0x180] sm:$0xff]
      %v808 = vld [vmem:[%s1 + $0x188] sm:$0xff]
      %v809 = vld [vmem:[%s1 + $0x190] sm:$0xff]
      %v810 = vld [vmem:[%s1 + $0x198] sm:$0xff]
      %v811 = vld [vmem:[%s1 + $0x1a0] sm:$0xff]
      %v812 = vld [vmem:[%s1 + $0x1a8] sm:$0xff]
      %v813 = vld [vmem:[%s1 + $0x1b0] sm:$0xff]
      %v814 = vld [vmem:[%s1 + $0x1b8] sm:$0xff]
      %v815 = vld [vmem:[%s1 + $0x1c0] sm:$0xff]
      %v816 = vld [vmem:[%s1 + $0x1c8] sm:$0xff]
      %v817 = vld [vmem:[%s1 + $0x1d0] sm:$0xff]
      %v818 = vld [vmem:[%s1 + $0x1d8] sm:$0xff]
      %v819 = vld [vmem:[%s1 + $0x1e0] sm:$0xff]
      %v820 = vld [vmem:[%s1 + $0x1e8] sm:$0xff]
      %v821 = vld [vmem:[%s1 + $0x1f0] sm:$0xff]
      %v822 = vld [vmem:[%s1 + $0x1f8] sm:$0xff]
      %v823 = vld [vmem:[%s1 + $0x200] sm:$0xff]
      %v824 = vld [vmem:[%s1 + $0x208] sm:$0xff]
      %v825 = vld [vmem:[%s1 + $0x210] sm:$0xff]
      %v826 = vld [vmem:[%s1 + $0x218] sm:$0xff]
      %v827 = vld [vmem:[%s1 + $0x220] sm:$0xff]
      %v828 = vld [vmem:[%s1 + $0x228] sm:$0xff]
      %v829 = vld [vmem:[%s1 + $0x230] sm:$0xff]
      %v830 = vld [vmem:[%s1 + $0x238] sm:$0xff]
      %v831 = vld [vmem:[%s1 + $0x240] sm:$0xff]
      %v832 = vld [vmem:[%s1 + $0x248] sm:$0xff]
      %v833 = vld [vmem:[%s1 + $0x250] sm:$0xff]
      %v834 = vld [vmem:[%s1 + $0x258] sm:$0xff]
      %v835 = vld [vmem:[%s1 + $0x260] sm:$0xff]
      %v836 = vld [vmem:[%s1 + $0x268] sm:$0xff]
      %v837 = vld [vmem:[%s1 + $0x270] sm:$0xff]
      %v838 = vld [vmem:[%s1 + $0x278] sm:$0xff]
      %v839 = vld [vmem:[%s1 + $0x280] sm:$0xff]
      %v840 = vld [vmem:[%s1 + $0x288] sm:$0xff]
      %v841 = vld [vmem:[%s1 + $0x290] sm:$0xff]
      %v842 = vld [vmem:[%s1 + $0x298] sm:$0xff]
      %v843 = vld [vmem:[%s1 + $0x2a0] sm:$0xff]
      %v844 = vld [vmem:[%s1 + $0x2a8] sm:$0xff]
      %v845 = vld [vmem:[%s1 + $0x2b0] sm:$0xff]
      %v846 = vld [vmem:[%s1 + $0x2b8] sm:$0xff]
      %v847 = vld [vmem:[%s1 + $0x2c0] sm:$0xff]
      %v848 = vld [vmem:[%s1 + $0x2c8] sm:$0xff]
      %v849 = vld [vmem:[%s1 + $0x2d0] sm:$0xff]
      %v850 = vld [vmem:[%s1 + $0x2d8] sm:$0xff]
      %v851 = vld [vmem:[%s1 + $0x2e0] sm:$0xff]
      %v852 = vld [vmem:[%s1 + $0x2e8] sm:$0xff]
      %v853 = vld [vmem:[%s1 + $0x2f0] sm:$0xff]
      %v854 = vld [vmem:[%s1 + $0x2f8] sm:$0xff]
      %v855 = vld [vmem:[%s1 + $0x300] sm:$0xff]
      %v856 = vld [vmem:[%s1 + $0x308] sm:$0xff]
      %v857 = vld [vmem:[%s1 + $0x310] sm:$0xff]
      %v858 = vld [vmem:[%s1 + $0x318] sm:$0xff]
      %v859 = vld [vmem:[%s1 + $0x320] sm:$0xff]
      %v860 = vld [vmem:[%s1 + $0x328] sm:$0xff]
      %v861 = vld [vmem:[%s1 + $0x330] sm:$0xff]
      %v862 = vld [vmem:[%s1 + $0x338] sm:$0xff]
      %v863 = vld [vmem:[%s1 + $0x340] sm:$0xff]
      %v864 = vld [vmem:[%s1 + $0x348] sm:$0xff]
      %v865 = vld [vmem:[%s1 + $0x350] sm:$0xff]
      %v866 = vld [vmem:[%s1 + $0x358] sm:$0xff]
      %v867 = vld [vmem:[%s1 + $0x360] sm:$0xff]
      %v868 = vld [vmem:[%s1 + $0x368] sm:$0xff]
      %v869 = vld [vmem:[%s1 + $0x370] sm:$0xff]
      %v870 = vld [vmem:[%s1 + $0x378] sm:$0xff]
      %v871 = vld [vmem:[%s1 + $0x380] sm:$0xff]
      %v872 = vld [vmem:[%s1 + $0x388] sm:$0xff]
      %v873 = vld [vmem:[%s1 + $0x390] sm:$0xff]
      %v874 = vld [vmem:[%s1 + $0x398] sm:$0xff]
      %v875 = vld [vmem:[%s1 + $0x3a0] sm:$0xff]
      %v876 = vld [vmem:[%s1 + $0x3a8] sm:$0xff]
      %v877 = vld [vmem:[%s1 + $0x3b0] sm:$0xff]
      %v878 = vld [vmem:[%s1 + $0x3b8] sm:$0xff]
      %v879 = vld [vmem:[%s1 + $0x3c0] sm:$0xff]
      %v880 = vld [vmem:[%s1 + $0x3c8] sm:$0xff]
      %v881 = vld [vmem:[%s1 + $0x3d0] sm:$0xff]
      %v882 = vld [vmem:[%s1 + $0x3d8] sm:$0xff]
      %v883 = vld [vmem:[%s1 + $0x3e0] sm:$0xff]
      %v884 = vld [vmem:[%s1 + $0x3e8] sm:$0xff]
      %v885 = vld [vmem:[%s1 + $0x3f0] sm:$0xff]
      %v886 = vld [vmem:[%s1 + $0x3f8] sm:$0xff]
      %v887 = vld [vmem:[%s1 + $0x400] sm:$0xff]
      %v888 = vld [vmem:[%s1 + $0x408] sm:$0xff]
      %v889 = vld [vmem:[%s1 + $0x410] sm:$0xff]
      %v890 = vld [vmem:[%s1 + $0x418] sm:$0xff]
      %v891 = vld [vmem:[%s1 + $0x420] sm:$0xff]
      %v892 = vld [vmem:[%s1 + $0x428] sm:$0xff]
      %v893 = vld [vmem:[%s1 + $0x430] sm:$0xff]
      %v894 = vld [vmem:[%s1 + $0x438] sm:$0xff]
      %v895 = vld [vmem:[%s1 + $0x440] sm:$0xff]
      %v896 = vld [vmem:[%s1 + $0x448] sm:$0xff]
      %v897 = vld [vmem:[%s1 + $0x450] sm:$0xff]
      %v898 = vld [vmem:[%s1 + $0x458] sm:$0xff]
      %v899 = vld [vmem:[%s1 + $0x460] sm:$0xff]
      %v900 = vld [vmem:[%s1 + $0x468] sm:$0xff]
      %v901 = vld [vmem:[%s1 + $0x470] sm:$0xff]
      %v902 = vld [vmem:[%s1 + $0x478] sm:$0xff]
      %v903 = vld [vmem:[%s1 + $0x480] sm:$0xff]
      %v904 = vld [vmem:[%s1 + $0x488] sm:$0xff]
      %v905 = vld [vmem:[%s1 + $0x490] sm:$0xff]
      %v906 = vld [vmem:[%s1 + $0x498] sm:$0xff]
      %v907 = vld [vmem:[%s1 + $0x4a0] sm:$0xff]
      %v908 = vld [vmem:[%s1 + $0x4a8] sm:$0xff]
      %v909 = vld [vmem:[%s1 + $0x4b0] sm:$0xff]
      %v910 = vld [vmem:[%s1 + $0x4b8] sm:$0xff]
      %v911 = vld [vmem:[%s1 + $0x4c0] sm:$0xff]
      %v912 = vld [vmem:[%s1 + $0x4c8] sm:$0xff]
      %v913 = vld [vmem:[%s1 + $0x4d0] sm:$0xff]
      %v914 = vld [vmem:[%s1 + $0x4d8] sm:$0xff]
      %v915 = vld [vmem:[%s1 + $0x4e0] sm:$0xff]
      %v916 = vld [vmem:[%s1 + $0x4e8] sm:$0xff]
      %v917 = vld [vmem:[%s1 + $0x4f0] sm:$0xff]
      %v918 = vld [vmem:[%s1 + $0x4f8] sm:$0xff]
      %v919 = vld [vmem:[%s1 + $0x500] sm:$0xff]
      %v920 = vld [vmem:[%s1 + $0x508] sm:$0xff]
      %v921 = vld [vmem:[%s1 + $0x510] sm:$0xff]
      %v922 = vld [vmem:[%s1 + $0x518] sm:$0xff]
      %v923 = vld [vmem:[%s1 + $0x520] sm:$0xff]
      %v924 = vld [vmem:[%s1 + $0x528] sm:$0xff]
      %v925 = vld [vmem:[%s1 + $0x530] sm:$0xff]
      %v926 = vld [vmem:[%s1 + $0x538] sm:$0xff]
      %v927 = vld [vmem:[%s1 + $0x540] sm:$0xff]
      %v928 = vld [vmem:[%s1 + $0x548] sm:$0xff]
      %v929 = vld [vmem:[%s1 + $0x550] sm:$0xff]
      %v930 = vld [vmem:[%s1 + $0x558] sm:$0xff]
      %v931 = vld [vmem:[%s1 + $0x560] sm:$0xff]
      %v932 = vld [vmem:[%s1 + $0x568] sm:$0xff]
      %v933 = vld [vmem:[%s1 + $0x570] sm:$0xff]
      %v934 = vld [vmem:[%s1 + $0x578] sm:$0xff]
      %v935 = vld [vmem:[%s1 + $0x580] sm:$0xff]
      %v936 = vld [vmem:[%s1 + $0x588] sm:$0xff]
      %v937 = vld [vmem:[%s1 + $0x590] sm:$0xff]
      %v938 = vld [vmem:[%s1 + $0x598] sm:$0xff]
      %v939 = vld [vmem:[%s1 + $0x5a0] sm:$0xff]
      %v940 = vld [vmem:[%s1 + $0x5a8] sm:$0xff]
      %v941 = vld [vmem:[%s1 + $0x5b0] sm:$0xff]
      %v942 = vld [vmem:[%s1 + $0x5b8] sm:$0xff]
      %v943 = vld [vmem:[%s1 + $0x5c0] sm:$0xff]
      %v944 = vld [vmem:[%s1 + $0x5c8] sm:$0xff]
      %v945 = vld [vmem:[%s1 + $0x5d0] sm:$0xff]
      %v946 = vld [vmem:[%s1 + $0x5d8] sm:$0xff]
      %v947 = vld [vmem:[%s1 + $0x5e0] sm:$0xff]
      %v948 = vld [vmem:[%s1 + $0x5e8] sm:$0xff]
      %v949 = vld [vmem:[%s1 + $0x5f0] sm:$0xff]
      %v950 = vld [vmem:[%s1 + $0x5f8] sm:$0xff]
      %v951 = vld [vmem:[%s1 + $0x600] sm:$0xff]
      %v952 = vld [vmem:[%s1 + $0x608] sm:$0xff]
      %v953 = vld [vmem:[%s1 + $0x610] sm:$0xff]
      %v954 = vld [vmem:[%s1 + $0x618] sm:$0xff]
      %v955 = vld [vmem:[%s4] sm:$0x1]
      %v956 = vperm.slane %v955, 0
      %961 = vst [vmem:[#allocation1] ss:$4 sm:$0xff] %v755
      %s962 = scalar_lea.vmem [#allocation1], 32
      %963 = vst [vmem:[%s962] ss:$4 sm:$0xff] %v756
      %v964 = vld.sshfl [vmem:[#allocation1] sm:$0xff pattern:$0x73625140]
      %v965 = vld.sshfl [vmem:[#allocation1 + $0x8] sm:$0xff pattern:$0x73625140]
      %v966 = vld.sshfl [vmem:[#allocation1 + $0x10] sm:$0xff pattern:$0x73625140]
      %v967 = vld.sshfl [vmem:[#allocation1 + $0x18] sm:$0xff pattern:$0x73625140]
      %v968 = vld.sshfl [vmem:[#allocation1 + $0x20] sm:$0xff pattern:$0x73625140]
      %v969 = vld.sshfl [vmem:[#allocation1 + $0x28] sm:$0xff pattern:$0x73625140]
      %v970 = vld.sshfl [vmem:[#allocation1 + $0x30] sm:$0xff pattern:$0x73625140]
      %v971 = vld.sshfl [vmem:[#allocation1 + $0x38] sm:$0xff pattern:$0x73625140]
      %972 = vst [vmem:[#allocation1] ss:$4 sm:$0xff] %v757
      %973 = vst [vmem:[%s962] ss:$4 sm:$0xff] %v758
      %v974 = vld.sshfl [vmem:[#allocation1] sm:$0xff pattern:$0x73625140]
      %v975 = vld.sshfl [vmem:[#allocation1 + $0x8] sm:$0xff pattern:$0x73625140]
      %v976 = vld.sshfl [vmem:[#allocation1 + $0x10] sm:$0xff pattern:$0x73625140]
      %v977 = vld.sshfl [vmem:[#allocation1 + $0x18] sm:$0xff pattern:$0x73625140]
      %v978 = vld.sshfl [vmem:[#allocation1 + $0x20] sm:$0xff pattern:$0x73625140]
      %v991 = vsel %vm462, %v978, 0
      %993 = vmatpush.msra.mxu0 %v774
      %994 = vmatpush.msra.mxu0 %v773
      %995 = vmatpush.msra.mxu0 %v772
      %996 = vmatpush.msra.mxu0 %v771
      %997 = vmatpush.msra.mxu0 %v770
      %998 = vmatpush.msra.mxu0 %v769
      %999 = vmatpush.msra.mxu0 %v768
      %1000 = vmatpush.msra.mxu0 %v767
      %1001 = vmatpush.msra.mxu0 %v766
      %1002 = vmatpush.msra.mxu0 %v765
      %1003 = vmatpush.msra.mxu0 %v764
      %1004 = vmatpush.msra.mxu0 %v763
      %1005 = vmatpush.msra.mxu0 %v762
      %1006 = vmatpush.msra.mxu0 %v761
      %1007 = vmatpush.msra.mxu0 %v760
      %1008 = vmatpush.msra.mxu0 %v759
      %1009 = vmatmul.f32.gmra.mxu0 %v964
      %v1010 = vpop.f32.mrf.mxu0
      %v1011 = vadd.f32 %v956, %v1010
      %1012 = vdwg.mxu0
      %1013 = vmatpush.msra.mxu0 %v790
      %1014 = vmatpush.msra.mxu0 %v789
      %1015 = vmatpush.msra.mxu0 %v788
      %1016 = vmatpush.msra.mxu0 %v787
      %1017 = vmatpush.msra.mxu0 %v786
      %1018 = vmatpush.msra.mxu0 %v785
      %1019 = vmatpush.msra.mxu0 %v784
      %1020 = vmatpush.msra.mxu0 %v783
      %1021 = vmatpush.msra.mxu0 %v782
      %1022 = vmatpush.msra.mxu0 %v781
      %1023 = vmatpush.msra.mxu0 %v780
      %1024 = vmatpush.msra.mxu0 %v779
      %1025 = vmatpush.msra.mxu0 %v778
      %1026 = vmatpush.msra.mxu0 %v777
      %1027 = vmatpush.msra.mxu0 %v776
      %1028 = vmatpush.msra.mxu0 %v775
      %1029 = vmatmul.f32.gmra.mxu0 %v965
      %v1030 = vpop.f32.mrf.mxu0
      %v1031 = vadd.f32 %v1011, %v1030
      %1032 = vdwg.mxu0
      %1033 = vmatpush.msra.mxu0 %v806
      %1034 = vmatpush.msra.mxu0 %v805
      %1035 = vmatpush.msra.mxu0 %v804
      %1036 = vmatpush.msra.mxu0 %v803
      %1037 = vmatpush.msra.mxu0 %v802
      %1038 = vmatpush.msra.mxu0 %v801
      %1039 = vmatpush.msra.mxu0 %v800
      %1040 = vmatpush.msra.mxu0 %v799
      %1041 = vmatpush.msra.mxu0 %v798
      %1042 = vmatpush.msra.mxu0 %v797
      %1043 = vmatpush.msra.mxu0 %v796
      %1044 = vmatpush.msra.mxu0 %v795
      %1045 = vmatpush.msra.mxu0 %v794
      %1046 = vmatpush.msra.mxu0 %v793
      %1047 = vmatpush.msra.mxu0 %v792
      %1048 = vmatpush.msra.mxu0 %v791
      %1049 = vmatmul.f32.gmra.mxu0 %v966
      %v1050 = vpop.f32.mrf.mxu0
      %v1051 = vadd.f32 %v1031, %v1050
      %1052 = vdwg.mxu0
      %1053 = vmatpush.msra.mxu0 %v822
      %1054 = vmatpush.msra.mxu0 %v821
      %1055 = vmatpush.msra.mxu0 %v820
      %1056 = vmatpush.msra.mxu0 %v819
      %1057 = vmatpush.msra.mxu0 %v818
      %1058 = vmatpush.msra.mxu0 %v817
      %1059 = vmatpush.msra.mxu0 %v816
      %1060 = vmatpush.msra.mxu0 %v815
      %1061 = vmatpush.msra.mxu0 %v814
      %1062 = vmatpush.msra.mxu0 %v813
      %1063 = vmatpush.msra.mxu0 %v812
      %1064 = vmatpush.msra.mxu0 %v811
      %1065 = vmatpush.msra.mxu0 %v810
      %1066 = vmatpush.msra.mxu0 %v809
      %1067 = vmatpush.msra.mxu0 %v808
      %1068 = vmatpush.msra.mxu0 %v807
      %1069 = vmatmul.f32.gmra.mxu0 %v967
      %v1070 = vpop.f32.mrf.mxu0
      %v1071 = vadd.f32 %v1051, %v1070
      %1072 = vdwg.mxu0
      %1073 = vmatpush.msra.mxu0 %v838
      %1074 = vmatpush.msra.mxu0 %v837
      %1075 = vmatpush.msra.mxu0 %v836
      %1076 = vmatpush.msra.mxu0 %v835
      %1077 = vmatpush.msra.mxu0 %v834
      %1078 = vmatpush.msra.mxu0 %v833
      %1079 = vmatpush.msra.mxu0 %v832
      %1080 = vmatpush.msra.mxu0 %v831
      %1081 = vmatpush.msra.mxu0 %v830
      %1082 = vmatpush.msra.mxu0 %v829
      %1083 = vmatpush.msra.mxu0 %v828
      %1084 = vmatpush.msra.mxu0 %v827
      %1085 = vmatpush.msra.mxu0 %v826
      %1086 = vmatpush.msra.mxu0 %v825
      %1087 = vmatpush.msra.mxu0 %v824
      %1088 = vmatpush.msra.mxu0 %v823
      %1089 = vmatmul.f32.gmra.mxu0 %v968
      %v1090 = vpop.f32.mrf.mxu0
      %v1091 = vadd.f32 %v1071, %v1090
      %1092 = vdwg.mxu0
      %1093 = vmatpush.msra.mxu0 %v854
      %1094 = vmatpush.msra.mxu0 %v853
      %1095 = vmatpush.msra.mxu0 %v852
      %1096 = vmatpush.msra.mxu0 %v851
      %1097 = vmatpush.msra.mxu0 %v850
      %1098 = vmatpush.msra.mxu0 %v849
      %1099 = vmatpush.msra.mxu0 %v848
      %1100 = vmatpush.msra.mxu0 %v847
      %1101 = vmatpush.msra.mxu0 %v846
      %1102 = vmatpush.msra.mxu0 %v845
      %1103 = vmatpush.msra.mxu0 %v844
      %1104 = vmatpush.msra.mxu0 %v843
      %1105 = vmatpush.msra.mxu0 %v842
      %1106 = vmatpush.msra.mxu0 %v841
      %1107 = vmatpush.msra.mxu0 %v840
      %1108 = vmatpush.msra.mxu0 %v839
      %1109 = vmatmul.f32.gmra.mxu0 %v969
      %v1110 = vpop.f32.mrf.mxu0
      %v1111 = vadd.f32 %v1091, %v1110
      %1112 = vdwg.mxu0
      %1113 = vmatpush.msra.mxu0 %v870
      %1114 = vmatpush.msra.mxu0 %v869
      %1115 = vmatpush.msra.mxu0 %v868
      %1116 = vmatpush.msra.mxu0 %v867
      %1117 = vmatpush.msra.mxu0 %v866
      %1118 = vmatpush.msra.mxu0 %v865
      %1119 = vmatpush.msra.mxu0 %v864
      %1120 = vmatpush.msra.mxu0 %v863
      %1121 = vmatpush.msra.mxu0 %v862
      %1122 = vmatpush.msra.mxu0 %v861
      %1123 = vmatpush.msra.mxu0 %v860
      %1124 = vmatpush.msra.mxu0 %v859
      %1125 = vmatpush.msra.mxu0 %v858
      %1126 = vmatpush.msra.mxu0 %v857
      %1127 = vmatpush.msra.mxu0 %v856
      %1128 = vmatpush.msra.mxu0 %v855
      %1129 = vmatmul.f32.gmra.mxu0 %v970
      %v1130 = vpop.f32.mrf.mxu0
      %v1131 = vadd.f32 %v1111, %v1130
      %1132 = vdwg.mxu0
      %1133 = vmatpush.msra.mxu0 %v886
      %1134 = vmatpush.msra.mxu0 %v885
      %1135 = vmatpush.msra.mxu0 %v884
      %1136 = vmatpush.msra.mxu0 %v883
      %1137 = vmatpush.msra.mxu0 %v882
      %1138 = vmatpush.msra.mxu0 %v881
      %1139 = vmatpush.msra.mxu0 %v880
      %1140 = vmatpush.msra.mxu0 %v879
      %1141 = vmatpush.msra.mxu0 %v878
      %1142 = vmatpush.msra.mxu0 %v877
      %1143 = vmatpush.msra.mxu0 %v876
      %1144 = vmatpush.msra.mxu0 %v875
      %1145 = vmatpush.msra.mxu0 %v874
      %1146 = vmatpush.msra.mxu0 %v873
      %1147 = vmatpush.msra.mxu0 %v872
      %1148 = vmatpush.msra.mxu0 %v871
      %1149 = vmatmul.f32.gmra.mxu0 %v971
      %v1150 = vpop.f32.mrf.mxu0
      %v1151 = vadd.f32 %v1131, %v1150
      %1152 = vdwg.mxu0
      %1153 = vmatpush.msra.mxu0 %v902
      %1154 = vmatpush.msra.mxu0 %v901
      %1155 = vmatpush.msra.mxu0 %v900
      %1156 = vmatpush.msra.mxu0 %v899
      %1157 = vmatpush.msra.mxu0 %v898
      %1158 = vmatpush.msra.mxu0 %v897
      %1159 = vmatpush.msra.mxu0 %v896
      %1160 = vmatpush.msra.mxu0 %v895
      %1161 = vmatpush.msra.mxu0 %v894
      %1162 = vmatpush.msra.mxu0 %v893
      %1163 = vmatpush.msra.mxu0 %v892
      %1164 = vmatpush.msra.mxu0 %v891
      %1165 = vmatpush.msra.mxu0 %v890
      %1166 = vmatpush.msra.mxu0 %v889
      %1167 = vmatpush.msra.mxu0 %v888
      %1168 = vmatpush.msra.mxu0 %v887
      %1169 = vmatmul.f32.gmra.mxu0 %v974
      %v1170 = vpop.f32.mrf.mxu0
      %v1171 = vadd.f32 %v1151, %v1170
      %1172 = vdwg.mxu0
      %1173 = vmatpush.msra.mxu0 %v918
      %1174 = vmatpush.msra.mxu0 %v917
      %1175 = vmatpush.msra.mxu0 %v916
      %1176 = vmatpush.msra.mxu0 %v915
      %1177 = vmatpush.msra.mxu0 %v914
      %1178 = vmatpush.msra.mxu0 %v913
      %1179 = vmatpush.msra.mxu0 %v912
      %1180 = vmatpush.msra.mxu0 %v911
      %1181 = vmatpush.msra.mxu0 %v910
      %1182 = vmatpush.msra.mxu0 %v909
      %1183 = vmatpush.msra.mxu0 %v908
      %1184 = vmatpush.msra.mxu0 %v907
      %1185 = vmatpush.msra.mxu0 %v906
      %1186 = vmatpush.msra.mxu0 %v905
      %1187 = vmatpush.msra.mxu0 %v904
      %1188 = vmatpush.msra.mxu0 %v903
      %1189 = vmatmul.f32.gmra.mxu0 %v975
      %v1190 = vpop.f32.mrf.mxu0
      %v1191 = vadd.f32 %v1171, %v1190
      %1192 = vdwg.mxu0
      %1193 = vmatpush.msra.mxu0 %v934
      %1194 = vmatpush.msra.mxu0 %v933
      %1195 = vmatpush.msra.mxu0 %v932
      %1196 = vmatpush.msra.mxu0 %v931
      %1197 = vmatpush.msra.mxu0 %v930
      %1198 = vmatpush.msra.mxu0 %v929
      %1199 = vmatpush.msra.mxu0 %v928
      %1200 = vmatpush.msra.mxu0 %v927
      %1201 = vmatpush.msra.mxu0 %v926
      %1202 = vmatpush.msra.mxu0 %v925
      %1203 = vmatpush.msra.mxu0 %v924
      %1204 = vmatpush.msra.mxu0 %v923
      %1205 = vmatpush.msra.mxu0 %v922
      %1206 = vmatpush.msra.mxu0 %v921
      %1207 = vmatpush.msra.mxu0 %v920
      %1208 = vmatpush.msra.mxu0 %v919
      %1209 = vmatmul.f32.gmra.mxu0 %v976
      %v1210 = vpop.f32.mrf.mxu0
      %v1211 = vadd.f32 %v1191, %v1210
      %1212 = vdwg.mxu0
      %1213 = vmatpush.msra.mxu0 %v950
      %1214 = vmatpush.msra.mxu0 %v949
      %1215 = vmatpush.msra.mxu0 %v948
      %1216 = vmatpush.msra.mxu0 %v947
      %1217 = vmatpush.msra.mxu0 %v946
      %1218 = vmatpush.msra.mxu0 %v945
      %1219 = vmatpush.msra.mxu0 %v944
      %1220 = vmatpush.msra.mxu0 %v943
      %1221 = vmatpush.msra.mxu0 %v942
      %1222 = vmatpush.msra.mxu0 %v941
      %1223 = vmatpush.msra.mxu0 %v940
      %1224 = vmatpush.msra.mxu0 %v939
      %1225 = vmatpush.msra.mxu0 %v938
      %1226 = vmatpush.msra.mxu0 %v937
      %1227 = vmatpush.msra.mxu0 %v936
      %1228 = vmatpush.msra.mxu0 %v935
      %1229 = vmatmul.f32.gmra.mxu0 %v977
      %v1230 = vpop.f32.mrf.mxu0
      %v1231 = vadd.f32 %v1211, %v1230
      %1232 = vdwg.mxu0
      %1233 = vmatpush.msra.mxu0 0.0
      %1234 = vmatpush.msra.mxu0 0.0
      %1235 = vmatpush.msra.mxu0 0.0
      %1236 = vmatpush.msra.mxu0 0.0
      %1237 = vmatpush.msra.mxu0 0.0
      %1238 = vmatpush.msra.mxu0 0.0
      %1239 = vmatpush.msra.mxu0 0.0
      %1240 = vmatpush.msra.mxu0 0.0
      %1241 = vmatpush.msra.mxu0 0.0
      %1242 = vmatpush.msra.mxu0 0.0
      %1243 = vmatpush.msra.mxu0 0.0
      %1244 = vmatpush.msra.mxu0 0.0
      %1245 = vmatpush.msra.mxu0 %v954
      %1246 = vmatpush.msra.mxu0 %v953
      %1247 = vmatpush.msra.mxu0 %v952
      %1248 = vmatpush.msra.mxu0 %v951
      %1249 = vmatmul.f32.gmra.mxu0 %v991
      %v1250 = vpop.f32.mrf.mxu0
      %v1251 = vadd.f32 %v1231, %v1250
      %1252 = vdwg.mxu0
      %v1253 = vsub.f32 0.0, %v1251
      %v1254 = vmul.f32 %v1253, 1.442695
      %v1255 = vpow.pop %v1254
      %v1256 = vadd.f32 %v1255, 1.0
      %v1257 = vrcp.pop %v1256
      %v1258 = vmul.f32 %v1256, %v1257
      %v1259 = vsub.f32 1.0, %v1258
      %v1260 = vmul.f32 %v1257, %v1259
      %v1261 = vadd.f32 %v1257, %v1260
      %vm1262 = vweird.f32 %v1256
      %vm1263 = vweird.f32 %v1257
      %vm1264 = vmor %vm1262, %vm1263
      %v1265 = vsel %vm1264, %v1257, %v1261
      %v1266 = vand.u32 2147483647, %v1256
      %vm1267 = vcmp.eq.f32.partialorder %v1266, 8.507059e+37
      %v1268 = vand.u32 %v1256, 2147483648
      %v1269 = vor.u32 1.1754944e-38, %v1268
      %v1270 = vsel %vm1267, %v1269, %v1265
      %v1271 = vmul.f32 1.0, %v1270
      %v1272 = vmul.f32 %v1251, %v1271
      %v1273 = vld [vmem:[%s4 + $0x1] sm:$0x1]
      %v1274 = vperm.slane %v1273, 0
      %v1275 = vmul.f32 %v1272, %v1274
      %v1276 = vld [vmem:[%s4 + $0x2] sm:$0x1]
      %v1277 = vperm.slane %v1276, 0
      %v1278 = vadd.f32 %v1275, %v1277
      %s1279 = scalar_lea.vmem [#allocation2], 8
      %1280 = vst.msk [vmem:[%s1279 + $0x1] sm:$0x3] %vm752, %v1278
      %v1281 = vld [vmem:[#allocation2] sm:$0x3]
      %v1282 = vld [vmem:[%s2] sm:$0x1]
      %v1283 = vperm.slane %v1282, 0
      %v1284 = vmul.f32 %v1281, %v1283
      %v1285 = vadd.f32 %v1284, 0.0
      %v1286 = vld [vmem:[#allocation2 + $0x1] sm:$0x3]
      %v1287 = vld [vmem:[%s2 + $0x1] sm:$0x1]
      %v1288 = vperm.slane %v1287, 0
      %v1289 = vmul.f32 %v1286, %v1288
      %v1290 = vadd.f32 %v1285, %v1289
      %v1291 = vld [vmem:[#allocation2 + $0x2] sm:$0x3]
      %v1292 = vld [vmem:[%s2 + $0x2] sm:$0x1]
      %v1293 = vperm.slane %v1292, 0
      %v1294 = vmul.f32 %v1291, %v1293
      %v1295 = vadd.f32 %v1290, %v1294
      %v1296 = vld [vmem:[%s751] sm:$0x3]
      %v1297 = vld [vmem:[%s2 + $0x3] sm:$0x1]
      %v1298 = vperm.slane %v1297, 0
      %v1299 = vmul.f32 %v1296, %v1298
      %v1300 = vadd.f32 %v1295, %v1299
      %v1301 = vld [vmem:[%s751 + $0x1] sm:$0x3]
      %v1302 = vld [vmem:[%s2 + $0x4] sm:$0x1]
      %v1303 = vperm.slane %v1302, 0
      %v1304 = vmul.f32 %v1301, %v1303
      %v1305 = vadd.f32 %v1300, %v1304
      %v1306 = vld [vmem:[%s751 + $0x2] sm:$0x3]
      %v1307 = vld [vmem:[%s2 + $0x5] sm:$0x1]
      %v1308 = vperm.slane %v1307, 0
      %v1309 = vmul.f32 %v1306, %v1308
      %v1310 = vadd.f32 %v1305, %v1309
      %v1311 = vld [vmem:[%s1279] sm:$0x3]
      %v1312 = vld [vmem:[%s2 + $0x6] sm:$0x1]
      %v1313 = vperm.slane %v1312, 0
      %v1314 = vmul.f32 %v1311, %v1313
      %v1315 = vadd.f32 %v1310, %v1314
      %v1316 = vld [vmem:[%s1279 + $0x1] sm:$0x3]
      %v1317 = vld [vmem:[%s2 + $0x7] sm:$0x1]
      %v1318 = vperm.slane %v1317, 0
      %v1319 = vmul.f32 %v1316, %v1318
      %v1320 = vadd.f32 %v1315, %v1319
      %v1321 = vld [vmem:[%s1279 + $0x2] sm:$0x3]
      %v1322 = vld [vmem:[%s2 + $0x8] sm:$0x1]
      %v1323 = vperm.slane %v1322, 0
      %v1324 = vmul.f32 %v1321, %v1323
      %v1325 = vadd.f32 %v1320, %v1324
      %v1326 = vld [vmem:[%s4 + $0x3] sm:$0x1]
      %v1327 = vperm.slane %v1326, 0
      %v1328 = vadd.f32 %v1325, %v1327
      %v1329 = vsub.f32 0.0, %v1328
      %v1330 = vmul.f32 %v1329, 1.442695
      %v1331 = vpow.pop %v1330
      %v1332 = vadd.f32 %v1331, 1.0
      %v1333 = vrcp.pop %v1332
      %v1334 = vmul.f32 %v1332, %v1333
      %v1335 = vsub.f32 1.0, %v1334
      %v1336 = vmul.f32 %v1333, %v1335
      %v1337 = vadd.f32 %v1333, %v1336
      %vm1338 = vweird.f32 %v1332
      %vm1339 = vweird.f32 %v1333
      %vm1340 = vmor %vm1338, %vm1339
      %v1341 = vsel %vm1340, %v1333, %v1337
      %v1342 = vand.u32 2147483647, %v1332
      %vm1343 = vcmp.eq.f32.partialorder %v1342, 8.507059e+37
      %v1344 = vand.u32 %v1332, 2147483648
      %v1345 = vor.u32 1.1754944e-38, %v1344
      %v1346 = vsel %vm1343, %v1345, %v1341
      %v1347 = vmul.f32 1.0, %v1346
      %v1348 = vmul.f32 %v1328, %v1347
      %v1349 = vld [vmem:[%s4 + $0x4] sm:$0x1]
      %v1350 = vperm.slane %v1349, 0
      %v1351 = vmul.f32 %v1348, %v1350
      %v1352 = vld [vmem:[%s4 + $0x5] sm:$0x1]
      %v1353 = vperm.slane %v1352, 0
      %v1354 = vadd.f32 %v1351, %v1353
      %v1355 = vadd.f32 %v1354, %v1301
      %v1356 = vld [vmem:[%s3] sm:$0xff]
      %v1357 = vld [vmem:[%s3 + $0x8] sm:$0xff]
      %v1358 = vld [vmem:[%s3 + $0x10] sm:$0xff]
      %v1359 = vld [vmem:[%s3 + $0x18] sm:$0xff]
      %v1360 = vld [vmem:[%s4 + $0x6] sm:$0x1]
      %v1361 = vperm.slane %v1360, 0
      %v1363 = vsel %vm462, %v1355, 0
      %1365 = vmatpush.msra.mxu0 0.0
      %1366 = vmatpush.msra.mxu0 0.0
      %1367 = vmatpush.msra.mxu0 0.0
      %1368 = vmatpush.msra.mxu0 0.0
      %1369 = vmatpush.msra.mxu0 0.0
      %1370 = vmatpush.msra.mxu0 0.0
      %1371 = vmatpush.msra.mxu0 0.0
      %1372 = vmatpush.msra.mxu0 0.0
      %1373 = vmatpush.msra.mxu0 0.0
      %1374 = vmatpush.msra.mxu0 0.0
      %1375 = vmatpush.msra.mxu0 0.0
      %1376 = vmatpush.msra.mxu0 0.0
      %1377 = vmatpush.msra.mxu0 %v1359
      %1378 = vmatpush.msra.mxu0 %v1358
      %1379 = vmatpush.msra.mxu0 %v1357
      %1380 = vmatpush.msra.mxu0 %v1356
      %1381 = vmatmul.f32.gmra.mxu0 %v1363
      %v1382 = vpop.f32.mrf.mxu0
      %v1383 = vadd.f32 %v1361, %v1382
      %1384 = vdwg.mxu0
      %v1385 = vsub.f32 0.0, %v1383
      %v1386 = vmul.f32 %v1385, 1.442695
      %v1387 = vpow.pop %v1386
      %v1388 = vadd.f32 %v1387, 1.0
      %v1389 = vrcp.pop %v1388
      %v1390 = vmul.f32 %v1388, %v1389
      %v1391 = vsub.f32 1.0, %v1390
      %v1392 = vmul.f32 %v1389, %v1391
      %v1393 = vadd.f32 %v1389, %v1392
      %vm1394 = vweird.f32 %v1388
      %vm1395 = vweird.f32 %v1389
      %vm1396 = vmor %vm1394, %vm1395
      %v1397 = vsel %vm1396, %v1389, %v1393
      %v1398 = vand.u32 2147483647, %v1388
      %vm1399 = vcmp.eq.f32.partialorder %v1398, 8.507059e+37
      %v1400 = vand.u32 %v1388, 2147483648
      %v1401 = vor.u32 1.1754944e-38, %v1400
      %v1402 = vsel %vm1399, %v1401, %v1397
      %v1403 = vmul.f32 1.0, %v1402
      %v1404 = vmul.f32 %v1383, %v1403
      %v1405 = vld [vmem:[%s4 + $0x7] sm:$0x1]
      %v1406 = vperm.slane %v1405, 0
      %v1407 = vmul.f32 %v1404, %v1406
      %v1408 = vld [vmem:[%s4 + $0x8] sm:$0x1]
      %v1409 = vperm.slane %v1408, 0
      %v1410 = vadd.f32 %v1407, %v1409
      %v1411 = vsel %vm752, %v1410, 0.0
      %v1412 = vrot.slane %v1411, 4
      %v1413 = vadd.f32 %v1411, %v1412
      %v1414 = vrot.slane %v1413, 2
      %v1415 = vadd.f32 %v1413, %v1414
      %v1416 = vrot.slane %v1415, 1
      %v1417 = vadd.f32 %v1415, %v1416
      %v1418 = vadd.f32 %v1417, 0.0
      %v1419 = vmul.f32 %v1296, %v1283
      %v1420 = vadd.f32 %v1419, 0.0
      %v1421 = vmul.f32 %v1301, %v1288
      %v1422 = vadd.f32 %v1420, %v1421
      %v1423 = vmul.f32 %v1306, %v1293
      %v1424 = vadd.f32 %v1422, %v1423
      %v1425 = vmul.f32 %v1311, %v1298
      %v1426 = vadd.f32 %v1424, %v1425
      %v1427 = vmul.f32 %v1316, %v1303
      %v1428 = vadd.f32 %v1426, %v1427
      %v1429 = vmul.f32 %v1321, %v1308
      %v1430 = vadd.f32 %v1428, %v1429
      %s1431 = scalar_lea.vmem [#allocation2], 12
      %v1432 = vld [vmem:[%s1431] sm:$0x3]
      %v1433 = vmul.f32 %v1432, %v1313
      %v1434 = vadd.f32 %v1430, %v1433
      %v1435 = vld [vmem:[%s1431 + $0x1] sm:$0x3]
      %v1436 = vmul.f32 %v1435, %v1318
      %v1437 = vadd.f32 %v1434, %v1436
      %v1438 = vld [vmem:[%s1431 + $0x2] sm:$0x3]
      %v1439 = vmul.f32 %v1438, %v1323
      %v1440 = vadd.f32 %v1437, %v1439
      %v1441 = vadd.f32 %v1440, %v1327
      %v1442 = vsub.f32 0.0, %v1441
      %v1443 = vmul.f32 %v1442, 1.442695
      %v1444 = vpow.pop %v1443
      %v1445 = vadd.f32 %v1444, 1.0
      %v1446 = vrcp.pop %v1445
      %v1447 = vmul.f32 %v1445, %v1446
      %v1448 = vsub.f32 1.0, %v1447
      %v1449 = vmul.f32 %v1446, %v1448
      %v1450 = vadd.f32 %v1446, %v1449
      %vm1451 = vweird.f32 %v1445
      %vm1452 = vweird.f32 %v1446
      %vm1453 = vmor %vm1451, %vm1452
      %v1454 = vsel %vm1453, %v1446, %v1450
      %v1455 = vand.u32 2147483647, %v1445
      %vm1456 = vcmp.eq.f32.partialorder %v1455, 8.507059e+37
      %v1457 = vand.u32 %v1445, 2147483648
      %v1458 = vor.u32 1.1754944e-38, %v1457
      %v1459 = vsel %vm1456, %v1458, %v1454
      %v1460 = vmul.f32 1.0, %v1459
      %v1461 = vmul.f32 %v1441, %v1460
      %v1462 = vmul.f32 %v1461, %v1350
      %v1463 = vadd.f32 %v1462, %v1353
      %v1464 = vadd.f32 %v1463, %v1316
      %v1466 = vsel %vm462, %v1464, 0
      %1468 = vmatpush.msra.mxu0 0.0
      %1469 = vmatpush.msra.mxu0 0.0
      %1470 = vmatpush.msra.mxu0 0.0
      %1471 = vmatpush.msra.mxu0 0.0
      %1472 = vmatpush.msra.mxu0 0.0
      %1473 = vmatpush.msra.mxu0 0.0
      %1474 = vmatpush.msra.mxu0 0.0
      %1475 = vmatpush.msra.mxu0 0.0
      %1476 = vmatpush.msra.mxu0 0.0
      %1477 = vmatpush.msra.mxu0 0.0
      %1478 = vmatpush.msra.mxu0 0.0
      %1479 = vmatpush.msra.mxu0 0.0
      %1480 = vmatpush.msra.mxu0 %v1359
      %1481 = vmatpush.msra.mxu0 %v1358
      %1482 = vmatpush.msra.mxu0 %v1357
      %1483 = vmatpush.msra.mxu0 %v1356
      %1484 = vmatmul.f32.gmra.mxu0 %v1466
      %v1485 = vpop.f32.mrf.mxu0
      %v1486 = vadd.f32 %v1361, %v1485
      %1487 = vdwg.mxu0
      %v1488 = vsub.f32 0.0, %v1486
      %v1489 = vmul.f32 %v1488, 1.442695
      %v1490 = vpow.pop %v1489
      %v1491 = vadd.f32 %v1490, 1.0
      %v1492 = vrcp.pop %v1491
      %v1493 = vmul.f32 %v1491, %v1492
      %v1494 = vsub.f32 1.0, %v1493
      %v1495 = vmul.f32 %v1492, %v1494
      %v1496 = vadd.f32 %v1492, %v1495
      %vm1497 = vweird.f32 %v1491
      %vm1498 = vweird.f32 %v1492
      %vm1499 = vmor %vm1497, %vm1498
      %v1500 = vsel %vm1499, %v1492, %v1496
      %v1501 = vand.u32 2147483647, %v1491
      %vm1502 = vcmp.eq.f32.partialorder %v1501, 8.507059e+37
      %v1503 = vand.u32 %v1491, 2147483648
      %v1504 = vor.u32 1.1754944e-38, %v1503
      %v1505 = vsel %vm1502, %v1504, %v1500
      %v1506 = vmul.f32 1.0, %v1505
      %v1507 = vmul.f32 %v1486, %v1506
      %v1508 = vmul.f32 %v1507, %v1406
      %v1509 = vadd.f32 %v1508, %v1409
      %v1510 = vsel %vm752, %v1509, 0.0
      %v1511 = vrot.slane %v1510, 4
      %v1512 = vadd.f32 %v1510, %v1511
      %v1513 = vrot.slane %v1512, 2
      %v1514 = vadd.f32 %v1512, %v1513
      %v1515 = vrot.slane %v1514, 1
      %v1516 = vadd.f32 %v1514, %v1515
      %v1517 = vadd.f32 %v1418, %v1516
      %v1518 = vmul.f32 %v1517, 0.25
      %vm1519 = vcmask 253952
      %1520 = vst.msk [vmem:[%s220] sm:$0x1] %vm1519, %v1518
      %p1521 = scmp.lt.s32.totalorder %s16, 1
      %s1522 = scalar_select %p1521, %s16, 1
      %s1523 = scalar_lea.vmem %s5, %s1522
      // Predicated region
      $region41: #{multi_seam_forward.6} parent=39 // pred_check
        %p1524 = pneg %p144
      $region42: #{multi_seam_forward.6} parent=39 // pred_check_branch
        %1526 = sbr.rel (%p1524) target = $region44
      $region43: #{multi_seam_forward.6} parent=39 // pred_region
        _
      $region44: #{multi_seam_forward.6} parent=39 // pred_fallthru
        _
    $region40: #{multi_seam_forward.6} parent=5 // pred_fallthru
      _
    %p1527 = scmp.le.s32.totalorder 2, %s11
    // Predicated region
    $region45: #{multi_seam_forward.6} parent=5 // pred_check
      %p1528 = pneg %p1527
    $region46: #{multi_seam_forward.6} parent=5 // pred_check_branch
      %1530 = sbr.rel (%p1528) target = $region48
    $region47: #{multi_seam_forward.6} parent=5 // pred_region
      %s1531 = ssub.s32 %s11, 2
      // Predicated region
      $region49: #{multi_seam_forward.6} parent=47 // pred_check
        %p1532 = pneg %p150
      $region50: #{multi_seam_forward.6} parent=47 // pred_check_branch
        %1534 = sbr.rel (%p1532) target = $region52
      $region51: #{multi_seam_forward.6} parent=47 // pred_region
        %p1535 = scmp.lt.s32.totalorder %s17, 1
        %s1536 = scalar_select %p1535, %s17, 1
        %s1537 = scalar_lea.vmem %s5, %s1536
      $region52: #{multi_seam_forward.6} parent=47 // pred_fallthru
        _
    $region48: #{multi_seam_forward.6} parent=5 // pred_fallthru
      _
  $region6: #{multi_seam_forward.6} parent=0 // loop_footer
    %s15 = sadd.s32 1, %s11
  $region7: #{multi_seam_forward.6} parent=0 // loop_footer_branch
    %10 = sbr.rel target = $region3
  $region8: #{multi_seam_forward.6} parent=0 // loop_exit
    _

</llo_original>
